<compile_context>
chip_gen: v7x
topology: tpu7x:2x2x1
jax: 0.10.0
libtpu: 0.0.40
codegen_flags: <defaults>
</compile_context>

<pallas_src>
import math

import jax
import jax.numpy as jnp
from jax import lax
from jax.experimental import pallas as pl
from jax.experimental.pallas import tpu as pltpu

D_MODEL = 60        # fixed by decoder = nn.Linear(60, 10)
NHEAD = 6           # must divide d_model; only used by the reference path
HEAD_DIM = D_MODEL // NHEAD
DIM_FF = 10000      # module default dim_feedforward
SEQ = 1             # forced by .view(1, 10)
BATCH = 1
EPS = 1e-5          # nn.LayerNorm default


def attention_layer_kernel(x_ref, wv_ref, wo_ref, w1_ref, b1_ref, w2_ref,
                           wd_ref, vec_ref, out_ref):
    """Fused encoder-layer + decoder forward for a single (1, 60) token."""
    x = x_ref[...]                                   # (1, E) f32

    bv  = vec_ref[0:1, :]                            # (1, E)
    bo  = vec_ref[1:2, :]
    g1  = vec_ref[2:3, :]
    be1 = vec_ref[3:4, :]
    b2  = vec_ref[4:5, :]
    g2  = vec_ref[5:6, :]
    be2 = vec_ref[6:7, :]
    bd  = vec_ref[7:8, 0:10]                         # (1, 10)

    contract_last = (((1,), (1,)), ((), ()))         # A(m,k) x B(n,k) -> (m,n)

    def layer_norm(z, g, b):
        mu = jnp.mean(z, axis=-1, keepdims=True)
        d = z - mu
        var = jnp.mean(d * d, axis=-1, keepdims=True)
        return d * lax.rsqrt(var + EPS) * g + b

    # ---- self-attention, collapsed for L*N == 1 (softmax over 1 key == 1) ----
    v = jnp.dot(x, wv_ref[...], preferred_element_type=jnp.float32) + bv      # (1, E)
    attn = jnp.dot(v, wo_ref[...], preferred_element_type=jnp.float32) + bo   # (1, E)

    # ---- residual + LayerNorm 1 ----
    src = layer_norm(x + attn, g1, be1)

    # ---- feed-forward: linear2(relu(linear1(src))) ----
    hdn = jnp.dot(src, w1_ref[...], preferred_element_type=jnp.float32) + b1_ref[...]
    hdn = jnp.maximum(hdn, 0.0)                                                # (1, DIM_FF)
    ffn = lax.dot_general(hdn, w2_ref[...], contract_last,
                          preferred_element_type=jnp.float32) + b2            # (1, E)

    # ---- residual + LayerNorm 2 ----
    src = layer_norm(src + ffn, g2, be2)

    # ---- decoder: Linear(60, 10) ----
    out = lax.dot_general(src, wd_ref[...], contract_last,
                          preferred_element_type=jnp.float32) + bd            # (1, 10)
    out_ref[...] = out.astype(out_ref.dtype)


def init_params(key):
    """Deterministic synthetic parameters with PyTorch-native shapes."""
    ks = jax.random.split(key, 10)

    def u(k, shape, fan_in):
        bound = 1.0 / math.sqrt(fan_in)
        return jax.random.uniform(k, shape, jnp.float32, -bound, bound)

    return dict(
        in_proj_weight=u(ks[0], (3 * D_MODEL, D_MODEL), D_MODEL),
        in_proj_bias=u(ks[1], (3 * D_MODEL,), D_MODEL),
        out_proj_weight=u(ks[2], (D_MODEL, D_MODEL), D_MODEL),
        out_proj_bias=u(ks[3], (D_MODEL,), D_MODEL),
        w1=u(ks[4], (DIM_FF, D_MODEL), D_MODEL),      # linear1.weight
        b1=u(ks[5], (DIM_FF,), D_MODEL),
        w2=u(ks[6], (D_MODEL, DIM_FF), DIM_FF),       # linear2.weight
        b2=u(ks[7], (D_MODEL,), DIM_FF),
        g1=jnp.ones((D_MODEL,), jnp.float32),
        be1=jnp.zeros((D_MODEL,), jnp.float32),
        g2=jnp.ones((D_MODEL,), jnp.float32),
        be2=jnp.zeros((D_MODEL,), jnp.float32),
        wd=u(ks[8], (10, D_MODEL), D_MODEL),          # decoder.weight
        bd=u(ks[9], (10,), D_MODEL),
    )


def attention_forward(src, params):
    """src: (L, N, E) with L = N = 1 (seq-first, like nn.MultiheadAttention)."""
    L, N, E = src.shape
    x = src.reshape(L * N, E).astype(jnp.float32)

    W, b = params["in_proj_weight"], params["in_proj_bias"]
    Wv, bv = W[2 * E:], b[2 * E:]                     # V slice of in_proj
    Wo, bo = params["out_proj_weight"], params["out_proj_bias"]

    # Lane-dense 2D weight slabs (large dim on lanes; no tiny minor dims).
    wv = Wv.T                                         # (E, E):       x   @ wv
    wo = Wo.T                                         # (E, E):       v   @ wo
    w1 = params["w1"].T                               # (E, DIM_FF):  src @ w1
    b1 = params["b1"].reshape(1, DIM_FF)
    w2 = params["w2"]                                 # (E, DIM_FF):  hdn @ w2^T
    wd = params["wd"]                                 # (10, E):      src @ wd^T

    # All 1xE vectors (plus the zero-padded decoder bias) in one (8, E) stack.
    bd_pad = jnp.zeros((E,), jnp.float32).at[:10].set(params["bd"])
    vecs = jnp.stack([bv, bo, params["g1"], params["be1"], params["b2"],
                      params["g2"], params["be2"], bd_pad], axis=0)   # (8, E)

    args = (x, wv, wo, w1, b1, w2, wd, vecs)
    out = pl.pallas_call(
        attention_layer_kernel,
        out_shape=jax.ShapeDtypeStruct((L * N, 10), jnp.float32),
        in_specs=[pl.BlockSpec(memory_space=pltpu.MemorySpace.VMEM)
                  for _ in args],
        out_specs=pl.BlockSpec(memory_space=pltpu.MemorySpace.VMEM),
    )(*args)
    return out.reshape(1, 10)


def reference_forward(src, params):
    """Pure-JAX reference with the full MHA/softmax path (PyTorch semantics)."""
    L, N, E = src.shape
    H, Dh = NHEAD, HEAD_DIM
    x = src.reshape(L * N, E)
    W, b = params["in_proj_weight"], params["in_proj_bias"]
    qkv = x @ W.T + b
    q, k, v = qkv[:, :E], qkv[:, E:2 * E], qkv[:, 2 * E:]
    q = q.reshape(L * N, H, Dh) / math.sqrt(Dh)
    k = k.reshape(L * N, H, Dh)
    v = v.reshape(L * N, H, Dh)
    s = jnp.einsum('qhd,khd->hqk', q, k)
    p = jax.nn.softmax(s, axis=-1)
    o = jnp.einsum('hqk,khd->qhd', p, v).reshape(L * N, E)
    attn = o @ params["out_proj_weight"].T + params["out_proj_bias"]

    def ln(z, g, be):
        mu = z.mean(-1, keepdims=True)
        var = ((z - mu) ** 2).mean(-1, keepdims=True)
        return (z - mu) / jnp.sqrt(var + EPS) * g + be

    src1 = ln(x + attn, params["g1"], params["be1"])
    hdn = jax.nn.relu(src1 @ params["w1"].T + params["b1"])
    ffn = hdn @ params["w2"].T + params["b2"]
    src2 = ln(src1 + ffn, params["g2"], params["be2"])
    out = src2 @ params["wd"].T + params["bd"]
    return out.reshape(1, 10)


if __name__ == "__main__":
    key = jax.random.PRNGKey(0)
    pkey, xkey = jax.random.split(key)
    params = init_params(pkey)
    src = jax.random.normal(xkey, (SEQ, BATCH, D_MODEL), jnp.float32)

    out = attention_forward(src, params)
    out = jax.block_until_ready(out)

    ref = reference_forward(src, params)
    assert out.shape == (1, 10)
    assert jnp.allclose(out, ref, atol=5e-4, rtol=5e-4), (out, ref)
    print("KERNEL_OK")
</pallas_src>

<mosaic_0001>
module attributes {stable_mosaic.version = 11 : i64} {
  func.func @attention_layer_kernel(%arg0: memref<1x60xf32, #tpu.memory_space<vmem>>, %arg1: memref<60x60xf32, #tpu.memory_space<vmem>>, %arg2: memref<60x60xf32, #tpu.memory_space<vmem>>, %arg3: memref<60x10000xf32, #tpu.memory_space<vmem>>, %arg4: memref<1x10000xf32, #tpu.memory_space<vmem>>, %arg5: memref<60x10000xf32, #tpu.memory_space<vmem>>, %arg6: memref<10x60xf32, #tpu.memory_space<vmem>>, %arg7: memref<8x60xf32, #tpu.memory_space<vmem>>, %arg8: memref<1x10xf32, #tpu.memory_space<vmem>>) attributes {dimension_semantics = [], scalar_prefetch = 0 : i64, scratch_operands = 0 : i64, tpu.core_type = #tpu.core_type<tc>} {
    %c0 = arith.constant 0 : index
    %c0_0 = arith.constant 0 : index
    %0 = vector.load %arg0[%c0, %c0_0] : memref<1x60xf32, #tpu.memory_space<vmem>>, vector<1x60xf32>
    %c0_1 = arith.constant 0 : index
    %c0_2 = arith.constant 0 : index
    %1 = vector.load %arg7[%c0_1, %c0_2] : memref<8x60xf32, #tpu.memory_space<vmem>>, vector<1x60xf32>
    %c1 = arith.constant 1 : index
    %c0_3 = arith.constant 0 : index
    %2 = vector.load %arg7[%c1, %c0_3] : memref<8x60xf32, #tpu.memory_space<vmem>>, vector<1x60xf32>
    %c2 = arith.constant 2 : index
    %c0_4 = arith.constant 0 : index
    %3 = vector.load %arg7[%c2, %c0_4] : memref<8x60xf32, #tpu.memory_space<vmem>>, vector<1x60xf32>
    %c3 = arith.constant 3 : index
    %c0_5 = arith.constant 0 : index
    %4 = vector.load %arg7[%c3, %c0_5] : memref<8x60xf32, #tpu.memory_space<vmem>>, vector<1x60xf32>
    %c4 = arith.constant 4 : index
    %c0_6 = arith.constant 0 : index
    %5 = vector.load %arg7[%c4, %c0_6] : memref<8x60xf32, #tpu.memory_space<vmem>>, vector<1x60xf32>
    %c5 = arith.constant 5 : index
    %c0_7 = arith.constant 0 : index
    %6 = vector.load %arg7[%c5, %c0_7] : memref<8x60xf32, #tpu.memory_space<vmem>>, vector<1x60xf32>
    %c6 = arith.constant 6 : index
    %c0_8 = arith.constant 0 : index
    %7 = vector.load %arg7[%c6, %c0_8] : memref<8x60xf32, #tpu.memory_space<vmem>>, vector<1x60xf32>
    %c7 = arith.constant 7 : index
    %c0_9 = arith.constant 0 : index
    %8 = vector.load %arg7[%c7, %c0_9] : memref<8x60xf32, #tpu.memory_space<vmem>>, vector<1x10xf32>
    %c0_10 = arith.constant 0 : index
    %c0_11 = arith.constant 0 : index
    %9 = vector.load %arg1[%c0_10, %c0_11] : memref<60x60xf32, #tpu.memory_space<vmem>>, vector<60x60xf32>
    %cst = arith.constant dense<0.000000e+00> : vector<1x60xf32>
    %10 = tpu.matmul %0, %9, %cst {dimension_numbers = #tpu.dot_dimension_numbers<[1], [0], [0], [1], [0, 0, 1, 1], [], []>} : vector<1x60xf32>, vector<60x60xf32>, vector<1x60xf32> -> vector<1x60xf32>
    %11 = arith.addf %10, %1 : vector<1x60xf32>
    %c0_12 = arith.constant 0 : index
    %c0_13 = arith.constant 0 : index
    %12 = vector.load %arg2[%c0_12, %c0_13] : memref<60x60xf32, #tpu.memory_space<vmem>>, vector<60x60xf32>
    %cst_14 = arith.constant dense<0.000000e+00> : vector<1x60xf32>
    %13 = tpu.matmul %11, %12, %cst_14 {dimension_numbers = #tpu.dot_dimension_numbers<[1], [0], [0], [1], [0, 0, 1, 1], [], []>} : vector<1x60xf32>, vector<60x60xf32>, vector<1x60xf32> -> vector<1x60xf32>
    %14 = arith.addf %13, %2 : vector<1x60xf32>
    %15 = arith.addf %0, %14 : vector<1x60xf32>
    %cst_15 = arith.constant dense<0.000000e+00> : vector<1xf32>
    %16 = vector.multi_reduction <add>, %15, %cst_15 [1] : vector<1x60xf32> to vector<1xf32>
    %17 = vector.shape_cast %16 : vector<1xf32> to vector<1x1xf32>
    %cst_16 = arith.constant 6.000000e+01 : f32
    %18 = vector.broadcast %cst_16 : f32 to vector<1x1xf32>
    %19 = arith.divf %17, %18 : vector<1x1xf32>
    %20 = vector.broadcast %19 : vector<1x1xf32> to vector<1x60xf32>
    %21 = arith.subf %15, %20 : vector<1x60xf32>
    %22 = arith.mulf %21, %21 : vector<1x60xf32>
    %cst_17 = arith.constant dense<0.000000e+00> : vector<1xf32>
    %23 = vector.multi_reduction <add>, %22, %cst_17 [1] : vector<1x60xf32> to vector<1xf32>
    %24 = vector.shape_cast %23 : vector<1xf32> to vector<1x1xf32>
    %cst_18 = arith.constant 6.000000e+01 : f32
    %25 = vector.broadcast %cst_18 : f32 to vector<1x1xf32>
    %26 = arith.divf %24, %25 : vector<1x1xf32>
    %cst_19 = arith.constant 9.99999974E-6 : f32
    %27 = vector.broadcast %cst_19 : f32 to vector<1x1xf32>
    %28 = arith.addf %26, %27 : vector<1x1xf32>
    %29 = math.rsqrt %28 : vector<1x1xf32>
    %30 = vector.broadcast %29 : vector<1x1xf32> to vector<1x60xf32>
    %31 = arith.mulf %21, %30 : vector<1x60xf32>
    %32 = arith.mulf %31, %3 : vector<1x60xf32>
    %33 = arith.addf %32, %4 : vector<1x60xf32>
    %c0_20 = arith.constant 0 : index
    %c0_21 = arith.constant 0 : index
    %34 = vector.load %arg3[%c0_20, %c0_21] : memref<60x10000xf32, #tpu.memory_space<vmem>>, vector<60x10000xf32>
    %cst_22 = arith.constant dense<0.000000e+00> : vector<1x10000xf32>
    %35 = tpu.matmul %33, %34, %cst_22 {dimension_numbers = #tpu.dot_dimension_numbers<[1], [0], [0], [1], [0, 0, 1, 1], [], []>} : vector<1x60xf32>, vector<60x10000xf32>, vector<1x10000xf32> -> vector<1x10000xf32>
    %c0_23 = arith.constant 0 : index
    %c0_24 = arith.constant 0 : index
    %36 = vector.load %arg4[%c0_23, %c0_24] : memref<1x10000xf32, #tpu.memory_space<vmem>>, vector<1x10000xf32>
    %37 = arith.addf %35, %36 : vector<1x10000xf32>
    %cst_25 = arith.constant 0.000000e+00 : f32
    %38 = vector.broadcast %cst_25 : f32 to vector<1x10000xf32>
    %39 = arith.maximumf %37, %38 : vector<1x10000xf32>
    %c0_26 = arith.constant 0 : index
    %c0_27 = arith.constant 0 : index
    %40 = vector.load %arg5[%c0_26, %c0_27] : memref<60x10000xf32, #tpu.memory_space<vmem>>, vector<60x10000xf32>
    %cst_28 = arith.constant dense<0.000000e+00> : vector<1x60xf32>
    %41 = tpu.matmul %39, %40, %cst_28 {dimension_numbers = #tpu.dot_dimension_numbers<[1], [1], [0], [0], [0, 0, 1, 0], [], []>} : vector<1x10000xf32>, vector<60x10000xf32>, vector<1x60xf32> -> vector<1x60xf32>
    %42 = arith.addf %41, %5 : vector<1x60xf32>
    %43 = arith.addf %33, %42 : vector<1x60xf32>
    %cst_29 = arith.constant dense<0.000000e+00> : vector<1xf32>
    %44 = vector.multi_reduction <add>, %43, %cst_29 [1] : vector<1x60xf32> to vector<1xf32>
    %45 = vector.shape_cast %44 : vector<1xf32> to vector<1x1xf32>
    %cst_30 = arith.constant 6.000000e+01 : f32
    %46 = vector.broadcast %cst_30 : f32 to vector<1x1xf32>
    %47 = arith.divf %45, %46 : vector<1x1xf32>
    %48 = vector.broadcast %47 : vector<1x1xf32> to vector<1x60xf32>
    %49 = arith.subf %43, %48 : vector<1x60xf32>
    %50 = arith.mulf %49, %49 : vector<1x60xf32>
    %cst_31 = arith.constant dense<0.000000e+00> : vector<1xf32>
    %51 = vector.multi_reduction <add>, %50, %cst_31 [1] : vector<1x60xf32> to vector<1xf32>
    %52 = vector.shape_cast %51 : vector<1xf32> to vector<1x1xf32>
    %cst_32 = arith.constant 6.000000e+01 : f32
    %53 = vector.broadcast %cst_32 : f32 to vector<1x1xf32>
    %54 = arith.divf %52, %53 : vector<1x1xf32>
    %cst_33 = arith.constant 9.99999974E-6 : f32
    %55 = vector.broadcast %cst_33 : f32 to vector<1x1xf32>
    %56 = arith.addf %54, %55 : vector<1x1xf32>
    %57 = math.rsqrt %56 : vector<1x1xf32>
    %58 = vector.broadcast %57 : vector<1x1xf32> to vector<1x60xf32>
    %59 = arith.mulf %49, %58 : vector<1x60xf32>
    %60 = arith.mulf %59, %6 : vector<1x60xf32>
    %61 = arith.addf %60, %7 : vector<1x60xf32>
    %c0_34 = arith.constant 0 : index
    %c0_35 = arith.constant 0 : index
    %62 = vector.load %arg6[%c0_34, %c0_35] : memref<10x60xf32, #tpu.memory_space<vmem>>, vector<10x60xf32>
    %cst_36 = arith.constant dense<0.000000e+00> : vector<1x10xf32>
    %63 = tpu.matmul %61, %62, %cst_36 {dimension_numbers = #tpu.dot_dimension_numbers<[1], [1], [0], [0], [0, 0, 1, 0], [], []>} : vector<1x60xf32>, vector<10x60xf32>, vector<1x10xf32> -> vector<1x10xf32>
    %64 = arith.addf %63, %8 : vector<1x10xf32>
    %c0_37 = arith.constant 0 : index
    %c0_38 = arith.constant 0 : index
    %65 = vector.load %arg8[%c0_37, %c0_38] : memref<1x10xf32, #tpu.memory_space<vmem>>, vector<1x10xf32>
    tpu.vector_store %arg8[%c0_37, %c0_38], %64 {strides = array<i32>} : memref<1x10xf32, #tpu.memory_space<vmem>>, vector<1x10xf32>,
    return
  }
}

</mosaic_0001>

<llo_original>
// kernel: tpu_custom_call.1
$region0: #{tpu_custom_call.1}
  #allocation0 [shape = 'u32[]', space=smem, size = 0x4, offset = 0x4, fixed_abs, tag = 'smem constant byte address 0x4 - core index']
  #allocation1 [shape = 'u32[144,128]{1,0:T(1,128)}', space=vmem, size = 0x12000, scoped, tag = 'internal scratch']
  %s0 = inlined_call_operand.hbm [shape: f32[1,60], index: 0, kind: input, shape index: {}]
  %s1 = inlined_call_operand.hbm [shape: f32[60,60], index: 1, kind: input, shape index: {}]
  %s2 = inlined_call_operand.hbm [shape: f32[60,60], index: 2, kind: input, shape index: {}]
  %s3 = inlined_call_operand.hbm [shape: f32[60,10000], index: 3, kind: input, shape index: {}]
  %s4 = inlined_call_operand.hbm [shape: f32[1,10000], index: 4, kind: input, shape index: {}]
  %s5 = inlined_call_operand.hbm [shape: f32[60,10000], index: 5, kind: input, shape index: {}]
  %s6 = inlined_call_operand.hbm [shape: f32[10,60], index: 6, kind: input, shape index: {}]
  %s7 = inlined_call_operand.hbm [shape: f32[8,60], index: 7, kind: input, shape index: {}]
  %s8 = inlined_call_operand.hbm [shape: f32[1,10], index: 8, kind: output, shape index: {}]
  %s9 = sld [smem:[#allocation0]]
  $region74: #{tpu_custom_call.1} parent=0
    _
  %s11 = ssub.s32 1, %s9
  %s12 = scalar_select 0, %s11, %s9
  $region1: #{tpu_custom_call.1} parent=0
    #allocation2 [shape = 'u8[512]{0}', space=vmem, size = 0x400, scoped, tag = 'input window, operand 0, single buffered']
    #allocation3 [shape = 's32[1]{0}', space=sflag, size = 0x4, scoped, tag = 'scoped memory for tpu_custom_call.1']
    #allocation4 [shape = 's32[1]{0}', space=sflag, size = 0x4, scoped, tag = 'scoped memory for tpu_custom_call.1']
    #allocation5 [shape = 'u8[32768]{0}', space=vmem, size = 0x8000, scoped, tag = 'input window, operand 1, single buffered']
    #allocation6 [shape = 's32[1]{0}', space=sflag, size = 0x4, scoped, tag = 'scoped memory for tpu_custom_call.1']
    #allocation7 [shape = 'u8[32768]{0}', space=vmem, size = 0x8000, scoped, tag = 'input window, operand 2, single buffered']
    #allocation8 [shape = 'u8[2588672]{0}', space=vmem, size = 0x278000, scoped, tag = 'input window, operand 3, single buffered']
    #allocation9 [shape = 's32[1]{0}', space=sflag, size = 0x4, scoped, tag = 'scoped memory for tpu_custom_call.1']
    #allocation10 [shape = 'u8[40448]{0}', space=vmem, size = 0xa000, scoped, tag = 'input window, operand 4, single buffered']
    #allocation11 [shape = 'u8[2588672]{0}', space=vmem, size = 0x278000, scoped, tag = 'input window, operand 5, single buffered']
    #allocation12 [shape = 's32[1]{0}', space=sflag, size = 0x4, scoped, tag = 'scoped memory for tpu_custom_call.1']
    #allocation13 [shape = 'u8[8192]{0}', space=vmem, size = 0x2000, scoped, tag = 'input window, operand 6, single buffered']
    #allocation14 [shape = 'u8[4096]{0}', space=vmem, size = 0x1000, scoped, tag = 'input window, operand 7, single buffered']
    #allocation15 [shape = 's32[1]{0}', space=sflag, size = 0x4, scoped, tag = 'scoped memory for tpu_custom_call.1']
    #allocation16 [shape = 'u8[512]{0}', space=vmem, size = 0x400, scoped, tag = 'output window, operand 0, single buffered']
    %13 = vsyncpa [#allocation3], 0
    %14 = vsyncpa [#allocation6], 0
    %15 = vsyncpa [#allocation9], 0
    %16 = vsyncpa [#allocation12], 0
    %17 = vsyncpa [#allocation15], 0
    %18 = vsyncpa [#allocation4], 0
    // Predicated region
    $region2: #{tpu_custom_call.1} parent=1 // pred_check
      _
    $region3: #{tpu_custom_call.1} parent=1 // pred_check_branch
      %20 = sbr.rel (0) target = $region5
    $region4: #{tpu_custom_call.1} parent=1 // pred_region
      %s22 = ssub.s32 16, 16
      %23 = vsyncadd [#allocation3], %s22
      %s25 = sshll.u32 [#allocation2], 4
      %s26 = int_to_ptr.vmem [resolvable:$true] %s25
      %28 = dma.hbm_to_vmem [thread:$0]  %s0, 16, %s26, [#allocation3]
    $region5: #{tpu_custom_call.1} parent=1 // pred_fallthru
      _
    // Predicated region
    $region6: #{tpu_custom_call.1} parent=1 // pred_check
      _
    $region7: #{tpu_custom_call.1} parent=1 // pred_check_branch
      %30 = sbr.rel (0) target = $region9
    $region8: #{tpu_custom_call.1} parent=1 // pred_region
      %s32 = ssub.s32 1024, 1024
      %33 = vsyncadd [#allocation6], %s32
      %s34 = sshll.u32 [#allocation5], 4
      %s35 = int_to_ptr.vmem [resolvable:$true] %s34
      %40 = dma.hbm_to_vmem [thread:$0]  %s1, 1024, %s35, [#allocation6], 128, 128, 8
    $region9: #{tpu_custom_call.1} parent=1 // pred_fallthru
      _
    // Predicated region
    $region10: #{tpu_custom_call.1} parent=1 // pred_check
      _
    $region11: #{tpu_custom_call.1} parent=1 // pred_check_branch
      %42 = sbr.rel (0) target = $region13
    $region12: #{tpu_custom_call.1} parent=1 // pred_region
      %s44 = ssub.s32 1024, 1024
      %45 = vsyncadd [#allocation6], %s44
      %s46 = sshll.u32 [#allocation7], 4
      %s47 = int_to_ptr.vmem [resolvable:$true] %s46
      %52 = dma.hbm_to_vmem [thread:$0]  %s2, 1024, %s47, [#allocation6], 128, 128, 8
    $region13: #{tpu_custom_call.1} parent=1 // pred_fallthru
      _
    // Predicated region
    $region14: #{tpu_custom_call.1} parent=1 // pred_check
      _
    $region15: #{tpu_custom_call.1} parent=1 // pred_check_branch
      %54 = sbr.rel (0) target = $region17
    $region16: #{tpu_custom_call.1} parent=1 // pred_region
      %s56 = ssub.s32 80896, 80896
      %57 = vsyncadd [#allocation9], %s56
      %s58 = sshll.u32 [#allocation8], 4
      %s59 = int_to_ptr.vmem [resolvable:$true] %s58
      %64 = dma.hbm_to_vmem [thread:$0]  %s3, 80896, %s59, [#allocation9], 10112, 10112, 632
    $region17: #{tpu_custom_call.1} parent=1 // pred_fallthru
      _
    // Predicated region
    $region18: #{tpu_custom_call.1} parent=1 // pred_check
      _
    $region19: #{tpu_custom_call.1} parent=1 // pred_check_branch
      %66 = sbr.rel (0) target = $region21
    $region20: #{tpu_custom_call.1} parent=1 // pred_region
      %s68 = ssub.s32 1264, 1264
      %69 = vsyncadd [#allocation9], %s68
      %s71 = sshll.u32 [#allocation10], 4
      %s72 = int_to_ptr.vmem [resolvable:$true] %s71
      %74 = dma.hbm_to_vmem [thread:$0]  %s4, 1264, %s72, [#allocation9]
    $region21: #{tpu_custom_call.1} parent=1 // pred_fallthru
      _
    // Predicated region
    $region22: #{tpu_custom_call.1} parent=1 // pred_check
      _
    $region23: #{tpu_custom_call.1} parent=1 // pred_check_branch
      %76 = sbr.rel (0) target = $region25
    $region24: #{tpu_custom_call.1} parent=1 // pred_region
      %s78 = ssub.s32 80896, 80896
      %79 = vsyncadd [#allocation12], %s78
      %s80 = sshll.u32 [#allocation11], 4
      %s81 = int_to_ptr.vmem [resolvable:$true] %s80
      %86 = dma.hbm_to_vmem [thread:$0]  %s5, 80896, %s81, [#allocation12], 10112, 10112, 632
    $region25: #{tpu_custom_call.1} parent=1 // pred_fallthru
      _
    // Predicated region
    $region26: #{tpu_custom_call.1} parent=1 // pred_check
      _
    $region27: #{tpu_custom_call.1} parent=1 // pred_check_branch
      %88 = sbr.rel (0) target = $region29
    $region28: #{tpu_custom_call.1} parent=1 // pred_region
      %s90 = ssub.s32 256, 256
      %91 = vsyncadd [#allocation12], %s90
      %s92 = sshll.u32 [#allocation13], 4
      %s93 = int_to_ptr.vmem [resolvable:$true] %s92
      %98 = dma.hbm_to_vmem [thread:$0]  %s6, 256, %s93, [#allocation12], 128, 128, 8
    $region29: #{tpu_custom_call.1} parent=1 // pred_fallthru
      _
    // Predicated region
    $region30: #{tpu_custom_call.1} parent=1 // pred_check
      _
    $region31: #{tpu_custom_call.1} parent=1 // pred_check_branch
      %100 = sbr.rel (0) target = $region33
    $region32: #{tpu_custom_call.1} parent=1 // pred_region
      %s102 = ssub.s32 128, 128
      %103 = vsyncadd [#allocation15], %s102
      %s105 = sshll.u32 [#allocation14], 4
      %s106 = int_to_ptr.vmem [resolvable:$true] %s105
      %108 = dma.hbm_to_vmem [thread:$0]  %s7, 128, %s106, [#allocation15]
    $region33: #{tpu_custom_call.1} parent=1 // pred_fallthru
      _
    // Predicated region
    $region34: #{tpu_custom_call.1} parent=1 // pred_check
      _
    $region35: #{tpu_custom_call.1} parent=1 // pred_check_branch
      %110 = sbr.rel (0) target = $region37
    $region36: #{tpu_custom_call.1} parent=1 // pred_region
      %111 = dma.done [#allocation3], 16
    $region37: #{tpu_custom_call.1} parent=1 // pred_fallthru
      _
    // Predicated region
    $region38: #{tpu_custom_call.1} parent=1 // pred_check
      _
    $region39: #{tpu_custom_call.1} parent=1 // pred_check_branch
      %113 = sbr.rel (0) target = $region41
    $region40: #{tpu_custom_call.1} parent=1 // pred_region
      %114 = dma.done [#allocation6], 1024
    $region41: #{tpu_custom_call.1} parent=1 // pred_fallthru
      _
    // Predicated region
    $region42: #{tpu_custom_call.1} parent=1 // pred_check
      _
    $region43: #{tpu_custom_call.1} parent=1 // pred_check_branch
      %116 = sbr.rel (0) target = $region45
    $region44: #{tpu_custom_call.1} parent=1 // pred_region
      %117 = dma.done [#allocation6], 1024
    $region45: #{tpu_custom_call.1} parent=1 // pred_fallthru
      _
    // Predicated region
    $region46: #{tpu_custom_call.1} parent=1 // pred_check
      _
    $region47: #{tpu_custom_call.1} parent=1 // pred_check_branch
      %119 = sbr.rel (0) target = $region49
    $region48: #{tpu_custom_call.1} parent=1 // pred_region
      %120 = dma.done [#allocation9], 80896
    $region49: #{tpu_custom_call.1} parent=1 // pred_fallthru
      _
    // Predicated region
    $region50: #{tpu_custom_call.1} parent=1 // pred_check
      _
    $region51: #{tpu_custom_call.1} parent=1 // pred_check_branch
      %122 = sbr.rel (0) target = $region53
    $region52: #{tpu_custom_call.1} parent=1 // pred_region
      %123 = dma.done [#allocation9], 1264
    $region53: #{tpu_custom_call.1} parent=1 // pred_fallthru
      _
    // Predicated region
    $region54: #{tpu_custom_call.1} parent=1 // pred_check
      _
    $region55: #{tpu_custom_call.1} parent=1 // pred_check_branch
      %125 = sbr.rel (0) target = $region57
    $region56: #{tpu_custom_call.1} parent=1 // pred_region
      %126 = dma.done [#allocation12], 80896
    $region57: #{tpu_custom_call.1} parent=1 // pred_fallthru
      _
    // Predicated region
    $region58: #{tpu_custom_call.1} parent=1 // pred_check
      _
    $region59: #{tpu_custom_call.1} parent=1 // pred_check_branch
      %128 = sbr.rel (0) target = $region61
    $region60: #{tpu_custom_call.1} parent=1 // pred_region
      %129 = dma.done [#allocation12], 256
    $region61: #{tpu_custom_call.1} parent=1 // pred_fallthru
      _
    // Predicated region
    $region62: #{tpu_custom_call.1} parent=1 // pred_check
      _
    $region63: #{tpu_custom_call.1} parent=1 // pred_check_branch
      %131 = sbr.rel (0) target = $region65
    $region64: #{tpu_custom_call.1} parent=1 // pred_region
      %132 = dma.done [#allocation15], 128
    $region65: #{tpu_custom_call.1} parent=1 // pred_fallthru
      _
    %v133 = vld [vmem:[#allocation2] sm:$0x1]
    %v134 = vld [vmem:[#allocation14] sm:$0x1]
    %v135 = vld [vmem:[#allocation14 + $0x1] sm:$0x1]
    %v136 = vld [vmem:[#allocation14 + $0x2] sm:$0x1]
    %v137 = vld [vmem:[#allocation14 + $0x3] sm:$0x1]
    %v138 = vld [vmem:[#allocation14 + $0x4] sm:$0x1]
    %v139 = vld [vmem:[#allocation14 + $0x5] sm:$0x1]
    %v140 = vld [vmem:[#allocation14 + $0x6] sm:$0x1]
    %v141 = vld [vmem:[#allocation14 + $0x7] sm:$0x1]
    %v142 = vld [vmem:[#allocation5] sm:$0xff]
    %v143 = vld [vmem:[#allocation5 + $0x8] sm:$0xff]
    %v144 = vld [vmem:[#allocation5 + $0x10] sm:$0xff]
    %v145 = vld [vmem:[#allocation5 + $0x18] sm:$0xff]
    %v146 = vld [vmem:[#allocation5 + $0x20] sm:$0xff]
    %v147 = vld [vmem:[#allocation5 + $0x28] sm:$0xff]
    %v148 = vld [vmem:[#allocation5 + $0x30] sm:$0xff]
    %v149 = vld [vmem:[#allocation5 + $0x38] sm:$0xf]
    %vm150 = vcmask 490496
    %v152 = vsel %vm150, %v133, 0
    %vm154 = vcmask 1043456
    %v156 = vsel %vm154, %v149, 0
    %158 = vmatprep.subr.mxu0 0.0
    %159 = vmatpush1.msra.mxu0 %v142
    %160 = vmatprep.subr.mxu0 0.0
    %161 = vmatpush1.msra.mxu0 %v143
    %162 = vmatprep.subr.mxu0 0.0
    %163 = vmatpush1.msra.mxu0 %v144
    %164 = vmatprep.subr.mxu0 0.0
    %165 = vmatpush1.msra.mxu0 %v145
    %166 = vmatprep.subr.mxu0 0.0
    %167 = vmatpush1.msra.mxu0 %v146
    %168 = vmatprep.subr.mxu0 0.0
    %169 = vmatpush1.msra.mxu0 %v147
    %170 = vmatprep.subr.mxu0 0.0
    %171 = vmatpush1.msra.mxu0 %v148
    %172 = vmatprep.subr.mxu0 0.0
    %173 = vmatpush1.msra.mxu0 %v156
    %174 = vmatprep.subr.mxu0 0.0
    %175 = vmatpush1.msra.mxu0 0.0
    %176 = vmatprep.subr.mxu0 0.0
    %177 = vmatpush1.msra.mxu0 0.0
    %178 = vmatprep.subr.mxu0 0.0
    %179 = vmatpush1.msra.mxu0 0.0
    %180 = vmatprep.subr.mxu0 0.0
    %181 = vmatpush1.msra.mxu0 0.0
    %182 = vmatprep.subr.mxu0 0.0
    %183 = vmatpush1.msra.mxu0 0.0
    %184 = vmatprep.subr.mxu0 0.0
    %185 = vmatpush1.msra.mxu0 0.0
    %186 = vmatprep.subr.mxu0 0.0
    %187 = vmatpush1.msra.mxu0 0.0
    %188 = vmatprep.subr.mxu0 0.0
    %189 = vmatpush1.msra.mxu0 0.0
    %190 = vmatprep.subr.mxu0 0.0
    %191 = vmatpush1.msra.mxu0 0.0
    %192 = vmatprep.subr.mxu0 0.0
    %193 = vmatpush1.msra.mxu0 0.0
    %194 = vmatprep.subr.mxu0 0.0
    %195 = vmatpush1.msra.mxu0 0.0
    %196 = vmatprep.subr.mxu0 0.0
    %197 = vmatpush1.msra.mxu0 0.0
    %198 = vmatprep.subr.mxu0 0.0
    %199 = vmatpush1.msra.mxu0 0.0
    %200 = vmatprep.subr.mxu0 0.0
    %201 = vmatpush1.msra.mxu0 0.0
    %202 = vmatprep.subr.mxu0 0.0
    %203 = vmatpush1.msra.mxu0 0.0
    %204 = vmatprep.subr.mxu0 0.0
    %205 = vmatpush1.msra.mxu0 0.0
    %206 = vmatprep.subr.mxu0 0.0
    %207 = vmatpush1.msra.mxu0 0.0
    %208 = vmatprep.subr.mxu0 0.0
    %209 = vmatpush1.msra.mxu0 0.0
    %210 = vmatprep.subr.mxu0 0.0
    %211 = vmatpush1.msra.mxu0 0.0
    %212 = vmatprep.subr.mxu0 0.0
    %213 = vmatpush1.msra.mxu0 0.0
    %214 = vmatprep.subr.mxu0 0.0
    %215 = vmatpush1.msra.mxu0 0.0
    %216 = vmatprep.subr.mxu0 0.0
    %217 = vmatpush1.msra.mxu0 0.0
    %218 = vmatprep.subr.mxu0 0.0
    %219 = vmatpush1.msra.mxu0 0.0
    %220 = vmatprep.subr.mxu0 0.0
    %221 = vmatpush1.msra.mxu0 0.0
    %222 = vmatprep.mubr.f32.mxu0 0.0
    %223 = vmatmul.mubr.f32.gmra.mrb[0].mxu0 %v152
    %v224 = vpop.f32.mrb[0].mxu0
    %v225 = vadd.f32 %v134, %v224
    %v226 = vpop.f32.mrb[0].mxu0
    %227 = vdwg.mxu0
    %v228 = vld [vmem:[#allocation7] sm:$0xff]
    %v229 = vld [vmem:[#allocation7 + $0x8] sm:$0xff]
    %v230 = vld [vmem:[#allocation7 + $0x10] sm:$0xff]
    %v231 = vld [vmem:[#allocation7 + $0x18] sm:$0xff]
    %v232 = vld [vmem:[#allocation7 + $0x20] sm:$0xff]
    %v233 = vld [vmem:[#allocation7 + $0x28] sm:$0xff]
    %v234 = vld [vmem:[#allocation7 + $0x30] sm:$0xff]
    %v235 = vld [vmem:[#allocation7 + $0x38] sm:$0xf]
    %v237 = vsel %vm150, %v225, 0
    %v240 = vsel %vm154, %v235, 0
    %242 = vmatprep.subr.mxu0 0.0
    %243 = vmatpush1.msra.mxu0 %v228
    %244 = vmatprep.subr.mxu0 0.0
    %245 = vmatpush1.msra.mxu0 %v229
    %246 = vmatprep.subr.mxu0 0.0
    %247 = vmatpush1.msra.mxu0 %v230
    %248 = vmatprep.subr.mxu0 0.0
    %249 = vmatpush1.msra.mxu0 %v231
    %250 = vmatprep.subr.mxu0 0.0
    %251 = vmatpush1.msra.mxu0 %v232
    %252 = vmatprep.subr.mxu0 0.0
    %253 = vmatpush1.msra.mxu0 %v233
    %254 = vmatprep.subr.mxu0 0.0
    %255 = vmatpush1.msra.mxu0 %v234
    %256 = vmatprep.subr.mxu0 0.0
    %257 = vmatpush1.msra.mxu0 %v240
    %258 = vmatprep.subr.mxu0 0.0
    %259 = vmatpush1.msra.mxu0 0.0
    %260 = vmatprep.subr.mxu0 0.0
    %261 = vmatpush1.msra.mxu0 0.0
    %262 = vmatprep.subr.mxu0 0.0
    %263 = vmatpush1.msra.mxu0 0.0
    %264 = vmatprep.subr.mxu0 0.0
    %265 = vmatpush1.msra.mxu0 0.0
    %266 = vmatprep.subr.mxu0 0.0
    %267 = vmatpush1.msra.mxu0 0.0
    %268 = vmatprep.subr.mxu0 0.0
    %269 = vmatpush1.msra.mxu0 0.0
    %270 = vmatprep.subr.mxu0 0.0
    %271 = vmatpush1.msra.mxu0 0.0
    %272 = vmatprep.subr.mxu0 0.0
    %273 = vmatpush1.msra.mxu0 0.0
    %274 = vmatprep.subr.mxu0 0.0
    %275 = vmatpush1.msra.mxu0 0.0
    %276 = vmatprep.subr.mxu0 0.0
    %277 = vmatpush1.msra.mxu0 0.0
    %278 = vmatprep.subr.mxu0 0.0
    %279 = vmatpush1.msra.mxu0 0.0
    %280 = vmatprep.subr.mxu0 0.0
    %281 = vmatpush1.msra.mxu0 0.0
    %282 = vmatprep.subr.mxu0 0.0
    %283 = vmatpush1.msra.mxu0 0.0
    %284 = vmatprep.subr.mxu0 0.0
    %285 = vmatpush1.msra.mxu0 0.0
    %286 = vmatprep.subr.mxu0 0.0
    %287 = vmatpush1.msra.mxu0 0.0
    %288 = vmatprep.subr.mxu0 0.0
    %289 = vmatpush1.msra.mxu0 0.0
    %290 = vmatprep.subr.mxu0 0.0
    %291 = vmatpush1.msra.mxu0 0.0
    %292 = vmatprep.subr.mxu0 0.0
    %293 = vmatpush1.msra.mxu0 0.0
    %294 = vmatprep.subr.mxu0 0.0
    %295 = vmatpush1.msra.mxu0 0.0
    %296 = vmatprep.subr.mxu0 0.0
    %297 = vmatpush1.msra.mxu0 0.0
    %298 = vmatprep.subr.mxu0 0.0
    %299 = vmatpush1.msra.mxu0 0.0
    %300 = vmatprep.subr.mxu0 0.0
    %301 = vmatpush1.msra.mxu0 0.0
    %302 = vmatprep.subr.mxu0 0.0
    %303 = vmatpush1.msra.mxu0 0.0
    %304 = vmatprep.subr.mxu0 0.0
    %305 = vmatpush1.msra.mxu0 0.0
    %306 = vmatprep.mubr.f32.mxu0 0.0
    %307 = vmatmul.mubr.f32.gmra.mrb[0].mxu0 %v237
    %v308 = vpop.f32.mrb[0].mxu0
    %v309 = vadd.f32 %v135, %v308
    %v310 = vpop.f32.mrb[0].mxu0
    %311 = vdwg.mxu0
    %v312 = vadd.f32 %v133, %v309
    %vm313 = vcmask 483328
    %v314 = vsel %vm313, %v312, 0.0
    %315 = vadd.xlane.f32.xlu0 %v314
    %v316 = vpop.xlane.xlu0 %315
    %v317 = vrcp.pop 60.0
    %v318 = vmul.f32 %v316, %v317
    %v319 = vsub.f32 %v312, %v318
    %v320 = vmul.f32 %v319, %v319
    %v321 = vsel %vm313, %v320, 0.0
    %322 = vadd.xlane.f32.xlu0 %v321
    %v323 = vpop.xlane.xlu0 %322
    %v324 = vmul.f32 %v323, %v317
    %v325 = vadd.f32 %v324, 1e-05
    %v326 = vrsqrt.pop %v325
    %v327 = vmul.f32 %v319, %v326
    %v328 = vmul.f32 %v327, %v136
    %v329 = vadd.f32 %v328, %v137
    %v330 = vld [vmem:[#allocation8] sm:$0xff]
    %v331 = vld [vmem:[#allocation8 + $0x8] sm:$0xff]
    %v332 = vld [vmem:[#allocation8 + $0x10] sm:$0xff]
    %v333 = vld [vmem:[#allocation8 + $0x18] sm:$0xff]
    %v334 = vld [vmem:[#allocation8 + $0x20] sm:$0xff]
    %v335 = vld [vmem:[#allocation8 + $0x28] sm:$0xff]
    %v336 = vld [vmem:[#allocation8 + $0x30] sm:$0xff]
    %v337 = vld [vmem:[#allocation8 + $0x38] sm:$0xff]
    %v338 = vld [vmem:[#allocation8 + $0x40] sm:$0xff]
    %v339 = vld [vmem:[#allocation8 + $0x48] sm:$0xff]
    %v340 = vld [vmem:[#allocation8 + $0x50] sm:$0xff]
    %v341 = vld [vmem:[#allocation8 + $0x58] sm:$0xff]
    %v342 = vld [vmem:[#allocation8 + $0x60] sm:$0xff]
    %v343 = vld [vmem:[#allocation8 + $0x68] sm:$0xff]
    %v344 = vld [vmem:[#allocation8 + $0x70] sm:$0xff]
    %v345 = vld [vmem:[#allocation8 + $0x78] sm:$0xff]
    %v346 = vld [vmem:[#allocation8 + $0x80] sm:$0xff]
    %v347 = vld [vmem:[#allocation8 + $0x88] sm:$0xff]
    %v348 = vld [vmem:[#allocation8 + $0x90] sm:$0xff]
    %v349 = vld [vmem:[#allocation8 + $0x98] sm:$0xff]
    %v350 = vld [vmem:[#allocation8 + $0xa0] sm:$0xff]
    %v351 = vld [vmem:[#allocation8 + $0xa8] sm:$0xff]
    %v352 = vld [vmem:[#allocation8 + $0xb0] sm:$0xff]
    %v353 = vld [vmem:[#allocation8 + $0xb8] sm:$0xff]
    %v354 = vld [vmem:[#allocation8 + $0xc0] sm:$0xff]
    %v355 = vld [vmem:[#allocation8 + $0xc8] sm:$0xff]
    %v356 = vld [vmem:[#allocation8 + $0xd0] sm:$0xff]
    %v357 = vld [vmem:[#allocation8 + $0xd8] sm:$0xff]
    %v358 = vld [vmem:[#allocation8 + $0xe0] sm:$0xff]
    %v359 = vld [vmem:[#allocation8 + $0xe8] sm:$0xff]
    %v360 = vld [vmem:[#allocation8 + $0xf0] sm:$0xff]
    %v361 = vld [vmem:[#allocation8 + $0xf8] sm:$0xff]
    %v362 = vld [vmem:[#allocation8 + $0x100] sm:$0xff]
    %v363 = vld [vmem:[#allocation8 + $0x108] sm:$0xff]
    %v364 = vld [vmem:[#allocation8 + $0x110] sm:$0xff]
    %v365 = vld [vmem:[#allocation8 + $0x118] sm:$0xff]
    %v366 = vld [vmem:[#allocation8 + $0x120] sm:$0xff]
    %v367 = vld [vmem:[#allocation8 + $0x128] sm:$0xff]
    %v368 = vld [vmem:[#allocation8 + $0x130] sm:$0xff]
    %v369 = vld [vmem:[#allocation8 + $0x138] sm:$0xff]
    %v370 = vld [vmem:[#allocation8 + $0x140] sm:$0xff]
    %v371 = vld [vmem:[#allocation8 + $0x148] sm:$0xff]
    %v372 = vld [vmem:[#allocation8 + $0x150] sm:$0xff]
    %v373 = vld [vmem:[#allocation8 + $0x158] sm:$0xff]
    %v374 = vld [vmem:[#allocation8 + $0x160] sm:$0xff]
    %v375 = vld [vmem:[#allocation8 + $0x168] sm:$0xff]
    %v376 = vld [vmem:[#allocation8 + $0x170] sm:$0xff]
    %v377 = vld [vmem:[#allocation8 + $0x178] sm:$0xff]
    %v378 = vld [vmem:[#allocation8 + $0x180] sm:$0xff]
    %v379 = vld [vmem:[#allocation8 + $0x188] sm:$0xff]
    %v380 = vld [vmem:[#allocation8 + $0x190] sm:$0xff]
    %v381 = vld [vmem:[#allocation8 + $0x198] sm:$0xff]
    %v382 = vld [vmem:[#allocation8 + $0x1a0] sm:$0xff]
    %v383 = vld [vmem:[#allocation8 + $0x1a8] sm:$0xff]
    %v384 = vld [vmem:[#allocation8 + $0x1b0] sm:$0xff]
    %v385 = vld [vmem:[#allocation8 + $0x1b8] sm:$0xff]
    %v386 = vld [vmem:[#allocation8 + $0x1c0] sm:$0xff]
    %v387 = vld [vmem:[#allocation8 + $0x1c8] sm:$0xff]
    %v388 = vld [vmem:[#allocation8 + $0x1d0] sm:$0xff]
    %v389 = vld [vmem:[#allocation8 + $0x1d8] sm:$0xff]
    %v390 = vld [vmem:[#allocation8 + $0x1e0] sm:$0xff]
    %v391 = vld [vmem:[#allocation8 + $0x1e8] sm:$0xff]
    %v392 = vld [vmem:[#allocation8 + $0x1f0] sm:$0xff]
    %v393 = vld [vmem:[#allocation8 + $0x1f8] sm:$0xff]
    %v394 = vld [vmem:[#allocation8 + $0x200] sm:$0xff]
    %v395 = vld [vmem:[#allocation8 + $0x208] sm:$0xff]
    %v396 = vld [vmem:[#allocation8 + $0x210] sm:$0xff]
    %v397 = vld [vmem:[#allocation8 + $0x218] sm:$0xff]
    %v398 = vld [vmem:[#allocation8 + $0x220] sm:$0xff]
    %v399 = vld [vmem:[#allocation8 + $0x228] sm:$0xff]
    %v400 = vld [vmem:[#allocation8 + $0x230] sm:$0xff]
    %v401 = vld [vmem:[#allocation8 + $0x238] sm:$0xff]
    %v402 = vld [vmem:[#allocation8 + $0x240] sm:$0xff]
    %v403 = vld [vmem:[#allocation8 + $0x248] sm:$0xff]
    %v404 = vld [vmem:[#allocation8 + $0x250] sm:$0xff]
    %v405 = vld [vmem:[#allocation8 + $0x258] sm:$0xff]
    %v406 = vld [vmem:[#allocation8 + $0x260] sm:$0xff]
    %v407 = vld [vmem:[#allocation8 + $0x268] sm:$0xff]
    %v408 = vld [vmem:[#allocation8 + $0x270] sm:$0xff]
    %v409 = vld [vmem:[#allocation8 + $0x278] sm:$0xff]
    %v410 = vld [vmem:[#allocation8 + $0x280] sm:$0xff]
    %v411 = vld [vmem:[#allocation8 + $0x288] sm:$0xff]
    %v412 = vld [vmem:[#allocation8 + $0x290] sm:$0xff]
    %v413 = vld [vmem:[#allocation8 + $0x298] sm:$0xff]
    %v414 = vld [vmem:[#allocation8 + $0x2a0] sm:$0xff]
    %v415 = vld [vmem:[#allocation8 + $0x2a8] sm:$0xff]
    %v416 = vld [vmem:[#allocation8 + $0x2b0] sm:$0xff]
    %v417 = vld [vmem:[#allocation8 + $0x2b8] sm:$0xff]
    %v418 = vld [vmem:[#allocation8 + $0x2c0] sm:$0xff]
    %v419 = vld [vmem:[#allocation8 + $0x2c8] sm:$0xff]
    %v420 = vld [vmem:[#allocation8 + $0x2d0] sm:$0xff]
    %v421 = vld [vmem:[#allocation8 + $0x2d8] sm:$0xff]
    %v422 = vld [vmem:[#allocation8 + $0x2e0] sm:$0xff]
    %v423 = vld [vmem:[#allocation8 + $0x2e8] sm:$0xff]
    %v424 = vld [vmem:[#allocation8 + $0x2f0] sm:$0xff]
    %v425 = vld [vmem:[#allocation8 + $0x2f8] sm:$0xff]
    %v426 = vld [vmem:[#allocation8 + $0x300] sm:$0xff]
    %v427 = vld [vmem:[#allocation8 + $0x308] sm:$0xff]
    %v428 = vld [vmem:[#allocation8 + $0x310] sm:$0xff]
    %v429 = vld [vmem:[#allocation8 + $0x318] sm:$0xff]
    %v430 = vld [vmem:[#allocation8 + $0x320] sm:$0xff]
    %v431 = vld [vmem:[#allocation8 + $0x328] sm:$0xff]
    %v432 = vld [vmem:[#allocation8 + $0x330] sm:$0xff]
    %v433 = vld [vmem:[#allocation8 + $0x338] sm:$0xff]
    %v434 = vld [vmem:[#allocation8 + $0x340] sm:$0xff]
    %v435 = vld [vmem:[#allocation8 + $0x348] sm:$0xff]
    %v436 = vld [vmem:[#allocation8 + $0x350] sm:$0xff]
    %v437 = vld [vmem:[#allocation8 + $0x358] sm:$0xff]
    %v438 = vld [vmem:[#allocation8 + $0x360] sm:$0xff]
    %v439 = vld [vmem:[#allocation8 + $0x368] sm:$0xff]
    %v440 = vld [vmem:[#allocation8 + $0x370] sm:$0xff]
    %v441 = vld [vmem:[#allocation8 + $0x378] sm:$0xff]
    %v442 = vld [vmem:[#allocation8 + $0x380] sm:$0xff]
    %v443 = vld [vmem:[#allocation8 + $0x388] sm:$0xff]
    %v444 = vld [vmem:[#allocation8 + $0x390] sm:$0xff]
    %v445 = vld [vmem:[#allocation8 + $0x398] sm:$0xff]
    %v446 = vld [vmem:[#allocation8 + $0x3a0] sm:$0xff]
    %v447 = vld [vmem:[#allocation8 + $0x3a8] sm:$0xff]
    %v448 = vld [vmem:[#allocation8 + $0x3b0] sm:$0xff]
    %v449 = vld [vmem:[#allocation8 + $0x3b8] sm:$0xff]
    %v450 = vld [vmem:[#allocation8 + $0x3c0] sm:$0xff]
    %v451 = vld [vmem:[#allocation8 + $0x3c8] sm:$0xff]
    %v452 = vld [vmem:[#allocation8 + $0x3d0] sm:$0xff]
    %v453 = vld [vmem:[#allocation8 + $0x3d8] sm:$0xff]
    %v454 = vld [vmem:[#allocation8 + $0x3e0] sm:$0xff]
    %v455 = vld [vmem:[#allocation8 + $0x3e8] sm:$0xff]
    %v456 = vld [vmem:[#allocation8 + $0x3f0] sm:$0xff]
    %v457 = vld [vmem:[#allocation8 + $0x3f8] sm:$0xff]
    %v458 = vld [vmem:[#allocation8 + $0x400] sm:$0xff]
    %v459 = vld [vmem:[#allocation8 + $0x408] sm:$0xff]
    %v460 = vld [vmem:[#allocation8 + $0x410] sm:$0xff]
    %v461 = vld [vmem:[#allocation8 + $0x418] sm:$0xff]
    %v462 = vld [vmem:[#allocation8 + $0x420] sm:$0xff]
    %v463 = vld [vmem:[#allocation8 + $0x428] sm:$0xff]
    %v464 = vld [vmem:[#allocation8 + $0x430] sm:$0xff]
    %v465 = vld [vmem:[#allocation8 + $0x438] sm:$0xff]
    %v466 = vld [vmem:[#allocation8 + $0x440] sm:$0xff]
    %v467 = vld [vmem:[#allocation8 + $0x448] sm:$0xff]
    %v468 = vld [vmem:[#allocation8 + $0x450] sm:$0xff]
    %v469 = vld [vmem:[#allocation8 + $0x458] sm:$0xff]
    %v470 = vld [vmem:[#allocation8 + $0x460] sm:$0xff]
    %v471 = vld [vmem:[#allocation8 + $0x468] sm:$0xff]
    %v472 = vld [vmem:[#allocation8 + $0x470] sm:$0xff]
    %v473 = vld [vmem:[#allocation8 + $0x478] sm:$0xff]
    %v474 = vld [vmem:[#allocation8 + $0x480] sm:$0xff]
    %v475 = vld [vmem:[#allocation8 + $0x488] sm:$0xff]
    %v476 = vld [vmem:[#allocation8 + $0x490] sm:$0xff]
    %v477 = vld [vmem:[#allocation8 + $0x498] sm:$0xff]
    %v478 = vld [vmem:[#allocation8 + $0x4a0] sm:$0xff]
    %v479 = vld [vmem:[#allocation8 + $0x4a8] sm:$0xff]
    %v480 = vld [vmem:[#allocation8 + $0x4b0] sm:$0xff]
    %v481 = vld [vmem:[#allocation8 + $0x4b8] sm:$0xff]
    %v482 = vld [vmem:[#allocation8 + $0x4c0] sm:$0xff]
    %v483 = vld [vmem:[#allocation8 + $0x4c8] sm:$0xff]
    %v484 = vld [vmem:[#allocation8 + $0x4d0] sm:$0xff]
    %v485 = vld [vmem:[#allocation8 + $0x4d8] sm:$0xff]
    %v486 = vld [vmem:[#allocation8 + $0x4e0] sm:$0xff]
    %v487 = vld [vmem:[#allocation8 + $0x4e8] sm:$0xff]
    %v488 = vld [vmem:[#allocation8 + $0x4f0] sm:$0xff]
    %v489 = vld [vmem:[#allocation8 + $0x4f8] sm:$0xff]
    %v490 = vld [vmem:[#allocation8 + $0x500] sm:$0xff]
    %v491 = vld [vmem:[#allocation8 + $0x508] sm:$0xff]
    %v492 = vld [vmem:[#allocation8 + $0x510] sm:$0xff]
    %v493 = vld [vmem:[#allocation8 + $0x518] sm:$0xff]
    %v494 = vld [vmem:[#allocation8 + $0x520] sm:$0xff]
    %v495 = vld [vmem:[#allocation8 + $0x528] sm:$0xff]
    %v496 = vld [vmem:[#allocation8 + $0x530] sm:$0xff]
    %v497 = vld [vmem:[#allocation8 + $0x538] sm:$0xff]
    %v498 = vld [vmem:[#allocation8 + $0x540] sm:$0xff]
    %v499 = vld [vmem:[#allocation8 + $0x548] sm:$0xff]
    %v500 = vld [vmem:[#allocation8 + $0x550] sm:$0xff]
    %v501 = vld [vmem:[#allocation8 + $0x558] sm:$0xff]
    %v502 = vld [vmem:[#allocation8 + $0x560] sm:$0xff]
    %v503 = vld [vmem:[#allocation8 + $0x568] sm:$0xff]
    %v504 = vld [vmem:[#allocation8 + $0x570] sm:$0xff]
    %v505 = vld [vmem:[#allocation8 + $0x578] sm:$0xff]
    %v506 = vld [vmem:[#allocation8 + $0x580] sm:$0xff]
    %v507 = vld [vmem:[#allocation8 + $0x588] sm:$0xff]
    %v508 = vld [vmem:[#allocation8 + $0x590] sm:$0xff]
    %v509 = vld [vmem:[#allocation8 + $0x598] sm:$0xff]
    %v510 = vld [vmem:[#allocation8 + $0x5a0] sm:$0xff]
    %v511 = vld [vmem:[#allocation8 + $0x5a8] sm:$0xff]
    %v512 = vld [vmem:[#allocation8 + $0x5b0] sm:$0xff]
    %v513 = vld [vmem:[#allocation8 + $0x5b8] sm:$0xff]
    %v514 = vld [vmem:[#allocation8 + $0x5c0] sm:$0xff]
    %v515 = vld [vmem:[#allocation8 + $0x5c8] sm:$0xff]
    %v516 = vld [vmem:[#allocation8 + $0x5d0] sm:$0xff]
    %v517 = vld [vmem:[#allocation8 + $0x5d8] sm:$0xff]
    %v518 = vld [vmem:[#allocation8 + $0x5e0] sm:$0xff]
    %v519 = vld [vmem:[#allocation8 + $0x5e8] sm:$0xff]
    %v520 = vld [vmem:[#allocation8 + $0x5f0] sm:$0xff]
    %v521 = vld [vmem:[#allocation8 + $0x5f8] sm:$0xff]
    %v522 = vld [vmem:[#allocation8 + $0x600] sm:$0xff]
    %v523 = vld [vmem:[#allocation8 + $0x608] sm:$0xff]
    %v524 = vld [vmem:[#allocation8 + $0x610] sm:$0xff]
    %v525 = vld [vmem:[#allocation8 + $0x618] sm:$0xff]
    %v526 = vld [vmem:[#allocation8 + $0x620] sm:$0xff]
    %v527 = vld [vmem:[#allocation8 + $0x628] sm:$0xff]
    %v528 = vld [vmem:[#allocation8 + $0x630] sm:$0xff]
    %v529 = vld [vmem:[#allocation8 + $0x638] sm:$0xff]
    %v530 = vld [vmem:[#allocation8 + $0x640] sm:$0xff]
    %v531 = vld [vmem:[#allocation8 + $0x648] sm:$0xff]
    %v532 = vld [vmem:[#allocation8 + $0x650] sm:$0xff]
    %v533 = vld [vmem:[#allocation8 + $0x658] sm:$0xff]
    %v534 = vld [vmem:[#allocation8 + $0x660] sm:$0xff]
    %v535 = vld [vmem:[#allocation8 + $0x668] sm:$0xff]
    %v536 = vld [vmem:[#allocation8 + $0x670] sm:$0xff]
    %v537 = vld [vmem:[#allocation8 + $0x678] sm:$0xff]
    %v538 = vld [vmem:[#allocation8 + $0x680] sm:$0xff]
    %v539 = vld [vmem:[#allocation8 + $0x688] sm:$0xff]
    %v540 = vld [vmem:[#allocation8 + $0x690] sm:$0xff]
    %v541 = vld [vmem:[#allocation8 + $0x698] sm:$0xff]
    %v542 = vld [vmem:[#allocation8 + $0x6a0] sm:$0xff]
    %v543 = vld [vmem:[#allocation8 + $0x6a8] sm:$0xff]
    %v544 = vld [vmem:[#allocation8 + $0x6b0] sm:$0xff]
    %v545 = vld [vmem:[#allocation8 + $0x6b8] sm:$0xff]
    %v546 = vld [vmem:[#allocation8 + $0x6c0] sm:$0xff]
    %v547 = vld [vmem:[#allocation8 + $0x6c8] sm:$0xff]
    %v548 = vld [vmem:[#allocation8 + $0x6d0] sm:$0xff]
    %v549 = vld [vmem:[#allocation8 + $0x6d8] sm:$0xff]
    %v550 = vld [vmem:[#allocation8 + $0x6e0] sm:$0xff]
    %v551 = vld [vmem:[#allocation8 + $0x6e8] sm:$0xff]
    %v552 = vld [vmem:[#allocation8 + $0x6f0] sm:$0xff]
    %v553 = vld [vmem:[#allocation8 + $0x6f8] sm:$0xff]
    %v554 = vld [vmem:[#allocation8 + $0x700] sm:$0xff]
    %v555 = vld [vmem:[#allocation8 + $0x708] sm:$0xff]
    %v556 = vld [vmem:[#allocation8 + $0x710] sm:$0xff]
    %v557 = vld [vmem:[#allocation8 + $0x718] sm:$0xff]
    %v558 = vld [vmem:[#allocation8 + $0x720] sm:$0xff]
    %v559 = vld [vmem:[#allocation8 + $0x728] sm:$0xff]
    %v560 = vld [vmem:[#allocation8 + $0x730] sm:$0xff]
    %v561 = vld [vmem:[#allocation8 + $0x738] sm:$0xff]
    %v562 = vld [vmem:[#allocation8 + $0x740] sm:$0xff]
    %v563 = vld [vmem:[#allocation8 + $0x748] sm:$0xff]
    %v564 = vld [vmem:[#allocation8 + $0x750] sm:$0xff]
    %v565 = vld [vmem:[#allocation8 + $0x758] sm:$0xff]
    %v566 = vld [vmem:[#allocation8 + $0x760] sm:$0xff]
    %v567 = vld [vmem:[#allocation8 + $0x768] sm:$0xff]
    %v568 = vld [vmem:[#allocation8 + $0x770] sm:$0xff]
    %v569 = vld [vmem:[#allocation8 + $0x778] sm:$0xff]
    %v570 = vld [vmem:[#allocation8 + $0x780] sm:$0xff]
    %v571 = vld [vmem:[#allocation8 + $0x788] sm:$0xff]
    %v572 = vld [vmem:[#allocation8 + $0x790] sm:$0xff]
    %v573 = vld [vmem:[#allocation8 + $0x798] sm:$0xff]
    %v574 = vld [vmem:[#allocation8 + $0x7a0] sm:$0xff]
    %v575 = vld [vmem:[#allocation8 + $0x7a8] sm:$0xff]
    %v576 = vld [vmem:[#allocation8 + $0x7b0] sm:$0xff]
    %v577 = vld [vmem:[#allocation8 + $0x7b8] sm:$0xff]
    %v578 = vld [vmem:[#allocation8 + $0x7c0] sm:$0xff]
    %v579 = vld [vmem:[#allocation8 + $0x7c8] sm:$0xff]
    %v580 = vld [vmem:[#allocation8 + $0x7d0] sm:$0xff]
    %v581 = vld [vmem:[#allocation8 + $0x7d8] sm:$0xff]
    %v582 = vld [vmem:[#allocation8 + $0x7e0] sm:$0xff]
    %v583 = vld [vmem:[#allocation8 + $0x7e8] sm:$0xff]
    %v584 = vld [vmem:[#allocation8 + $0x7f0] sm:$0xff]
    %v585 = vld [vmem:[#allocation8 + $0x7f8] sm:$0xff]
    %v586 = vld [vmem:[#allocation8 + $0x800] sm:$0xff]
    %v587 = vld [vmem:[#allocation8 + $0x808] sm:$0xff]
    %v588 = vld [vmem:[#allocation8 + $0x810] sm:$0xff]
    %v589 = vld [vmem:[#allocation8 + $0x818] sm:$0xff]
    %v590 = vld [vmem:[#allocation8 + $0x820] sm:$0xff]
    %v591 = vld [vmem:[#allocation8 + $0x828] sm:$0xff]
    %v592 = vld [vmem:[#allocation8 + $0x830] sm:$0xff]
    %v593 = vld [vmem:[#allocation8 + $0x838] sm:$0xff]
    %v594 = vld [vmem:[#allocation8 + $0x840] sm:$0xff]
    %v595 = vld [vmem:[#allocation8 + $0x848] sm:$0xff]
    %v596 = vld [vmem:[#allocation8 + $0x850] sm:$0xff]
    %v597 = vld [vmem:[#allocation8 + $0x858] sm:$0xff]
    %v598 = vld [vmem:[#allocation8 + $0x860] sm:$0xff]
    %v599 = vld [vmem:[#allocation8 + $0x868] sm:$0xff]
    %v600 = vld [vmem:[#allocation8 + $0x870] sm:$0xff]
    %v601 = vld [vmem:[#allocation8 + $0x878] sm:$0xff]
    %v602 = vld [vmem:[#allocation8 + $0x880] sm:$0xff]
    %v603 = vld [vmem:[#allocation8 + $0x888] sm:$0xff]
    %v604 = vld [vmem:[#allocation8 + $0x890] sm:$0xff]
    %v605 = vld [vmem:[#allocation8 + $0x898] sm:$0xff]
    %v606 = vld [vmem:[#allocation8 + $0x8a0] sm:$0xff]
    %v607 = vld [vmem:[#allocation8 + $0x8a8] sm:$0xff]
    %v608 = vld [vmem:[#allocation8 + $0x8b0] sm:$0xff]
    %v609 = vld [vmem:[#allocation8 + $0x8b8] sm:$0xff]
    %v610 = vld [vmem:[#allocation8 + $0x8c0] sm:$0xff]
    %v611 = vld [vmem:[#allocation8 + $0x8c8] sm:$0xff]
    %v612 = vld [vmem:[#allocation8 + $0x8d0] sm:$0xff]
    %v613 = vld [vmem:[#allocation8 + $0x8d8] sm:$0xff]
    %v614 = vld [vmem:[#allocation8 + $0x8e0] sm:$0xff]
    %v615 = vld [vmem:[#allocation8 + $0x8e8] sm:$0xff]
    %v616 = vld [vmem:[#allocation8 + $0x8f0] sm:$0xff]
    %v617 = vld [vmem:[#allocation8 + $0x8f8] sm:$0xff]
    %v618 = vld [vmem:[#allocation8 + $0x900] sm:$0xff]
    %v619 = vld [vmem:[#allocation8 + $0x908] sm:$0xff]
    %v620 = vld [vmem:[#allocation8 + $0x910] sm:$0xff]
    %v621 = vld [vmem:[#allocation8 + $0x918] sm:$0xff]
    %v622 = vld [vmem:[#allocation8 + $0x920] sm:$0xff]
    %v623 = vld [vmem:[#allocation8 + $0x928] sm:$0xff]
    %v624 = vld [vmem:[#allocation8 + $0x930] sm:$0xff]
    %v625 = vld [vmem:[#allocation8 + $0x938] sm:$0xff]
    %v626 = vld [vmem:[#allocation8 + $0x940] sm:$0xff]
    %v627 = vld [vmem:[#allocation8 + $0x948] sm:$0xff]
    %v628 = vld [vmem:[#allocation8 + $0x950] sm:$0xff]
    %v629 = vld [vmem:[#allocation8 + $0x958] sm:$0xff]
    %v630 = vld [vmem:[#allocation8 + $0x960] sm:$0xff]
    %v631 = vld [vmem:[#allocation8 + $0x968] sm:$0xff]
    %v632 = vld [vmem:[#allocation8 + $0x970] sm:$0xff]
    %v633 = vld [vmem:[#allocation8 + $0x978] sm:$0xff]
    %v634 = vld [vmem:[#allocation8 + $0x980] sm:$0xff]
    %v635 = vld [vmem:[#allocation8 + $0x988] sm:$0xff]
    %v636 = vld [vmem:[#allocation8 + $0x990] sm:$0xff]
    %v637 = vld [vmem:[#allocation8 + $0x998] sm:$0xff]
    %v638 = vld [vmem:[#allocation8 + $0x9a0] sm:$0xff]
    %v639 = vld [vmem:[#allocation8 + $0x9a8] sm:$0xff]
    %v640 = vld [vmem:[#allocation8 + $0x9b0] sm:$0xff]
    %v641 = vld [vmem:[#allocation8 + $0x9b8] sm:$0xff]
    %v642 = vld [vmem:[#allocation8 + $0x9c0] sm:$0xff]
    %v643 = vld [vmem:[#allocation8 + $0x9c8] sm:$0xff]
    %v644 = vld [vmem:[#allocation8 + $0x9d0] sm:$0xff]
    %v645 = vld [vmem:[#allocation8 + $0x9d8] sm:$0xff]
    %v646 = vld [vmem:[#allocation8 + $0x9e0] sm:$0xff]
    %v647 = vld [vmem:[#allocation8 + $0x9e8] sm:$0xff]
    %v648 = vld [vmem:[#allocation8 + $0x9f0] sm:$0xff]
    %v649 = vld [vmem:[#allocation8 + $0x9f8] sm:$0xff]
    %v650 = vld [vmem:[#allocation8 + $0xa00] sm:$0xff]
    %v651 = vld [vmem:[#allocation8 + $0xa08] sm:$0xff]
    %v652 = vld [vmem:[#allocation8 + $0xa10] sm:$0xff]
    %v653 = vld [vmem:[#allocation8 + $0xa18] sm:$0xff]
    %v654 = vld [vmem:[#allocation8 + $0xa20] sm:$0xff]
    %v655 = vld [vmem:[#allocation8 + $0xa28] sm:$0xff]
    %v656 = vld [vmem:[#allocation8 + $0xa30] sm:$0xff]
    %v657 = vld [vmem:[#allocation8 + $0xa38] sm:$0xff]
    %v658 = vld [vmem:[#allocation8 + $0xa40] sm:$0xff]
    %v659 = vld [vmem:[#allocation8 + $0xa48] sm:$0xff]
    %v660 = vld [vmem:[#allocation8 + $0xa50] sm:$0xff]
    %v661 = vld [vmem:[#allocation8 + $0xa58] sm:$0xff]
    %v662 = vld [vmem:[#allocation8 + $0xa60] sm:$0xff]
    %v663 = vld [vmem:[#allocation8 + $0xa68] sm:$0xff]
    %v664 = vld [vmem:[#allocation8 + $0xa70] sm:$0xff]
    %v665 = vld [vmem:[#allocation8 + $0xa78] sm:$0xff]
    %v666 = vld [vmem:[#allocation8 + $0xa80] sm:$0xff]
    %v667 = vld [vmem:[#allocation8 + $0xa88] sm:$0xff]
    %v668 = vld [vmem:[#allocation8 + $0xa90] sm:$0xff]
    %v669 = vld [vmem:[#allocation8 + $0xa98] sm:$0xff]
    %v670 = vld [vmem:[#allocation8 + $0xaa0] sm:$0xff]
    %v671 = vld [vmem:[#allocation8 + $0xaa8] sm:$0xff]
    %v672 = vld [vmem:[#allocation8 + $0xab0] sm:$0xff]
    %v673 = vld [vmem:[#allocation8 + $0xab8] sm:$0xff]
    %v674 = vld [vmem:[#allocation8 + $0xac0] sm:$0xff]
    %v675 = vld [vmem:[#allocation8 + $0xac8] sm:$0xff]
    %v676 = vld [vmem:[#allocation8 + $0xad0] sm:$0xff]
    %v677 = vld [vmem:[#allocation8 + $0xad8] sm:$0xff]
    %v678 = vld [vmem:[#allocation8 + $0xae0] sm:$0xff]
    %v679 = vld [vmem:[#allocation8 + $0xae8] sm:$0xff]
    %v680 = vld [vmem:[#allocation8 + $0xaf0] sm:$0xff]
    %v681 = vld [vmem:[#allocation8 + $0xaf8] sm:$0xff]
    %v682 = vld [vmem:[#allocation8 + $0xb00] sm:$0xff]
    %v683 = vld [vmem:[#allocation8 + $0xb08] sm:$0xff]
    %v684 = vld [vmem:[#allocation8 + $0xb10] sm:$0xff]
    %v685 = vld [vmem:[#allocation8 + $0xb18] sm:$0xff]
    %v686 = vld [vmem:[#allocation8 + $0xb20] sm:$0xff]
    %v687 = vld [vmem:[#allocation8 + $0xb28] sm:$0xff]
    %v688 = vld [vmem:[#allocation8 + $0xb30] sm:$0xff]
    %v689 = vld [vmem:[#allocation8 + $0xb38] sm:$0xff]
    %v690 = vld [vmem:[#allocation8 + $0xb40] sm:$0xff]
    %v691 = vld [vmem:[#allocation8 + $0xb48] sm:$0xff]
    %v692 = vld [vmem:[#allocation8 + $0xb50] sm:$0xff]
    %v693 = vld [vmem:[#allocation8 + $0xb58] sm:$0xff]
    %v694 = vld [vmem:[#allocation8 + $0xb60] sm:$0xff]
    %v695 = vld [vmem:[#allocation8 + $0xb68] sm:$0xff]
    %v696 = vld [vmem:[#allocation8 + $0xb70] sm:$0xff]
    %v697 = vld [vmem:[#allocation8 + $0xb78] sm:$0xff]
    %v698 = vld [vmem:[#allocation8 + $0xb80] sm:$0xff]
    %v699 = vld [vmem:[#allocation8 + $0xb88] sm:$0xff]
    %v700 = vld [vmem:[#allocation8 + $0xb90] sm:$0xff]
    %v701 = vld [vmem:[#allocation8 + $0xb98] sm:$0xff]
    %v702 = vld [vmem:[#allocation8 + $0xba0] sm:$0xff]
    %v703 = vld [vmem:[#allocation8 + $0xba8] sm:$0xff]
    %v704 = vld [vmem:[#allocation8 + $0xbb0] sm:$0xff]
    %v705 = vld [vmem:[#allocation8 + $0xbb8] sm:$0xff]
    %v706 = vld [vmem:[#allocation8 + $0xbc0] sm:$0xff]
    %v707 = vld [vmem:[#allocation8 + $0xbc8] sm:$0xff]
    %v708 = vld [vmem:[#allocation8 + $0xbd0] sm:$0xff]
    %v709 = vld [vmem:[#allocation8 + $0xbd8] sm:$0xff]
    %v710 = vld [vmem:[#allocation8 + $0xbe0] sm:$0xff]
    %v711 = vld [vmem:[#allocation8 + $0xbe8] sm:$0xff]
    %v712 = vld [vmem:[#allocation8 + $0xbf0] sm:$0xff]
    %v713 = vld [vmem:[#allocation8 + $0xbf8] sm:$0xff]
    %v714 = vld [vmem:[#allocation8 + $0xc00] sm:$0xff]
    %v715 = vld [vmem:[#allocation8 + $0xc08] sm:$0xff]
    %v716 = vld [vmem:[#allocation8 + $0xc10] sm:$0xff]
    %v717 = vld [vmem:[#allocation8 + $0xc18] sm:$0xff]
    %v718 = vld [vmem:[#allocation8 + $0xc20] sm:$0xff]
    %v719 = vld [vmem:[#allocation8 + $0xc28] sm:$0xff]
    %v720 = vld [vmem:[#allocation8 + $0xc30] sm:$0xff]
    %v721 = vld [vmem:[#allocation8 + $0xc38] sm:$0xff]
    %v722 = vld [vmem:[#allocation8 + $0xc40] sm:$0xff]
    %v723 = vld [vmem:[#allocation8 + $0xc48] sm:$0xff]
    %v724 = vld [vmem:[#allocation8 + $0xc50] sm:$0xff]
    %v725 = vld [vmem:[#allocation8 + $0xc58] sm:$0xff]
    %v726 = vld [vmem:[#allocation8 + $0xc60] sm:$0xff]
    %v727 = vld [vmem:[#allocation8 + $0xc68] sm:$0xff]
    %v728 = vld [vmem:[#allocation8 + $0xc70] sm:$0xff]
    %v729 = vld [vmem:[#allocation8 + $0xc78] sm:$0xff]
    %v730 = vld [vmem:[#allocation8 + $0xc80] sm:$0xff]
    %v731 = vld [vmem:[#allocation8 + $0xc88] sm:$0xff]
    %v732 = vld [vmem:[#allocation8 + $0xc90] sm:$0xff]
    %v733 = vld [vmem:[#allocation8 + $0xc98] sm:$0xff]
    %v734 = vld [vmem:[#allocation8 + $0xca0] sm:$0xff]
    %v735 = vld [vmem:[#allocation8 + $0xca8] sm:$0xff]
    %v736 = vld [vmem:[#allocation8 + $0xcb0] sm:$0xff]
    %v737 = vld [vmem:[#allocation8 + $0xcb8] sm:$0xff]
    %v738 = vld [vmem:[#allocation8 + $0xcc0] sm:$0xff]
    %v739 = vld [vmem:[#allocation8 + $0xcc8] sm:$0xff]
    %v740 = vld [vmem:[#allocation8 + $0xcd0] sm:$0xff]
    %v741 = vld [vmem:[#allocation8 + $0xcd8] sm:$0xff]
    %v742 = vld [vmem:[#allocation8 + $0xce0] sm:$0xff]
    %v743 = vld [vmem:[#allocation8 + $0xce8] sm:$0xff]
    %v744 = vld [vmem:[#allocation8 + $0xcf0] sm:$0xff]
    %v745 = vld [vmem:[#allocation8 + $0xcf8] sm:$0xff]
    %v746 = vld [vmem:[#allocation8 + $0xd00] sm:$0xff]
    %v747 = vld [vmem:[#allocation8 + $0xd08] sm:$0xff]
    %v748 = vld [vmem:[#allocation8 + $0xd10] sm:$0xff]
    %v749 = vld [vmem:[#allocation8 + $0xd18] sm:$0xff]
    %v750 = vld [vmem:[#allocation8 + $0xd20] sm:$0xff]
    %v751 = vld [vmem:[#allocation8 + $0xd28] sm:$0xff]
    %v752 = vld [vmem:[#allocation8 + $0xd30] sm:$0xff]
    %v753 = vld [vmem:[#allocation8 + $0xd38] sm:$0xff]
    %v754 = vld [vmem:[#allocation8 + $0xd40] sm:$0xff]
    %v755 = vld [vmem:[#allocation8 + $0xd48] sm:$0xff]
    %v756 = vld [vmem:[#allocation8 + $0xd50] sm:$0xff]
    %v757 = vld [vmem:[#allocation8 + $0xd58] sm:$0xff]
    %v758 = vld [vmem:[#allocation8 + $0xd60] sm:$0xff]
    %v759 = vld [vmem:[#allocation8 + $0xd68] sm:$0xff]
    %v760 = vld [vmem:[#allocation8 + $0xd70] sm:$0xff]
    %v761 = vld [vmem:[#allocation8 + $0xd78] sm:$0xff]
    %v762 = vld [vmem:[#allocation8 + $0xd80] sm:$0xff]
    %v763 = vld [vmem:[#allocation8 + $0xd88] sm:$0xff]
    %v764 = vld [vmem:[#allocation8 + $0xd90] sm:$0xff]
    %v765 = vld [vmem:[#allocation8 + $0xd98] sm:$0xff]
    %v766 = vld [vmem:[#allocation8 + $0xda0] sm:$0xff]
    %v767 = vld [vmem:[#allocation8 + $0xda8] sm:$0xff]
    %v768 = vld [vmem:[#allocation8 + $0xdb0] sm:$0xff]
    %v769 = vld [vmem:[#allocation8 + $0xdb8] sm:$0xff]
    %v770 = vld [vmem:[#allocation8 + $0xdc0] sm:$0xff]
    %v771 = vld [vmem:[#allocation8 + $0xdc8] sm:$0xff]
    %v772 = vld [vmem:[#allocation8 + $0xdd0] sm:$0xff]
    %v773 = vld [vmem:[#allocation8 + $0xdd8] sm:$0xff]
    %v774 = vld [vmem:[#allocation8 + $0xde0] sm:$0xff]
    %v775 = vld [vmem:[#allocation8 + $0xde8] sm:$0xff]
    %v776 = vld [vmem:[#allocation8 + $0xdf0] sm:$0xff]
    %v777 = vld [vmem:[#allocation8 + $0xdf8] sm:$0xff]
    %v778 = vld [vmem:[#allocation8 + $0xe00] sm:$0xff]
    %v779 = vld [vmem:[#allocation8 + $0xe08] sm:$0xff]
    %v780 = vld [vmem:[#allocation8 + $0xe10] sm:$0xff]
    %v781 = vld [vmem:[#allocation8 + $0xe18] sm:$0xff]
    %v782 = vld [vmem:[#allocation8 + $0xe20] sm:$0xff]
    %v783 = vld [vmem:[#allocation8 + $0xe28] sm:$0xff]
    %v784 = vld [vmem:[#allocation8 + $0xe30] sm:$0xff]
    %v785 = vld [vmem:[#allocation8 + $0xe38] sm:$0xff]
    %v786 = vld [vmem:[#allocation8 + $0xe40] sm:$0xff]
    %v787 = vld [vmem:[#allocation8 + $0xe48] sm:$0xff]
    %v788 = vld [vmem:[#allocation8 + $0xe50] sm:$0xff]
    %v789 = vld [vmem:[#allocation8 + $0xe58] sm:$0xff]
    %v790 = vld [vmem:[#allocation8 + $0xe60] sm:$0xff]
    %v791 = vld [vmem:[#allocation8 + $0xe68] sm:$0xff]
    %v792 = vld [vmem:[#allocation8 + $0xe70] sm:$0xff]
    %v793 = vld [vmem:[#allocation8 + $0xe78] sm:$0xff]
    %v794 = vld [vmem:[#allocation8 + $0xe80] sm:$0xff]
    %v795 = vld [vmem:[#allocation8 + $0xe88] sm:$0xff]
    %v796 = vld [vmem:[#allocation8 + $0xe90] sm:$0xff]
    %v797 = vld [vmem:[#allocation8 + $0xe98] sm:$0xff]
    %v798 = vld [vmem:[#allocation8 + $0xea0] sm:$0xff]
    %v799 = vld [vmem:[#allocation8 + $0xea8] sm:$0xff]
    %v800 = vld [vmem:[#allocation8 + $0xeb0] sm:$0xff]
    %v801 = vld [vmem:[#allocation8 + $0xeb8] sm:$0xff]
    %v802 = vld [vmem:[#allocation8 + $0xec0] sm:$0xff]
    %v803 = vld [vmem:[#allocation8 + $0xec8] sm:$0xff]
    %v804 = vld [vmem:[#allocation8 + $0xed0] sm:$0xff]
    %v805 = vld [vmem:[#allocation8 + $0xed8] sm:$0xff]
    %v806 = vld [vmem:[#allocation8 + $0xee0] sm:$0xff]
    %v807 = vld [vmem:[#allocation8 + $0xee8] sm:$0xff]
    %v808 = vld [vmem:[#allocation8 + $0xef0] sm:$0xff]
    %v809 = vld [vmem:[#allocation8 + $0xef8] sm:$0xff]
    %v810 = vld [vmem:[#allocation8 + $0xf00] sm:$0xff]
    %v811 = vld [vmem:[#allocation8 + $0xf08] sm:$0xff]
    %v812 = vld [vmem:[#allocation8 + $0xf10] sm:$0xff]
    %v813 = vld [vmem:[#allocation8 + $0xf18] sm:$0xff]
    %v814 = vld [vmem:[#allocation8 + $0xf20] sm:$0xff]
    %v815 = vld [vmem:[#allocation8 + $0xf28] sm:$0xff]
    %v816 = vld [vmem:[#allocation8 + $0xf30] sm:$0xff]
    %v817 = vld [vmem:[#allocation8 + $0xf38] sm:$0xff]
    %v818 = vld [vmem:[#allocation8 + $0xf40] sm:$0xff]
    %v819 = vld [vmem:[#allocation8 + $0xf48] sm:$0xff]
    %v820 = vld [vmem:[#allocation8 + $0xf50] sm:$0xff]
    %v821 = vld [vmem:[#allocation8 + $0xf58] sm:$0xff]
    %v822 = vld [vmem:[#allocation8 + $0xf60] sm:$0xff]
    %v823 = vld [vmem:[#allocation8 + $0xf68] sm:$0xff]
    %v824 = vld [vmem:[#allocation8 + $0xf70] sm:$0xff]
    %v825 = vld [vmem:[#allocation8 + $0xf78] sm:$0xff]
    %v826 = vld [vmem:[#allocation8 + $0xf80] sm:$0xff]
    %v827 = vld [vmem:[#allocation8 + $0xf88] sm:$0xff]
    %v828 = vld [vmem:[#allocation8 + $0xf90] sm:$0xff]
    %v829 = vld [vmem:[#allocation8 + $0xf98] sm:$0xff]
    %v830 = vld [vmem:[#allocation8 + $0xfa0] sm:$0xff]
    %v831 = vld [vmem:[#allocation8 + $0xfa8] sm:$0xff]
    %v832 = vld [vmem:[#allocation8 + $0xfb0] sm:$0xff]
    %v833 = vld [vmem:[#allocation8 + $0xfb8] sm:$0xff]
    %v834 = vld [vmem:[#allocation8 + $0xfc0] sm:$0xff]
    %v835 = vld [vmem:[#allocation8 + $0xfc8] sm:$0xff]
    %v836 = vld [vmem:[#allocation8 + $0xfd0] sm:$0xff]
    %v837 = vld [vmem:[#allocation8 + $0xfd8] sm:$0xff]
    %v838 = vld [vmem:[#allocation8 + $0xfe0] sm:$0xff]
    %v839 = vld [vmem:[#allocation8 + $0xfe8] sm:$0xff]
    %v840 = vld [vmem:[#allocation8 + $0xff0] sm:$0xff]
    %v841 = vld [vmem:[#allocation8 + $0xff8] sm:$0xff]
    %v842 = vld [vmem:[#allocation8 + $0x1000] sm:$0xff]
    %v843 = vld [vmem:[#allocation8 + $0x1008] sm:$0xff]
    %v844 = vld [vmem:[#allocation8 + $0x1010] sm:$0xff]
    %v845 = vld [vmem:[#allocation8 + $0x1018] sm:$0xff]
    %v846 = vld [vmem:[#allocation8 + $0x1020] sm:$0xff]
    %v847 = vld [vmem:[#allocation8 + $0x1028] sm:$0xff]
    %v848 = vld [vmem:[#allocation8 + $0x1030] sm:$0xff]
    %v849 = vld [vmem:[#allocation8 + $0x1038] sm:$0xff]
    %v850 = vld [vmem:[#allocation8 + $0x1040] sm:$0xff]
    %v851 = vld [vmem:[#allocation8 + $0x1048] sm:$0xff]
    %v852 = vld [vmem:[#allocation8 + $0x1050] sm:$0xff]
    %v853 = vld [vmem:[#allocation8 + $0x1058] sm:$0xff]
    %v854 = vld [vmem:[#allocation8 + $0x1060] sm:$0xff]
    %v855 = vld [vmem:[#allocation8 + $0x1068] sm:$0xff]
    %v856 = vld [vmem:[#allocation8 + $0x1070] sm:$0xff]
    %v857 = vld [vmem:[#allocation8 + $0x1078] sm:$0xff]
    %v858 = vld [vmem:[#allocation8 + $0x1080] sm:$0xff]
    %v859 = vld [vmem:[#allocation8 + $0x1088] sm:$0xff]
    %v860 = vld [vmem:[#allocation8 + $0x1090] sm:$0xff]
    %v861 = vld [vmem:[#allocation8 + $0x1098] sm:$0xff]
    %v862 = vld [vmem:[#allocation8 + $0x10a0] sm:$0xff]
    %v863 = vld [vmem:[#allocation8 + $0x10a8] sm:$0xff]
    %v864 = vld [vmem:[#allocation8 + $0x10b0] sm:$0xff]
    %v865 = vld [vmem:[#allocation8 + $0x10b8] sm:$0xff]
    %v866 = vld [vmem:[#allocation8 + $0x10c0] sm:$0xff]
    %v867 = vld [vmem:[#allocation8 + $0x10c8] sm:$0xff]
    %v868 = vld [vmem:[#allocation8 + $0x10d0] sm:$0xff]
    %v869 = vld [vmem:[#allocation8 + $0x10d8] sm:$0xff]
    %v870 = vld [vmem:[#allocation8 + $0x10e0] sm:$0xff]
    %v871 = vld [vmem:[#allocation8 + $0x10e8] sm:$0xff]
    %v872 = vld [vmem:[#allocation8 + $0x10f0] sm:$0xff]
    %v873 = vld [vmem:[#allocation8 + $0x10f8] sm:$0xff]
    %v874 = vld [vmem:[#allocation8 + $0x1100] sm:$0xff]
    %v875 = vld [vmem:[#allocation8 + $0x1108] sm:$0xff]
    %v876 = vld [vmem:[#allocation8 + $0x1110] sm:$0xff]
    %v877 = vld [vmem:[#allocation8 + $0x1118] sm:$0xff]
    %v878 = vld [vmem:[#allocation8 + $0x1120] sm:$0xff]
    %v879 = vld [vmem:[#allocation8 + $0x1128] sm:$0xff]
    %v880 = vld [vmem:[#allocation8 + $0x1130] sm:$0xff]
    %v881 = vld [vmem:[#allocation8 + $0x1138] sm:$0xff]
    %v882 = vld [vmem:[#allocation8 + $0x1140] sm:$0xff]
    %v883 = vld [vmem:[#allocation8 + $0x1148] sm:$0xf]
    %v884 = vld [vmem:[#allocation8 + $0x1150] sm:$0xf]
    %v885 = vld [vmem:[#allocation8 + $0x1158] sm:$0xf]
    %v886 = vld [vmem:[#allocation8 + $0x1160] sm:$0xf]
    %v887 = vld [vmem:[#allocation8 + $0x1168] sm:$0xf]
    %v888 = vld [vmem:[#allocation8 + $0x1170] sm:$0xf]
    %v889 = vld [vmem:[#allocation8 + $0x1178] sm:$0xf]
    %v890 = vld [vmem:[#allocation8 + $0x1180] sm:$0xf]
    %v891 = vld [vmem:[#allocation8 + $0x1188] sm:$0xf]
    %v892 = vld [vmem:[#allocation8 + $0x1190] sm:$0xf]
    %v893 = vld [vmem:[#allocation8 + $0x1198] sm:$0xf]
    %v894 = vld [vmem:[#allocation8 + $0x11a0] sm:$0xf]
    %v895 = vld [vmem:[#allocation8 + $0x11a8] sm:$0xf]
    %v896 = vld [vmem:[#allocation8 + $0x11b0] sm:$0xf]
    %v897 = vld [vmem:[#allocation8 + $0x11b8] sm:$0xf]
    %v898 = vld [vmem:[#allocation8 + $0x11c0] sm:$0xf]
    %v899 = vld [vmem:[#allocation8 + $0x11c8] sm:$0xf]
    %v900 = vld [vmem:[#allocation8 + $0x11d0] sm:$0xf]
    %v901 = vld [vmem:[#allocation8 + $0x11d8] sm:$0xf]
    %v902 = vld [vmem:[#allocation8 + $0x11e0] sm:$0xf]
    %v903 = vld [vmem:[#allocation8 + $0x11e8] sm:$0xf]
    %v904 = vld [vmem:[#allocation8 + $0x11f0] sm:$0xf]
    %v905 = vld [vmem:[#allocation8 + $0x11f8] sm:$0xf]
    %v906 = vld [vmem:[#allocation8 + $0x1200] sm:$0xf]
    %v907 = vld [vmem:[#allocation8 + $0x1208] sm:$0xf]
    %v908 = vld [vmem:[#allocation8 + $0x1210] sm:$0xf]
    %v909 = vld [vmem:[#allocation8 + $0x1218] sm:$0xf]
    %v910 = vld [vmem:[#allocation8 + $0x1220] sm:$0xf]
    %v911 = vld [vmem:[#allocation8 + $0x1228] sm:$0xf]
    %v912 = vld [vmem:[#allocation8 + $0x1230] sm:$0xf]
    %v913 = vld [vmem:[#allocation8 + $0x1238] sm:$0xf]
    %v914 = vld [vmem:[#allocation8 + $0x1240] sm:$0xf]
    %v915 = vld [vmem:[#allocation8 + $0x1248] sm:$0xf]
    %v916 = vld [vmem:[#allocation8 + $0x1250] sm:$0xf]
    %v917 = vld [vmem:[#allocation8 + $0x1258] sm:$0xf]
    %v918 = vld [vmem:[#allocation8 + $0x1260] sm:$0xf]
    %v919 = vld [vmem:[#allocation8 + $0x1268] sm:$0xf]
    %v920 = vld [vmem:[#allocation8 + $0x1270] sm:$0xf]
    %v921 = vld [vmem:[#allocation8 + $0x1278] sm:$0xf]
    %v922 = vld [vmem:[#allocation8 + $0x1280] sm:$0xf]
    %v923 = vld [vmem:[#allocation8 + $0x1288] sm:$0xf]
    %v924 = vld [vmem:[#allocation8 + $0x1290] sm:$0xf]
    %v925 = vld [vmem:[#allocation8 + $0x1298] sm:$0xf]
    %v926 = vld [vmem:[#allocation8 + $0x12a0] sm:$0xf]
    %v927 = vld [vmem:[#allocation8 + $0x12a8] sm:$0xf]
    %v928 = vld [vmem:[#allocation8 + $0x12b0] sm:$0xf]
    %v929 = vld [vmem:[#allocation8 + $0x12b8] sm:$0xf]
    %v930 = vld [vmem:[#allocation8 + $0x12c0] sm:$0xf]
    %v931 = vld [vmem:[#allocation8 + $0x12c8] sm:$0xf]
    %v932 = vld [vmem:[#allocation8 + $0x12d0] sm:$0xf]
    %v933 = vld [vmem:[#allocation8 + $0x12d8] sm:$0xf]
    %v934 = vld [vmem:[#allocation8 + $0x12e0] sm:$0xf]
    %v935 = vld [vmem:[#allocation8 + $0x12e8] sm:$0xf]
    %v936 = vld [vmem:[#allocation8 + $0x12f0] sm:$0xf]
    %v937 = vld [vmem:[#allocation8 + $0x12f8] sm:$0xf]
    %v938 = vld [vmem:[#allocation8 + $0x1300] sm:$0xf]
    %v939 = vld [vmem:[#allocation8 + $0x1308] sm:$0xf]
    %v940 = vld [vmem:[#allocation8 + $0x1310] sm:$0xf]
    %v941 = vld [vmem:[#allocation8 + $0x1318] sm:$0xf]
    %v942 = vld [vmem:[#allocation8 + $0x1320] sm:$0xf]
    %v943 = vld [vmem:[#allocation8 + $0x1328] sm:$0xf]
    %v944 = vld [vmem:[#allocation8 + $0x1330] sm:$0xf]
    %v945 = vld [vmem:[#allocation8 + $0x1338] sm:$0xf]
    %v946 = vld [vmem:[#allocation8 + $0x1340] sm:$0xf]
    %v947 = vld [vmem:[#allocation8 + $0x1348] sm:$0xf]
    %v948 = vld [vmem:[#allocation8 + $0x1350] sm:$0xf]
    %v949 = vld [vmem:[#allocation8 + $0x1358] sm:$0xf]
    %v950 = vld [vmem:[#allocation8 + $0x1360] sm:$0xf]
    %v951 = vld [vmem:[#allocation8 + $0x1368] sm:$0xf]
    %v952 = vld [vmem:[#allocation8 + $0x1370] sm:$0xf]
    %v953 = vld [vmem:[#allocation8 + $0x1378] sm:$0xf]
    %v954 = vld [vmem:[#allocation8 + $0x1380] sm:$0xf]
    %v955 = vld [vmem:[#allocation8 + $0x1388] sm:$0xf]
    %v956 = vld [vmem:[#allocation8 + $0x1390] sm:$0xf]
    %v957 = vld [vmem:[#allocation8 + $0x1398] sm:$0xf]
    %v958 = vld [vmem:[#allocation8 + $0x13a0] sm:$0xf]
    %v959 = vld [vmem:[#allocation8 + $0x13a8] sm:$0xf]
    %v960 = vld [vmem:[#allocation8 + $0x13b0] sm:$0xf]
    %v961 = vld [vmem:[#allocation8 + $0x13b8] sm:$0xf]
    %v962 = vld [vmem:[#allocation10] sm:$0xff]
    %v963 = vld [vmem:[#allocation10 + $0x8] sm:$0xff]
    %v964 = vld [vmem:[#allocation10 + $0x10] sm:$0xff]
    %v965 = vld [vmem:[#allocation10 + $0x18] sm:$0xff]
    %v966 = vld [vmem:[#allocation10 + $0x20] sm:$0xff]
    %v967 = vld [vmem:[#allocation10 + $0x28] sm:$0xff]
    %v968 = vld [vmem:[#allocation10 + $0x30] sm:$0xff]
    %v969 = vld [vmem:[#allocation10 + $0x38] sm:$0xff]
    %v970 = vld [vmem:[#allocation10 + $0x40] sm:$0xff]
    %v971 = vld [vmem:[#allocation10 + $0x48] sm:$0x7f]
    %v982 = vlaneseq
    %v983 = vshrl.u32 %v982, 7
    %v984 = vsub.s32 0, %v983
    %v985 = vrot.slane %v962, %v984
    %v986 = vlaneseq
    %v987 = vshrl.u32 %v986, 7
    %v988 = vsub.s32 1, %v987
    %v989 = vrot.slane %v962, %v988
    %v990 = vlaneseq
    %v991 = vshrl.u32 %v990, 7
    %v992 = vsub.s32 2, %v991
    %v993 = vrot.slane %v962, %v992
    %v994 = vlaneseq
    %v995 = vshrl.u32 %v994, 7
    %v996 = vsub.s32 3, %v995
    %v997 = vrot.slane %v962, %v996
    %v998 = vlaneseq
    %v999 = vshrl.u32 %v998, 7
    %v1000 = vsub.s32 4, %v999
    %v1001 = vrot.slane %v962, %v1000
    %v1002 = vlaneseq
    %v1003 = vshrl.u32 %v1002, 7
    %v1004 = vsub.s32 5, %v1003
    %v1005 = vrot.slane %v962, %v1004
    %v1006 = vlaneseq
    %v1007 = vshrl.u32 %v1006, 7
    %v1008 = vsub.s32 6, %v1007
    %v1009 = vrot.slane %v962, %v1008
    %v1010 = vlaneseq
    %v1011 = vshrl.u32 %v1010, 7
    %v1012 = vsub.s32 7, %v1011
    %v1013 = vrot.slane %v962, %v1012
    %v1014 = vlaneseq
    %v1015 = vshrl.u32 %v1014, 7
    %v1016 = vsub.s32 0, %v1015
    %v1017 = vrot.slane %v963, %v1016
    %v1018 = vlaneseq
    %v1019 = vshrl.u32 %v1018, 7
    %v1020 = vsub.s32 1, %v1019
    %v1021 = vrot.slane %v963, %v1020
    %v1022 = vlaneseq
    %v1023 = vshrl.u32 %v1022, 7
    %v1024 = vsub.s32 2, %v1023
    %v1025 = vrot.slane %v963, %v1024
    %v1026 = vlaneseq
    %v1027 = vshrl.u32 %v1026, 7
    %v1028 = vsub.s32 3, %v1027
    %v1029 = vrot.slane %v963, %v1028
    %v1030 = vlaneseq
    %v1031 = vshrl.u32 %v1030, 7
    %v1032 = vsub.s32 4, %v1031
    %v1033 = vrot.slane %v963, %v1032
    %v1034 = vlaneseq
    %v1035 = vshrl.u32 %v1034, 7
    %v1036 = vsub.s32 5, %v1035
    %v1037 = vrot.slane %v963, %v1036
    %v1038 = vlaneseq
    %v1039 = vshrl.u32 %v1038, 7
    %v1040 = vsub.s32 6, %v1039
    %v1041 = vrot.slane %v963, %v1040
    %v1042 = vlaneseq
    %v1043 = vshrl.u32 %v1042, 7
    %v1044 = vsub.s32 7, %v1043
    %v1045 = vrot.slane %v963, %v1044
    %v1046 = vlaneseq
    %v1047 = vshrl.u32 %v1046, 7
    %v1048 = vsub.s32 0, %v1047
    %v1049 = vrot.slane %v964, %v1048
    %v1050 = vlaneseq
    %v1051 = vshrl.u32 %v1050, 7
    %v1052 = vsub.s32 1, %v1051
    %v1053 = vrot.slane %v964, %v1052
    %v1054 = vlaneseq
    %v1055 = vshrl.u32 %v1054, 7
    %v1056 = vsub.s32 2, %v1055
    %v1057 = vrot.slane %v964, %v1056
    %v1058 = vlaneseq
    %v1059 = vshrl.u32 %v1058, 7
    %v1060 = vsub.s32 3, %v1059
    %v1061 = vrot.slane %v964, %v1060
    %v1062 = vlaneseq
    %v1063 = vshrl.u32 %v1062, 7
    %v1064 = vsub.s32 4, %v1063
    %v1065 = vrot.slane %v964, %v1064
    %v1066 = vlaneseq
    %v1067 = vshrl.u32 %v1066, 7
    %v1068 = vsub.s32 5, %v1067
    %v1069 = vrot.slane %v964, %v1068
    %v1070 = vlaneseq
    %v1071 = vshrl.u32 %v1070, 7
    %v1072 = vsub.s32 6, %v1071
    %v1073 = vrot.slane %v964, %v1072
    %v1074 = vlaneseq
    %v1075 = vshrl.u32 %v1074, 7
    %v1076 = vsub.s32 7, %v1075
    %v1077 = vrot.slane %v964, %v1076
    %v1078 = vlaneseq
    %v1079 = vshrl.u32 %v1078, 7
    %v1080 = vsub.s32 0, %v1079
    %v1081 = vrot.slane %v965, %v1080
    %v1082 = vlaneseq
    %v1083 = vshrl.u32 %v1082, 7
    %v1084 = vsub.s32 1, %v1083
    %v1085 = vrot.slane %v965, %v1084
    %v1086 = vlaneseq
    %v1087 = vshrl.u32 %v1086, 7
    %v1088 = vsub.s32 2, %v1087
    %v1089 = vrot.slane %v965, %v1088
    %v1090 = vlaneseq
    %v1091 = vshrl.u32 %v1090, 7
    %v1092 = vsub.s32 3, %v1091
    %v1093 = vrot.slane %v965, %v1092
    %v1094 = vlaneseq
    %v1095 = vshrl.u32 %v1094, 7
    %v1096 = vsub.s32 4, %v1095
    %v1097 = vrot.slane %v965, %v1096
    %v1098 = vlaneseq
    %v1099 = vshrl.u32 %v1098, 7
    %v1100 = vsub.s32 5, %v1099
    %v1101 = vrot.slane %v965, %v1100
    %v1102 = vlaneseq
    %v1103 = vshrl.u32 %v1102, 7
    %v1104 = vsub.s32 6, %v1103
    %v1105 = vrot.slane %v965, %v1104
    %v1106 = vlaneseq
    %v1107 = vshrl.u32 %v1106, 7
    %v1108 = vsub.s32 7, %v1107
    %v1109 = vrot.slane %v965, %v1108
    %v1110 = vlaneseq
    %v1111 = vshrl.u32 %v1110, 7
    %v1112 = vsub.s32 0, %v1111
    %v1113 = vrot.slane %v966, %v1112
    %v1114 = vlaneseq
    %v1115 = vshrl.u32 %v1114, 7
    %v1116 = vsub.s32 1, %v1115
    %v1117 = vrot.slane %v966, %v1116
    %v1118 = vlaneseq
    %v1119 = vshrl.u32 %v1118, 7
    %v1120 = vsub.s32 2, %v1119
    %v1121 = vrot.slane %v966, %v1120
    %v1122 = vlaneseq
    %v1123 = vshrl.u32 %v1122, 7
    %v1124 = vsub.s32 3, %v1123
    %v1125 = vrot.slane %v966, %v1124
    %v1126 = vlaneseq
    %v1127 = vshrl.u32 %v1126, 7
    %v1128 = vsub.s32 4, %v1127
    %v1129 = vrot.slane %v966, %v1128
    %v1130 = vlaneseq
    %v1131 = vshrl.u32 %v1130, 7
    %v1132 = vsub.s32 5, %v1131
    %v1133 = vrot.slane %v966, %v1132
    %v1134 = vlaneseq
    %v1135 = vshrl.u32 %v1134, 7
    %v1136 = vsub.s32 6, %v1135
    %v1137 = vrot.slane %v966, %v1136
    %v1138 = vlaneseq
    %v1139 = vshrl.u32 %v1138, 7
    %v1140 = vsub.s32 7, %v1139
    %v1141 = vrot.slane %v966, %v1140
    %v1142 = vlaneseq
    %v1143 = vshrl.u32 %v1142, 7
    %v1144 = vsub.s32 0, %v1143
    %v1145 = vrot.slane %v967, %v1144
    %v1146 = vlaneseq
    %v1147 = vshrl.u32 %v1146, 7
    %v1148 = vsub.s32 1, %v1147
    %v1149 = vrot.slane %v967, %v1148
    %v1150 = vlaneseq
    %v1151 = vshrl.u32 %v1150, 7
    %v1152 = vsub.s32 2, %v1151
    %v1153 = vrot.slane %v967, %v1152
    %v1154 = vlaneseq
    %v1155 = vshrl.u32 %v1154, 7
    %v1156 = vsub.s32 3, %v1155
    %v1157 = vrot.slane %v967, %v1156
    %v1158 = vlaneseq
    %v1159 = vshrl.u32 %v1158, 7
    %v1160 = vsub.s32 4, %v1159
    %v1161 = vrot.slane %v967, %v1160
    %v1162 = vlaneseq
    %v1163 = vshrl.u32 %v1162, 7
    %v1164 = vsub.s32 5, %v1163
    %v1165 = vrot.slane %v967, %v1164
    %v1166 = vlaneseq
    %v1167 = vshrl.u32 %v1166, 7
    %v1168 = vsub.s32 6, %v1167
    %v1169 = vrot.slane %v967, %v1168
    %v1170 = vlaneseq
    %v1171 = vshrl.u32 %v1170, 7
    %v1172 = vsub.s32 7, %v1171
    %v1173 = vrot.slane %v967, %v1172
    %v1174 = vlaneseq
    %v1175 = vshrl.u32 %v1174, 7
    %v1176 = vsub.s32 0, %v1175
    %v1177 = vrot.slane %v968, %v1176
    %v1178 = vlaneseq
    %v1179 = vshrl.u32 %v1178, 7
    %v1180 = vsub.s32 1, %v1179
    %v1181 = vrot.slane %v968, %v1180
    %v1182 = vlaneseq
    %v1183 = vshrl.u32 %v1182, 7
    %v1184 = vsub.s32 2, %v1183
    %v1185 = vrot.slane %v968, %v1184
    %v1186 = vlaneseq
    %v1187 = vshrl.u32 %v1186, 7
    %v1188 = vsub.s32 3, %v1187
    %v1189 = vrot.slane %v968, %v1188
    %v1190 = vlaneseq
    %v1191 = vshrl.u32 %v1190, 7
    %v1192 = vsub.s32 4, %v1191
    %v1193 = vrot.slane %v968, %v1192
    %v1194 = vlaneseq
    %v1195 = vshrl.u32 %v1194, 7
    %v1196 = vsub.s32 5, %v1195
    %v1197 = vrot.slane %v968, %v1196
    %v1198 = vlaneseq
    %v1199 = vshrl.u32 %v1198, 7
    %v1200 = vsub.s32 6, %v1199
    %v1201 = vrot.slane %v968, %v1200
    %v1202 = vlaneseq
    %v1203 = vshrl.u32 %v1202, 7
    %v1204 = vsub.s32 7, %v1203
    %v1205 = vrot.slane %v968, %v1204
    %v1206 = vlaneseq
    %v1207 = vshrl.u32 %v1206, 7
    %v1208 = vsub.s32 0, %v1207
    %v1209 = vrot.slane %v969, %v1208
    %v1210 = vlaneseq
    %v1211 = vshrl.u32 %v1210, 7
    %v1212 = vsub.s32 1, %v1211
    %v1213 = vrot.slane %v969, %v1212
    %v1214 = vlaneseq
    %v1215 = vshrl.u32 %v1214, 7
    %v1216 = vsub.s32 2, %v1215
    %v1217 = vrot.slane %v969, %v1216
    %v1218 = vlaneseq
    %v1219 = vshrl.u32 %v1218, 7
    %v1220 = vsub.s32 3, %v1219
    %v1221 = vrot.slane %v969, %v1220
    %v1222 = vlaneseq
    %v1223 = vshrl.u32 %v1222, 7
    %v1224 = vsub.s32 4, %v1223
    %v1225 = vrot.slane %v969, %v1224
    %v1226 = vlaneseq
    %v1227 = vshrl.u32 %v1226, 7
    %v1228 = vsub.s32 5, %v1227
    %v1229 = vrot.slane %v969, %v1228
    %v1230 = vlaneseq
    %v1231 = vshrl.u32 %v1230, 7
    %v1232 = vsub.s32 6, %v1231
    %v1233 = vrot.slane %v969, %v1232
    %v1234 = vlaneseq
    %v1235 = vshrl.u32 %v1234, 7
    %v1236 = vsub.s32 7, %v1235
    %v1237 = vrot.slane %v969, %v1236
    %v1238 = vlaneseq
    %v1239 = vshrl.u32 %v1238, 7
    %v1240 = vsub.s32 0, %v1239
    %v1241 = vrot.slane %v970, %v1240
    %v1242 = vlaneseq
    %v1243 = vshrl.u32 %v1242, 7
    %v1244 = vsub.s32 1, %v1243
    %v1245 = vrot.slane %v970, %v1244
    %v1246 = vlaneseq
    %v1247 = vshrl.u32 %v1246, 7
    %v1248 = vsub.s32 2, %v1247
    %v1249 = vrot.slane %v970, %v1248
    %v1250 = vlaneseq
    %v1251 = vshrl.u32 %v1250, 7
    %v1252 = vsub.s32 3, %v1251
    %v1253 = vrot.slane %v970, %v1252
    %v1254 = vlaneseq
    %v1255 = vshrl.u32 %v1254, 7
    %v1256 = vsub.s32 4, %v1255
    %v1257 = vrot.slane %v970, %v1256
    %v1258 = vlaneseq
    %v1259 = vshrl.u32 %v1258, 7
    %v1260 = vsub.s32 5, %v1259
    %v1261 = vrot.slane %v970, %v1260
    %v1262 = vlaneseq
    %v1263 = vshrl.u32 %v1262, 7
    %v1264 = vsub.s32 6, %v1263
    %v1265 = vrot.slane %v970, %v1264
    %v1266 = vlaneseq
    %v1267 = vshrl.u32 %v1266, 7
    %v1268 = vsub.s32 7, %v1267
    %v1269 = vrot.slane %v970, %v1268
    %v1270 = vlaneseq
    %v1271 = vshrl.u32 %v1270, 7
    %v1272 = vsub.s32 0, %v1271
    %v1273 = vrot.slane %v971, %v1272
    %v1274 = vlaneseq
    %v1275 = vshrl.u32 %v1274, 7
    %v1276 = vsub.s32 1, %v1275
    %v1277 = vrot.slane %v971, %v1276
    %v1278 = vlaneseq
    %v1279 = vshrl.u32 %v1278, 7
    %v1280 = vsub.s32 2, %v1279
    %v1281 = vrot.slane %v971, %v1280
    %v1282 = vlaneseq
    %v1283 = vshrl.u32 %v1282, 7
    %v1284 = vsub.s32 3, %v1283
    %v1285 = vrot.slane %v971, %v1284
    %v1286 = vlaneseq
    %v1287 = vshrl.u32 %v1286, 7
    %v1288 = vsub.s32 4, %v1287
    %v1289 = vrot.slane %v971, %v1288
    %v1290 = vlaneseq
    %v1291 = vshrl.u32 %v1290, 7
    %v1292 = vsub.s32 5, %v1291
    %v1293 = vrot.slane %v971, %v1292
    %v1294 = vlaneseq
    %v1295 = vshrl.u32 %v1294, 7
    %v1296 = vsub.s32 6, %v1295
    %v1297 = vrot.slane %v971, %v1296
    %v1378 = vsel %vm150, %v329, 0
    %v1381 = vsel %vm154, %v883, 0
    %v1384 = vsel %vm154, %v884, 0
    %v1387 = vsel %vm154, %v885, 0
    %v1390 = vsel %vm154, %v886, 0
    %v1393 = vsel %vm154, %v887, 0
    %v1396 = vsel %vm154, %v888, 0
    %v1399 = vsel %vm154, %v889, 0
    %v1402 = vsel %vm154, %v890, 0
    %v1405 = vsel %vm154, %v891, 0
    %v1408 = vsel %vm154, %v892, 0
    %v1411 = vsel %vm154, %v893, 0
    %v1414 = vsel %vm154, %v894, 0
    %v1417 = vsel %vm154, %v895, 0
    %v1420 = vsel %vm154, %v896, 0
    %v1423 = vsel %vm154, %v897, 0
    %v1426 = vsel %vm154, %v898, 0
    %v1429 = vsel %vm154, %v899, 0
    %v1432 = vsel %vm154, %v900, 0
    %v1435 = vsel %vm154, %v901, 0
    %v1438 = vsel %vm154, %v902, 0
    %v1441 = vsel %vm154, %v903, 0
    %v1444 = vsel %vm154, %v904, 0
    %v1447 = vsel %vm154, %v905, 0
    %v1450 = vsel %vm154, %v906, 0
    %v1453 = vsel %vm154, %v907, 0
    %v1456 = vsel %vm154, %v908, 0
    %v1459 = vsel %vm154, %v909, 0
    %v1462 = vsel %vm154, %v910, 0
    %v1465 = vsel %vm154, %v911, 0
    %v1468 = vsel %vm154, %v912, 0
    %v1471 = vsel %vm154, %v913, 0
    %v1474 = vsel %vm154, %v914, 0
    %v1477 = vsel %vm154, %v915, 0
    %v1480 = vsel %vm154, %v916, 0
    %v1483 = vsel %vm154, %v917, 0
    %v1486 = vsel %vm154, %v918, 0
    %v1489 = vsel %vm154, %v919, 0
    %v1492 = vsel %vm154, %v920, 0
    %v1495 = vsel %vm154, %v921, 0
    %v1498 = vsel %vm154, %v922, 0
    %v1501 = vsel %vm154, %v923, 0
    %v1504 = vsel %vm154, %v924, 0
    %v1507 = vsel %vm154, %v925, 0
    %v1510 = vsel %vm154, %v926, 0
    %v1513 = vsel %vm154, %v927, 0
    %v1516 = vsel %vm154, %v928, 0
    %v1519 = vsel %vm154, %v929, 0
    %v1522 = vsel %vm154, %v930, 0
    %v1525 = vsel %vm154, %v931, 0
    %v1528 = vsel %vm154, %v932, 0
    %v1531 = vsel %vm154, %v933, 0
    %v1534 = vsel %vm154, %v934, 0
    %v1537 = vsel %vm154, %v935, 0
    %v1540 = vsel %vm154, %v936, 0
    %v1543 = vsel %vm154, %v937, 0
    %v1546 = vsel %vm154, %v938, 0
    %v1549 = vsel %vm154, %v939, 0
    %v1552 = vsel %vm154, %v940, 0
    %v1555 = vsel %vm154, %v941, 0
    %v1558 = vsel %vm154, %v942, 0
    %v1561 = vsel %vm154, %v943, 0
    %v1564 = vsel %vm154, %v944, 0
    %v1567 = vsel %vm154, %v945, 0
    %v1570 = vsel %vm154, %v946, 0
    %v1573 = vsel %vm154, %v947, 0
    %v1576 = vsel %vm154, %v948, 0
    %v1579 = vsel %vm154, %v949, 0
    %v1582 = vsel %vm154, %v950, 0
    %v1585 = vsel %vm154, %v951, 0
    %v1588 = vsel %vm154, %v952, 0
    %v1591 = vsel %vm154, %v953, 0
    %v1594 = vsel %vm154, %v954, 0
    %v1597 = vsel %vm154, %v955, 0
    %v1600 = vsel %vm154, %v956, 0
    %v1603 = vsel %vm154, %v957, 0
    %v1606 = vsel %vm154, %v958, 0
    %v1609 = vsel %vm154, %v959, 0
    %v1612 = vsel %vm154, %v960, 0
    %v1615 = vsel %vm154, %v961, 0
    %1617 = vmatprep.subr.mxu0 %v331
    %1618 = vmatpush1.msra.mxu0 %v330
    %1619 = vmatprep.subr.mxu0 %v410
    %1620 = vmatpush1.msra.mxu0 %v409
    %1621 = vmatprep.subr.mxu0 %v489
    %1622 = vmatpush1.msra.mxu0 %v488
    %1623 = vmatprep.subr.mxu0 %v568
    %1624 = vmatpush1.msra.mxu0 %v567
    %1625 = vmatprep.subr.mxu0 %v647
    %1626 = vmatpush1.msra.mxu0 %v646
    %1627 = vmatprep.subr.mxu0 %v726
    %1628 = vmatpush1.msra.mxu0 %v725
    %1629 = vmatprep.subr.mxu0 %v805
    %1630 = vmatpush1.msra.mxu0 %v804
    %1631 = vmatprep.subr.mxu0 %v1384
    %1632 = vmatpush1.msra.mxu0 %v1381
    %1633 = vmatprep.subr.mxu0 0.0
    %1634 = vmatpush1.msra.mxu0 0.0
    %1635 = vmatprep.subr.mxu0 0.0
    %1636 = vmatpush1.msra.mxu0 0.0
    %1637 = vmatprep.subr.mxu0 0.0
    %1638 = vmatpush1.msra.mxu0 0.0
    %1639 = vmatprep.subr.mxu0 0.0
    %1640 = vmatpush1.msra.mxu0 0.0
    %1641 = vmatprep.subr.mxu0 0.0
    %1642 = vmatpush1.msra.mxu0 0.0
    %1643 = vmatprep.subr.mxu0 0.0
    %1644 = vmatpush1.msra.mxu0 0.0
    %1645 = vmatprep.subr.mxu0 0.0
    %1646 = vmatpush1.msra.mxu0 0.0
    %1647 = vmatprep.subr.mxu0 0.0
    %1648 = vmatpush1.msra.mxu0 0.0
    %1649 = vmatprep.subr.mxu0 0.0
    %1650 = vmatpush1.msra.mxu0 0.0
    %1651 = vmatprep.subr.mxu0 0.0
    %1652 = vmatpush1.msra.mxu0 0.0
    %1653 = vmatprep.subr.mxu0 0.0
    %1654 = vmatpush1.msra.mxu0 0.0
    %1655 = vmatprep.subr.mxu0 0.0
    %1656 = vmatpush1.msra.mxu0 0.0
    %1657 = vmatprep.subr.mxu0 0.0
    %1658 = vmatpush1.msra.mxu0 0.0
    %1659 = vmatprep.subr.mxu0 0.0
    %1660 = vmatpush1.msra.mxu0 0.0
    %1661 = vmatprep.subr.mxu0 0.0
    %1662 = vmatpush1.msra.mxu0 0.0
    %1663 = vmatprep.subr.mxu0 0.0
    %1664 = vmatpush1.msra.mxu0 0.0
    %1665 = vmatprep.subr.mxu0 0.0
    %1666 = vmatpush1.msra.mxu0 0.0
    %1667 = vmatprep.subr.mxu0 0.0
    %1668 = vmatpush1.msra.mxu0 0.0
    %1669 = vmatprep.subr.mxu0 0.0
    %1670 = vmatpush1.msra.mxu0 0.0
    %1671 = vmatprep.subr.mxu0 0.0
    %1672 = vmatpush1.msra.mxu0 0.0
    %1673 = vmatprep.subr.mxu0 0.0
    %1674 = vmatpush1.msra.mxu0 0.0
    %1675 = vmatprep.subr.mxu0 0.0
    %1676 = vmatpush1.msra.mxu0 0.0
    %1677 = vmatprep.subr.mxu0 0.0
    %1678 = vmatpush1.msra.mxu0 0.0
    %1679 = vmatprep.subr.mxu0 0.0
    %1680 = vmatpush1.msra.mxu0 0.0
    %1681 = vmatprep.mubr.f32.mxu0 0.0
    %1682 = vmatmul.mubr.f32.gmra.mrb[0].mxu0 %v1378
    %v1683 = vpop.f32.mrb[0].mxu0
    %v1684 = vadd.f32 %v985, %v1683
    %v1685 = vpop.f32.mrb[0].mxu0
    %v1686 = vadd.f32 %v989, %v1685
    %1687 = vdwg.mxu0
    %1688 = vmatprep.subr.mxu0 %v333
    %1689 = vmatpush1.msra.mxu0 %v332
    %1690 = vmatprep.subr.mxu0 %v412
    %1691 = vmatpush1.msra.mxu0 %v411
    %1692 = vmatprep.subr.mxu0 %v491
    %1693 = vmatpush1.msra.mxu0 %v490
    %1694 = vmatprep.subr.mxu0 %v570
    %1695 = vmatpush1.msra.mxu0 %v569
    %1696 = vmatprep.subr.mxu0 %v649
    %1697 = vmatpush1.msra.mxu0 %v648
    %1698 = vmatprep.subr.mxu0 %v728
    %1699 = vmatpush1.msra.mxu0 %v727
    %1700 = vmatprep.subr.mxu0 %v807
    %1701 = vmatpush1.msra.mxu0 %v806
    %1702 = vmatprep.subr.mxu0 %v1390
    %1703 = vmatpush1.msra.mxu0 %v1387
    %1704 = vmatprep.subr.mxu0 0.0
    %1705 = vmatpush1.msra.mxu0 0.0
    %1706 = vmatprep.subr.mxu0 0.0
    %1707 = vmatpush1.msra.mxu0 0.0
    %1708 = vmatprep.subr.mxu0 0.0
    %1709 = vmatpush1.msra.mxu0 0.0
    %1710 = vmatprep.subr.mxu0 0.0
    %1711 = vmatpush1.msra.mxu0 0.0
    %1712 = vmatprep.subr.mxu0 0.0
    %1713 = vmatpush1.msra.mxu0 0.0
    %1714 = vmatprep.subr.mxu0 0.0
    %1715 = vmatpush1.msra.mxu0 0.0
    %1716 = vmatprep.subr.mxu0 0.0
    %1717 = vmatpush1.msra.mxu0 0.0
    %1718 = vmatprep.subr.mxu0 0.0
    %1719 = vmatpush1.msra.mxu0 0.0
    %1720 = vmatprep.subr.mxu0 0.0
    %1721 = vmatpush1.msra.mxu0 0.0
    %1722 = vmatprep.subr.mxu0 0.0
    %1723 = vmatpush1.msra.mxu0 0.0
    %1724 = vmatprep.subr.mxu0 0.0
    %1725 = vmatpush1.msra.mxu0 0.0
    %1726 = vmatprep.subr.mxu0 0.0
    %1727 = vmatpush1.msra.mxu0 0.0
    %1728 = vmatprep.subr.mxu0 0.0
    %1729 = vmatpush1.msra.mxu0 0.0
    %1730 = vmatprep.subr.mxu0 0.0
    %1731 = vmatpush1.msra.mxu0 0.0
    %1732 = vmatprep.subr.mxu0 0.0
    %1733 = vmatpush1.msra.mxu0 0.0
    %1734 = vmatprep.subr.mxu0 0.0
    %1735 = vmatpush1.msra.mxu0 0.0
    %1736 = vmatprep.subr.mxu0 0.0
    %1737 = vmatpush1.msra.mxu0 0.0
    %1738 = vmatprep.subr.mxu0 0.0
    %1739 = vmatpush1.msra.mxu0 0.0
    %1740 = vmatprep.subr.mxu0 0.0
    %1741 = vmatpush1.msra.mxu0 0.0
    %1742 = vmatprep.subr.mxu0 0.0
    %1743 = vmatpush1.msra.mxu0 0.0
    %1744 = vmatprep.subr.mxu0 0.0
    %1745 = vmatpush1.msra.mxu0 0.0
    %1746 = vmatprep.subr.mxu0 0.0
    %1747 = vmatpush1.msra.mxu0 0.0
    %1748 = vmatprep.subr.mxu0 0.0
    %1749 = vmatpush1.msra.mxu0 0.0
    %1750 = vmatprep.subr.mxu0 0.0
    %1751 = vmatpush1.msra.mxu0 0.0
    %1752 = vmatprep.mubr.f32.mxu0 0.0
    %1753 = vmatmul.mubr.f32.gmra.mrb[0].mxu0 %v1378
    %v1754 = vpop.f32.mrb[0].mxu0
    %v1755 = vadd.f32 %v993, %v1754
    %v1756 = vpop.f32.mrb[0].mxu0
    %v1757 = vadd.f32 %v997, %v1756
    %1758 = vdwg.mxu0
    %1759 = vmatprep.subr.mxu0 %v335
    %1760 = vmatpush1.msra.mxu0 %v334
    %1761 = vmatprep.subr.mxu0 %v414
    %1762 = vmatpush1.msra.mxu0 %v413
    %1763 = vmatprep.subr.mxu0 %v493
    %1764 = vmatpush1.msra.mxu0 %v492
    %1765 = vmatprep.subr.mxu0 %v572
    %1766 = vmatpush1.msra.mxu0 %v571
    %1767 = vmatprep.subr.mxu0 %v651
    %1768 = vmatpush1.msra.mxu0 %v650
    %1769 = vmatprep.subr.mxu0 %v730
    %1770 = vmatpush1.msra.mxu0 %v729
    %1771 = vmatprep.subr.mxu0 %v809
    %1772 = vmatpush1.msra.mxu0 %v808
    %1773 = vmatprep.subr.mxu0 %v1396
    %1774 = vmatpush1.msra.mxu0 %v1393
    %1775 = vmatprep.subr.mxu0 0.0
    %1776 = vmatpush1.msra.mxu0 0.0
    %1777 = vmatprep.subr.mxu0 0.0
    %1778 = vmatpush1.msra.mxu0 0.0
    %1779 = vmatprep.subr.mxu0 0.0
    %1780 = vmatpush1.msra.mxu0 0.0
    %1781 = vmatprep.subr.mxu0 0.0
    %1782 = vmatpush1.msra.mxu0 0.0
    %1783 = vmatprep.subr.mxu0 0.0
    %1784 = vmatpush1.msra.mxu0 0.0
    %1785 = vmatprep.subr.mxu0 0.0
    %1786 = vmatpush1.msra.mxu0 0.0
    %1787 = vmatprep.subr.mxu0 0.0
    %1788 = vmatpush1.msra.mxu0 0.0
    %1789 = vmatprep.subr.mxu0 0.0
    %1790 = vmatpush1.msra.mxu0 0.0
    %1791 = vmatprep.subr.mxu0 0.0
    %1792 = vmatpush1.msra.mxu0 0.0
    %1793 = vmatprep.subr.mxu0 0.0
    %1794 = vmatpush1.msra.mxu0 0.0
    %1795 = vmatprep.subr.mxu0 0.0
    %1796 = vmatpush1.msra.mxu0 0.0
    %1797 = vmatprep.subr.mxu0 0.0
    %1798 = vmatpush1.msra.mxu0 0.0
    %1799 = vmatprep.subr.mxu0 0.0
    %1800 = vmatpush1.msra.mxu0 0.0
    %1801 = vmatprep.subr.mxu0 0.0
    %1802 = vmatpush1.msra.mxu0 0.0
    %1803 = vmatprep.subr.mxu0 0.0
    %1804 = vmatpush1.msra.mxu0 0.0
    %1805 = vmatprep.subr.mxu0 0.0
    %1806 = vmatpush1.msra.mxu0 0.0
    %1807 = vmatprep.subr.mxu0 0.0
    %1808 = vmatpush1.msra.mxu0 0.0
    %1809 = vmatprep.subr.mxu0 0.0
    %1810 = vmatpush1.msra.mxu0 0.0
    %1811 = vmatprep.subr.mxu0 0.0
    %1812 = vmatpush1.msra.mxu0 0.0
    %1813 = vmatprep.subr.mxu0 0.0
    %1814 = vmatpush1.msra.mxu0 0.0
    %1815 = vmatprep.subr.mxu0 0.0
    %1816 = vmatpush1.msra.mxu0 0.0
    %1817 = vmatprep.subr.mxu0 0.0
    %1818 = vmatpush1.msra.mxu0 0.0
    %1819 = vmatprep.subr.mxu0 0.0
    %1820 = vmatpush1.msra.mxu0 0.0
    %1821 = vmatprep.subr.mxu0 0.0
    %1822 = vmatpush1.msra.mxu0 0.0
    %1823 = vmatprep.mubr.f32.mxu0 0.0
    %1824 = vmatmul.mubr.f32.gmra.mrb[0].mxu0 %v1378
    %v1825 = vpop.f32.mrb[0].mxu0
    %v1826 = vadd.f32 %v1001, %v1825
    %v1827 = vpop.f32.mrb[0].mxu0
    %v1828 = vadd.f32 %v1005, %v1827
    %1829 = vdwg.mxu0
    %1830 = vmatprep.subr.mxu0 %v337
    %1831 = vmatpush1.msra.mxu0 %v336
    %1832 = vmatprep.subr.mxu0 %v416
    %1833 = vmatpush1.msra.mxu0 %v415
    %1834 = vmatprep.subr.mxu0 %v495
    %1835 = vmatpush1.msra.mxu0 %v494
    %1836 = vmatprep.subr.mxu0 %v574
    %1837 = vmatpush1.msra.mxu0 %v573
    %1838 = vmatprep.subr.mxu0 %v653
    %1839 = vmatpush1.msra.mxu0 %v652
    %1840 = vmatprep.subr.mxu0 %v732
    %1841 = vmatpush1.msra.mxu0 %v731
    %1842 = vmatprep.subr.mxu0 %v811
    %1843 = vmatpush1.msra.mxu0 %v810
    %1844 = vmatprep.subr.mxu0 %v1402
    %1845 = vmatpush1.msra.mxu0 %v1399
    %1846 = vmatprep.subr.mxu0 0.0
    %1847 = vmatpush1.msra.mxu0 0.0
    %1848 = vmatprep.subr.mxu0 0.0
    %1849 = vmatpush1.msra.mxu0 0.0
    %1850 = vmatprep.subr.mxu0 0.0
    %1851 = vmatpush1.msra.mxu0 0.0
    %1852 = vmatprep.subr.mxu0 0.0
    %1853 = vmatpush1.msra.mxu0 0.0
    %1854 = vmatprep.subr.mxu0 0.0
    %1855 = vmatpush1.msra.mxu0 0.0
    %1856 = vmatprep.subr.mxu0 0.0
    %1857 = vmatpush1.msra.mxu0 0.0
    %1858 = vmatprep.subr.mxu0 0.0
    %1859 = vmatpush1.msra.mxu0 0.0
    %1860 = vmatprep.subr.mxu0 0.0
    %1861 = vmatpush1.msra.mxu0 0.0
    %1862 = vmatprep.subr.mxu0 0.0
    %1863 = vmatpush1.msra.mxu0 0.0
    %1864 = vmatprep.subr.mxu0 0.0
    %1865 = vmatpush1.msra.mxu0 0.0
    %1866 = vmatprep.subr.mxu0 0.0
    %1867 = vmatpush1.msra.mxu0 0.0
    %1868 = vmatprep.subr.mxu0 0.0
    %1869 = vmatpush1.msra.mxu0 0.0
    %1870 = vmatprep.subr.mxu0 0.0
    %1871 = vmatpush1.msra.mxu0 0.0
    %1872 = vmatprep.subr.mxu0 0.0
    %1873 = vmatpush1.msra.mxu0 0.0
    %1874 = vmatprep.subr.mxu0 0.0
    %1875 = vmatpush1.msra.mxu0 0.0
    %1876 = vmatprep.subr.mxu0 0.0
    %1877 = vmatpush1.msra.mxu0 0.0
    %1878 = vmatprep.subr.mxu0 0.0
    %1879 = vmatpush1.msra.mxu0 0.0
    %1880 = vmatprep.subr.mxu0 0.0
    %1881 = vmatpush1.msra.mxu0 0.0
    %1882 = vmatprep.subr.mxu0 0.0
    %1883 = vmatpush1.msra.mxu0 0.0
    %1884 = vmatprep.subr.mxu0 0.0
    %1885 = vmatpush1.msra.mxu0 0.0
    %1886 = vmatprep.subr.mxu0 0.0
    %1887 = vmatpush1.msra.mxu0 0.0
    %1888 = vmatprep.subr.mxu0 0.0
    %1889 = vmatpush1.msra.mxu0 0.0
    %1890 = vmatprep.subr.mxu0 0.0
    %1891 = vmatpush1.msra.mxu0 0.0
    %1892 = vmatprep.subr.mxu0 0.0
    %1893 = vmatpush1.msra.mxu0 0.0
    %1894 = vmatprep.mubr.f32.mxu0 0.0
    %1895 = vmatmul.mubr.f32.gmra.mrb[0].mxu0 %v1378
    %v1896 = vpop.f32.mrb[0].mxu0
    %v1897 = vadd.f32 %v1009, %v1896
    %v1898 = vpop.f32.mrb[0].mxu0
    %v1899 = vadd.f32 %v1013, %v1898
    %1900 = vdwg.mxu0
    %1901 = vmatprep.subr.mxu0 %v339
    %1902 = vmatpush1.msra.mxu0 %v338
    %1903 = vmatprep.subr.mxu0 %v418
    %1904 = vmatpush1.msra.mxu0 %v417
    %1905 = vmatprep.subr.mxu0 %v497
    %1906 = vmatpush1.msra.mxu0 %v496
    %1907 = vmatprep.subr.mxu0 %v576
    %1908 = vmatpush1.msra.mxu0 %v575
    %1909 = vmatprep.subr.mxu0 %v655
    %1910 = vmatpush1.msra.mxu0 %v654
    %1911 = vmatprep.subr.mxu0 %v734
    %1912 = vmatpush1.msra.mxu0 %v733
    %1913 = vmatprep.subr.mxu0 %v813
    %1914 = vmatpush1.msra.mxu0 %v812
    %1915 = vmatprep.subr.mxu0 %v1408
    %1916 = vmatpush1.msra.mxu0 %v1405
    %1917 = vmatprep.subr.mxu0 0.0
    %1918 = vmatpush1.msra.mxu0 0.0
    %1919 = vmatprep.subr.mxu0 0.0
    %1920 = vmatpush1.msra.mxu0 0.0
    %1921 = vmatprep.subr.mxu0 0.0
    %1922 = vmatpush1.msra.mxu0 0.0
    %1923 = vmatprep.subr.mxu0 0.0
    %1924 = vmatpush1.msra.mxu0 0.0
    %1925 = vmatprep.subr.mxu0 0.0
    %1926 = vmatpush1.msra.mxu0 0.0
    %1927 = vmatprep.subr.mxu0 0.0
    %1928 = vmatpush1.msra.mxu0 0.0
    %1929 = vmatprep.subr.mxu0 0.0
    %1930 = vmatpush1.msra.mxu0 0.0
    %1931 = vmatprep.subr.mxu0 0.0
    %1932 = vmatpush1.msra.mxu0 0.0
    %1933 = vmatprep.subr.mxu0 0.0
    %1934 = vmatpush1.msra.mxu0 0.0
    %1935 = vmatprep.subr.mxu0 0.0
    %1936 = vmatpush1.msra.mxu0 0.0
    %1937 = vmatprep.subr.mxu0 0.0
    %1938 = vmatpush1.msra.mxu0 0.0
    %1939 = vmatprep.subr.mxu0 0.0
    %1940 = vmatpush1.msra.mxu0 0.0
    %1941 = vmatprep.subr.mxu0 0.0
    %1942 = vmatpush1.msra.mxu0 0.0
    %1943 = vmatprep.subr.mxu0 0.0
    %1944 = vmatpush1.msra.mxu0 0.0
    %1945 = vmatprep.subr.mxu0 0.0
    %1946 = vmatpush1.msra.mxu0 0.0
    %1947 = vmatprep.subr.mxu0 0.0
    %1948 = vmatpush1.msra.mxu0 0.0
    %1949 = vmatprep.subr.mxu0 0.0
    %1950 = vmatpush1.msra.mxu0 0.0
    %1951 = vmatprep.subr.mxu0 0.0
    %1952 = vmatpush1.msra.mxu0 0.0
    %1953 = vmatprep.subr.mxu0 0.0
    %1954 = vmatpush1.msra.mxu0 0.0
    %1955 = vmatprep.subr.mxu0 0.0
    %1956 = vmatpush1.msra.mxu0 0.0
    %1957 = vmatprep.subr.mxu0 0.0
    %1958 = vmatpush1.msra.mxu0 0.0
    %1959 = vmatprep.subr.mxu0 0.0
    %1960 = vmatpush1.msra.mxu0 0.0
    %1961 = vmatprep.subr.mxu0 0.0
    %1962 = vmatpush1.msra.mxu0 0.0
    %1963 = vmatprep.subr.mxu0 0.0
    %1964 = vmatpush1.msra.mxu0 0.0
    %1965 = vmatprep.mubr.f32.mxu0 0.0
    %1966 = vmatmul.mubr.f32.gmra.mrb[0].mxu0 %v1378
    %v1967 = vpop.f32.mrb[0].mxu0
    %v1968 = vadd.f32 %v1017, %v1967
    %v1969 = vpop.f32.mrb[0].mxu0
    %v1970 = vadd.f32 %v1021, %v1969
    %1971 = vdwg.mxu0
    %1972 = vmatprep.subr.mxu0 %v341
    %1973 = vmatpush1.msra.mxu0 %v340
    %1974 = vmatprep.subr.mxu0 %v420
    %1975 = vmatpush1.msra.mxu0 %v419
    %1976 = vmatprep.subr.mxu0 %v499
    %1977 = vmatpush1.msra.mxu0 %v498
    %1978 = vmatprep.subr.mxu0 %v578
    %1979 = vmatpush1.msra.mxu0 %v577
    %1980 = vmatprep.subr.mxu0 %v657
    %1981 = vmatpush1.msra.mxu0 %v656
    %1982 = vmatprep.subr.mxu0 %v736
    %1983 = vmatpush1.msra.mxu0 %v735
    %1984 = vmatprep.subr.mxu0 %v815
    %1985 = vmatpush1.msra.mxu0 %v814
    %1986 = vmatprep.subr.mxu0 %v1414
    %1987 = vmatpush1.msra.mxu0 %v1411
    %1988 = vmatprep.subr.mxu0 0.0
    %1989 = vmatpush1.msra.mxu0 0.0
    %1990 = vmatprep.subr.mxu0 0.0
    %1991 = vmatpush1.msra.mxu0 0.0
    %1992 = vmatprep.subr.mxu0 0.0
    %1993 = vmatpush1.msra.mxu0 0.0
    %1994 = vmatprep.subr.mxu0 0.0
    %1995 = vmatpush1.msra.mxu0 0.0
    %1996 = vmatprep.subr.mxu0 0.0
    %1997 = vmatpush1.msra.mxu0 0.0
    %1998 = vmatprep.subr.mxu0 0.0
    %1999 = vmatpush1.msra.mxu0 0.0
    %2000 = vmatprep.subr.mxu0 0.0
    %2001 = vmatpush1.msra.mxu0 0.0
    %2002 = vmatprep.subr.mxu0 0.0
    %2003 = vmatpush1.msra.mxu0 0.0
    %2004 = vmatprep.subr.mxu0 0.0
    %2005 = vmatpush1.msra.mxu0 0.0
    %2006 = vmatprep.subr.mxu0 0.0
    %2007 = vmatpush1.msra.mxu0 0.0
    %2008 = vmatprep.subr.mxu0 0.0
    %2009 = vmatpush1.msra.mxu0 0.0
    %2010 = vmatprep.subr.mxu0 0.0
    %2011 = vmatpush1.msra.mxu0 0.0
    %2012 = vmatprep.subr.mxu0 0.0
    %2013 = vmatpush1.msra.mxu0 0.0
    %2014 = vmatprep.subr.mxu0 0.0
    %2015 = vmatpush1.msra.mxu0 0.0
    %2016 = vmatprep.subr.mxu0 0.0
    %2017 = vmatpush1.msra.mxu0 0.0
    %2018 = vmatprep.subr.mxu0 0.0
    %2019 = vmatpush1.msra.mxu0 0.0
    %2020 = vmatprep.subr.mxu0 0.0
    %2021 = vmatpush1.msra.mxu0 0.0
    %2022 = vmatprep.subr.mxu0 0.0
    %2023 = vmatpush1.msra.mxu0 0.0
    %2024 = vmatprep.subr.mxu0 0.0
    %2025 = vmatpush1.msra.mxu0 0.0
    %2026 = vmatprep.subr.mxu0 0.0
    %2027 = vmatpush1.msra.mxu0 0.0
    %2028 = vmatprep.subr.mxu0 0.0
    %2029 = vmatpush1.msra.mxu0 0.0
    %2030 = vmatprep.subr.mxu0 0.0
    %2031 = vmatpush1.msra.mxu0 0.0
    %2032 = vmatprep.subr.mxu0 0.0
    %2033 = vmatpush1.msra.mxu0 0.0
    %2034 = vmatprep.subr.mxu0 0.0
    %2035 = vmatpush1.msra.mxu0 0.0
    %2036 = vmatprep.mubr.f32.mxu0 0.0
    %2037 = vmatmul.mubr.f32.gmra.mrb[0].mxu0 %v1378
    %v2038 = vpop.f32.mrb[0].mxu0
    %v2039 = vadd.f32 %v1025, %v2038
    %v2040 = vpop.f32.mrb[0].mxu0
    %v2041 = vadd.f32 %v1029, %v2040
    %2042 = vdwg.mxu0
    %2043 = vmatprep.subr.mxu0 %v343
    %2044 = vmatpush1.msra.mxu0 %v342
    %2045 = vmatprep.subr.mxu0 %v422
    %2046 = vmatpush1.msra.mxu0 %v421
    %2047 = vmatprep.subr.mxu0 %v501
    %2048 = vmatpush1.msra.mxu0 %v500
    %2049 = vmatprep.subr.mxu0 %v580
    %2050 = vmatpush1.msra.mxu0 %v579
    %2051 = vmatprep.subr.mxu0 %v659
    %2052 = vmatpush1.msra.mxu0 %v658
    %2053 = vmatprep.subr.mxu0 %v738
    %2054 = vmatpush1.msra.mxu0 %v737
    %2055 = vmatprep.subr.mxu0 %v817
    %2056 = vmatpush1.msra.mxu0 %v816
    %2057 = vmatprep.subr.mxu0 %v1420
    %2058 = vmatpush1.msra.mxu0 %v1417
    %2059 = vmatprep.subr.mxu0 0.0
    %2060 = vmatpush1.msra.mxu0 0.0
    %2061 = vmatprep.subr.mxu0 0.0
    %2062 = vmatpush1.msra.mxu0 0.0
    %2063 = vmatprep.subr.mxu0 0.0
    %2064 = vmatpush1.msra.mxu0 0.0
    %2065 = vmatprep.subr.mxu0 0.0
    %2066 = vmatpush1.msra.mxu0 0.0
    %2067 = vmatprep.subr.mxu0 0.0
    %2068 = vmatpush1.msra.mxu0 0.0
    %2069 = vmatprep.subr.mxu0 0.0
    %2070 = vmatpush1.msra.mxu0 0.0
    %2071 = vmatprep.subr.mxu0 0.0
    %2072 = vmatpush1.msra.mxu0 0.0
    %2073 = vmatprep.subr.mxu0 0.0
    %2074 = vmatpush1.msra.mxu0 0.0
    %2075 = vmatprep.subr.mxu0 0.0
    %2076 = vmatpush1.msra.mxu0 0.0
    %2077 = vmatprep.subr.mxu0 0.0
    %2078 = vmatpush1.msra.mxu0 0.0
    %2079 = vmatprep.subr.mxu0 0.0
    %2080 = vmatpush1.msra.mxu0 0.0
    %2081 = vmatprep.subr.mxu0 0.0
    %2082 = vmatpush1.msra.mxu0 0.0
    %2083 = vmatprep.subr.mxu0 0.0
    %2084 = vmatpush1.msra.mxu0 0.0
    %2085 = vmatprep.subr.mxu0 0.0
    %2086 = vmatpush1.msra.mxu0 0.0
    %2087 = vmatprep.subr.mxu0 0.0
    %2088 = vmatpush1.msra.mxu0 0.0
    %2089 = vmatprep.subr.mxu0 0.0
    %2090 = vmatpush1.msra.mxu0 0.0
    %2091 = vmatprep.subr.mxu0 0.0
    %2092 = vmatpush1.msra.mxu0 0.0
    %2093 = vmatprep.subr.mxu0 0.0
    %2094 = vmatpush1.msra.mxu0 0.0
    %2095 = vmatprep.subr.mxu0 0.0
    %2096 = vmatpush1.msra.mxu0 0.0
    %2097 = vmatprep.subr.mxu0 0.0
    %2098 = vmatpush1.msra.mxu0 0.0
    %2099 = vmatprep.subr.mxu0 0.0
    %2100 = vmatpush1.msra.mxu0 0.0
    %2101 = vmatprep.subr.mxu0 0.0
    %2102 = vmatpush1.msra.mxu0 0.0
    %2103 = vmatprep.subr.mxu0 0.0
    %2104 = vmatpush1.msra.mxu0 0.0
    %2105 = vmatprep.subr.mxu0 0.0
    %2106 = vmatpush1.msra.mxu0 0.0
    %2107 = vmatprep.mubr.f32.mxu0 0.0
    %2108 = vmatmul.mubr.f32.gmra.mrb[0].mxu0 %v1378
    %v2109 = vpop.f32.mrb[0].mxu0
    %v2110 = vadd.f32 %v1033, %v2109
    %v2111 = vpop.f32.mrb[0].mxu0
    %v2112 = vadd.f32 %v1037, %v2111
    %2113 = vdwg.mxu0
    %2114 = vmatprep.subr.mxu0 %v345
    %2115 = vmatpush1.msra.mxu0 %v344
    %2116 = vmatprep.subr.mxu0 %v424
    %2117 = vmatpush1.msra.mxu0 %v423
    %2118 = vmatprep.subr.mxu0 %v503
    %2119 = vmatpush1.msra.mxu0 %v502
    %2120 = vmatprep.subr.mxu0 %v582
    %2121 = vmatpush1.msra.mxu0 %v581
    %2122 = vmatprep.subr.mxu0 %v661
    %2123 = vmatpush1.msra.mxu0 %v660
    %2124 = vmatprep.subr.mxu0 %v740
    %2125 = vmatpush1.msra.mxu0 %v739
    %2126 = vmatprep.subr.mxu0 %v819
    %2127 = vmatpush1.msra.mxu0 %v818
    %2128 = vmatprep.subr.mxu0 %v1426
    %2129 = vmatpush1.msra.mxu0 %v1423
    %2130 = vmatprep.subr.mxu0 0.0
    %2131 = vmatpush1.msra.mxu0 0.0
    %2132 = vmatprep.subr.mxu0 0.0
    %2133 = vmatpush1.msra.mxu0 0.0
    %2134 = vmatprep.subr.mxu0 0.0
    %2135 = vmatpush1.msra.mxu0 0.0
    %2136 = vmatprep.subr.mxu0 0.0
    %2137 = vmatpush1.msra.mxu0 0.0
    %2138 = vmatprep.subr.mxu0 0.0
    %2139 = vmatpush1.msra.mxu0 0.0
    %2140 = vmatprep.subr.mxu0 0.0
    %2141 = vmatpush1.msra.mxu0 0.0
    %2142 = vmatprep.subr.mxu0 0.0
    %2143 = vmatpush1.msra.mxu0 0.0
    %2144 = vmatprep.subr.mxu0 0.0
    %2145 = vmatpush1.msra.mxu0 0.0
    %2146 = vmatprep.subr.mxu0 0.0
    %2147 = vmatpush1.msra.mxu0 0.0
    %2148 = vmatprep.subr.mxu0 0.0
    %2149 = vmatpush1.msra.mxu0 0.0
    %2150 = vmatprep.subr.mxu0 0.0
    %2151 = vmatpush1.msra.mxu0 0.0
    %2152 = vmatprep.subr.mxu0 0.0
    %2153 = vmatpush1.msra.mxu0 0.0
    %2154 = vmatprep.subr.mxu0 0.0
    %2155 = vmatpush1.msra.mxu0 0.0
    %2156 = vmatprep.subr.mxu0 0.0
    %2157 = vmatpush1.msra.mxu0 0.0
    %2158 = vmatprep.subr.mxu0 0.0
    %2159 = vmatpush1.msra.mxu0 0.0
    %2160 = vmatprep.subr.mxu0 0.0
    %2161 = vmatpush1.msra.mxu0 0.0
    %2162 = vmatprep.subr.mxu0 0.0
    %2163 = vmatpush1.msra.mxu0 0.0
    %2164 = vmatprep.subr.mxu0 0.0
    %2165 = vmatpush1.msra.mxu0 0.0
    %2166 = vmatprep.subr.mxu0 0.0
    %2167 = vmatpush1.msra.mxu0 0.0
    %2168 = vmatprep.subr.mxu0 0.0
    %2169 = vmatpush1.msra.mxu0 0.0
    %2170 = vmatprep.subr.mxu0 0.0
    %2171 = vmatpush1.msra.mxu0 0.0
    %2172 = vmatprep.subr.mxu0 0.0
    %2173 = vmatpush1.msra.mxu0 0.0
    %2174 = vmatprep.subr.mxu0 0.0
    %2175 = vmatpush1.msra.mxu0 0.0
    %2176 = vmatprep.subr.mxu0 0.0
    %2177 = vmatpush1.msra.mxu0 0.0
    %2178 = vmatprep.mubr.f32.mxu0 0.0
    %2179 = vmatmul.mubr.f32.gmra.mrb[0].mxu0 %v1378
    %v2180 = vpop.f32.mrb[0].mxu0
    %v2181 = vadd.f32 %v1041, %v2180
    %v2182 = vpop.f32.mrb[0].mxu0
    %v2183 = vadd.f32 %v1045, %v2182
    %2184 = vdwg.mxu0
    %2185 = vmatprep.subr.mxu0 %v347
    %2186 = vmatpush1.msra.mxu0 %v346
    %2187 = vmatprep.subr.mxu0 %v426
    %2188 = vmatpush1.msra.mxu0 %v425
    %2189 = vmatprep.subr.mxu0 %v505
    %2190 = vmatpush1.msra.mxu0 %v504
    %2191 = vmatprep.subr.mxu0 %v584
    %2192 = vmatpush1.msra.mxu0 %v583
    %2193 = vmatprep.subr.mxu0 %v663
    %2194 = vmatpush1.msra.mxu0 %v662
    %2195 = vmatprep.subr.mxu0 %v742
    %2196 = vmatpush1.msra.mxu0 %v741
    %2197 = vmatprep.subr.mxu0 %v821
    %2198 = vmatpush1.msra.mxu0 %v820
    %2199 = vmatprep.subr.mxu0 %v1432
    %2200 = vmatpush1.msra.mxu0 %v1429
    %2201 = vmatprep.subr.mxu0 0.0
    %2202 = vmatpush1.msra.mxu0 0.0
    %2203 = vmatprep.subr.mxu0 0.0
    %2204 = vmatpush1.msra.mxu0 0.0
    %2205 = vmatprep.subr.mxu0 0.0
    %2206 = vmatpush1.msra.mxu0 0.0
    %2207 = vmatprep.subr.mxu0 0.0
    %2208 = vmatpush1.msra.mxu0 0.0
    %2209 = vmatprep.subr.mxu0 0.0
    %2210 = vmatpush1.msra.mxu0 0.0
    %2211 = vmatprep.subr.mxu0 0.0
    %2212 = vmatpush1.msra.mxu0 0.0
    %2213 = vmatprep.subr.mxu0 0.0
    %2214 = vmatpush1.msra.mxu0 0.0
    %2215 = vmatprep.subr.mxu0 0.0
    %2216 = vmatpush1.msra.mxu0 0.0
    %2217 = vmatprep.subr.mxu0 0.0
    %2218 = vmatpush1.msra.mxu0 0.0
    %2219 = vmatprep.subr.mxu0 0.0
    %2220 = vmatpush1.msra.mxu0 0.0
    %2221 = vmatprep.subr.mxu0 0.0
    %2222 = vmatpush1.msra.mxu0 0.0
    %2223 = vmatprep.subr.mxu0 0.0
    %2224 = vmatpush1.msra.mxu0 0.0
    %2225 = vmatprep.subr.mxu0 0.0
    %2226 = vmatpush1.msra.mxu0 0.0
    %2227 = vmatprep.subr.mxu0 0.0
    %2228 = vmatpush1.msra.mxu0 0.0
    %2229 = vmatprep.subr.mxu0 0.0
    %2230 = vmatpush1.msra.mxu0 0.0
    %2231 = vmatprep.subr.mxu0 0.0
    %2232 = vmatpush1.msra.mxu0 0.0
    %2233 = vmatprep.subr.mxu0 0.0
    %2234 = vmatpush1.msra.mxu0 0.0
    %2235 = vmatprep.subr.mxu0 0.0
    %2236 = vmatpush1.msra.mxu0 0.0
    %2237 = vmatprep.subr.mxu0 0.0
    %2238 = vmatpush1.msra.mxu0 0.0
    %2239 = vmatprep.subr.mxu0 0.0
    %2240 = vmatpush1.msra.mxu0 0.0
    %2241 = vmatprep.subr.mxu0 0.0
    %2242 = vmatpush1.msra.mxu0 0.0
    %2243 = vmatprep.subr.mxu0 0.0
    %2244 = vmatpush1.msra.mxu0 0.0
    %2245 = vmatprep.subr.mxu0 0.0
    %2246 = vmatpush1.msra.mxu0 0.0
    %2247 = vmatprep.subr.mxu0 0.0
    %2248 = vmatpush1.msra.mxu0 0.0
    %2249 = vmatprep.mubr.f32.mxu0 0.0
    %2250 = vmatmul.mubr.f32.gmra.mrb[0].mxu0 %v1378
    %v2251 = vpop.f32.mrb[0].mxu0
    %v2252 = vadd.f32 %v1049, %v2251
    %v2253 = vpop.f32.mrb[0].mxu0
    %v2254 = vadd.f32 %v1053, %v2253
    %2255 = vdwg.mxu0
    %2256 = vmatprep.subr.mxu0 %v349
    %2257 = vmatpush1.msra.mxu0 %v348
    %2258 = vmatprep.subr.mxu0 %v428
    %2259 = vmatpush1.msra.mxu0 %v427
    %2260 = vmatprep.subr.mxu0 %v507
    %2261 = vmatpush1.msra.mxu0 %v506
    %2262 = vmatprep.subr.mxu0 %v586
    %2263 = vmatpush1.msra.mxu0 %v585
    %2264 = vmatprep.subr.mxu0 %v665
    %2265 = vmatpush1.msra.mxu0 %v664
    %2266 = vmatprep.subr.mxu0 %v744
    %2267 = vmatpush1.msra.mxu0 %v743
    %2268 = vmatprep.subr.mxu0 %v823
    %2269 = vmatpush1.msra.mxu0 %v822
    %2270 = vmatprep.subr.mxu0 %v1438
    %2271 = vmatpush1.msra.mxu0 %v1435
    %2272 = vmatprep.subr.mxu0 0.0
    %2273 = vmatpush1.msra.mxu0 0.0
    %2274 = vmatprep.subr.mxu0 0.0
    %2275 = vmatpush1.msra.mxu0 0.0
    %2276 = vmatprep.subr.mxu0 0.0
    %2277 = vmatpush1.msra.mxu0 0.0
    %2278 = vmatprep.subr.mxu0 0.0
    %2279 = vmatpush1.msra.mxu0 0.0
    %2280 = vmatprep.subr.mxu0 0.0
    %2281 = vmatpush1.msra.mxu0 0.0
    %2282 = vmatprep.subr.mxu0 0.0
    %2283 = vmatpush1.msra.mxu0 0.0
    %2284 = vmatprep.subr.mxu0 0.0
    %2285 = vmatpush1.msra.mxu0 0.0
    %2286 = vmatprep.subr.mxu0 0.0
    %2287 = vmatpush1.msra.mxu0 0.0
    %2288 = vmatprep.subr.mxu0 0.0
    %2289 = vmatpush1.msra.mxu0 0.0
    %2290 = vmatprep.subr.mxu0 0.0
    %2291 = vmatpush1.msra.mxu0 0.0
    %2292 = vmatprep.subr.mxu0 0.0
    %2293 = vmatpush1.msra.mxu0 0.0
    %2294 = vmatprep.subr.mxu0 0.0
    %2295 = vmatpush1.msra.mxu0 0.0
    %2296 = vmatprep.subr.mxu0 0.0
    %2297 = vmatpush1.msra.mxu0 0.0
    %2298 = vmatprep.subr.mxu0 0.0
    %2299 = vmatpush1.msra.mxu0 0.0
    %2300 = vmatprep.subr.mxu0 0.0
    %2301 = vmatpush1.msra.mxu0 0.0
    %2302 = vmatprep.subr.mxu0 0.0
    %2303 = vmatpush1.msra.mxu0 0.0
    %2304 = vmatprep.subr.mxu0 0.0
    %2305 = vmatpush1.msra.mxu0 0.0
    %2306 = vmatprep.subr.mxu0 0.0
    %2307 = vmatpush1.msra.mxu0 0.0
    %2308 = vmatprep.subr.mxu0 0.0
    %2309 = vmatpush1.msra.mxu0 0.0
    %2310 = vmatprep.subr.mxu0 0.0
    %2311 = vmatpush1.msra.mxu0 0.0
    %2312 = vmatprep.subr.mxu0 0.0
    %2313 = vmatpush1.msra.mxu0 0.0
    %2314 = vmatprep.subr.mxu0 0.0
    %2315 = vmatpush1.msra.mxu0 0.0
    %2316 = vmatprep.subr.mxu0 0.0
    %2317 = vmatpush1.msra.mxu0 0.0
    %2318 = vmatprep.subr.mxu0 0.0
    %2319 = vmatpush1.msra.mxu0 0.0
    %2320 = vmatprep.mubr.f32.mxu0 0.0
    %2321 = vmatmul.mubr.f32.gmra.mrb[0].mxu0 %v1378
    %v2322 = vpop.f32.mrb[0].mxu0
    %v2323 = vadd.f32 %v1057, %v2322
    %v2324 = vpop.f32.mrb[0].mxu0
    %v2325 = vadd.f32 %v1061, %v2324
    %2326 = vdwg.mxu0
    %2327 = vmatprep.subr.mxu0 %v351
    %2328 = vmatpush1.msra.mxu0 %v350
    %2329 = vmatprep.subr.mxu0 %v430
    %2330 = vmatpush1.msra.mxu0 %v429
    %2331 = vmatprep.subr.mxu0 %v509
    %2332 = vmatpush1.msra.mxu0 %v508
    %2333 = vmatprep.subr.mxu0 %v588
    %2334 = vmatpush1.msra.mxu0 %v587
    %2335 = vmatprep.subr.mxu0 %v667
    %2336 = vmatpush1.msra.mxu0 %v666
    %2337 = vmatprep.subr.mxu0 %v746
    %2338 = vmatpush1.msra.mxu0 %v745
    %2339 = vmatprep.subr.mxu0 %v825
    %2340 = vmatpush1.msra.mxu0 %v824
    %2341 = vmatprep.subr.mxu0 %v1444
    %2342 = vmatpush1.msra.mxu0 %v1441
    %2343 = vmatprep.subr.mxu0 0.0
    %2344 = vmatpush1.msra.mxu0 0.0
    %2345 = vmatprep.subr.mxu0 0.0
    %2346 = vmatpush1.msra.mxu0 0.0
    %2347 = vmatprep.subr.mxu0 0.0
    %2348 = vmatpush1.msra.mxu0 0.0
    %2349 = vmatprep.subr.mxu0 0.0
    %2350 = vmatpush1.msra.mxu0 0.0
    %2351 = vmatprep.subr.mxu0 0.0
    %2352 = vmatpush1.msra.mxu0 0.0
    %2353 = vmatprep.subr.mxu0 0.0
    %2354 = vmatpush1.msra.mxu0 0.0
    %2355 = vmatprep.subr.mxu0 0.0
    %2356 = vmatpush1.msra.mxu0 0.0
    %2357 = vmatprep.subr.mxu0 0.0
    %2358 = vmatpush1.msra.mxu0 0.0
    %2359 = vmatprep.subr.mxu0 0.0
    %2360 = vmatpush1.msra.mxu0 0.0
    %2361 = vmatprep.subr.mxu0 0.0
    %2362 = vmatpush1.msra.mxu0 0.0
    %2363 = vmatprep.subr.mxu0 0.0
    %2364 = vmatpush1.msra.mxu0 0.0
    %2365 = vmatprep.subr.mxu0 0.0
    %2366 = vmatpush1.msra.mxu0 0.0
    %2367 = vmatprep.subr.mxu0 0.0
    %2368 = vmatpush1.msra.mxu0 0.0
    %2369 = vmatprep.subr.mxu0 0.0
    %2370 = vmatpush1.msra.mxu0 0.0
    %2371 = vmatprep.subr.mxu0 0.0
    %2372 = vmatpush1.msra.mxu0 0.0
    %2373 = vmatprep.subr.mxu0 0.0
    %2374 = vmatpush1.msra.mxu0 0.0
    %2375 = vmatprep.subr.mxu0 0.0
    %2376 = vmatpush1.msra.mxu0 0.0
    %2377 = vmatprep.subr.mxu0 0.0
    %2378 = vmatpush1.msra.mxu0 0.0
    %2379 = vmatprep.subr.mxu0 0.0
    %2380 = vmatpush1.msra.mxu0 0.0
    %2381 = vmatprep.subr.mxu0 0.0
    %2382 = vmatpush1.msra.mxu0 0.0
    %2383 = vmatprep.subr.mxu0 0.0
    %2384 = vmatpush1.msra.mxu0 0.0
    %2385 = vmatprep.subr.mxu0 0.0
    %2386 = vmatpush1.msra.mxu0 0.0
    %2387 = vmatprep.subr.mxu0 0.0
    %2388 = vmatpush1.msra.mxu0 0.0
    %2389 = vmatprep.subr.mxu0 0.0
    %2390 = vmatpush1.msra.mxu0 0.0
    %2391 = vmatprep.mubr.f32.mxu0 0.0
    %2392 = vmatmul.mubr.f32.gmra.mrb[0].mxu0 %v1378
    %v2393 = vpop.f32.mrb[0].mxu0
    %v2394 = vadd.f32 %v1065, %v2393
    %v2395 = vpop.f32.mrb[0].mxu0
    %v2396 = vadd.f32 %v1069, %v2395
    %2397 = vdwg.mxu0
    %2398 = vmatprep.subr.mxu0 %v353
    %2399 = vmatpush1.msra.mxu0 %v352
    %2400 = vmatprep.subr.mxu0 %v432
    %2401 = vmatpush1.msra.mxu0 %v431
    %2402 = vmatprep.subr.mxu0 %v511
    %2403 = vmatpush1.msra.mxu0 %v510
    %2404 = vmatprep.subr.mxu0 %v590
    %2405 = vmatpush1.msra.mxu0 %v589
    %2406 = vmatprep.subr.mxu0 %v669
    %2407 = vmatpush1.msra.mxu0 %v668
    %2408 = vmatprep.subr.mxu0 %v748
    %2409 = vmatpush1.msra.mxu0 %v747
    %2410 = vmatprep.subr.mxu0 %v827
    %2411 = vmatpush1.msra.mxu0 %v826
    %2412 = vmatprep.subr.mxu0 %v1450
    %2413 = vmatpush1.msra.mxu0 %v1447
    %2414 = vmatprep.subr.mxu0 0.0
    %2415 = vmatpush1.msra.mxu0 0.0
    %2416 = vmatprep.subr.mxu0 0.0
    %2417 = vmatpush1.msra.mxu0 0.0
    %2418 = vmatprep.subr.mxu0 0.0
    %2419 = vmatpush1.msra.mxu0 0.0
    %2420 = vmatprep.subr.mxu0 0.0
    %2421 = vmatpush1.msra.mxu0 0.0
    %2422 = vmatprep.subr.mxu0 0.0
    %2423 = vmatpush1.msra.mxu0 0.0
    %2424 = vmatprep.subr.mxu0 0.0
    %2425 = vmatpush1.msra.mxu0 0.0
    %2426 = vmatprep.subr.mxu0 0.0
    %2427 = vmatpush1.msra.mxu0 0.0
    %2428 = vmatprep.subr.mxu0 0.0
    %2429 = vmatpush1.msra.mxu0 0.0
    %2430 = vmatprep.subr.mxu0 0.0
    %2431 = vmatpush1.msra.mxu0 0.0
    %2432 = vmatprep.subr.mxu0 0.0
    %2433 = vmatpush1.msra.mxu0 0.0
    %2434 = vmatprep.subr.mxu0 0.0
    %2435 = vmatpush1.msra.mxu0 0.0
    %2436 = vmatprep.subr.mxu0 0.0
    %2437 = vmatpush1.msra.mxu0 0.0
    %2438 = vmatprep.subr.mxu0 0.0
    %2439 = vmatpush1.msra.mxu0 0.0
    %2440 = vmatprep.subr.mxu0 0.0
    %2441 = vmatpush1.msra.mxu0 0.0
    %2442 = vmatprep.subr.mxu0 0.0
    %2443 = vmatpush1.msra.mxu0 0.0
    %2444 = vmatprep.subr.mxu0 0.0
    %2445 = vmatpush1.msra.mxu0 0.0
    %2446 = vmatprep.subr.mxu0 0.0
    %2447 = vmatpush1.msra.mxu0 0.0
    %2448 = vmatprep.subr.mxu0 0.0
    %2449 = vmatpush1.msra.mxu0 0.0
    %2450 = vmatprep.subr.mxu0 0.0
    %2451 = vmatpush1.msra.mxu0 0.0
    %2452 = vmatprep.subr.mxu0 0.0
    %2453 = vmatpush1.msra.mxu0 0.0
    %2454 = vmatprep.subr.mxu0 0.0
    %2455 = vmatpush1.msra.mxu0 0.0
    %2456 = vmatprep.subr.mxu0 0.0
    %2457 = vmatpush1.msra.mxu0 0.0
    %2458 = vmatprep.subr.mxu0 0.0
    %2459 = vmatpush1.msra.mxu0 0.0
    %2460 = vmatprep.subr.mxu0 0.0
    %2461 = vmatpush1.msra.mxu0 0.0
    %2462 = vmatprep.mubr.f32.mxu0 0.0
    %2463 = vmatmul.mubr.f32.gmra.mrb[0].mxu0 %v1378
    %v2464 = vpop.f32.mrb[0].mxu0
    %v2465 = vadd.f32 %v1073, %v2464
    %v2466 = vpop.f32.mrb[0].mxu0
    %v2467 = vadd.f32 %v1077, %v2466
    %2468 = vdwg.mxu0
    %2469 = vmatprep.subr.mxu0 %v355
    %2470 = vmatpush1.msra.mxu0 %v354
    %2471 = vmatprep.subr.mxu0 %v434
    %2472 = vmatpush1.msra.mxu0 %v433
    %2473 = vmatprep.subr.mxu0 %v513
    %2474 = vmatpush1.msra.mxu0 %v512
    %2475 = vmatprep.subr.mxu0 %v592
    %2476 = vmatpush1.msra.mxu0 %v591
    %2477 = vmatprep.subr.mxu0 %v671
    %2478 = vmatpush1.msra.mxu0 %v670
    %2479 = vmatprep.subr.mxu0 %v750
    %2480 = vmatpush1.msra.mxu0 %v749
    %2481 = vmatprep.subr.mxu0 %v829
    %2482 = vmatpush1.msra.mxu0 %v828
    %2483 = vmatprep.subr.mxu0 %v1456
    %2484 = vmatpush1.msra.mxu0 %v1453
    %2485 = vmatprep.subr.mxu0 0.0
    %2486 = vmatpush1.msra.mxu0 0.0
    %2487 = vmatprep.subr.mxu0 0.0
    %2488 = vmatpush1.msra.mxu0 0.0
    %2489 = vmatprep.subr.mxu0 0.0
    %2490 = vmatpush1.msra.mxu0 0.0
    %2491 = vmatprep.subr.mxu0 0.0
    %2492 = vmatpush1.msra.mxu0 0.0
    %2493 = vmatprep.subr.mxu0 0.0
    %2494 = vmatpush1.msra.mxu0 0.0
    %2495 = vmatprep.subr.mxu0 0.0
    %2496 = vmatpush1.msra.mxu0 0.0
    %2497 = vmatprep.subr.mxu0 0.0
    %2498 = vmatpush1.msra.mxu0 0.0
    %2499 = vmatprep.subr.mxu0 0.0
    %2500 = vmatpush1.msra.mxu0 0.0
    %2501 = vmatprep.subr.mxu0 0.0
    %2502 = vmatpush1.msra.mxu0 0.0
    %2503 = vmatprep.subr.mxu0 0.0
    %2504 = vmatpush1.msra.mxu0 0.0
    %2505 = vmatprep.subr.mxu0 0.0
    %2506 = vmatpush1.msra.mxu0 0.0
    %2507 = vmatprep.subr.mxu0 0.0
    %2508 = vmatpush1.msra.mxu0 0.0
    %2509 = vmatprep.subr.mxu0 0.0
    %2510 = vmatpush1.msra.mxu0 0.0
    %2511 = vmatprep.subr.mxu0 0.0
    %2512 = vmatpush1.msra.mxu0 0.0
    %2513 = vmatprep.subr.mxu0 0.0
    %2514 = vmatpush1.msra.mxu0 0.0
    %2515 = vmatprep.subr.mxu0 0.0
    %2516 = vmatpush1.msra.mxu0 0.0
    %2517 = vmatprep.subr.mxu0 0.0
    %2518 = vmatpush1.msra.mxu0 0.0
    %2519 = vmatprep.subr.mxu0 0.0
    %2520 = vmatpush1.msra.mxu0 0.0
    %2521 = vmatprep.subr.mxu0 0.0
    %2522 = vmatpush1.msra.mxu0 0.0
    %2523 = vmatprep.subr.mxu0 0.0
    %2524 = vmatpush1.msra.mxu0 0.0
    %2525 = vmatprep.subr.mxu0 0.0
    %2526 = vmatpush1.msra.mxu0 0.0
    %2527 = vmatprep.subr.mxu0 0.0
    %2528 = vmatpush1.msra.mxu0 0.0
    %2529 = vmatprep.subr.mxu0 0.0
    %2530 = vmatpush1.msra.mxu0 0.0
    %2531 = vmatprep.subr.mxu0 0.0
    %2532 = vmatpush1.msra.mxu0 0.0
    %2533 = vmatprep.mubr.f32.mxu0 0.0
    %2534 = vmatmul.mubr.f32.gmra.mrb[0].mxu0 %v1378
    %v2535 = vpop.f32.mrb[0].mxu0
    %v2536 = vadd.f32 %v1081, %v2535
    %v2537 = vpop.f32.mrb[0].mxu0
    %v2538 = vadd.f32 %v1085, %v2537
    %2539 = vdwg.mxu0
    %2540 = vmatprep.subr.mxu0 %v357
    %2541 = vmatpush1.msra.mxu0 %v356
    %2542 = vmatprep.subr.mxu0 %v436
    %2543 = vmatpush1.msra.mxu0 %v435
    %2544 = vmatprep.subr.mxu0 %v515
    %2545 = vmatpush1.msra.mxu0 %v514
    %2546 = vmatprep.subr.mxu0 %v594
    %2547 = vmatpush1.msra.mxu0 %v593
    %2548 = vmatprep.subr.mxu0 %v673
    %2549 = vmatpush1.msra.mxu0 %v672
    %2550 = vmatprep.subr.mxu0 %v752
    %2551 = vmatpush1.msra.mxu0 %v751
    %2552 = vmatprep.subr.mxu0 %v831
    %2553 = vmatpush1.msra.mxu0 %v830
    %2554 = vmatprep.subr.mxu0 %v1462
    %2555 = vmatpush1.msra.mxu0 %v1459
    %2556 = vmatprep.subr.mxu0 0.0
    %2557 = vmatpush1.msra.mxu0 0.0
    %2558 = vmatprep.subr.mxu0 0.0
    %2559 = vmatpush1.msra.mxu0 0.0
    %2560 = vmatprep.subr.mxu0 0.0
    %2561 = vmatpush1.msra.mxu0 0.0
    %2562 = vmatprep.subr.mxu0 0.0
    %2563 = vmatpush1.msra.mxu0 0.0
    %2564 = vmatprep.subr.mxu0 0.0
    %2565 = vmatpush1.msra.mxu0 0.0
    %2566 = vmatprep.subr.mxu0 0.0
    %2567 = vmatpush1.msra.mxu0 0.0
    %2568 = vmatprep.subr.mxu0 0.0
    %2569 = vmatpush1.msra.mxu0 0.0
    %2570 = vmatprep.subr.mxu0 0.0
    %2571 = vmatpush1.msra.mxu0 0.0
    %2572 = vmatprep.subr.mxu0 0.0
    %2573 = vmatpush1.msra.mxu0 0.0
    %2574 = vmatprep.subr.mxu0 0.0
    %2575 = vmatpush1.msra.mxu0 0.0
    %2576 = vmatprep.subr.mxu0 0.0
    %2577 = vmatpush1.msra.mxu0 0.0
    %2578 = vmatprep.subr.mxu0 0.0
    %2579 = vmatpush1.msra.mxu0 0.0
    %2580 = vmatprep.subr.mxu0 0.0
    %2581 = vmatpush1.msra.mxu0 0.0
    %2582 = vmatprep.subr.mxu0 0.0
    %2583 = vmatpush1.msra.mxu0 0.0
    %2584 = vmatprep.subr.mxu0 0.0
    %2585 = vmatpush1.msra.mxu0 0.0
    %2586 = vmatprep.subr.mxu0 0.0
    %2587 = vmatpush1.msra.mxu0 0.0
    %2588 = vmatprep.subr.mxu0 0.0
    %2589 = vmatpush1.msra.mxu0 0.0
    %2590 = vmatprep.subr.mxu0 0.0
    %2591 = vmatpush1.msra.mxu0 0.0
    %2592 = vmatprep.subr.mxu0 0.0
    %2593 = vmatpush1.msra.mxu0 0.0
    %2594 = vmatprep.subr.mxu0 0.0
    %2595 = vmatpush1.msra.mxu0 0.0
    %2596 = vmatprep.subr.mxu0 0.0
    %2597 = vmatpush1.msra.mxu0 0.0
    %2598 = vmatprep.subr.mxu0 0.0
    %2599 = vmatpush1.msra.mxu0 0.0
    %2600 = vmatprep.subr.mxu0 0.0
    %2601 = vmatpush1.msra.mxu0 0.0
    %2602 = vmatprep.subr.mxu0 0.0
    %2603 = vmatpush1.msra.mxu0 0.0
    %2604 = vmatprep.mubr.f32.mxu0 0.0
    %2605 = vmatmul.mubr.f32.gmra.mrb[0].mxu0 %v1378
    %v2606 = vpop.f32.mrb[0].mxu0
    %v2607 = vadd.f32 %v1089, %v2606
    %v2608 = vpop.f32.mrb[0].mxu0
    %v2609 = vadd.f32 %v1093, %v2608
    %2610 = vdwg.mxu0
    %2611 = vmatprep.subr.mxu0 %v359
    %2612 = vmatpush1.msra.mxu0 %v358
    %2613 = vmatprep.subr.mxu0 %v438
    %2614 = vmatpush1.msra.mxu0 %v437
    %2615 = vmatprep.subr.mxu0 %v517
    %2616 = vmatpush1.msra.mxu0 %v516
    %2617 = vmatprep.subr.mxu0 %v596
    %2618 = vmatpush1.msra.mxu0 %v595
    %2619 = vmatprep.subr.mxu0 %v675
    %2620 = vmatpush1.msra.mxu0 %v674
    %2621 = vmatprep.subr.mxu0 %v754
    %2622 = vmatpush1.msra.mxu0 %v753
    %2623 = vmatprep.subr.mxu0 %v833
    %2624 = vmatpush1.msra.mxu0 %v832
    %2625 = vmatprep.subr.mxu0 %v1468
    %2626 = vmatpush1.msra.mxu0 %v1465
    %2627 = vmatprep.subr.mxu0 0.0
    %2628 = vmatpush1.msra.mxu0 0.0
    %2629 = vmatprep.subr.mxu0 0.0
    %2630 = vmatpush1.msra.mxu0 0.0
    %2631 = vmatprep.subr.mxu0 0.0
    %2632 = vmatpush1.msra.mxu0 0.0
    %2633 = vmatprep.subr.mxu0 0.0
    %2634 = vmatpush1.msra.mxu0 0.0
    %2635 = vmatprep.subr.mxu0 0.0
    %2636 = vmatpush1.msra.mxu0 0.0
    %2637 = vmatprep.subr.mxu0 0.0
    %2638 = vmatpush1.msra.mxu0 0.0
    %2639 = vmatprep.subr.mxu0 0.0
    %2640 = vmatpush1.msra.mxu0 0.0
    %2641 = vmatprep.subr.mxu0 0.0
    %2642 = vmatpush1.msra.mxu0 0.0
    %2643 = vmatprep.subr.mxu0 0.0
    %2644 = vmatpush1.msra.mxu0 0.0
    %2645 = vmatprep.subr.mxu0 0.0
    %2646 = vmatpush1.msra.mxu0 0.0
    %2647 = vmatprep.subr.mxu0 0.0
    %2648 = vmatpush1.msra.mxu0 0.0
    %2649 = vmatprep.subr.mxu0 0.0
    %2650 = vmatpush1.msra.mxu0 0.0
    %2651 = vmatprep.subr.mxu0 0.0
    %2652 = vmatpush1.msra.mxu0 0.0
    %2653 = vmatprep.subr.mxu0 0.0
    %2654 = vmatpush1.msra.mxu0 0.0
    %2655 = vmatprep.subr.mxu0 0.0
    %2656 = vmatpush1.msra.mxu0 0.0
    %2657 = vmatprep.subr.mxu0 0.0
    %2658 = vmatpush1.msra.mxu0 0.0
    %2659 = vmatprep.subr.mxu0 0.0
    %2660 = vmatpush1.msra.mxu0 0.0
    %2661 = vmatprep.subr.mxu0 0.0
    %2662 = vmatpush1.msra.mxu0 0.0
    %2663 = vmatprep.subr.mxu0 0.0
    %2664 = vmatpush1.msra.mxu0 0.0
    %2665 = vmatprep.subr.mxu0 0.0
    %2666 = vmatpush1.msra.mxu0 0.0
    %2667 = vmatprep.subr.mxu0 0.0
    %2668 = vmatpush1.msra.mxu0 0.0
    %2669 = vmatprep.subr.mxu0 0.0
    %2670 = vmatpush1.msra.mxu0 0.0
    %2671 = vmatprep.subr.mxu0 0.0
    %2672 = vmatpush1.msra.mxu0 0.0
    %2673 = vmatprep.subr.mxu0 0.0
    %2674 = vmatpush1.msra.mxu0 0.0
    %2675 = vmatprep.mubr.f32.mxu0 0.0
    %2676 = vmatmul.mubr.f32.gmra.mrb[0].mxu0 %v1378
    %v2677 = vpop.f32.mrb[0].mxu0
    %v2678 = vadd.f32 %v1097, %v2677
    %v2679 = vpop.f32.mrb[0].mxu0
    %v2680 = vadd.f32 %v1101, %v2679
    %2681 = vdwg.mxu0
    %2682 = vmatprep.subr.mxu0 %v361
    %2683 = vmatpush1.msra.mxu0 %v360
    %2684 = vmatprep.subr.mxu0 %v440
    %2685 = vmatpush1.msra.mxu0 %v439
    %2686 = vmatprep.subr.mxu0 %v519
    %2687 = vmatpush1.msra.mxu0 %v518
    %2688 = vmatprep.subr.mxu0 %v598
    %2689 = vmatpush1.msra.mxu0 %v597
    %2690 = vmatprep.subr.mxu0 %v677
    %2691 = vmatpush1.msra.mxu0 %v676
    %2692 = vmatprep.subr.mxu0 %v756
    %2693 = vmatpush1.msra.mxu0 %v755
    %2694 = vmatprep.subr.mxu0 %v835
    %2695 = vmatpush1.msra.mxu0 %v834
    %2696 = vmatprep.subr.mxu0 %v1474
    %2697 = vmatpush1.msra.mxu0 %v1471
    %2698 = vmatprep.subr.mxu0 0.0
    %2699 = vmatpush1.msra.mxu0 0.0
    %2700 = vmatprep.subr.mxu0 0.0
    %2701 = vmatpush1.msra.mxu0 0.0
    %2702 = vmatprep.subr.mxu0 0.0
    %2703 = vmatpush1.msra.mxu0 0.0
    %2704 = vmatprep.subr.mxu0 0.0
    %2705 = vmatpush1.msra.mxu0 0.0
    %2706 = vmatprep.subr.mxu0 0.0
    %2707 = vmatpush1.msra.mxu0 0.0
    %2708 = vmatprep.subr.mxu0 0.0
    %2709 = vmatpush1.msra.mxu0 0.0
    %2710 = vmatprep.subr.mxu0 0.0
    %2711 = vmatpush1.msra.mxu0 0.0
    %2712 = vmatprep.subr.mxu0 0.0
    %2713 = vmatpush1.msra.mxu0 0.0
    %2714 = vmatprep.subr.mxu0 0.0
    %2715 = vmatpush1.msra.mxu0 0.0
    %2716 = vmatprep.subr.mxu0 0.0
    %2717 = vmatpush1.msra.mxu0 0.0
    %2718 = vmatprep.subr.mxu0 0.0
    %2719 = vmatpush1.msra.mxu0 0.0
    %2720 = vmatprep.subr.mxu0 0.0
    %2721 = vmatpush1.msra.mxu0 0.0
    %2722 = vmatprep.subr.mxu0 0.0
    %2723 = vmatpush1.msra.mxu0 0.0
    %2724 = vmatprep.subr.mxu0 0.0
    %2725 = vmatpush1.msra.mxu0 0.0
    %2726 = vmatprep.subr.mxu0 0.0
    %2727 = vmatpush1.msra.mxu0 0.0
    %2728 = vmatprep.subr.mxu0 0.0
    %2729 = vmatpush1.msra.mxu0 0.0
    %2730 = vmatprep.subr.mxu0 0.0
    %2731 = vmatpush1.msra.mxu0 0.0
    %2732 = vmatprep.subr.mxu0 0.0
    %2733 = vmatpush1.msra.mxu0 0.0
    %2734 = vmatprep.subr.mxu0 0.0
    %2735 = vmatpush1.msra.mxu0 0.0
    %2736 = vmatprep.subr.mxu0 0.0
    %2737 = vmatpush1.msra.mxu0 0.0
    %2738 = vmatprep.subr.mxu0 0.0
    %2739 = vmatpush1.msra.mxu0 0.0
    %2740 = vmatprep.subr.mxu0 0.0
    %2741 = vmatpush1.msra.mxu0 0.0
    %2742 = vmatprep.subr.mxu0 0.0
    %2743 = vmatpush1.msra.mxu0 0.0
    %2744 = vmatprep.subr.mxu0 0.0
    %2745 = vmatpush1.msra.mxu0 0.0
    %2746 = vmatprep.mubr.f32.mxu0 0.0
    %2747 = vmatmul.mubr.f32.gmra.mrb[0].mxu0 %v1378
    %v2748 = vpop.f32.mrb[0].mxu0
    %v2749 = vadd.f32 %v1105, %v2748
    %v2750 = vpop.f32.mrb[0].mxu0
    %v2751 = vadd.f32 %v1109, %v2750
    %2752 = vdwg.mxu0
    %2753 = vmatprep.subr.mxu0 %v363
    %2754 = vmatpush1.msra.mxu0 %v362
    %2755 = vmatprep.subr.mxu0 %v442
    %2756 = vmatpush1.msra.mxu0 %v441
    %2757 = vmatprep.subr.mxu0 %v521
    %2758 = vmatpush1.msra.mxu0 %v520
    %2759 = vmatprep.subr.mxu0 %v600
    %2760 = vmatpush1.msra.mxu0 %v599
    %2761 = vmatprep.subr.mxu0 %v679
    %2762 = vmatpush1.msra.mxu0 %v678
    %2763 = vmatprep.subr.mxu0 %v758
    %2764 = vmatpush1.msra.mxu0 %v757
    %2765 = vmatprep.subr.mxu0 %v837
    %2766 = vmatpush1.msra.mxu0 %v836
    %2767 = vmatprep.subr.mxu0 %v1480
    %2768 = vmatpush1.msra.mxu0 %v1477
    %2769 = vmatprep.subr.mxu0 0.0
    %2770 = vmatpush1.msra.mxu0 0.0
    %2771 = vmatprep.subr.mxu0 0.0
    %2772 = vmatpush1.msra.mxu0 0.0
    %2773 = vmatprep.subr.mxu0 0.0
    %2774 = vmatpush1.msra.mxu0 0.0
    %2775 = vmatprep.subr.mxu0 0.0
    %2776 = vmatpush1.msra.mxu0 0.0
    %2777 = vmatprep.subr.mxu0 0.0
    %2778 = vmatpush1.msra.mxu0 0.0
    %2779 = vmatprep.subr.mxu0 0.0
    %2780 = vmatpush1.msra.mxu0 0.0
    %2781 = vmatprep.subr.mxu0 0.0
    %2782 = vmatpush1.msra.mxu0 0.0
    %2783 = vmatprep.subr.mxu0 0.0
    %2784 = vmatpush1.msra.mxu0 0.0
    %2785 = vmatprep.subr.mxu0 0.0
    %2786 = vmatpush1.msra.mxu0 0.0
    %2787 = vmatprep.subr.mxu0 0.0
    %2788 = vmatpush1.msra.mxu0 0.0
    %2789 = vmatprep.subr.mxu0 0.0
    %2790 = vmatpush1.msra.mxu0 0.0
    %2791 = vmatprep.subr.mxu0 0.0
    %2792 = vmatpush1.msra.mxu0 0.0
    %2793 = vmatprep.subr.mxu0 0.0
    %2794 = vmatpush1.msra.mxu0 0.0
    %2795 = vmatprep.subr.mxu0 0.0
    %2796 = vmatpush1.msra.mxu0 0.0
    %2797 = vmatprep.subr.mxu0 0.0
    %2798 = vmatpush1.msra.mxu0 0.0
    %2799 = vmatprep.subr.mxu0 0.0
    %2800 = vmatpush1.msra.mxu0 0.0
    %2801 = vmatprep.subr.mxu0 0.0
    %2802 = vmatpush1.msra.mxu0 0.0
    %2803 = vmatprep.subr.mxu0 0.0
    %2804 = vmatpush1.msra.mxu0 0.0
    %2805 = vmatprep.subr.mxu0 0.0
    %2806 = vmatpush1.msra.mxu0 0.0
    %2807 = vmatprep.subr.mxu0 0.0
    %2808 = vmatpush1.msra.mxu0 0.0
    %2809 = vmatprep.subr.mxu0 0.0
    %2810 = vmatpush1.msra.mxu0 0.0
    %2811 = vmatprep.subr.mxu0 0.0
    %2812 = vmatpush1.msra.mxu0 0.0
    %2813 = vmatprep.subr.mxu0 0.0
    %2814 = vmatpush1.msra.mxu0 0.0
    %2815 = vmatprep.subr.mxu0 0.0
    %2816 = vmatpush1.msra.mxu0 0.0
    %2817 = vmatprep.mubr.f32.mxu0 0.0
    %2818 = vmatmul.mubr.f32.gmra.mrb[0].mxu0 %v1378
    %v2819 = vpop.f32.mrb[0].mxu0
    %v2820 = vadd.f32 %v1113, %v2819
    %v2821 = vpop.f32.mrb[0].mxu0
    %v2822 = vadd.f32 %v1117, %v2821
    %2823 = vdwg.mxu0
    %2824 = vmatprep.subr.mxu0 %v365
    %2825 = vmatpush1.msra.mxu0 %v364
    %2826 = vmatprep.subr.mxu0 %v444
    %2827 = vmatpush1.msra.mxu0 %v443
    %2828 = vmatprep.subr.mxu0 %v523
    %2829 = vmatpush1.msra.mxu0 %v522
    %2830 = vmatprep.subr.mxu0 %v602
    %2831 = vmatpush1.msra.mxu0 %v601
    %2832 = vmatprep.subr.mxu0 %v681
    %2833 = vmatpush1.msra.mxu0 %v680
    %2834 = vmatprep.subr.mxu0 %v760
    %2835 = vmatpush1.msra.mxu0 %v759
    %2836 = vmatprep.subr.mxu0 %v839
    %2837 = vmatpush1.msra.mxu0 %v838
    %2838 = vmatprep.subr.mxu0 %v1486
    %2839 = vmatpush1.msra.mxu0 %v1483
    %2840 = vmatprep.subr.mxu0 0.0
    %2841 = vmatpush1.msra.mxu0 0.0
    %2842 = vmatprep.subr.mxu0 0.0
    %2843 = vmatpush1.msra.mxu0 0.0
    %2844 = vmatprep.subr.mxu0 0.0
    %2845 = vmatpush1.msra.mxu0 0.0
    %2846 = vmatprep.subr.mxu0 0.0
    %2847 = vmatpush1.msra.mxu0 0.0
    %2848 = vmatprep.subr.mxu0 0.0
    %2849 = vmatpush1.msra.mxu0 0.0
    %2850 = vmatprep.subr.mxu0 0.0
    %2851 = vmatpush1.msra.mxu0 0.0
    %2852 = vmatprep.subr.mxu0 0.0
    %2853 = vmatpush1.msra.mxu0 0.0
    %2854 = vmatprep.subr.mxu0 0.0
    %2855 = vmatpush1.msra.mxu0 0.0
    %2856 = vmatprep.subr.mxu0 0.0
    %2857 = vmatpush1.msra.mxu0 0.0
    %2858 = vmatprep.subr.mxu0 0.0
    %2859 = vmatpush1.msra.mxu0 0.0
    %2860 = vmatprep.subr.mxu0 0.0
    %2861 = vmatpush1.msra.mxu0 0.0
    %2862 = vmatprep.subr.mxu0 0.0
    %2863 = vmatpush1.msra.mxu0 0.0
    %2864 = vmatprep.subr.mxu0 0.0
    %2865 = vmatpush1.msra.mxu0 0.0
    %2866 = vmatprep.subr.mxu0 0.0
    %2867 = vmatpush1.msra.mxu0 0.0
    %2868 = vmatprep.subr.mxu0 0.0
    %2869 = vmatpush1.msra.mxu0 0.0
    %2870 = vmatprep.subr.mxu0 0.0
    %2871 = vmatpush1.msra.mxu0 0.0
    %2872 = vmatprep.subr.mxu0 0.0
    %2873 = vmatpush1.msra.mxu0 0.0
    %2874 = vmatprep.subr.mxu0 0.0
    %2875 = vmatpush1.msra.mxu0 0.0
    %2876 = vmatprep.subr.mxu0 0.0
    %2877 = vmatpush1.msra.mxu0 0.0
    %2878 = vmatprep.subr.mxu0 0.0
    %2879 = vmatpush1.msra.mxu0 0.0
    %2880 = vmatprep.subr.mxu0 0.0
    %2881 = vmatpush1.msra.mxu0 0.0
    %2882 = vmatprep.subr.mxu0 0.0
    %2883 = vmatpush1.msra.mxu0 0.0
    %2884 = vmatprep.subr.mxu0 0.0
    %2885 = vmatpush1.msra.mxu0 0.0
    %2886 = vmatprep.subr.mxu0 0.0
    %2887 = vmatpush1.msra.mxu0 0.0
    %2888 = vmatprep.mubr.f32.mxu0 0.0
    %2889 = vmatmul.mubr.f32.gmra.mrb[0].mxu0 %v1378
    %v2890 = vpop.f32.mrb[0].mxu0
    %v2891 = vadd.f32 %v1121, %v2890
    %v2892 = vpop.f32.mrb[0].mxu0
    %v2893 = vadd.f32 %v1125, %v2892
    %2894 = vdwg.mxu0
    %2895 = vmatprep.subr.mxu0 %v367
    %2896 = vmatpush1.msra.mxu0 %v366
    %2897 = vmatprep.subr.mxu0 %v446
    %2898 = vmatpush1.msra.mxu0 %v445
    %2899 = vmatprep.subr.mxu0 %v525
    %2900 = vmatpush1.msra.mxu0 %v524
    %2901 = vmatprep.subr.mxu0 %v604
    %2902 = vmatpush1.msra.mxu0 %v603
    %2903 = vmatprep.subr.mxu0 %v683
    %2904 = vmatpush1.msra.mxu0 %v682
    %2905 = vmatprep.subr.mxu0 %v762
    %2906 = vmatpush1.msra.mxu0 %v761
    %2907 = vmatprep.subr.mxu0 %v841
    %2908 = vmatpush1.msra.mxu0 %v840
    %2909 = vmatprep.subr.mxu0 %v1492
    %2910 = vmatpush1.msra.mxu0 %v1489
    %2911 = vmatprep.subr.mxu0 0.0
    %2912 = vmatpush1.msra.mxu0 0.0
    %2913 = vmatprep.subr.mxu0 0.0
    %2914 = vmatpush1.msra.mxu0 0.0
    %2915 = vmatprep.subr.mxu0 0.0
    %2916 = vmatpush1.msra.mxu0 0.0
    %2917 = vmatprep.subr.mxu0 0.0
    %2918 = vmatpush1.msra.mxu0 0.0
    %2919 = vmatprep.subr.mxu0 0.0
    %2920 = vmatpush1.msra.mxu0 0.0
    %2921 = vmatprep.subr.mxu0 0.0
    %2922 = vmatpush1.msra.mxu0 0.0
    %2923 = vmatprep.subr.mxu0 0.0
    %2924 = vmatpush1.msra.mxu0 0.0
    %2925 = vmatprep.subr.mxu0 0.0
    %2926 = vmatpush1.msra.mxu0 0.0
    %2927 = vmatprep.subr.mxu0 0.0
    %2928 = vmatpush1.msra.mxu0 0.0
    %2929 = vmatprep.subr.mxu0 0.0
    %2930 = vmatpush1.msra.mxu0 0.0
    %2931 = vmatprep.subr.mxu0 0.0
    %2932 = vmatpush1.msra.mxu0 0.0
    %2933 = vmatprep.subr.mxu0 0.0
    %2934 = vmatpush1.msra.mxu0 0.0
    %2935 = vmatprep.subr.mxu0 0.0
    %2936 = vmatpush1.msra.mxu0 0.0
    %2937 = vmatprep.subr.mxu0 0.0
    %2938 = vmatpush1.msra.mxu0 0.0
    %2939 = vmatprep.subr.mxu0 0.0
    %2940 = vmatpush1.msra.mxu0 0.0
    %2941 = vmatprep.subr.mxu0 0.0
    %2942 = vmatpush1.msra.mxu0 0.0
    %2943 = vmatprep.subr.mxu0 0.0
    %2944 = vmatpush1.msra.mxu0 0.0
    %2945 = vmatprep.subr.mxu0 0.0
    %2946 = vmatpush1.msra.mxu0 0.0
    %2947 = vmatprep.subr.mxu0 0.0
    %2948 = vmatpush1.msra.mxu0 0.0
    %2949 = vmatprep.subr.mxu0 0.0
    %2950 = vmatpush1.msra.mxu0 0.0
    %2951 = vmatprep.subr.mxu0 0.0
    %2952 = vmatpush1.msra.mxu0 0.0
    %2953 = vmatprep.subr.mxu0 0.0
    %2954 = vmatpush1.msra.mxu0 0.0
    %2955 = vmatprep.subr.mxu0 0.0
    %2956 = vmatpush1.msra.mxu0 0.0
    %2957 = vmatprep.subr.mxu0 0.0
    %2958 = vmatpush1.msra.mxu0 0.0
    %2959 = vmatprep.mubr.f32.mxu0 0.0
    %2960 = vmatmul.mubr.f32.gmra.mrb[0].mxu0 %v1378
    %v2961 = vpop.f32.mrb[0].mxu0
    %v2962 = vadd.f32 %v1129, %v2961
    %v2963 = vpop.f32.mrb[0].mxu0
    %v2964 = vadd.f32 %v1133, %v2963
    %2965 = vdwg.mxu0
    %2966 = vmatprep.subr.mxu0 %v369
    %2967 = vmatpush1.msra.mxu0 %v368
    %2968 = vmatprep.subr.mxu0 %v448
    %2969 = vmatpush1.msra.mxu0 %v447
    %2970 = vmatprep.subr.mxu0 %v527
    %2971 = vmatpush1.msra.mxu0 %v526
    %2972 = vmatprep.subr.mxu0 %v606
    %2973 = vmatpush1.msra.mxu0 %v605
    %2974 = vmatprep.subr.mxu0 %v685
    %2975 = vmatpush1.msra.mxu0 %v684
    %2976 = vmatprep.subr.mxu0 %v764
    %2977 = vmatpush1.msra.mxu0 %v763
    %2978 = vmatprep.subr.mxu0 %v843
    %2979 = vmatpush1.msra.mxu0 %v842
    %2980 = vmatprep.subr.mxu0 %v1498
    %2981 = vmatpush1.msra.mxu0 %v1495
    %2982 = vmatprep.subr.mxu0 0.0
    %2983 = vmatpush1.msra.mxu0 0.0
    %2984 = vmatprep.subr.mxu0 0.0
    %2985 = vmatpush1.msra.mxu0 0.0
    %2986 = vmatprep.subr.mxu0 0.0
    %2987 = vmatpush1.msra.mxu0 0.0
    %2988 = vmatprep.subr.mxu0 0.0
    %2989 = vmatpush1.msra.mxu0 0.0
    %2990 = vmatprep.subr.mxu0 0.0
    %2991 = vmatpush1.msra.mxu0 0.0
    %2992 = vmatprep.subr.mxu0 0.0
    %2993 = vmatpush1.msra.mxu0 0.0
    %2994 = vmatprep.subr.mxu0 0.0
    %2995 = vmatpush1.msra.mxu0 0.0
    %2996 = vmatprep.subr.mxu0 0.0
    %2997 = vmatpush1.msra.mxu0 0.0
    %2998 = vmatprep.subr.mxu0 0.0
    %2999 = vmatpush1.msra.mxu0 0.0
    %3000 = vmatprep.subr.mxu0 0.0
    %3001 = vmatpush1.msra.mxu0 0.0
    %3002 = vmatprep.subr.mxu0 0.0
    %3003 = vmatpush1.msra.mxu0 0.0
    %3004 = vmatprep.subr.mxu0 0.0
    %3005 = vmatpush1.msra.mxu0 0.0
    %3006 = vmatprep.subr.mxu0 0.0
    %3007 = vmatpush1.msra.mxu0 0.0
    %3008 = vmatprep.subr.mxu0 0.0
    %3009 = vmatpush1.msra.mxu0 0.0
    %3010 = vmatprep.subr.mxu0 0.0
    %3011 = vmatpush1.msra.mxu0 0.0
    %3012 = vmatprep.subr.mxu0 0.0
    %3013 = vmatpush1.msra.mxu0 0.0
    %3014 = vmatprep.subr.mxu0 0.0
    %3015 = vmatpush1.msra.mxu0 0.0
    %3016 = vmatprep.subr.mxu0 0.0
    %3017 = vmatpush1.msra.mxu0 0.0
    %3018 = vmatprep.subr.mxu0 0.0
    %3019 = vmatpush1.msra.mxu0 0.0
    %3020 = vmatprep.subr.mxu0 0.0
    %3021 = vmatpush1.msra.mxu0 0.0
    %3022 = vmatprep.subr.mxu0 0.0
    %3023 = vmatpush1.msra.mxu0 0.0
    %3024 = vmatprep.subr.mxu0 0.0
    %3025 = vmatpush1.msra.mxu0 0.0
    %3026 = vmatprep.subr.mxu0 0.0
    %3027 = vmatpush1.msra.mxu0 0.0
    %3028 = vmatprep.subr.mxu0 0.0
    %3029 = vmatpush1.msra.mxu0 0.0
    %3030 = vmatprep.mubr.f32.mxu0 0.0
    %3031 = vmatmul.mubr.f32.gmra.mrb[0].mxu0 %v1378
    %v3032 = vpop.f32.mrb[0].mxu0
    %v3033 = vadd.f32 %v1137, %v3032
    %v3034 = vpop.f32.mrb[0].mxu0
    %v3035 = vadd.f32 %v1141, %v3034
    %3036 = vdwg.mxu0
    %3037 = vmatprep.subr.mxu0 %v371
    %3038 = vmatpush1.msra.mxu0 %v370
    %3039 = vmatprep.subr.mxu0 %v450
    %3040 = vmatpush1.msra.mxu0 %v449
    %3041 = vmatprep.subr.mxu0 %v529
    %3042 = vmatpush1.msra.mxu0 %v528
    %3043 = vmatprep.subr.mxu0 %v608
    %3044 = vmatpush1.msra.mxu0 %v607
    %3045 = vmatprep.subr.mxu0 %v687
    %3046 = vmatpush1.msra.mxu0 %v686
    %3047 = vmatprep.subr.mxu0 %v766
    %3048 = vmatpush1.msra.mxu0 %v765
    %3049 = vmatprep.subr.mxu0 %v845
    %3050 = vmatpush1.msra.mxu0 %v844
    %3051 = vmatprep.subr.mxu0 %v1504
    %3052 = vmatpush1.msra.mxu0 %v1501
    %3053 = vmatprep.subr.mxu0 0.0
    %3054 = vmatpush1.msra.mxu0 0.0
    %3055 = vmatprep.subr.mxu0 0.0
    %3056 = vmatpush1.msra.mxu0 0.0
    %3057 = vmatprep.subr.mxu0 0.0
    %3058 = vmatpush1.msra.mxu0 0.0
    %3059 = vmatprep.subr.mxu0 0.0
    %3060 = vmatpush1.msra.mxu0 0.0
    %3061 = vmatprep.subr.mxu0 0.0
    %3062 = vmatpush1.msra.mxu0 0.0
    %3063 = vmatprep.subr.mxu0 0.0
    %3064 = vmatpush1.msra.mxu0 0.0
    %3065 = vmatprep.subr.mxu0 0.0
    %3066 = vmatpush1.msra.mxu0 0.0
    %3067 = vmatprep.subr.mxu0 0.0
    %3068 = vmatpush1.msra.mxu0 0.0
    %3069 = vmatprep.subr.mxu0 0.0
    %3070 = vmatpush1.msra.mxu0 0.0
    %3071 = vmatprep.subr.mxu0 0.0
    %3072 = vmatpush1.msra.mxu0 0.0
    %3073 = vmatprep.subr.mxu0 0.0
    %3074 = vmatpush1.msra.mxu0 0.0
    %3075 = vmatprep.subr.mxu0 0.0
    %3076 = vmatpush1.msra.mxu0 0.0
    %3077 = vmatprep.subr.mxu0 0.0
    %3078 = vmatpush1.msra.mxu0 0.0
    %3079 = vmatprep.subr.mxu0 0.0
    %3080 = vmatpush1.msra.mxu0 0.0
    %3081 = vmatprep.subr.mxu0 0.0
    %3082 = vmatpush1.msra.mxu0 0.0
    %3083 = vmatprep.subr.mxu0 0.0
    %3084 = vmatpush1.msra.mxu0 0.0
    %3085 = vmatprep.subr.mxu0 0.0
    %3086 = vmatpush1.msra.mxu0 0.0
    %3087 = vmatprep.subr.mxu0 0.0
    %3088 = vmatpush1.msra.mxu0 0.0
    %3089 = vmatprep.subr.mxu0 0.0
    %3090 = vmatpush1.msra.mxu0 0.0
    %3091 = vmatprep.subr.mxu0 0.0
    %3092 = vmatpush1.msra.mxu0 0.0
    %3093 = vmatprep.subr.mxu0 0.0
    %3094 = vmatpush1.msra.mxu0 0.0
    %3095 = vmatprep.subr.mxu0 0.0
    %3096 = vmatpush1.msra.mxu0 0.0
    %3097 = vmatprep.subr.mxu0 0.0
    %3098 = vmatpush1.msra.mxu0 0.0
    %3099 = vmatprep.subr.mxu0 0.0
    %3100 = vmatpush1.msra.mxu0 0.0
    %3101 = vmatprep.mubr.f32.mxu0 0.0
    %3102 = vmatmul.mubr.f32.gmra.mrb[0].mxu0 %v1378
    %v3103 = vpop.f32.mrb[0].mxu0
    %v3104 = vadd.f32 %v1145, %v3103
    %v3105 = vpop.f32.mrb[0].mxu0
    %v3106 = vadd.f32 %v1149, %v3105
    %3107 = vdwg.mxu0
    %3108 = vmatprep.subr.mxu0 %v373
    %3109 = vmatpush1.msra.mxu0 %v372
    %3110 = vmatprep.subr.mxu0 %v452
    %3111 = vmatpush1.msra.mxu0 %v451
    %3112 = vmatprep.subr.mxu0 %v531
    %3113 = vmatpush1.msra.mxu0 %v530
    %3114 = vmatprep.subr.mxu0 %v610
    %3115 = vmatpush1.msra.mxu0 %v609
    %3116 = vmatprep.subr.mxu0 %v689
    %3117 = vmatpush1.msra.mxu0 %v688
    %3118 = vmatprep.subr.mxu0 %v768
    %3119 = vmatpush1.msra.mxu0 %v767
    %3120 = vmatprep.subr.mxu0 %v847
    %3121 = vmatpush1.msra.mxu0 %v846
    %3122 = vmatprep.subr.mxu0 %v1510
    %3123 = vmatpush1.msra.mxu0 %v1507
    %3124 = vmatprep.subr.mxu0 0.0
    %3125 = vmatpush1.msra.mxu0 0.0
    %3126 = vmatprep.subr.mxu0 0.0
    %3127 = vmatpush1.msra.mxu0 0.0
    %3128 = vmatprep.subr.mxu0 0.0
    %3129 = vmatpush1.msra.mxu0 0.0
    %3130 = vmatprep.subr.mxu0 0.0
    %3131 = vmatpush1.msra.mxu0 0.0
    %3132 = vmatprep.subr.mxu0 0.0
    %3133 = vmatpush1.msra.mxu0 0.0
    %3134 = vmatprep.subr.mxu0 0.0
    %3135 = vmatpush1.msra.mxu0 0.0
    %3136 = vmatprep.subr.mxu0 0.0
    %3137 = vmatpush1.msra.mxu0 0.0
    %3138 = vmatprep.subr.mxu0 0.0
    %3139 = vmatpush1.msra.mxu0 0.0
    %3140 = vmatprep.subr.mxu0 0.0
    %3141 = vmatpush1.msra.mxu0 0.0
    %3142 = vmatprep.subr.mxu0 0.0
    %3143 = vmatpush1.msra.mxu0 0.0
    %3144 = vmatprep.subr.mxu0 0.0
    %3145 = vmatpush1.msra.mxu0 0.0
    %3146 = vmatprep.subr.mxu0 0.0
    %3147 = vmatpush1.msra.mxu0 0.0
    %3148 = vmatprep.subr.mxu0 0.0
    %3149 = vmatpush1.msra.mxu0 0.0
    %3150 = vmatprep.subr.mxu0 0.0
    %3151 = vmatpush1.msra.mxu0 0.0
    %3152 = vmatprep.subr.mxu0 0.0
    %3153 = vmatpush1.msra.mxu0 0.0
    %3154 = vmatprep.subr.mxu0 0.0
    %3155 = vmatpush1.msra.mxu0 0.0
    %3156 = vmatprep.subr.mxu0 0.0
    %3157 = vmatpush1.msra.mxu0 0.0
    %3158 = vmatprep.subr.mxu0 0.0
    %3159 = vmatpush1.msra.mxu0 0.0
    %3160 = vmatprep.subr.mxu0 0.0
    %3161 = vmatpush1.msra.mxu0 0.0
    %3162 = vmatprep.subr.mxu0 0.0
    %3163 = vmatpush1.msra.mxu0 0.0
    %3164 = vmatprep.subr.mxu0 0.0
    %3165 = vmatpush1.msra.mxu0 0.0
    %3166 = vmatprep.subr.mxu0 0.0
    %3167 = vmatpush1.msra.mxu0 0.0
    %3168 = vmatprep.subr.mxu0 0.0
    %3169 = vmatpush1.msra.mxu0 0.0
    %3170 = vmatprep.subr.mxu0 0.0
    %3171 = vmatpush1.msra.mxu0 0.0
    %3172 = vmatprep.mubr.f32.mxu0 0.0
    %3173 = vmatmul.mubr.f32.gmra.mrb[0].mxu0 %v1378
    %v3174 = vpop.f32.mrb[0].mxu0
    %v3175 = vadd.f32 %v1153, %v3174
    %v3176 = vpop.f32.mrb[0].mxu0
    %v3177 = vadd.f32 %v1157, %v3176
    %3178 = vdwg.mxu0
    %3179 = vmatprep.subr.mxu0 %v375
    %3180 = vmatpush1.msra.mxu0 %v374
    %3181 = vmatprep.subr.mxu0 %v454
    %3182 = vmatpush1.msra.mxu0 %v453
    %3183 = vmatprep.subr.mxu0 %v533
    %3184 = vmatpush1.msra.mxu0 %v532
    %3185 = vmatprep.subr.mxu0 %v612
    %3186 = vmatpush1.msra.mxu0 %v611
    %3187 = vmatprep.subr.mxu0 %v691
    %3188 = vmatpush1.msra.mxu0 %v690
    %3189 = vmatprep.subr.mxu0 %v770
    %3190 = vmatpush1.msra.mxu0 %v769
    %3191 = vmatprep.subr.mxu0 %v849
    %3192 = vmatpush1.msra.mxu0 %v848
    %3193 = vmatprep.subr.mxu0 %v1516
    %3194 = vmatpush1.msra.mxu0 %v1513
    %3195 = vmatprep.subr.mxu0 0.0
    %3196 = vmatpush1.msra.mxu0 0.0
    %3197 = vmatprep.subr.mxu0 0.0
    %3198 = vmatpush1.msra.mxu0 0.0
    %3199 = vmatprep.subr.mxu0 0.0
    %3200 = vmatpush1.msra.mxu0 0.0
    %3201 = vmatprep.subr.mxu0 0.0
    %3202 = vmatpush1.msra.mxu0 0.0
    %3203 = vmatprep.subr.mxu0 0.0
    %3204 = vmatpush1.msra.mxu0 0.0
    %3205 = vmatprep.subr.mxu0 0.0
    %3206 = vmatpush1.msra.mxu0 0.0
    %3207 = vmatprep.subr.mxu0 0.0
    %3208 = vmatpush1.msra.mxu0 0.0
    %3209 = vmatprep.subr.mxu0 0.0
    %3210 = vmatpush1.msra.mxu0 0.0
    %3211 = vmatprep.subr.mxu0 0.0
    %3212 = vmatpush1.msra.mxu0 0.0
    %3213 = vmatprep.subr.mxu0 0.0
    %3214 = vmatpush1.msra.mxu0 0.0
    %3215 = vmatprep.subr.mxu0 0.0
    %3216 = vmatpush1.msra.mxu0 0.0
    %3217 = vmatprep.subr.mxu0 0.0
    %3218 = vmatpush1.msra.mxu0 0.0
    %3219 = vmatprep.subr.mxu0 0.0
    %3220 = vmatpush1.msra.mxu0 0.0
    %3221 = vmatprep.subr.mxu0 0.0
    %3222 = vmatpush1.msra.mxu0 0.0
    %3223 = vmatprep.subr.mxu0 0.0
    %3224 = vmatpush1.msra.mxu0 0.0
    %3225 = vmatprep.subr.mxu0 0.0
    %3226 = vmatpush1.msra.mxu0 0.0
    %3227 = vmatprep.subr.mxu0 0.0
    %3228 = vmatpush1.msra.mxu0 0.0
    %3229 = vmatprep.subr.mxu0 0.0
    %3230 = vmatpush1.msra.mxu0 0.0
    %3231 = vmatprep.subr.mxu0 0.0
    %3232 = vmatpush1.msra.mxu0 0.0
    %3233 = vmatprep.subr.mxu0 0.0
    %3234 = vmatpush1.msra.mxu0 0.0
    %3235 = vmatprep.subr.mxu0 0.0
    %3236 = vmatpush1.msra.mxu0 0.0
    %3237 = vmatprep.subr.mxu0 0.0
    %3238 = vmatpush1.msra.mxu0 0.0
    %3239 = vmatprep.subr.mxu0 0.0
    %3240 = vmatpush1.msra.mxu0 0.0
    %3241 = vmatprep.subr.mxu0 0.0
    %3242 = vmatpush1.msra.mxu0 0.0
    %3243 = vmatprep.mubr.f32.mxu0 0.0
    %3244 = vmatmul.mubr.f32.gmra.mrb[0].mxu0 %v1378
    %v3245 = vpop.f32.mrb[0].mxu0
    %v3246 = vadd.f32 %v1161, %v3245
    %v3247 = vpop.f32.mrb[0].mxu0
    %v3248 = vadd.f32 %v1165, %v3247
    %3249 = vdwg.mxu0
    %3250 = vmatprep.subr.mxu0 %v377
    %3251 = vmatpush1.msra.mxu0 %v376
    %3252 = vmatprep.subr.mxu0 %v456
    %3253 = vmatpush1.msra.mxu0 %v455
    %3254 = vmatprep.subr.mxu0 %v535
    %3255 = vmatpush1.msra.mxu0 %v534
    %3256 = vmatprep.subr.mxu0 %v614
    %3257 = vmatpush1.msra.mxu0 %v613
    %3258 = vmatprep.subr.mxu0 %v693
    %3259 = vmatpush1.msra.mxu0 %v692
    %3260 = vmatprep.subr.mxu0 %v772
    %3261 = vmatpush1.msra.mxu0 %v771
    %3262 = vmatprep.subr.mxu0 %v851
    %3263 = vmatpush1.msra.mxu0 %v850
    %3264 = vmatprep.subr.mxu0 %v1522
    %3265 = vmatpush1.msra.mxu0 %v1519
    %3266 = vmatprep.subr.mxu0 0.0
    %3267 = vmatpush1.msra.mxu0 0.0
    %3268 = vmatprep.subr.mxu0 0.0
    %3269 = vmatpush1.msra.mxu0 0.0
    %3270 = vmatprep.subr.mxu0 0.0
    %3271 = vmatpush1.msra.mxu0 0.0
    %3272 = vmatprep.subr.mxu0 0.0
    %3273 = vmatpush1.msra.mxu0 0.0
    %3274 = vmatprep.subr.mxu0 0.0
    %3275 = vmatpush1.msra.mxu0 0.0
    %3276 = vmatprep.subr.mxu0 0.0
    %3277 = vmatpush1.msra.mxu0 0.0
    %3278 = vmatprep.subr.mxu0 0.0
    %3279 = vmatpush1.msra.mxu0 0.0
    %3280 = vmatprep.subr.mxu0 0.0
    %3281 = vmatpush1.msra.mxu0 0.0
    %3282 = vmatprep.subr.mxu0 0.0
    %3283 = vmatpush1.msra.mxu0 0.0
    %3284 = vmatprep.subr.mxu0 0.0
    %3285 = vmatpush1.msra.mxu0 0.0
    %3286 = vmatprep.subr.mxu0 0.0
    %3287 = vmatpush1.msra.mxu0 0.0
    %3288 = vmatprep.subr.mxu0 0.0
    %3289 = vmatpush1.msra.mxu0 0.0
    %3290 = vmatprep.subr.mxu0 0.0
    %3291 = vmatpush1.msra.mxu0 0.0
    %3292 = vmatprep.subr.mxu0 0.0
    %3293 = vmatpush1.msra.mxu0 0.0
    %3294 = vmatprep.subr.mxu0 0.0
    %3295 = vmatpush1.msra.mxu0 0.0
    %3296 = vmatprep.subr.mxu0 0.0
    %3297 = vmatpush1.msra.mxu0 0.0
    %3298 = vmatprep.subr.mxu0 0.0
    %3299 = vmatpush1.msra.mxu0 0.0
    %3300 = vmatprep.subr.mxu0 0.0
    %3301 = vmatpush1.msra.mxu0 0.0
    %3302 = vmatprep.subr.mxu0 0.0
    %3303 = vmatpush1.msra.mxu0 0.0
    %3304 = vmatprep.subr.mxu0 0.0
    %3305 = vmatpush1.msra.mxu0 0.0
    %3306 = vmatprep.subr.mxu0 0.0
    %3307 = vmatpush1.msra.mxu0 0.0
    %3308 = vmatprep.subr.mxu0 0.0
    %3309 = vmatpush1.msra.mxu0 0.0
    %3310 = vmatprep.subr.mxu0 0.0
    %3311 = vmatpush1.msra.mxu0 0.0
    %3312 = vmatprep.subr.mxu0 0.0
    %3313 = vmatpush1.msra.mxu0 0.0
    %3314 = vmatprep.mubr.f32.mxu0 0.0
    %3315 = vmatmul.mubr.f32.gmra.mrb[0].mxu0 %v1378
    %v3316 = vpop.f32.mrb[0].mxu0
    %v3317 = vadd.f32 %v1169, %v3316
    %v3318 = vpop.f32.mrb[0].mxu0
    %v3319 = vadd.f32 %v1173, %v3318
    %3320 = vdwg.mxu0
    %3321 = vmatprep.subr.mxu0 %v379
    %3322 = vmatpush1.msra.mxu0 %v378
    %3323 = vmatprep.subr.mxu0 %v458
    %3324 = vmatpush1.msra.mxu0 %v457
    %3325 = vmatprep.subr.mxu0 %v537
    %3326 = vmatpush1.msra.mxu0 %v536
    %3327 = vmatprep.subr.mxu0 %v616
    %3328 = vmatpush1.msra.mxu0 %v615
    %3329 = vmatprep.subr.mxu0 %v695
    %3330 = vmatpush1.msra.mxu0 %v694
    %3331 = vmatprep.subr.mxu0 %v774
    %3332 = vmatpush1.msra.mxu0 %v773
    %3333 = vmatprep.subr.mxu0 %v853
    %3334 = vmatpush1.msra.mxu0 %v852
    %3335 = vmatprep.subr.mxu0 %v1528
    %3336 = vmatpush1.msra.mxu0 %v1525
    %3337 = vmatprep.subr.mxu0 0.0
    %3338 = vmatpush1.msra.mxu0 0.0
    %3339 = vmatprep.subr.mxu0 0.0
    %3340 = vmatpush1.msra.mxu0 0.0
    %3341 = vmatprep.subr.mxu0 0.0
    %3342 = vmatpush1.msra.mxu0 0.0
    %3343 = vmatprep.subr.mxu0 0.0
    %3344 = vmatpush1.msra.mxu0 0.0
    %3345 = vmatprep.subr.mxu0 0.0
    %3346 = vmatpush1.msra.mxu0 0.0
    %3347 = vmatprep.subr.mxu0 0.0
    %3348 = vmatpush1.msra.mxu0 0.0
    %3349 = vmatprep.subr.mxu0 0.0
    %3350 = vmatpush1.msra.mxu0 0.0
    %3351 = vmatprep.subr.mxu0 0.0
    %3352 = vmatpush1.msra.mxu0 0.0
    %3353 = vmatprep.subr.mxu0 0.0
    %3354 = vmatpush1.msra.mxu0 0.0
    %3355 = vmatprep.subr.mxu0 0.0
    %3356 = vmatpush1.msra.mxu0 0.0
    %3357 = vmatprep.subr.mxu0 0.0
    %3358 = vmatpush1.msra.mxu0 0.0
    %3359 = vmatprep.subr.mxu0 0.0
    %3360 = vmatpush1.msra.mxu0 0.0
    %3361 = vmatprep.subr.mxu0 0.0
    %3362 = vmatpush1.msra.mxu0 0.0
    %3363 = vmatprep.subr.mxu0 0.0
    %3364 = vmatpush1.msra.mxu0 0.0
    %3365 = vmatprep.subr.mxu0 0.0
    %3366 = vmatpush1.msra.mxu0 0.0
    %3367 = vmatprep.subr.mxu0 0.0
    %3368 = vmatpush1.msra.mxu0 0.0
    %3369 = vmatprep.subr.mxu0 0.0
    %3370 = vmatpush1.msra.mxu0 0.0
    %3371 = vmatprep.subr.mxu0 0.0
    %3372 = vmatpush1.msra.mxu0 0.0
    %3373 = vmatprep.subr.mxu0 0.0
    %3374 = vmatpush1.msra.mxu0 0.0
    %3375 = vmatprep.subr.mxu0 0.0
    %3376 = vmatpush1.msra.mxu0 0.0
    %3377 = vmatprep.subr.mxu0 0.0
    %3378 = vmatpush1.msra.mxu0 0.0
    %3379 = vmatprep.subr.mxu0 0.0
    %3380 = vmatpush1.msra.mxu0 0.0
    %3381 = vmatprep.subr.mxu0 0.0
    %3382 = vmatpush1.msra.mxu0 0.0
    %3383 = vmatprep.subr.mxu0 0.0
    %3384 = vmatpush1.msra.mxu0 0.0
    %3385 = vmatprep.mubr.f32.mxu0 0.0
    %3386 = vmatmul.mubr.f32.gmra.mrb[0].mxu0 %v1378
    %v3387 = vpop.f32.mrb[0].mxu0
    %v3388 = vadd.f32 %v1177, %v3387
    %v3389 = vpop.f32.mrb[0].mxu0
    %v3390 = vadd.f32 %v1181, %v3389
    %3391 = vdwg.mxu0
    %3392 = vmatprep.subr.mxu0 %v381
    %3393 = vmatpush1.msra.mxu0 %v380
    %3394 = vmatprep.subr.mxu0 %v460
    %3395 = vmatpush1.msra.mxu0 %v459
    %3396 = vmatprep.subr.mxu0 %v539
    %3397 = vmatpush1.msra.mxu0 %v538
    %3398 = vmatprep.subr.mxu0 %v618
    %3399 = vmatpush1.msra.mxu0 %v617
    %3400 = vmatprep.subr.mxu0 %v697
    %3401 = vmatpush1.msra.mxu0 %v696
    %3402 = vmatprep.subr.mxu0 %v776
    %3403 = vmatpush1.msra.mxu0 %v775
    %3404 = vmatprep.subr.mxu0 %v855
    %3405 = vmatpush1.msra.mxu0 %v854
    %3406 = vmatprep.subr.mxu0 %v1534
    %3407 = vmatpush1.msra.mxu0 %v1531
    %3408 = vmatprep.subr.mxu0 0.0
    %3409 = vmatpush1.msra.mxu0 0.0
    %3410 = vmatprep.subr.mxu0 0.0
    %3411 = vmatpush1.msra.mxu0 0.0
    %3412 = vmatprep.subr.mxu0 0.0
    %3413 = vmatpush1.msra.mxu0 0.0
    %3414 = vmatprep.subr.mxu0 0.0
    %3415 = vmatpush1.msra.mxu0 0.0
    %3416 = vmatprep.subr.mxu0 0.0
    %3417 = vmatpush1.msra.mxu0 0.0
    %3418 = vmatprep.subr.mxu0 0.0
    %3419 = vmatpush1.msra.mxu0 0.0
    %3420 = vmatprep.subr.mxu0 0.0
    %3421 = vmatpush1.msra.mxu0 0.0
    %3422 = vmatprep.subr.mxu0 0.0
    %3423 = vmatpush1.msra.mxu0 0.0
    %3424 = vmatprep.subr.mxu0 0.0
    %3425 = vmatpush1.msra.mxu0 0.0
    %3426 = vmatprep.subr.mxu0 0.0
    %3427 = vmatpush1.msra.mxu0 0.0
    %3428 = vmatprep.subr.mxu0 0.0
    %3429 = vmatpush1.msra.mxu0 0.0
    %3430 = vmatprep.subr.mxu0 0.0
    %3431 = vmatpush1.msra.mxu0 0.0
    %3432 = vmatprep.subr.mxu0 0.0
    %3433 = vmatpush1.msra.mxu0 0.0
    %3434 = vmatprep.subr.mxu0 0.0
    %3435 = vmatpush1.msra.mxu0 0.0
    %3436 = vmatprep.subr.mxu0 0.0
    %3437 = vmatpush1.msra.mxu0 0.0
    %3438 = vmatprep.subr.mxu0 0.0
    %3439 = vmatpush1.msra.mxu0 0.0
    %3440 = vmatprep.subr.mxu0 0.0
    %3441 = vmatpush1.msra.mxu0 0.0
    %3442 = vmatprep.subr.mxu0 0.0
    %3443 = vmatpush1.msra.mxu0 0.0
    %3444 = vmatprep.subr.mxu0 0.0
    %3445 = vmatpush1.msra.mxu0 0.0
    %3446 = vmatprep.subr.mxu0 0.0
    %3447 = vmatpush1.msra.mxu0 0.0
    %3448 = vmatprep.subr.mxu0 0.0
    %3449 = vmatpush1.msra.mxu0 0.0
    %3450 = vmatprep.subr.mxu0 0.0
    %3451 = vmatpush1.msra.mxu0 0.0
    %3452 = vmatprep.subr.mxu0 0.0
    %3453 = vmatpush1.msra.mxu0 0.0
    %3454 = vmatprep.subr.mxu0 0.0
    %3455 = vmatpush1.msra.mxu0 0.0
    %3456 = vmatprep.mubr.f32.mxu0 0.0
    %3457 = vmatmul.mubr.f32.gmra.mrb[0].mxu0 %v1378
    %v3458 = vpop.f32.mrb[0].mxu0
    %v3459 = vadd.f32 %v1185, %v3458
    %v3460 = vpop.f32.mrb[0].mxu0
    %v3461 = vadd.f32 %v1189, %v3460
    %3462 = vdwg.mxu0
    %3463 = vmatprep.subr.mxu0 %v383
    %3464 = vmatpush1.msra.mxu0 %v382
    %3465 = vmatprep.subr.mxu0 %v462
    %3466 = vmatpush1.msra.mxu0 %v461
    %3467 = vmatprep.subr.mxu0 %v541
    %3468 = vmatpush1.msra.mxu0 %v540
    %3469 = vmatprep.subr.mxu0 %v620
    %3470 = vmatpush1.msra.mxu0 %v619
    %3471 = vmatprep.subr.mxu0 %v699
    %3472 = vmatpush1.msra.mxu0 %v698
    %3473 = vmatprep.subr.mxu0 %v778
    %3474 = vmatpush1.msra.mxu0 %v777
    %3475 = vmatprep.subr.mxu0 %v857
    %3476 = vmatpush1.msra.mxu0 %v856
    %3477 = vmatprep.subr.mxu0 %v1540
    %3478 = vmatpush1.msra.mxu0 %v1537
    %3479 = vmatprep.subr.mxu0 0.0
    %3480 = vmatpush1.msra.mxu0 0.0
    %3481 = vmatprep.subr.mxu0 0.0
    %3482 = vmatpush1.msra.mxu0 0.0
    %3483 = vmatprep.subr.mxu0 0.0
    %3484 = vmatpush1.msra.mxu0 0.0
    %3485 = vmatprep.subr.mxu0 0.0
    %3486 = vmatpush1.msra.mxu0 0.0
    %3487 = vmatprep.subr.mxu0 0.0
    %3488 = vmatpush1.msra.mxu0 0.0
    %3489 = vmatprep.subr.mxu0 0.0
    %3490 = vmatpush1.msra.mxu0 0.0
    %3491 = vmatprep.subr.mxu0 0.0
    %3492 = vmatpush1.msra.mxu0 0.0
    %3493 = vmatprep.subr.mxu0 0.0
    %3494 = vmatpush1.msra.mxu0 0.0
    %3495 = vmatprep.subr.mxu0 0.0
    %3496 = vmatpush1.msra.mxu0 0.0
    %3497 = vmatprep.subr.mxu0 0.0
    %3498 = vmatpush1.msra.mxu0 0.0
    %3499 = vmatprep.subr.mxu0 0.0
    %3500 = vmatpush1.msra.mxu0 0.0
    %3501 = vmatprep.subr.mxu0 0.0
    %3502 = vmatpush1.msra.mxu0 0.0
    %3503 = vmatprep.subr.mxu0 0.0
    %3504 = vmatpush1.msra.mxu0 0.0
    %3505 = vmatprep.subr.mxu0 0.0
    %3506 = vmatpush1.msra.mxu0 0.0
    %3507 = vmatprep.subr.mxu0 0.0
    %3508 = vmatpush1.msra.mxu0 0.0
    %3509 = vmatprep.subr.mxu0 0.0
    %3510 = vmatpush1.msra.mxu0 0.0
    %3511 = vmatprep.subr.mxu0 0.0
    %3512 = vmatpush1.msra.mxu0 0.0
    %3513 = vmatprep.subr.mxu0 0.0
    %3514 = vmatpush1.msra.mxu0 0.0
    %3515 = vmatprep.subr.mxu0 0.0
    %3516 = vmatpush1.msra.mxu0 0.0
    %3517 = vmatprep.subr.mxu0 0.0
    %3518 = vmatpush1.msra.mxu0 0.0
    %3519 = vmatprep.subr.mxu0 0.0
    %3520 = vmatpush1.msra.mxu0 0.0
    %3521 = vmatprep.subr.mxu0 0.0
    %3522 = vmatpush1.msra.mxu0 0.0
    %3523 = vmatprep.subr.mxu0 0.0
    %3524 = vmatpush1.msra.mxu0 0.0
    %3525 = vmatprep.subr.mxu0 0.0
    %3526 = vmatpush1.msra.mxu0 0.0
    %3527 = vmatprep.mubr.f32.mxu0 0.0
    %3528 = vmatmul.mubr.f32.gmra.mrb[0].mxu0 %v1378
    %v3529 = vpop.f32.mrb[0].mxu0
    %v3530 = vadd.f32 %v1193, %v3529
    %v3531 = vpop.f32.mrb[0].mxu0
    %v3532 = vadd.f32 %v1197, %v3531
    %3533 = vdwg.mxu0
    %3534 = vmatprep.subr.mxu0 %v385
    %3535 = vmatpush1.msra.mxu0 %v384
    %3536 = vmatprep.subr.mxu0 %v464
    %3537 = vmatpush1.msra.mxu0 %v463
    %3538 = vmatprep.subr.mxu0 %v543
    %3539 = vmatpush1.msra.mxu0 %v542
    %3540 = vmatprep.subr.mxu0 %v622
    %3541 = vmatpush1.msra.mxu0 %v621
    %3542 = vmatprep.subr.mxu0 %v701
    %3543 = vmatpush1.msra.mxu0 %v700
    %3544 = vmatprep.subr.mxu0 %v780
    %3545 = vmatpush1.msra.mxu0 %v779
    %3546 = vmatprep.subr.mxu0 %v859
    %3547 = vmatpush1.msra.mxu0 %v858
    %3548 = vmatprep.subr.mxu0 %v1546
    %3549 = vmatpush1.msra.mxu0 %v1543
    %3550 = vmatprep.subr.mxu0 0.0
    %3551 = vmatpush1.msra.mxu0 0.0
    %3552 = vmatprep.subr.mxu0 0.0
    %3553 = vmatpush1.msra.mxu0 0.0
    %3554 = vmatprep.subr.mxu0 0.0
    %3555 = vmatpush1.msra.mxu0 0.0
    %3556 = vmatprep.subr.mxu0 0.0
    %3557 = vmatpush1.msra.mxu0 0.0
    %3558 = vmatprep.subr.mxu0 0.0
    %3559 = vmatpush1.msra.mxu0 0.0
    %3560 = vmatprep.subr.mxu0 0.0
    %3561 = vmatpush1.msra.mxu0 0.0
    %3562 = vmatprep.subr.mxu0 0.0
    %3563 = vmatpush1.msra.mxu0 0.0
    %3564 = vmatprep.subr.mxu0 0.0
    %3565 = vmatpush1.msra.mxu0 0.0
    %3566 = vmatprep.subr.mxu0 0.0
    %3567 = vmatpush1.msra.mxu0 0.0
    %3568 = vmatprep.subr.mxu0 0.0
    %3569 = vmatpush1.msra.mxu0 0.0
    %3570 = vmatprep.subr.mxu0 0.0
    %3571 = vmatpush1.msra.mxu0 0.0
    %3572 = vmatprep.subr.mxu0 0.0
    %3573 = vmatpush1.msra.mxu0 0.0
    %3574 = vmatprep.subr.mxu0 0.0
    %3575 = vmatpush1.msra.mxu0 0.0
    %3576 = vmatprep.subr.mxu0 0.0
    %3577 = vmatpush1.msra.mxu0 0.0
    %3578 = vmatprep.subr.mxu0 0.0
    %3579 = vmatpush1.msra.mxu0 0.0
    %3580 = vmatprep.subr.mxu0 0.0
    %3581 = vmatpush1.msra.mxu0 0.0
    %3582 = vmatprep.subr.mxu0 0.0
    %3583 = vmatpush1.msra.mxu0 0.0
    %3584 = vmatprep.subr.mxu0 0.0
    %3585 = vmatpush1.msra.mxu0 0.0
    %3586 = vmatprep.subr.mxu0 0.0
    %3587 = vmatpush1.msra.mxu0 0.0
    %3588 = vmatprep.subr.mxu0 0.0
    %3589 = vmatpush1.msra.mxu0 0.0
    %3590 = vmatprep.subr.mxu0 0.0
    %3591 = vmatpush1.msra.mxu0 0.0
    %3592 = vmatprep.subr.mxu0 0.0
    %3593 = vmatpush1.msra.mxu0 0.0
    %3594 = vmatprep.subr.mxu0 0.0
    %3595 = vmatpush1.msra.mxu0 0.0
    %3596 = vmatprep.subr.mxu0 0.0
    %3597 = vmatpush1.msra.mxu0 0.0
    %3598 = vmatprep.mubr.f32.mxu0 0.0
    %3599 = vmatmul.mubr.f32.gmra.mrb[0].mxu0 %v1378
    %v3600 = vpop.f32.mrb[0].mxu0
    %v3601 = vadd.f32 %v1201, %v3600
    %v3602 = vpop.f32.mrb[0].mxu0
    %v3603 = vadd.f32 %v1205, %v3602
    %3604 = vdwg.mxu0
    %3605 = vmatprep.subr.mxu0 %v387
    %3606 = vmatpush1.msra.mxu0 %v386
    %3607 = vmatprep.subr.mxu0 %v466
    %3608 = vmatpush1.msra.mxu0 %v465
    %3609 = vmatprep.subr.mxu0 %v545
    %3610 = vmatpush1.msra.mxu0 %v544
    %3611 = vmatprep.subr.mxu0 %v624
    %3612 = vmatpush1.msra.mxu0 %v623
    %3613 = vmatprep.subr.mxu0 %v703
    %3614 = vmatpush1.msra.mxu0 %v702
    %3615 = vmatprep.subr.mxu0 %v782
    %3616 = vmatpush1.msra.mxu0 %v781
    %3617 = vmatprep.subr.mxu0 %v861
    %3618 = vmatpush1.msra.mxu0 %v860
    %3619 = vmatprep.subr.mxu0 %v1552
    %3620 = vmatpush1.msra.mxu0 %v1549
    %3621 = vmatprep.subr.mxu0 0.0
    %3622 = vmatpush1.msra.mxu0 0.0
    %3623 = vmatprep.subr.mxu0 0.0
    %3624 = vmatpush1.msra.mxu0 0.0
    %3625 = vmatprep.subr.mxu0 0.0
    %3626 = vmatpush1.msra.mxu0 0.0
    %3627 = vmatprep.subr.mxu0 0.0
    %3628 = vmatpush1.msra.mxu0 0.0
    %3629 = vmatprep.subr.mxu0 0.0
    %3630 = vmatpush1.msra.mxu0 0.0
    %3631 = vmatprep.subr.mxu0 0.0
    %3632 = vmatpush1.msra.mxu0 0.0
    %3633 = vmatprep.subr.mxu0 0.0
    %3634 = vmatpush1.msra.mxu0 0.0
    %3635 = vmatprep.subr.mxu0 0.0
    %3636 = vmatpush1.msra.mxu0 0.0
    %3637 = vmatprep.subr.mxu0 0.0
    %3638 = vmatpush1.msra.mxu0 0.0
    %3639 = vmatprep.subr.mxu0 0.0
    %3640 = vmatpush1.msra.mxu0 0.0
    %3641 = vmatprep.subr.mxu0 0.0
    %3642 = vmatpush1.msra.mxu0 0.0
    %3643 = vmatprep.subr.mxu0 0.0
    %3644 = vmatpush1.msra.mxu0 0.0
    %3645 = vmatprep.subr.mxu0 0.0
    %3646 = vmatpush1.msra.mxu0 0.0
    %3647 = vmatprep.subr.mxu0 0.0
    %3648 = vmatpush1.msra.mxu0 0.0
    %3649 = vmatprep.subr.mxu0 0.0
    %3650 = vmatpush1.msra.mxu0 0.0
    %3651 = vmatprep.subr.mxu0 0.0
    %3652 = vmatpush1.msra.mxu0 0.0
    %3653 = vmatprep.subr.mxu0 0.0
    %3654 = vmatpush1.msra.mxu0 0.0
    %3655 = vmatprep.subr.mxu0 0.0
    %3656 = vmatpush1.msra.mxu0 0.0
    %3657 = vmatprep.subr.mxu0 0.0
    %3658 = vmatpush1.msra.mxu0 0.0
    %3659 = vmatprep.subr.mxu0 0.0
    %3660 = vmatpush1.msra.mxu0 0.0
    %3661 = vmatprep.subr.mxu0 0.0
    %3662 = vmatpush1.msra.mxu0 0.0
    %3663 = vmatprep.subr.mxu0 0.0
    %3664 = vmatpush1.msra.mxu0 0.0
    %3665 = vmatprep.subr.mxu0 0.0
    %3666 = vmatpush1.msra.mxu0 0.0
    %3667 = vmatprep.subr.mxu0 0.0
    %3668 = vmatpush1.msra.mxu0 0.0
    %3669 = vmatprep.mubr.f32.mxu0 0.0
    %3670 = vmatmul.mubr.f32.gmra.mrb[0].mxu0 %v1378
    %v3671 = vpop.f32.mrb[0].mxu0
    %v3672 = vadd.f32 %v1209, %v3671
    %v3673 = vpop.f32.mrb[0].mxu0
    %v3674 = vadd.f32 %v1213, %v3673
    %3675 = vdwg.mxu0
    %3676 = vmatprep.subr.mxu0 %v389
    %3677 = vmatpush1.msra.mxu0 %v388
    %3678 = vmatprep.subr.mxu0 %v468
    %3679 = vmatpush1.msra.mxu0 %v467
    %3680 = vmatprep.subr.mxu0 %v547
    %3681 = vmatpush1.msra.mxu0 %v546
    %3682 = vmatprep.subr.mxu0 %v626
    %3683 = vmatpush1.msra.mxu0 %v625
    %3684 = vmatprep.subr.mxu0 %v705
    %3685 = vmatpush1.msra.mxu0 %v704
    %3686 = vmatprep.subr.mxu0 %v784
    %3687 = vmatpush1.msra.mxu0 %v783
    %3688 = vmatprep.subr.mxu0 %v863
    %3689 = vmatpush1.msra.mxu0 %v862
    %3690 = vmatprep.subr.mxu0 %v1558
    %3691 = vmatpush1.msra.mxu0 %v1555
    %3692 = vmatprep.subr.mxu0 0.0
    %3693 = vmatpush1.msra.mxu0 0.0
    %3694 = vmatprep.subr.mxu0 0.0
    %3695 = vmatpush1.msra.mxu0 0.0
    %3696 = vmatprep.subr.mxu0 0.0
    %3697 = vmatpush1.msra.mxu0 0.0
    %3698 = vmatprep.subr.mxu0 0.0
    %3699 = vmatpush1.msra.mxu0 0.0
    %3700 = vmatprep.subr.mxu0 0.0
    %3701 = vmatpush1.msra.mxu0 0.0
    %3702 = vmatprep.subr.mxu0 0.0
    %3703 = vmatpush1.msra.mxu0 0.0
    %3704 = vmatprep.subr.mxu0 0.0
    %3705 = vmatpush1.msra.mxu0 0.0
    %3706 = vmatprep.subr.mxu0 0.0
    %3707 = vmatpush1.msra.mxu0 0.0
    %3708 = vmatprep.subr.mxu0 0.0
    %3709 = vmatpush1.msra.mxu0 0.0
    %3710 = vmatprep.subr.mxu0 0.0
    %3711 = vmatpush1.msra.mxu0 0.0
    %3712 = vmatprep.subr.mxu0 0.0
    %3713 = vmatpush1.msra.mxu0 0.0
    %3714 = vmatprep.subr.mxu0 0.0
    %3715 = vmatpush1.msra.mxu0 0.0
    %3716 = vmatprep.subr.mxu0 0.0
    %3717 = vmatpush1.msra.mxu0 0.0
    %3718 = vmatprep.subr.mxu0 0.0
    %3719 = vmatpush1.msra.mxu0 0.0
    %3720 = vmatprep.subr.mxu0 0.0
    %3721 = vmatpush1.msra.mxu0 0.0
    %3722 = vmatprep.subr.mxu0 0.0
    %3723 = vmatpush1.msra.mxu0 0.0
    %3724 = vmatprep.subr.mxu0 0.0
    %3725 = vmatpush1.msra.mxu0 0.0
    %3726 = vmatprep.subr.mxu0 0.0
    %3727 = vmatpush1.msra.mxu0 0.0
    %3728 = vmatprep.subr.mxu0 0.0
    %3729 = vmatpush1.msra.mxu0 0.0
    %3730 = vmatprep.subr.mxu0 0.0
    %3731 = vmatpush1.msra.mxu0 0.0
    %3732 = vmatprep.subr.mxu0 0.0
    %3733 = vmatpush1.msra.mxu0 0.0
    %3734 = vmatprep.subr.mxu0 0.0
    %3735 = vmatpush1.msra.mxu0 0.0
    %3736 = vmatprep.subr.mxu0 0.0
    %3737 = vmatpush1.msra.mxu0 0.0
    %3738 = vmatprep.subr.mxu0 0.0
    %3739 = vmatpush1.msra.mxu0 0.0
    %3740 = vmatprep.mubr.f32.mxu0 0.0
    %3741 = vmatmul.mubr.f32.gmra.mrb[0].mxu0 %v1378
    %v3742 = vpop.f32.mrb[0].mxu0
    %v3743 = vadd.f32 %v1217, %v3742
    %v3744 = vpop.f32.mrb[0].mxu0
    %v3745 = vadd.f32 %v1221, %v3744
    %3746 = vdwg.mxu0
    %3747 = vmatprep.subr.mxu0 %v391
    %3748 = vmatpush1.msra.mxu0 %v390
    %3749 = vmatprep.subr.mxu0 %v470
    %3750 = vmatpush1.msra.mxu0 %v469
    %3751 = vmatprep.subr.mxu0 %v549
    %3752 = vmatpush1.msra.mxu0 %v548
    %3753 = vmatprep.subr.mxu0 %v628
    %3754 = vmatpush1.msra.mxu0 %v627
    %3755 = vmatprep.subr.mxu0 %v707
    %3756 = vmatpush1.msra.mxu0 %v706
    %3757 = vmatprep.subr.mxu0 %v786
    %3758 = vmatpush1.msra.mxu0 %v785
    %3759 = vmatprep.subr.mxu0 %v865
    %3760 = vmatpush1.msra.mxu0 %v864
    %3761 = vmatprep.subr.mxu0 %v1564
    %3762 = vmatpush1.msra.mxu0 %v1561
    %3763 = vmatprep.subr.mxu0 0.0
    %3764 = vmatpush1.msra.mxu0 0.0
    %3765 = vmatprep.subr.mxu0 0.0
    %3766 = vmatpush1.msra.mxu0 0.0
    %3767 = vmatprep.subr.mxu0 0.0
    %3768 = vmatpush1.msra.mxu0 0.0
    %3769 = vmatprep.subr.mxu0 0.0
    %3770 = vmatpush1.msra.mxu0 0.0
    %3771 = vmatprep.subr.mxu0 0.0
    %3772 = vmatpush1.msra.mxu0 0.0
    %3773 = vmatprep.subr.mxu0 0.0
    %3774 = vmatpush1.msra.mxu0 0.0
    %3775 = vmatprep.subr.mxu0 0.0
    %3776 = vmatpush1.msra.mxu0 0.0
    %3777 = vmatprep.subr.mxu0 0.0
    %3778 = vmatpush1.msra.mxu0 0.0
    %3779 = vmatprep.subr.mxu0 0.0
    %3780 = vmatpush1.msra.mxu0 0.0
    %3781 = vmatprep.subr.mxu0 0.0
    %3782 = vmatpush1.msra.mxu0 0.0
    %3783 = vmatprep.subr.mxu0 0.0
    %3784 = vmatpush1.msra.mxu0 0.0
    %3785 = vmatprep.subr.mxu0 0.0
    %3786 = vmatpush1.msra.mxu0 0.0
    %3787 = vmatprep.subr.mxu0 0.0
    %3788 = vmatpush1.msra.mxu0 0.0
    %3789 = vmatprep.subr.mxu0 0.0
    %3790 = vmatpush1.msra.mxu0 0.0
    %3791 = vmatprep.subr.mxu0 0.0
    %3792 = vmatpush1.msra.mxu0 0.0
    %3793 = vmatprep.subr.mxu0 0.0
    %3794 = vmatpush1.msra.mxu0 0.0
    %3795 = vmatprep.subr.mxu0 0.0
    %3796 = vmatpush1.msra.mxu0 0.0
    %3797 = vmatprep.subr.mxu0 0.0
    %3798 = vmatpush1.msra.mxu0 0.0
    %3799 = vmatprep.subr.mxu0 0.0
    %3800 = vmatpush1.msra.mxu0 0.0
    %3801 = vmatprep.subr.mxu0 0.0
    %3802 = vmatpush1.msra.mxu0 0.0
    %3803 = vmatprep.subr.mxu0 0.0
    %3804 = vmatpush1.msra.mxu0 0.0
    %3805 = vmatprep.subr.mxu0 0.0
    %3806 = vmatpush1.msra.mxu0 0.0
    %3807 = vmatprep.subr.mxu0 0.0
    %3808 = vmatpush1.msra.mxu0 0.0
    %3809 = vmatprep.subr.mxu0 0.0
    %3810 = vmatpush1.msra.mxu0 0.0
    %3811 = vmatprep.mubr.f32.mxu0 0.0
    %3812 = vmatmul.mubr.f32.gmra.mrb[0].mxu0 %v1378
    %v3813 = vpop.f32.mrb[0].mxu0
    %v3814 = vadd.f32 %v1225, %v3813
    %v3815 = vpop.f32.mrb[0].mxu0
    %v3816 = vadd.f32 %v1229, %v3815
    %3817 = vdwg.mxu0
    %3818 = vmatprep.subr.mxu0 %v393
    %3819 = vmatpush1.msra.mxu0 %v392
    %3820 = vmatprep.subr.mxu0 %v472
    %3821 = vmatpush1.msra.mxu0 %v471
    %3822 = vmatprep.subr.mxu0 %v551
    %3823 = vmatpush1.msra.mxu0 %v550
    %3824 = vmatprep.subr.mxu0 %v630
    %3825 = vmatpush1.msra.mxu0 %v629
    %3826 = vmatprep.subr.mxu0 %v709
    %3827 = vmatpush1.msra.mxu0 %v708
    %3828 = vmatprep.subr.mxu0 %v788
    %3829 = vmatpush1.msra.mxu0 %v787
    %3830 = vmatprep.subr.mxu0 %v867
    %3831 = vmatpush1.msra.mxu0 %v866
    %3832 = vmatprep.subr.mxu0 %v1570
    %3833 = vmatpush1.msra.mxu0 %v1567
    %3834 = vmatprep.subr.mxu0 0.0
    %3835 = vmatpush1.msra.mxu0 0.0
    %3836 = vmatprep.subr.mxu0 0.0
    %3837 = vmatpush1.msra.mxu0 0.0
    %3838 = vmatprep.subr.mxu0 0.0
    %3839 = vmatpush1.msra.mxu0 0.0
    %3840 = vmatprep.subr.mxu0 0.0
    %3841 = vmatpush1.msra.mxu0 0.0
    %3842 = vmatprep.subr.mxu0 0.0
    %3843 = vmatpush1.msra.mxu0 0.0
    %3844 = vmatprep.subr.mxu0 0.0
    %3845 = vmatpush1.msra.mxu0 0.0
    %3846 = vmatprep.subr.mxu0 0.0
    %3847 = vmatpush1.msra.mxu0 0.0
    %3848 = vmatprep.subr.mxu0 0.0
    %3849 = vmatpush1.msra.mxu0 0.0
    %3850 = vmatprep.subr.mxu0 0.0
    %3851 = vmatpush1.msra.mxu0 0.0
    %3852 = vmatprep.subr.mxu0 0.0
    %3853 = vmatpush1.msra.mxu0 0.0
    %3854 = vmatprep.subr.mxu0 0.0
    %3855 = vmatpush1.msra.mxu0 0.0
    %3856 = vmatprep.subr.mxu0 0.0
    %3857 = vmatpush1.msra.mxu0 0.0
    %3858 = vmatprep.subr.mxu0 0.0
    %3859 = vmatpush1.msra.mxu0 0.0
    %3860 = vmatprep.subr.mxu0 0.0
    %3861 = vmatpush1.msra.mxu0 0.0
    %3862 = vmatprep.subr.mxu0 0.0
    %3863 = vmatpush1.msra.mxu0 0.0
    %3864 = vmatprep.subr.mxu0 0.0
    %3865 = vmatpush1.msra.mxu0 0.0
    %3866 = vmatprep.subr.mxu0 0.0
    %3867 = vmatpush1.msra.mxu0 0.0
    %3868 = vmatprep.subr.mxu0 0.0
    %3869 = vmatpush1.msra.mxu0 0.0
    %3870 = vmatprep.subr.mxu0 0.0
    %3871 = vmatpush1.msra.mxu0 0.0
    %3872 = vmatprep.subr.mxu0 0.0
    %3873 = vmatpush1.msra.mxu0 0.0
    %3874 = vmatprep.subr.mxu0 0.0
    %3875 = vmatpush1.msra.mxu0 0.0
    %3876 = vmatprep.subr.mxu0 0.0
    %3877 = vmatpush1.msra.mxu0 0.0
    %3878 = vmatprep.subr.mxu0 0.0
    %3879 = vmatpush1.msra.mxu0 0.0
    %3880 = vmatprep.subr.mxu0 0.0
    %3881 = vmatpush1.msra.mxu0 0.0
    %3882 = vmatprep.mubr.f32.mxu0 0.0
    %3883 = vmatmul.mubr.f32.gmra.mrb[0].mxu0 %v1378
    %v3884 = vpop.f32.mrb[0].mxu0
    %v3885 = vadd.f32 %v1233, %v3884
    %v3886 = vpop.f32.mrb[0].mxu0
    %v3887 = vadd.f32 %v1237, %v3886
    %3888 = vdwg.mxu0
    %3889 = vmatprep.subr.mxu0 %v395
    %3890 = vmatpush1.msra.mxu0 %v394
    %3891 = vmatprep.subr.mxu0 %v474
    %3892 = vmatpush1.msra.mxu0 %v473
    %3893 = vmatprep.subr.mxu0 %v553
    %3894 = vmatpush1.msra.mxu0 %v552
    %3895 = vmatprep.subr.mxu0 %v632
    %3896 = vmatpush1.msra.mxu0 %v631
    %3897 = vmatprep.subr.mxu0 %v711
    %3898 = vmatpush1.msra.mxu0 %v710
    %3899 = vmatprep.subr.mxu0 %v790
    %3900 = vmatpush1.msra.mxu0 %v789
    %3901 = vmatprep.subr.mxu0 %v869
    %3902 = vmatpush1.msra.mxu0 %v868
    %3903 = vmatprep.subr.mxu0 %v1576
    %3904 = vmatpush1.msra.mxu0 %v1573
    %3905 = vmatprep.subr.mxu0 0.0
    %3906 = vmatpush1.msra.mxu0 0.0
    %3907 = vmatprep.subr.mxu0 0.0
    %3908 = vmatpush1.msra.mxu0 0.0
    %3909 = vmatprep.subr.mxu0 0.0
    %3910 = vmatpush1.msra.mxu0 0.0
    %3911 = vmatprep.subr.mxu0 0.0
    %3912 = vmatpush1.msra.mxu0 0.0
    %3913 = vmatprep.subr.mxu0 0.0
    %3914 = vmatpush1.msra.mxu0 0.0
    %3915 = vmatprep.subr.mxu0 0.0
    %3916 = vmatpush1.msra.mxu0 0.0
    %3917 = vmatprep.subr.mxu0 0.0
    %3918 = vmatpush1.msra.mxu0 0.0
    %3919 = vmatprep.subr.mxu0 0.0
    %3920 = vmatpush1.msra.mxu0 0.0
    %3921 = vmatprep.subr.mxu0 0.0
    %3922 = vmatpush1.msra.mxu0 0.0
    %3923 = vmatprep.subr.mxu0 0.0
    %3924 = vmatpush1.msra.mxu0 0.0
    %3925 = vmatprep.subr.mxu0 0.0
    %3926 = vmatpush1.msra.mxu0 0.0
    %3927 = vmatprep.subr.mxu0 0.0
    %3928 = vmatpush1.msra.mxu0 0.0
    %3929 = vmatprep.subr.mxu0 0.0
    %3930 = vmatpush1.msra.mxu0 0.0
    %3931 = vmatprep.subr.mxu0 0.0
    %3932 = vmatpush1.msra.mxu0 0.0
    %3933 = vmatprep.subr.mxu0 0.0
    %3934 = vmatpush1.msra.mxu0 0.0
    %3935 = vmatprep.subr.mxu0 0.0
    %3936 = vmatpush1.msra.mxu0 0.0
    %3937 = vmatprep.subr.mxu0 0.0
    %3938 = vmatpush1.msra.mxu0 0.0
    %3939 = vmatprep.subr.mxu0 0.0
    %3940 = vmatpush1.msra.mxu0 0.0
    %3941 = vmatprep.subr.mxu0 0.0
    %3942 = vmatpush1.msra.mxu0 0.0
    %3943 = vmatprep.subr.mxu0 0.0
    %3944 = vmatpush1.msra.mxu0 0.0
    %3945 = vmatprep.subr.mxu0 0.0
    %3946 = vmatpush1.msra.mxu0 0.0
    %3947 = vmatprep.subr.mxu0 0.0
    %3948 = vmatpush1.msra.mxu0 0.0
    %3949 = vmatprep.subr.mxu0 0.0
    %3950 = vmatpush1.msra.mxu0 0.0
    %3951 = vmatprep.subr.mxu0 0.0
    %3952 = vmatpush1.msra.mxu0 0.0
    %3953 = vmatprep.mubr.f32.mxu0 0.0
    %3954 = vmatmul.mubr.f32.gmra.mrb[0].mxu0 %v1378
    %v3955 = vpop.f32.mrb[0].mxu0
    %v3956 = vadd.f32 %v1241, %v3955
    %v3957 = vpop.f32.mrb[0].mxu0
    %v3958 = vadd.f32 %v1245, %v3957
    %3959 = vdwg.mxu0
    %3960 = vmatprep.subr.mxu0 %v397
    %3961 = vmatpush1.msra.mxu0 %v396
    %3962 = vmatprep.subr.mxu0 %v476
    %3963 = vmatpush1.msra.mxu0 %v475
    %3964 = vmatprep.subr.mxu0 %v555
    %3965 = vmatpush1.msra.mxu0 %v554
    %3966 = vmatprep.subr.mxu0 %v634
    %3967 = vmatpush1.msra.mxu0 %v633
    %3968 = vmatprep.subr.mxu0 %v713
    %3969 = vmatpush1.msra.mxu0 %v712
    %3970 = vmatprep.subr.mxu0 %v792
    %3971 = vmatpush1.msra.mxu0 %v791
    %3972 = vmatprep.subr.mxu0 %v871
    %3973 = vmatpush1.msra.mxu0 %v870
    %3974 = vmatprep.subr.mxu0 %v1582
    %3975 = vmatpush1.msra.mxu0 %v1579
    %3976 = vmatprep.subr.mxu0 0.0
    %3977 = vmatpush1.msra.mxu0 0.0
    %3978 = vmatprep.subr.mxu0 0.0
    %3979 = vmatpush1.msra.mxu0 0.0
    %3980 = vmatprep.subr.mxu0 0.0
    %3981 = vmatpush1.msra.mxu0 0.0
    %3982 = vmatprep.subr.mxu0 0.0
    %3983 = vmatpush1.msra.mxu0 0.0
    %3984 = vmatprep.subr.mxu0 0.0
    %3985 = vmatpush1.msra.mxu0 0.0
    %3986 = vmatprep.subr.mxu0 0.0
    %3987 = vmatpush1.msra.mxu0 0.0
    %3988 = vmatprep.subr.mxu0 0.0
    %3989 = vmatpush1.msra.mxu0 0.0
    %3990 = vmatprep.subr.mxu0 0.0
    %3991 = vmatpush1.msra.mxu0 0.0
    %3992 = vmatprep.subr.mxu0 0.0
    %3993 = vmatpush1.msra.mxu0 0.0
    %3994 = vmatprep.subr.mxu0 0.0
    %3995 = vmatpush1.msra.mxu0 0.0
    %3996 = vmatprep.subr.mxu0 0.0
    %3997 = vmatpush1.msra.mxu0 0.0
    %3998 = vmatprep.subr.mxu0 0.0
    %3999 = vmatpush1.msra.mxu0 0.0
    %4000 = vmatprep.subr.mxu0 0.0
    %4001 = vmatpush1.msra.mxu0 0.0
    %4002 = vmatprep.subr.mxu0 0.0
    %4003 = vmatpush1.msra.mxu0 0.0
    %4004 = vmatprep.subr.mxu0 0.0
    %4005 = vmatpush1.msra.mxu0 0.0
    %4006 = vmatprep.subr.mxu0 0.0
    %4007 = vmatpush1.msra.mxu0 0.0
    %4008 = vmatprep.subr.mxu0 0.0
    %4009 = vmatpush1.msra.mxu0 0.0
    %4010 = vmatprep.subr.mxu0 0.0
    %4011 = vmatpush1.msra.mxu0 0.0
    %4012 = vmatprep.subr.mxu0 0.0
    %4013 = vmatpush1.msra.mxu0 0.0
    %4014 = vmatprep.subr.mxu0 0.0
    %4015 = vmatpush1.msra.mxu0 0.0
    %4016 = vmatprep.subr.mxu0 0.0
    %4017 = vmatpush1.msra.mxu0 0.0
    %4018 = vmatprep.subr.mxu0 0.0
    %4019 = vmatpush1.msra.mxu0 0.0
    %4020 = vmatprep.subr.mxu0 0.0
    %4021 = vmatpush1.msra.mxu0 0.0
    %4022 = vmatprep.subr.mxu0 0.0
    %4023 = vmatpush1.msra.mxu0 0.0
    %4024 = vmatprep.mubr.f32.mxu0 0.0
    %4025 = vmatmul.mubr.f32.gmra.mrb[0].mxu0 %v1378
    %v4026 = vpop.f32.mrb[0].mxu0
    %v4027 = vadd.f32 %v1249, %v4026
    %v4028 = vpop.f32.mrb[0].mxu0
    %v4029 = vadd.f32 %v1253, %v4028
    %4030 = vdwg.mxu0
    %4031 = vmatprep.subr.mxu0 %v399
    %4032 = vmatpush1.msra.mxu0 %v398
    %4033 = vmatprep.subr.mxu0 %v478
    %4034 = vmatpush1.msra.mxu0 %v477
    %4035 = vmatprep.subr.mxu0 %v557
    %4036 = vmatpush1.msra.mxu0 %v556
    %4037 = vmatprep.subr.mxu0 %v636
    %4038 = vmatpush1.msra.mxu0 %v635
    %4039 = vmatprep.subr.mxu0 %v715
    %4040 = vmatpush1.msra.mxu0 %v714
    %4041 = vmatprep.subr.mxu0 %v794
    %4042 = vmatpush1.msra.mxu0 %v793
    %4043 = vmatprep.subr.mxu0 %v873
    %4044 = vmatpush1.msra.mxu0 %v872
    %4045 = vmatprep.subr.mxu0 %v1588
    %4046 = vmatpush1.msra.mxu0 %v1585
    %4047 = vmatprep.subr.mxu0 0.0
    %4048 = vmatpush1.msra.mxu0 0.0
    %4049 = vmatprep.subr.mxu0 0.0
    %4050 = vmatpush1.msra.mxu0 0.0
    %4051 = vmatprep.subr.mxu0 0.0
    %4052 = vmatpush1.msra.mxu0 0.0
    %4053 = vmatprep.subr.mxu0 0.0
    %4054 = vmatpush1.msra.mxu0 0.0
    %4055 = vmatprep.subr.mxu0 0.0
    %4056 = vmatpush1.msra.mxu0 0.0
    %4057 = vmatprep.subr.mxu0 0.0
    %4058 = vmatpush1.msra.mxu0 0.0
    %4059 = vmatprep.subr.mxu0 0.0
    %4060 = vmatpush1.msra.mxu0 0.0
    %4061 = vmatprep.subr.mxu0 0.0
    %4062 = vmatpush1.msra.mxu0 0.0
    %4063 = vmatprep.subr.mxu0 0.0
    %4064 = vmatpush1.msra.mxu0 0.0
    %4065 = vmatprep.subr.mxu0 0.0
    %4066 = vmatpush1.msra.mxu0 0.0
    %4067 = vmatprep.subr.mxu0 0.0
    %4068 = vmatpush1.msra.mxu0 0.0
    %4069 = vmatprep.subr.mxu0 0.0
    %4070 = vmatpush1.msra.mxu0 0.0
    %4071 = vmatprep.subr.mxu0 0.0
    %4072 = vmatpush1.msra.mxu0 0.0
    %4073 = vmatprep.subr.mxu0 0.0
    %4074 = vmatpush1.msra.mxu0 0.0
    %4075 = vmatprep.subr.mxu0 0.0
    %4076 = vmatpush1.msra.mxu0 0.0
    %4077 = vmatprep.subr.mxu0 0.0
    %4078 = vmatpush1.msra.mxu0 0.0
    %4079 = vmatprep.subr.mxu0 0.0
    %4080 = vmatpush1.msra.mxu0 0.0
    %4081 = vmatprep.subr.mxu0 0.0
    %4082 = vmatpush1.msra.mxu0 0.0
    %4083 = vmatprep.subr.mxu0 0.0
    %4084 = vmatpush1.msra.mxu0 0.0
    %4085 = vmatprep.subr.mxu0 0.0
    %4086 = vmatpush1.msra.mxu0 0.0
    %4087 = vmatprep.subr.mxu0 0.0
    %4088 = vmatpush1.msra.mxu0 0.0
    %4089 = vmatprep.subr.mxu0 0.0
    %4090 = vmatpush1.msra.mxu0 0.0
    %4091 = vmatprep.subr.mxu0 0.0
    %4092 = vmatpush1.msra.mxu0 0.0
    %4093 = vmatprep.subr.mxu0 0.0
    %4094 = vmatpush1.msra.mxu0 0.0
    %4095 = vmatprep.mubr.f32.mxu0 0.0
    %4096 = vmatmul.mubr.f32.gmra.mrb[0].mxu0 %v1378
    %v4097 = vpop.f32.mrb[0].mxu0
    %v4098 = vadd.f32 %v1257, %v4097
    %v4099 = vpop.f32.mrb[0].mxu0
    %v4100 = vadd.f32 %v1261, %v4099
    %4101 = vdwg.mxu0
    %4102 = vmatprep.subr.mxu0 %v401
    %4103 = vmatpush1.msra.mxu0 %v400
    %4104 = vmatprep.subr.mxu0 %v480
    %4105 = vmatpush1.msra.mxu0 %v479
    %4106 = vmatprep.subr.mxu0 %v559
    %4107 = vmatpush1.msra.mxu0 %v558
    %4108 = vmatprep.subr.mxu0 %v638
    %4109 = vmatpush1.msra.mxu0 %v637
    %4110 = vmatprep.subr.mxu0 %v717
    %4111 = vmatpush1.msra.mxu0 %v716
    %4112 = vmatprep.subr.mxu0 %v796
    %4113 = vmatpush1.msra.mxu0 %v795
    %4114 = vmatprep.subr.mxu0 %v875
    %4115 = vmatpush1.msra.mxu0 %v874
    %4116 = vmatprep.subr.mxu0 %v1594
    %4117 = vmatpush1.msra.mxu0 %v1591
    %4118 = vmatprep.subr.mxu0 0.0
    %4119 = vmatpush1.msra.mxu0 0.0
    %4120 = vmatprep.subr.mxu0 0.0
    %4121 = vmatpush1.msra.mxu0 0.0
    %4122 = vmatprep.subr.mxu0 0.0
    %4123 = vmatpush1.msra.mxu0 0.0
    %4124 = vmatprep.subr.mxu0 0.0
    %4125 = vmatpush1.msra.mxu0 0.0
    %4126 = vmatprep.subr.mxu0 0.0
    %4127 = vmatpush1.msra.mxu0 0.0
    %4128 = vmatprep.subr.mxu0 0.0
    %4129 = vmatpush1.msra.mxu0 0.0
    %4130 = vmatprep.subr.mxu0 0.0
    %4131 = vmatpush1.msra.mxu0 0.0
    %4132 = vmatprep.subr.mxu0 0.0
    %4133 = vmatpush1.msra.mxu0 0.0
    %4134 = vmatprep.subr.mxu0 0.0
    %4135 = vmatpush1.msra.mxu0 0.0
    %4136 = vmatprep.subr.mxu0 0.0
    %4137 = vmatpush1.msra.mxu0 0.0
    %4138 = vmatprep.subr.mxu0 0.0
    %4139 = vmatpush1.msra.mxu0 0.0
    %4140 = vmatprep.subr.mxu0 0.0
    %4141 = vmatpush1.msra.mxu0 0.0
    %4142 = vmatprep.subr.mxu0 0.0
    %4143 = vmatpush1.msra.mxu0 0.0
    %4144 = vmatprep.subr.mxu0 0.0
    %4145 = vmatpush1.msra.mxu0 0.0
    %4146 = vmatprep.subr.mxu0 0.0
    %4147 = vmatpush1.msra.mxu0 0.0
    %4148 = vmatprep.subr.mxu0 0.0
    %4149 = vmatpush1.msra.mxu0 0.0
    %4150 = vmatprep.subr.mxu0 0.0
    %4151 = vmatpush1.msra.mxu0 0.0
    %4152 = vmatprep.subr.mxu0 0.0
    %4153 = vmatpush1.msra.mxu0 0.0
    %4154 = vmatprep.subr.mxu0 0.0
    %4155 = vmatpush1.msra.mxu0 0.0
    %4156 = vmatprep.subr.mxu0 0.0
    %4157 = vmatpush1.msra.mxu0 0.0
    %4158 = vmatprep.subr.mxu0 0.0
    %4159 = vmatpush1.msra.mxu0 0.0
    %4160 = vmatprep.subr.mxu0 0.0
    %4161 = vmatpush1.msra.mxu0 0.0
    %4162 = vmatprep.subr.mxu0 0.0
    %4163 = vmatpush1.msra.mxu0 0.0
    %4164 = vmatprep.subr.mxu0 0.0
    %4165 = vmatpush1.msra.mxu0 0.0
    %4166 = vmatprep.mubr.f32.mxu0 0.0
    %4167 = vmatmul.mubr.f32.gmra.mrb[0].mxu0 %v1378
    %v4168 = vpop.f32.mrb[0].mxu0
    %v4169 = vadd.f32 %v1265, %v4168
    %v4170 = vpop.f32.mrb[0].mxu0
    %v4171 = vadd.f32 %v1269, %v4170
    %4172 = vdwg.mxu0
    %4173 = vmatprep.subr.mxu0 %v403
    %4174 = vmatpush1.msra.mxu0 %v402
    %4175 = vmatprep.subr.mxu0 %v482
    %4176 = vmatpush1.msra.mxu0 %v481
    %4177 = vmatprep.subr.mxu0 %v561
    %4178 = vmatpush1.msra.mxu0 %v560
    %4179 = vmatprep.subr.mxu0 %v640
    %4180 = vmatpush1.msra.mxu0 %v639
    %4181 = vmatprep.subr.mxu0 %v719
    %4182 = vmatpush1.msra.mxu0 %v718
    %4183 = vmatprep.subr.mxu0 %v798
    %4184 = vmatpush1.msra.mxu0 %v797
    %4185 = vmatprep.subr.mxu0 %v877
    %4186 = vmatpush1.msra.mxu0 %v876
    %4187 = vmatprep.subr.mxu0 %v1600
    %4188 = vmatpush1.msra.mxu0 %v1597
    %4189 = vmatprep.subr.mxu0 0.0
    %4190 = vmatpush1.msra.mxu0 0.0
    %4191 = vmatprep.subr.mxu0 0.0
    %4192 = vmatpush1.msra.mxu0 0.0
    %4193 = vmatprep.subr.mxu0 0.0
    %4194 = vmatpush1.msra.mxu0 0.0
    %4195 = vmatprep.subr.mxu0 0.0
    %4196 = vmatpush1.msra.mxu0 0.0
    %4197 = vmatprep.subr.mxu0 0.0
    %4198 = vmatpush1.msra.mxu0 0.0
    %4199 = vmatprep.subr.mxu0 0.0
    %4200 = vmatpush1.msra.mxu0 0.0
    %4201 = vmatprep.subr.mxu0 0.0
    %4202 = vmatpush1.msra.mxu0 0.0
    %4203 = vmatprep.subr.mxu0 0.0
    %4204 = vmatpush1.msra.mxu0 0.0
    %4205 = vmatprep.subr.mxu0 0.0
    %4206 = vmatpush1.msra.mxu0 0.0
    %4207 = vmatprep.subr.mxu0 0.0
    %4208 = vmatpush1.msra.mxu0 0.0
    %4209 = vmatprep.subr.mxu0 0.0
    %4210 = vmatpush1.msra.mxu0 0.0
    %4211 = vmatprep.subr.mxu0 0.0
    %4212 = vmatpush1.msra.mxu0 0.0
    %4213 = vmatprep.subr.mxu0 0.0
    %4214 = vmatpush1.msra.mxu0 0.0
    %4215 = vmatprep.subr.mxu0 0.0
    %4216 = vmatpush1.msra.mxu0 0.0
    %4217 = vmatprep.subr.mxu0 0.0
    %4218 = vmatpush1.msra.mxu0 0.0
    %4219 = vmatprep.subr.mxu0 0.0
    %4220 = vmatpush1.msra.mxu0 0.0
    %4221 = vmatprep.subr.mxu0 0.0
    %4222 = vmatpush1.msra.mxu0 0.0
    %4223 = vmatprep.subr.mxu0 0.0
    %4224 = vmatpush1.msra.mxu0 0.0
    %4225 = vmatprep.subr.mxu0 0.0
    %4226 = vmatpush1.msra.mxu0 0.0
    %4227 = vmatprep.subr.mxu0 0.0
    %4228 = vmatpush1.msra.mxu0 0.0
    %4229 = vmatprep.subr.mxu0 0.0
    %4230 = vmatpush1.msra.mxu0 0.0
    %4231 = vmatprep.subr.mxu0 0.0
    %4232 = vmatpush1.msra.mxu0 0.0
    %4233 = vmatprep.subr.mxu0 0.0
    %4234 = vmatpush1.msra.mxu0 0.0
    %4235 = vmatprep.subr.mxu0 0.0
    %4236 = vmatpush1.msra.mxu0 0.0
    %4237 = vmatprep.mubr.f32.mxu0 0.0
    %4238 = vmatmul.mubr.f32.gmra.mrb[0].mxu0 %v1378
    %v4239 = vpop.f32.mrb[0].mxu0
    %v4240 = vadd.f32 %v1273, %v4239
    %v4241 = vpop.f32.mrb[0].mxu0
    %v4242 = vadd.f32 %v1277, %v4241
    %4243 = vdwg.mxu0
    %4244 = vmatprep.subr.mxu0 %v405
    %4245 = vmatpush1.msra.mxu0 %v404
    %4246 = vmatprep.subr.mxu0 %v484
    %4247 = vmatpush1.msra.mxu0 %v483
    %4248 = vmatprep.subr.mxu0 %v563
    %4249 = vmatpush1.msra.mxu0 %v562
    %4250 = vmatprep.subr.mxu0 %v642
    %4251 = vmatpush1.msra.mxu0 %v641
    %4252 = vmatprep.subr.mxu0 %v721
    %4253 = vmatpush1.msra.mxu0 %v720
    %4254 = vmatprep.subr.mxu0 %v800
    %4255 = vmatpush1.msra.mxu0 %v799
    %4256 = vmatprep.subr.mxu0 %v879
    %4257 = vmatpush1.msra.mxu0 %v878
    %4258 = vmatprep.subr.mxu0 %v1606
    %4259 = vmatpush1.msra.mxu0 %v1603
    %4260 = vmatprep.subr.mxu0 0.0
    %4261 = vmatpush1.msra.mxu0 0.0
    %4262 = vmatprep.subr.mxu0 0.0
    %4263 = vmatpush1.msra.mxu0 0.0
    %4264 = vmatprep.subr.mxu0 0.0
    %4265 = vmatpush1.msra.mxu0 0.0
    %4266 = vmatprep.subr.mxu0 0.0
    %4267 = vmatpush1.msra.mxu0 0.0
    %4268 = vmatprep.subr.mxu0 0.0
    %4269 = vmatpush1.msra.mxu0 0.0
    %4270 = vmatprep.subr.mxu0 0.0
    %4271 = vmatpush1.msra.mxu0 0.0
    %4272 = vmatprep.subr.mxu0 0.0
    %4273 = vmatpush1.msra.mxu0 0.0
    %4274 = vmatprep.subr.mxu0 0.0
    %4275 = vmatpush1.msra.mxu0 0.0
    %4276 = vmatprep.subr.mxu0 0.0
    %4277 = vmatpush1.msra.mxu0 0.0
    %4278 = vmatprep.subr.mxu0 0.0
    %4279 = vmatpush1.msra.mxu0 0.0
    %4280 = vmatprep.subr.mxu0 0.0
    %4281 = vmatpush1.msra.mxu0 0.0
    %4282 = vmatprep.subr.mxu0 0.0
    %4283 = vmatpush1.msra.mxu0 0.0
    %4284 = vmatprep.subr.mxu0 0.0
    %4285 = vmatpush1.msra.mxu0 0.0
    %4286 = vmatprep.subr.mxu0 0.0
    %4287 = vmatpush1.msra.mxu0 0.0
    %4288 = vmatprep.subr.mxu0 0.0
    %4289 = vmatpush1.msra.mxu0 0.0
    %4290 = vmatprep.subr.mxu0 0.0
    %4291 = vmatpush1.msra.mxu0 0.0
    %4292 = vmatprep.subr.mxu0 0.0
    %4293 = vmatpush1.msra.mxu0 0.0
    %4294 = vmatprep.subr.mxu0 0.0
    %4295 = vmatpush1.msra.mxu0 0.0
    %4296 = vmatprep.subr.mxu0 0.0
    %4297 = vmatpush1.msra.mxu0 0.0
    %4298 = vmatprep.subr.mxu0 0.0
    %4299 = vmatpush1.msra.mxu0 0.0
    %4300 = vmatprep.subr.mxu0 0.0
    %4301 = vmatpush1.msra.mxu0 0.0
    %4302 = vmatprep.subr.mxu0 0.0
    %4303 = vmatpush1.msra.mxu0 0.0
    %4304 = vmatprep.subr.mxu0 0.0
    %4305 = vmatpush1.msra.mxu0 0.0
    %4306 = vmatprep.subr.mxu0 0.0
    %4307 = vmatpush1.msra.mxu0 0.0
    %4308 = vmatprep.mubr.f32.mxu0 0.0
    %4309 = vmatmul.mubr.f32.gmra.mrb[0].mxu0 %v1378
    %v4310 = vpop.f32.mrb[0].mxu0
    %v4311 = vadd.f32 %v1281, %v4310
    %v4312 = vpop.f32.mrb[0].mxu0
    %v4313 = vadd.f32 %v1285, %v4312
    %4314 = vdwg.mxu0
    %4315 = vmatprep.subr.mxu0 %v407
    %4316 = vmatpush1.msra.mxu0 %v406
    %4317 = vmatprep.subr.mxu0 %v486
    %4318 = vmatpush1.msra.mxu0 %v485
    %4319 = vmatprep.subr.mxu0 %v565
    %4320 = vmatpush1.msra.mxu0 %v564
    %4321 = vmatprep.subr.mxu0 %v644
    %4322 = vmatpush1.msra.mxu0 %v643
    %4323 = vmatprep.subr.mxu0 %v723
    %4324 = vmatpush1.msra.mxu0 %v722
    %4325 = vmatprep.subr.mxu0 %v802
    %4326 = vmatpush1.msra.mxu0 %v801
    %4327 = vmatprep.subr.mxu0 %v881
    %4328 = vmatpush1.msra.mxu0 %v880
    %4329 = vmatprep.subr.mxu0 %v1612
    %4330 = vmatpush1.msra.mxu0 %v1609
    %4331 = vmatprep.subr.mxu0 0.0
    %4332 = vmatpush1.msra.mxu0 0.0
    %4333 = vmatprep.subr.mxu0 0.0
    %4334 = vmatpush1.msra.mxu0 0.0
    %4335 = vmatprep.subr.mxu0 0.0
    %4336 = vmatpush1.msra.mxu0 0.0
    %4337 = vmatprep.subr.mxu0 0.0
    %4338 = vmatpush1.msra.mxu0 0.0
    %4339 = vmatprep.subr.mxu0 0.0
    %4340 = vmatpush1.msra.mxu0 0.0
    %4341 = vmatprep.subr.mxu0 0.0
    %4342 = vmatpush1.msra.mxu0 0.0
    %4343 = vmatprep.subr.mxu0 0.0
    %4344 = vmatpush1.msra.mxu0 0.0
    %4345 = vmatprep.subr.mxu0 0.0
    %4346 = vmatpush1.msra.mxu0 0.0
    %4347 = vmatprep.subr.mxu0 0.0
    %4348 = vmatpush1.msra.mxu0 0.0
    %4349 = vmatprep.subr.mxu0 0.0
    %4350 = vmatpush1.msra.mxu0 0.0
    %4351 = vmatprep.subr.mxu0 0.0
    %4352 = vmatpush1.msra.mxu0 0.0
    %4353 = vmatprep.subr.mxu0 0.0
    %4354 = vmatpush1.msra.mxu0 0.0
    %4355 = vmatprep.subr.mxu0 0.0
    %4356 = vmatpush1.msra.mxu0 0.0
    %4357 = vmatprep.subr.mxu0 0.0
    %4358 = vmatpush1.msra.mxu0 0.0
    %4359 = vmatprep.subr.mxu0 0.0
    %4360 = vmatpush1.msra.mxu0 0.0
    %4361 = vmatprep.subr.mxu0 0.0
    %4362 = vmatpush1.msra.mxu0 0.0
    %4363 = vmatprep.subr.mxu0 0.0
    %4364 = vmatpush1.msra.mxu0 0.0
    %4365 = vmatprep.subr.mxu0 0.0
    %4366 = vmatpush1.msra.mxu0 0.0
    %4367 = vmatprep.subr.mxu0 0.0
    %4368 = vmatpush1.msra.mxu0 0.0
    %4369 = vmatprep.subr.mxu0 0.0
    %4370 = vmatpush1.msra.mxu0 0.0
    %4371 = vmatprep.subr.mxu0 0.0
    %4372 = vmatpush1.msra.mxu0 0.0
    %4373 = vmatprep.subr.mxu0 0.0
    %4374 = vmatpush1.msra.mxu0 0.0
    %4375 = vmatprep.subr.mxu0 0.0
    %4376 = vmatpush1.msra.mxu0 0.0
    %4377 = vmatprep.subr.mxu0 0.0
    %4378 = vmatpush1.msra.mxu0 0.0
    %4379 = vmatprep.mubr.f32.mxu0 0.0
    %4380 = vmatmul.mubr.f32.gmra.mrb[0].mxu0 %v1378
    %v4381 = vpop.f32.mrb[0].mxu0
    %v4382 = vadd.f32 %v1289, %v4381
    %v4383 = vpop.f32.mrb[0].mxu0
    %v4384 = vadd.f32 %v1293, %v4383
    %4385 = vdwg.mxu0
    %4386 = vmatprep.subr.mxu0 0.0
    %4387 = vmatpush1.msra.mxu0 %v408
    %4388 = vmatprep.subr.mxu0 0.0
    %4389 = vmatpush1.msra.mxu0 %v487
    %4390 = vmatprep.subr.mxu0 0.0
    %4391 = vmatpush1.msra.mxu0 %v566
    %4392 = vmatprep.subr.mxu0 0.0
    %4393 = vmatpush1.msra.mxu0 %v645
    %4394 = vmatprep.subr.mxu0 0.0
    %4395 = vmatpush1.msra.mxu0 %v724
    %4396 = vmatprep.subr.mxu0 0.0
    %4397 = vmatpush1.msra.mxu0 %v803
    %4398 = vmatprep.subr.mxu0 0.0
    %4399 = vmatpush1.msra.mxu0 %v882
    %4400 = vmatprep.subr.mxu0 0.0
    %4401 = vmatpush1.msra.mxu0 %v1615
    %4402 = vmatprep.subr.mxu0 0.0
    %4403 = vmatpush1.msra.mxu0 0.0
    %4404 = vmatprep.subr.mxu0 0.0
    %4405 = vmatpush1.msra.mxu0 0.0
    %4406 = vmatprep.subr.mxu0 0.0
    %4407 = vmatpush1.msra.mxu0 0.0
    %4408 = vmatprep.subr.mxu0 0.0
    %4409 = vmatpush1.msra.mxu0 0.0
    %4410 = vmatprep.subr.mxu0 0.0
    %4411 = vmatpush1.msra.mxu0 0.0
    %4412 = vmatprep.subr.mxu0 0.0
    %4413 = vmatpush1.msra.mxu0 0.0
    %4414 = vmatprep.subr.mxu0 0.0
    %4415 = vmatpush1.msra.mxu0 0.0
    %4416 = vmatprep.subr.mxu0 0.0
    %4417 = vmatpush1.msra.mxu0 0.0
    %4418 = vmatprep.subr.mxu0 0.0
    %4419 = vmatpush1.msra.mxu0 0.0
    %4420 = vmatprep.subr.mxu0 0.0
    %4421 = vmatpush1.msra.mxu0 0.0
    %4422 = vmatprep.subr.mxu0 0.0
    %4423 = vmatpush1.msra.mxu0 0.0
    %4424 = vmatprep.subr.mxu0 0.0
    %4425 = vmatpush1.msra.mxu0 0.0
    %4426 = vmatprep.subr.mxu0 0.0
    %4427 = vmatpush1.msra.mxu0 0.0
    %4428 = vmatprep.subr.mxu0 0.0
    %4429 = vmatpush1.msra.mxu0 0.0
    %4430 = vmatprep.subr.mxu0 0.0
    %4431 = vmatpush1.msra.mxu0 0.0
    %4432 = vmatprep.subr.mxu0 0.0
    %4433 = vmatpush1.msra.mxu0 0.0
    %4434 = vmatprep.subr.mxu0 0.0
    %4435 = vmatpush1.msra.mxu0 0.0
    %4436 = vmatprep.subr.mxu0 0.0
    %4437 = vmatpush1.msra.mxu0 0.0
    %4438 = vmatprep.subr.mxu0 0.0
    %4439 = vmatpush1.msra.mxu0 0.0
    %4440 = vmatprep.subr.mxu0 0.0
    %4441 = vmatpush1.msra.mxu0 0.0
    %4442 = vmatprep.subr.mxu0 0.0
    %4443 = vmatpush1.msra.mxu0 0.0
    %4444 = vmatprep.subr.mxu0 0.0
    %4445 = vmatpush1.msra.mxu0 0.0
    %4446 = vmatprep.subr.mxu0 0.0
    %4447 = vmatpush1.msra.mxu0 0.0
    %4448 = vmatprep.subr.mxu0 0.0
    %4449 = vmatpush1.msra.mxu0 0.0
    %4450 = vmatprep.mubr.f32.mxu0 0.0
    %4451 = vmatmul.mubr.f32.gmra.mrb[0].mxu0 %v1378
    %v4452 = vpop.f32.mrb[0].mxu0
    %v4453 = vadd.f32 %v1297, %v4452
    %v4454 = vpop.f32.mrb[0].mxu0
    %4455 = vdwg.mxu0
    %v4456 = vmax.f32 %v1684, 0.0
    %v4457 = vmax.f32 %v1686, 0.0
    %v4458 = vmax.f32 %v1755, 0.0
    %v4459 = vmax.f32 %v1757, 0.0
    %v4460 = vmax.f32 %v1826, 0.0
    %v4461 = vmax.f32 %v1828, 0.0
    %v4462 = vmax.f32 %v1897, 0.0
    %v4463 = vmax.f32 %v1899, 0.0
    %v4464 = vmax.f32 %v1968, 0.0
    %v4465 = vmax.f32 %v1970, 0.0
    %v4466 = vmax.f32 %v2039, 0.0
    %v4467 = vmax.f32 %v2041, 0.0
    %v4468 = vmax.f32 %v2110, 0.0
    %v4469 = vmax.f32 %v2112, 0.0
    %v4470 = vmax.f32 %v2181, 0.0
    %v4471 = vmax.f32 %v2183, 0.0
    %v4472 = vmax.f32 %v2252, 0.0
    %v4473 = vmax.f32 %v2254, 0.0
    %v4474 = vmax.f32 %v2323, 0.0
    %v4475 = vmax.f32 %v2325, 0.0
    %v4476 = vmax.f32 %v2394, 0.0
    %v4477 = vmax.f32 %v2396, 0.0
    %v4478 = vmax.f32 %v2465, 0.0
    %v4479 = vmax.f32 %v2467, 0.0
    %v4480 = vmax.f32 %v2536, 0.0
    %v4481 = vmax.f32 %v2538, 0.0
    %v4482 = vmax.f32 %v2607, 0.0
    %v4483 = vmax.f32 %v2609, 0.0
    %v4484 = vmax.f32 %v2678, 0.0
    %v4485 = vmax.f32 %v2680, 0.0
    %v4486 = vmax.f32 %v2749, 0.0
    %v4487 = vmax.f32 %v2751, 0.0
    %v4488 = vmax.f32 %v2820, 0.0
    %v4489 = vmax.f32 %v2822, 0.0
    %v4490 = vmax.f32 %v2891, 0.0
    %v4491 = vmax.f32 %v2893, 0.0
    %v4492 = vmax.f32 %v2962, 0.0
    %v4493 = vmax.f32 %v2964, 0.0
    %v4494 = vmax.f32 %v3033, 0.0
    %v4495 = vmax.f32 %v3035, 0.0
    %v4496 = vmax.f32 %v3104, 0.0
    %v4497 = vmax.f32 %v3106, 0.0
    %v4498 = vmax.f32 %v3175, 0.0
    %v4499 = vmax.f32 %v3177, 0.0
    %v4500 = vmax.f32 %v3246, 0.0
    %v4501 = vmax.f32 %v3248, 0.0
    %v4502 = vmax.f32 %v3317, 0.0
    %v4503 = vmax.f32 %v3319, 0.0
    %v4504 = vmax.f32 %v3388, 0.0
    %v4505 = vmax.f32 %v3390, 0.0
    %v4506 = vmax.f32 %v3459, 0.0
    %v4507 = vmax.f32 %v3461, 0.0
    %v4508 = vmax.f32 %v3530, 0.0
    %v4509 = vmax.f32 %v3532, 0.0
    %v4510 = vmax.f32 %v3601, 0.0
    %v4511 = vmax.f32 %v3603, 0.0
    %v4512 = vmax.f32 %v3672, 0.0
    %v4513 = vmax.f32 %v3674, 0.0
    %v4514 = vmax.f32 %v3743, 0.0
    %v4515 = vmax.f32 %v3745, 0.0
    %v4516 = vmax.f32 %v3814, 0.0
    %v4517 = vmax.f32 %v3816, 0.0
    %v4518 = vmax.f32 %v3885, 0.0
    %v4519 = vmax.f32 %v3887, 0.0
    %v4520 = vmax.f32 %v3956, 0.0
    %v4521 = vmax.f32 %v3958, 0.0
    %v4522 = vmax.f32 %v4027, 0.0
    %v4523 = vmax.f32 %v4029, 0.0
    %v4524 = vmax.f32 %v4098, 0.0
    %v4525 = vmax.f32 %v4100, 0.0
    %v4526 = vmax.f32 %v4169, 0.0
    %v4527 = vmax.f32 %v4171, 0.0
    %v4528 = vmax.f32 %v4240, 0.0
    %v4529 = vmax.f32 %v4242, 0.0
    %v4530 = vmax.f32 %v4311, 0.0
    %v4531 = vmax.f32 %v4313, 0.0
    %v4532 = vmax.f32 %v4382, 0.0
    %v4533 = vmax.f32 %v4384, 0.0
    %v4534 = vmax.f32 %v4453, 0.0
    %v4535 = vld [vmem:[#allocation11] sm:$0xff]
    %v4536 = vld [vmem:[#allocation11 + $0x8] sm:$0xff]
    %v4537 = vld [vmem:[#allocation11 + $0x10] sm:$0xff]
    %v4538 = vld [vmem:[#allocation11 + $0x18] sm:$0xff]
    %v4539 = vld [vmem:[#allocation11 + $0x20] sm:$0xff]
    %v4540 = vld [vmem:[#allocation11 + $0x28] sm:$0xff]
    %v4541 = vld [vmem:[#allocation11 + $0x30] sm:$0xff]
    %v4542 = vld [vmem:[#allocation11 + $0x38] sm:$0xff]
    %v4543 = vld [vmem:[#allocation11 + $0x40] sm:$0xff]
    %v4544 = vld [vmem:[#allocation11 + $0x48] sm:$0xff]
    %v4545 = vld [vmem:[#allocation11 + $0x50] sm:$0xff]
    %v4546 = vld [vmem:[#allocation11 + $0x58] sm:$0xff]
    %v4547 = vld [vmem:[#allocation11 + $0x60] sm:$0xff]
    %v4548 = vld [vmem:[#allocation11 + $0x68] sm:$0xff]
    %v4549 = vld [vmem:[#allocation11 + $0x70] sm:$0xff]
    %v4550 = vld [vmem:[#allocation11 + $0x78] sm:$0xff]
    %v4551 = vld [vmem:[#allocation11 + $0x80] sm:$0xff]
    %v4552 = vld [vmem:[#allocation11 + $0x88] sm:$0xff]
    %v4553 = vld [vmem:[#allocation11 + $0x90] sm:$0xff]
    %v4554 = vld [vmem:[#allocation11 + $0x98] sm:$0xff]
    %v4555 = vld [vmem:[#allocation11 + $0xa0] sm:$0xff]
    %v4556 = vld [vmem:[#allocation11 + $0xa8] sm:$0xff]
    %v4557 = vld [vmem:[#allocation11 + $0xb0] sm:$0xff]
    %v4558 = vld [vmem:[#allocation11 + $0xb8] sm:$0xff]
    %v4559 = vld [vmem:[#allocation11 + $0xc0] sm:$0xff]
    %v4560 = vld [vmem:[#allocation11 + $0xc8] sm:$0xff]
    %v4561 = vld [vmem:[#allocation11 + $0xd0] sm:$0xff]
    %v4562 = vld [vmem:[#allocation11 + $0xd8] sm:$0xff]
    %v4563 = vld [vmem:[#allocation11 + $0xe0] sm:$0xff]
    %v4564 = vld [vmem:[#allocation11 + $0xe8] sm:$0xff]
    %v4565 = vld [vmem:[#allocation11 + $0xf0] sm:$0xff]
    %v4566 = vld [vmem:[#allocation11 + $0xf8] sm:$0xff]
    %v4567 = vld [vmem:[#allocation11 + $0x100] sm:$0xff]
    %v4568 = vld [vmem:[#allocation11 + $0x108] sm:$0xff]
    %v4569 = vld [vmem:[#allocation11 + $0x110] sm:$0xff]
    %v4570 = vld [vmem:[#allocation11 + $0x118] sm:$0xff]
    %v4571 = vld [vmem:[#allocation11 + $0x120] sm:$0xff]
    %v4572 = vld [vmem:[#allocation11 + $0x128] sm:$0xff]
    %v4573 = vld [vmem:[#allocation11 + $0x130] sm:$0xff]
    %v4574 = vld [vmem:[#allocation11 + $0x138] sm:$0xff]
    %v4575 = vld [vmem:[#allocation11 + $0x140] sm:$0xff]
    %v4576 = vld [vmem:[#allocation11 + $0x148] sm:$0xff]
    %v4577 = vld [vmem:[#allocation11 + $0x150] sm:$0xff]
    %v4578 = vld [vmem:[#allocation11 + $0x158] sm:$0xff]
    %v4579 = vld [vmem:[#allocation11 + $0x160] sm:$0xff]
    %v4580 = vld [vmem:[#allocation11 + $0x168] sm:$0xff]
    %v4581 = vld [vmem:[#allocation11 + $0x170] sm:$0xff]
    %v4582 = vld [vmem:[#allocation11 + $0x178] sm:$0xff]
    %v4583 = vld [vmem:[#allocation11 + $0x180] sm:$0xff]
    %v4584 = vld [vmem:[#allocation11 + $0x188] sm:$0xff]
    %v4585 = vld [vmem:[#allocation11 + $0x190] sm:$0xff]
    %v4586 = vld [vmem:[#allocation11 + $0x198] sm:$0xff]
    %v4587 = vld [vmem:[#allocation11 + $0x1a0] sm:$0xff]
    %v4588 = vld [vmem:[#allocation11 + $0x1a8] sm:$0xff]
    %v4589 = vld [vmem:[#allocation11 + $0x1b0] sm:$0xff]
    %v4590 = vld [vmem:[#allocation11 + $0x1b8] sm:$0xff]
    %v4591 = vld [vmem:[#allocation11 + $0x1c0] sm:$0xff]
    %v4592 = vld [vmem:[#allocation11 + $0x1c8] sm:$0xff]
    %v4593 = vld [vmem:[#allocation11 + $0x1d0] sm:$0xff]
    %v4594 = vld [vmem:[#allocation11 + $0x1d8] sm:$0xff]
    %v4595 = vld [vmem:[#allocation11 + $0x1e0] sm:$0xff]
    %v4596 = vld [vmem:[#allocation11 + $0x1e8] sm:$0xff]
    %v4597 = vld [vmem:[#allocation11 + $0x1f0] sm:$0xff]
    %v4598 = vld [vmem:[#allocation11 + $0x1f8] sm:$0xff]
    %v4599 = vld [vmem:[#allocation11 + $0x200] sm:$0xff]
    %v4600 = vld [vmem:[#allocation11 + $0x208] sm:$0xff]
    %v4601 = vld [vmem:[#allocation11 + $0x210] sm:$0xff]
    %v4602 = vld [vmem:[#allocation11 + $0x218] sm:$0xff]
    %v4603 = vld [vmem:[#allocation11 + $0x220] sm:$0xff]
    %v4604 = vld [vmem:[#allocation11 + $0x228] sm:$0xff]
    %v4605 = vld [vmem:[#allocation11 + $0x230] sm:$0xff]
    %v4606 = vld [vmem:[#allocation11 + $0x238] sm:$0xff]
    %v4607 = vld [vmem:[#allocation11 + $0x240] sm:$0xff]
    %v4608 = vld [vmem:[#allocation11 + $0x248] sm:$0xff]
    %v4609 = vld [vmem:[#allocation11 + $0x250] sm:$0xff]
    %v4610 = vld [vmem:[#allocation11 + $0x258] sm:$0xff]
    %v4611 = vld [vmem:[#allocation11 + $0x260] sm:$0xff]
    %v4612 = vld [vmem:[#allocation11 + $0x268] sm:$0xff]
    %v4613 = vld [vmem:[#allocation11 + $0x270] sm:$0xff]
    %v4614 = vld [vmem:[#allocation11 + $0x278] sm:$0xff]
    %v4615 = vld [vmem:[#allocation11 + $0x280] sm:$0xff]
    %v4616 = vld [vmem:[#allocation11 + $0x288] sm:$0xff]
    %v4617 = vld [vmem:[#allocation11 + $0x290] sm:$0xff]
    %v4618 = vld [vmem:[#allocation11 + $0x298] sm:$0xff]
    %v4619 = vld [vmem:[#allocation11 + $0x2a0] sm:$0xff]
    %v4620 = vld [vmem:[#allocation11 + $0x2a8] sm:$0xff]
    %v4621 = vld [vmem:[#allocation11 + $0x2b0] sm:$0xff]
    %v4622 = vld [vmem:[#allocation11 + $0x2b8] sm:$0xff]
    %v4623 = vld [vmem:[#allocation11 + $0x2c0] sm:$0xff]
    %v4624 = vld [vmem:[#allocation11 + $0x2c8] sm:$0xff]
    %v4625 = vld [vmem:[#allocation11 + $0x2d0] sm:$0xff]
    %v4626 = vld [vmem:[#allocation11 + $0x2d8] sm:$0xff]
    %v4627 = vld [vmem:[#allocation11 + $0x2e0] sm:$0xff]
    %v4628 = vld [vmem:[#allocation11 + $0x2e8] sm:$0xff]
    %v4629 = vld [vmem:[#allocation11 + $0x2f0] sm:$0xff]
    %v4630 = vld [vmem:[#allocation11 + $0x2f8] sm:$0xff]
    %v4631 = vld [vmem:[#allocation11 + $0x300] sm:$0xff]
    %v4632 = vld [vmem:[#allocation11 + $0x308] sm:$0xff]
    %v4633 = vld [vmem:[#allocation11 + $0x310] sm:$0xff]
    %v4634 = vld [vmem:[#allocation11 + $0x318] sm:$0xff]
    %v4635 = vld [vmem:[#allocation11 + $0x320] sm:$0xff]
    %v4636 = vld [vmem:[#allocation11 + $0x328] sm:$0xff]
    %v4637 = vld [vmem:[#allocation11 + $0x330] sm:$0xff]
    %v4638 = vld [vmem:[#allocation11 + $0x338] sm:$0xff]
    %v4639 = vld [vmem:[#allocation11 + $0x340] sm:$0xff]
    %v4640 = vld [vmem:[#allocation11 + $0x348] sm:$0xff]
    %v4641 = vld [vmem:[#allocation11 + $0x350] sm:$0xff]
    %v4642 = vld [vmem:[#allocation11 + $0x358] sm:$0xff]
    %v4643 = vld [vmem:[#allocation11 + $0x360] sm:$0xff]
    %v4644 = vld [vmem:[#allocation11 + $0x368] sm:$0xff]
    %v4645 = vld [vmem:[#allocation11 + $0x370] sm:$0xff]
    %v4646 = vld [vmem:[#allocation11 + $0x378] sm:$0xff]
    %v4647 = vld [vmem:[#allocation11 + $0x380] sm:$0xff]
    %v4648 = vld [vmem:[#allocation11 + $0x388] sm:$0xff]
    %v4649 = vld [vmem:[#allocation11 + $0x390] sm:$0xff]
    %v4650 = vld [vmem:[#allocation11 + $0x398] sm:$0xff]
    %v4651 = vld [vmem:[#allocation11 + $0x3a0] sm:$0xff]
    %v4652 = vld [vmem:[#allocation11 + $0x3a8] sm:$0xff]
    %v4653 = vld [vmem:[#allocation11 + $0x3b0] sm:$0xff]
    %v4654 = vld [vmem:[#allocation11 + $0x3b8] sm:$0xff]
    %v4655 = vld [vmem:[#allocation11 + $0x3c0] sm:$0xff]
    %v4656 = vld [vmem:[#allocation11 + $0x3c8] sm:$0xff]
    %v4657 = vld [vmem:[#allocation11 + $0x3d0] sm:$0xff]
    %v4658 = vld [vmem:[#allocation11 + $0x3d8] sm:$0xff]
    %v4659 = vld [vmem:[#allocation11 + $0x3e0] sm:$0xff]
    %v4660 = vld [vmem:[#allocation11 + $0x3e8] sm:$0xff]
    %v4661 = vld [vmem:[#allocation11 + $0x3f0] sm:$0xff]
    %v4662 = vld [vmem:[#allocation11 + $0x3f8] sm:$0xff]
    %v4663 = vld [vmem:[#allocation11 + $0x400] sm:$0xff]
    %v4664 = vld [vmem:[#allocation11 + $0x408] sm:$0xff]
    %v4665 = vld [vmem:[#allocation11 + $0x410] sm:$0xff]
    %v4666 = vld [vmem:[#allocation11 + $0x418] sm:$0xff]
    %v4667 = vld [vmem:[#allocation11 + $0x420] sm:$0xff]
    %v4668 = vld [vmem:[#allocation11 + $0x428] sm:$0xff]
    %v4669 = vld [vmem:[#allocation11 + $0x430] sm:$0xff]
    %v4670 = vld [vmem:[#allocation11 + $0x438] sm:$0xff]
    %v4671 = vld [vmem:[#allocation11 + $0x440] sm:$0xff]
    %v4672 = vld [vmem:[#allocation11 + $0x448] sm:$0xff]
    %v4673 = vld [vmem:[#allocation11 + $0x450] sm:$0xff]
    %v4674 = vld [vmem:[#allocation11 + $0x458] sm:$0xff]
    %v4675 = vld [vmem:[#allocation11 + $0x460] sm:$0xff]
    %v4676 = vld [vmem:[#allocation11 + $0x468] sm:$0xff]
    %v4677 = vld [vmem:[#allocation11 + $0x470] sm:$0xff]
    %v4678 = vld [vmem:[#allocation11 + $0x478] sm:$0xff]
    %v4679 = vld [vmem:[#allocation11 + $0x480] sm:$0xff]
    %v4680 = vld [vmem:[#allocation11 + $0x488] sm:$0xff]
    %v4681 = vld [vmem:[#allocation11 + $0x490] sm:$0xff]
    %v4682 = vld [vmem:[#allocation11 + $0x498] sm:$0xff]
    %v4683 = vld [vmem:[#allocation11 + $0x4a0] sm:$0xff]
    %v4684 = vld [vmem:[#allocation11 + $0x4a8] sm:$0xff]
    %v4685 = vld [vmem:[#allocation11 + $0x4b0] sm:$0xff]
    %v4686 = vld [vmem:[#allocation11 + $0x4b8] sm:$0xff]
    %v4687 = vld [vmem:[#allocation11 + $0x4c0] sm:$0xff]
    %v4688 = vld [vmem:[#allocation11 + $0x4c8] sm:$0xff]
    %v4689 = vld [vmem:[#allocation11 + $0x4d0] sm:$0xff]
    %v4690 = vld [vmem:[#allocation11 + $0x4d8] sm:$0xff]
    %v4691 = vld [vmem:[#allocation11 + $0x4e0] sm:$0xff]
    %v4692 = vld [vmem:[#allocation11 + $0x4e8] sm:$0xff]
    %v4693 = vld [vmem:[#allocation11 + $0x4f0] sm:$0xff]
    %v4694 = vld [vmem:[#allocation11 + $0x4f8] sm:$0xff]
    %v4695 = vld [vmem:[#allocation11 + $0x500] sm:$0xff]
    %v4696 = vld [vmem:[#allocation11 + $0x508] sm:$0xff]
    %v4697 = vld [vmem:[#allocation11 + $0x510] sm:$0xff]
    %v4698 = vld [vmem:[#allocation11 + $0x518] sm:$0xff]
    %v4699 = vld [vmem:[#allocation11 + $0x520] sm:$0xff]
    %v4700 = vld [vmem:[#allocation11 + $0x528] sm:$0xff]
    %v4701 = vld [vmem:[#allocation11 + $0x530] sm:$0xff]
    %v4702 = vld [vmem:[#allocation11 + $0x538] sm:$0xff]
    %v4703 = vld [vmem:[#allocation11 + $0x540] sm:$0xff]
    %v4704 = vld [vmem:[#allocation11 + $0x548] sm:$0xff]
    %v4705 = vld [vmem:[#allocation11 + $0x550] sm:$0xff]
    %v4706 = vld [vmem:[#allocation11 + $0x558] sm:$0xff]
    %v4707 = vld [vmem:[#allocation11 + $0x560] sm:$0xff]
    %v4708 = vld [vmem:[#allocation11 + $0x568] sm:$0xff]
    %v4709 = vld [vmem:[#allocation11 + $0x570] sm:$0xff]
    %v4710 = vld [vmem:[#allocation11 + $0x578] sm:$0xff]
    %v4711 = vld [vmem:[#allocation11 + $0x580] sm:$0xff]
    %v4712 = vld [vmem:[#allocation11 + $0x588] sm:$0xff]
    %v4713 = vld [vmem:[#allocation11 + $0x590] sm:$0xff]
    %v4714 = vld [vmem:[#allocation11 + $0x598] sm:$0xff]
    %v4715 = vld [vmem:[#allocation11 + $0x5a0] sm:$0xff]
    %v4716 = vld [vmem:[#allocation11 + $0x5a8] sm:$0xff]
    %v4717 = vld [vmem:[#allocation11 + $0x5b0] sm:$0xff]
    %v4718 = vld [vmem:[#allocation11 + $0x5b8] sm:$0xff]
    %v4719 = vld [vmem:[#allocation11 + $0x5c0] sm:$0xff]
    %v4720 = vld [vmem:[#allocation11 + $0x5c8] sm:$0xff]
    %v4721 = vld [vmem:[#allocation11 + $0x5d0] sm:$0xff]
    %v4722 = vld [vmem:[#allocation11 + $0x5d8] sm:$0xff]
    %v4723 = vld [vmem:[#allocation11 + $0x5e0] sm:$0xff]
    %v4724 = vld [vmem:[#allocation11 + $0x5e8] sm:$0xff]
    %v4725 = vld [vmem:[#allocation11 + $0x5f0] sm:$0xff]
    %v4726 = vld [vmem:[#allocation11 + $0x5f8] sm:$0xff]
    %v4727 = vld [vmem:[#allocation11 + $0x600] sm:$0xff]
    %v4728 = vld [vmem:[#allocation11 + $0x608] sm:$0xff]
    %v4729 = vld [vmem:[#allocation11 + $0x610] sm:$0xff]
    %v4730 = vld [vmem:[#allocation11 + $0x618] sm:$0xff]
    %v4731 = vld [vmem:[#allocation11 + $0x620] sm:$0xff]
    %v4732 = vld [vmem:[#allocation11 + $0x628] sm:$0xff]
    %v4733 = vld [vmem:[#allocation11 + $0x630] sm:$0xff]
    %v4734 = vld [vmem:[#allocation11 + $0x638] sm:$0xff]
    %v4735 = vld [vmem:[#allocation11 + $0x640] sm:$0xff]
    %v4736 = vld [vmem:[#allocation11 + $0x648] sm:$0xff]
    %v4737 = vld [vmem:[#allocation11 + $0x650] sm:$0xff]
    %v4738 = vld [vmem:[#allocation11 + $0x658] sm:$0xff]
    %v4739 = vld [vmem:[#allocation11 + $0x660] sm:$0xff]
    %v4740 = vld [vmem:[#allocation11 + $0x668] sm:$0xff]
    %v4741 = vld [vmem:[#allocation11 + $0x670] sm:$0xff]
    %v4742 = vld [vmem:[#allocation11 + $0x678] sm:$0xff]
    %v4743 = vld [vmem:[#allocation11 + $0x680] sm:$0xff]
    %v4744 = vld [vmem:[#allocation11 + $0x688] sm:$0xff]
    %v4745 = vld [vmem:[#allocation11 + $0x690] sm:$0xff]
    %v4746 = vld [vmem:[#allocation11 + $0x698] sm:$0xff]
    %v4747 = vld [vmem:[#allocation11 + $0x6a0] sm:$0xff]
    %v4748 = vld [vmem:[#allocation11 + $0x6a8] sm:$0xff]
    %v4749 = vld [vmem:[#allocation11 + $0x6b0] sm:$0xff]
    %v4750 = vld [vmem:[#allocation11 + $0x6b8] sm:$0xff]
    %v4751 = vld [vmem:[#allocation11 + $0x6c0] sm:$0xff]
    %v4752 = vld [vmem:[#allocation11 + $0x6c8] sm:$0xff]
    %v4753 = vld [vmem:[#allocation11 + $0x6d0] sm:$0xff]
    %v4754 = vld [vmem:[#allocation11 + $0x6d8] sm:$0xff]
    %v4755 = vld [vmem:[#allocation11 + $0x6e0] sm:$0xff]
    %v4756 = vld [vmem:[#allocation11 + $0x6e8] sm:$0xff]
    %v4757 = vld [vmem:[#allocation11 + $0x6f0] sm:$0xff]
    %v4758 = vld [vmem:[#allocation11 + $0x6f8] sm:$0xff]
    %v4759 = vld [vmem:[#allocation11 + $0x700] sm:$0xff]
    %v4760 = vld [vmem:[#allocation11 + $0x708] sm:$0xff]
    %v4761 = vld [vmem:[#allocation11 + $0x710] sm:$0xff]
    %v4762 = vld [vmem:[#allocation11 + $0x718] sm:$0xff]
    %v4763 = vld [vmem:[#allocation11 + $0x720] sm:$0xff]
    %v4764 = vld [vmem:[#allocation11 + $0x728] sm:$0xff]
    %v4765 = vld [vmem:[#allocation11 + $0x730] sm:$0xff]
    %v4766 = vld [vmem:[#allocation11 + $0x738] sm:$0xff]
    %v4767 = vld [vmem:[#allocation11 + $0x740] sm:$0xff]
    %v4768 = vld [vmem:[#allocation11 + $0x748] sm:$0xff]
    %v4769 = vld [vmem:[#allocation11 + $0x750] sm:$0xff]
    %v4770 = vld [vmem:[#allocation11 + $0x758] sm:$0xff]
    %v4771 = vld [vmem:[#allocation11 + $0x760] sm:$0xff]
    %v4772 = vld [vmem:[#allocation11 + $0x768] sm:$0xff]
    %v4773 = vld [vmem:[#allocation11 + $0x770] sm:$0xff]
    %v4774 = vld [vmem:[#allocation11 + $0x778] sm:$0xff]
    %v4775 = vld [vmem:[#allocation11 + $0x780] sm:$0xff]
    %v4776 = vld [vmem:[#allocation11 + $0x788] sm:$0xff]
    %v4777 = vld [vmem:[#allocation11 + $0x790] sm:$0xff]
    %v4778 = vld [vmem:[#allocation11 + $0x798] sm:$0xff]
    %v4779 = vld [vmem:[#allocation11 + $0x7a0] sm:$0xff]
    %v4780 = vld [vmem:[#allocation11 + $0x7a8] sm:$0xff]
    %v4781 = vld [vmem:[#allocation11 + $0x7b0] sm:$0xff]
    %v4782 = vld [vmem:[#allocation11 + $0x7b8] sm:$0xff]
    %v4783 = vld [vmem:[#allocation11 + $0x7c0] sm:$0xff]
    %v4784 = vld [vmem:[#allocation11 + $0x7c8] sm:$0xff]
    %v4785 = vld [vmem:[#allocation11 + $0x7d0] sm:$0xff]
    %v4786 = vld [vmem:[#allocation11 + $0x7d8] sm:$0xff]
    %v4787 = vld [vmem:[#allocation11 + $0x7e0] sm:$0xff]
    %v4788 = vld [vmem:[#allocation11 + $0x7e8] sm:$0xff]
    %v4789 = vld [vmem:[#allocation11 + $0x7f0] sm:$0xff]
    %v4790 = vld [vmem:[#allocation11 + $0x7f8] sm:$0xff]
    %v4791 = vld [vmem:[#allocation11 + $0x800] sm:$0xff]
    %v4792 = vld [vmem:[#allocation11 + $0x808] sm:$0xff]
    %v4793 = vld [vmem:[#allocation11 + $0x810] sm:$0xff]
    %v4794 = vld [vmem:[#allocation11 + $0x818] sm:$0xff]
    %v4795 = vld [vmem:[#allocation11 + $0x820] sm:$0xff]
    %v4796 = vld [vmem:[#allocation11 + $0x828] sm:$0xff]
    %v4797 = vld [vmem:[#allocation11 + $0x830] sm:$0xff]
    %v4798 = vld [vmem:[#allocation11 + $0x838] sm:$0xff]
    %v4799 = vld [vmem:[#allocation11 + $0x840] sm:$0xff]
    %v4800 = vld [vmem:[#allocation11 + $0x848] sm:$0xff]
    %v4801 = vld [vmem:[#allocation11 + $0x850] sm:$0xff]
    %v4802 = vld [vmem:[#allocation11 + $0x858] sm:$0xff]
    %v4803 = vld [vmem:[#allocation11 + $0x860] sm:$0xff]
    %v4804 = vld [vmem:[#allocation11 + $0x868] sm:$0xff]
    %v4805 = vld [vmem:[#allocation11 + $0x870] sm:$0xff]
    %v4806 = vld [vmem:[#allocation11 + $0x878] sm:$0xff]
    %v4807 = vld [vmem:[#allocation11 + $0x880] sm:$0xff]
    %v4808 = vld [vmem:[#allocation11 + $0x888] sm:$0xff]
    %v4809 = vld [vmem:[#allocation11 + $0x890] sm:$0xff]
    %v4810 = vld [vmem:[#allocation11 + $0x898] sm:$0xff]
    %v4811 = vld [vmem:[#allocation11 + $0x8a0] sm:$0xff]
    %v4812 = vld [vmem:[#allocation11 + $0x8a8] sm:$0xff]
    %v4813 = vld [vmem:[#allocation11 + $0x8b0] sm:$0xff]
    %v4814 = vld [vmem:[#allocation11 + $0x8b8] sm:$0xff]
    %v4815 = vld [vmem:[#allocation11 + $0x8c0] sm:$0xff]
    %v4816 = vld [vmem:[#allocation11 + $0x8c8] sm:$0xff]
    %v4817 = vld [vmem:[#allocation11 + $0x8d0] sm:$0xff]
    %v4818 = vld [vmem:[#allocation11 + $0x8d8] sm:$0xff]
    %v4819 = vld [vmem:[#allocation11 + $0x8e0] sm:$0xff]
    %v4820 = vld [vmem:[#allocation11 + $0x8e8] sm:$0xff]
    %v4821 = vld [vmem:[#allocation11 + $0x8f0] sm:$0xff]
    %v4822 = vld [vmem:[#allocation11 + $0x8f8] sm:$0xff]
    %v4823 = vld [vmem:[#allocation11 + $0x900] sm:$0xff]
    %v4824 = vld [vmem:[#allocation11 + $0x908] sm:$0xff]
    %v4825 = vld [vmem:[#allocation11 + $0x910] sm:$0xff]
    %v4826 = vld [vmem:[#allocation11 + $0x918] sm:$0xff]
    %v4827 = vld [vmem:[#allocation11 + $0x920] sm:$0xff]
    %v4828 = vld [vmem:[#allocation11 + $0x928] sm:$0xff]
    %v4829 = vld [vmem:[#allocation11 + $0x930] sm:$0xff]
    %v4830 = vld [vmem:[#allocation11 + $0x938] sm:$0xff]
    %v4831 = vld [vmem:[#allocation11 + $0x940] sm:$0xff]
    %v4832 = vld [vmem:[#allocation11 + $0x948] sm:$0xff]
    %v4833 = vld [vmem:[#allocation11 + $0x950] sm:$0xff]
    %v4834 = vld [vmem:[#allocation11 + $0x958] sm:$0xff]
    %v4835 = vld [vmem:[#allocation11 + $0x960] sm:$0xff]
    %v4836 = vld [vmem:[#allocation11 + $0x968] sm:$0xff]
    %v4837 = vld [vmem:[#allocation11 + $0x970] sm:$0xff]
    %v4838 = vld [vmem:[#allocation11 + $0x978] sm:$0xff]
    %v4839 = vld [vmem:[#allocation11 + $0x980] sm:$0xff]
    %v4840 = vld [vmem:[#allocation11 + $0x988] sm:$0xff]
    %v4841 = vld [vmem:[#allocation11 + $0x990] sm:$0xff]
    %v4842 = vld [vmem:[#allocation11 + $0x998] sm:$0xff]
    %v4843 = vld [vmem:[#allocation11 + $0x9a0] sm:$0xff]
    %v4844 = vld [vmem:[#allocation11 + $0x9a8] sm:$0xff]
    %v4845 = vld [vmem:[#allocation11 + $0x9b0] sm:$0xff]
    %v4846 = vld [vmem:[#allocation11 + $0x9b8] sm:$0xff]
    %v4847 = vld [vmem:[#allocation11 + $0x9c0] sm:$0xff]
    %v4848 = vld [vmem:[#allocation11 + $0x9c8] sm:$0xff]
    %v4849 = vld [vmem:[#allocation11 + $0x9d0] sm:$0xff]
    %v4850 = vld [vmem:[#allocation11 + $0x9d8] sm:$0xff]
    %v4851 = vld [vmem:[#allocation11 + $0x9e0] sm:$0xff]
    %v4852 = vld [vmem:[#allocation11 + $0x9e8] sm:$0xff]
    %v4853 = vld [vmem:[#allocation11 + $0x9f0] sm:$0xff]
    %v4854 = vld [vmem:[#allocation11 + $0x9f8] sm:$0xff]
    %v4855 = vld [vmem:[#allocation11 + $0xa00] sm:$0xff]
    %v4856 = vld [vmem:[#allocation11 + $0xa08] sm:$0xff]
    %v4857 = vld [vmem:[#allocation11 + $0xa10] sm:$0xff]
    %v4858 = vld [vmem:[#allocation11 + $0xa18] sm:$0xff]
    %v4859 = vld [vmem:[#allocation11 + $0xa20] sm:$0xff]
    %v4860 = vld [vmem:[#allocation11 + $0xa28] sm:$0xff]
    %v4861 = vld [vmem:[#allocation11 + $0xa30] sm:$0xff]
    %v4862 = vld [vmem:[#allocation11 + $0xa38] sm:$0xff]
    %v4863 = vld [vmem:[#allocation11 + $0xa40] sm:$0xff]
    %v4864 = vld [vmem:[#allocation11 + $0xa48] sm:$0xff]
    %v4865 = vld [vmem:[#allocation11 + $0xa50] sm:$0xff]
    %v4866 = vld [vmem:[#allocation11 + $0xa58] sm:$0xff]
    %v4867 = vld [vmem:[#allocation11 + $0xa60] sm:$0xff]
    %v4868 = vld [vmem:[#allocation11 + $0xa68] sm:$0xff]
    %v4869 = vld [vmem:[#allocation11 + $0xa70] sm:$0xff]
    %v4870 = vld [vmem:[#allocation11 + $0xa78] sm:$0xff]
    %v4871 = vld [vmem:[#allocation11 + $0xa80] sm:$0xff]
    %v4872 = vld [vmem:[#allocation11 + $0xa88] sm:$0xff]
    %v4873 = vld [vmem:[#allocation11 + $0xa90] sm:$0xff]
    %v4874 = vld [vmem:[#allocation11 + $0xa98] sm:$0xff]
    %v4875 = vld [vmem:[#allocation11 + $0xaa0] sm:$0xff]
    %v4876 = vld [vmem:[#allocation11 + $0xaa8] sm:$0xff]
    %v4877 = vld [vmem:[#allocation11 + $0xab0] sm:$0xff]
    %v4878 = vld [vmem:[#allocation11 + $0xab8] sm:$0xff]
    %v4879 = vld [vmem:[#allocation11 + $0xac0] sm:$0xff]
    %v4880 = vld [vmem:[#allocation11 + $0xac8] sm:$0xff]
    %v4881 = vld [vmem:[#allocation11 + $0xad0] sm:$0xff]
    %v4882 = vld [vmem:[#allocation11 + $0xad8] sm:$0xff]
    %v4883 = vld [vmem:[#allocation11 + $0xae0] sm:$0xff]
    %v4884 = vld [vmem:[#allocation11 + $0xae8] sm:$0xff]
    %v4885 = vld [vmem:[#allocation11 + $0xaf0] sm:$0xff]
    %v4886 = vld [vmem:[#allocation11 + $0xaf8] sm:$0xff]
    %v4887 = vld [vmem:[#allocation11 + $0xb00] sm:$0xff]
    %v4888 = vld [vmem:[#allocation11 + $0xb08] sm:$0xff]
    %v4889 = vld [vmem:[#allocation11 + $0xb10] sm:$0xff]
    %v4890 = vld [vmem:[#allocation11 + $0xb18] sm:$0xff]
    %v4891 = vld [vmem:[#allocation11 + $0xb20] sm:$0xff]
    %v4892 = vld [vmem:[#allocation11 + $0xb28] sm:$0xff]
    %v4893 = vld [vmem:[#allocation11 + $0xb30] sm:$0xff]
    %v4894 = vld [vmem:[#allocation11 + $0xb38] sm:$0xff]
    %v4895 = vld [vmem:[#allocation11 + $0xb40] sm:$0xff]
    %v4896 = vld [vmem:[#allocation11 + $0xb48] sm:$0xff]
    %v4897 = vld [vmem:[#allocation11 + $0xb50] sm:$0xff]
    %v4898 = vld [vmem:[#allocation11 + $0xb58] sm:$0xff]
    %v4899 = vld [vmem:[#allocation11 + $0xb60] sm:$0xff]
    %v4900 = vld [vmem:[#allocation11 + $0xb68] sm:$0xff]
    %v4901 = vld [vmem:[#allocation11 + $0xb70] sm:$0xff]
    %v4902 = vld [vmem:[#allocation11 + $0xb78] sm:$0xff]
    %v4903 = vld [vmem:[#allocation11 + $0xb80] sm:$0xff]
    %v4904 = vld [vmem:[#allocation11 + $0xb88] sm:$0xff]
    %v4905 = vld [vmem:[#allocation11 + $0xb90] sm:$0xff]
    %v4906 = vld [vmem:[#allocation11 + $0xb98] sm:$0xff]
    %v4907 = vld [vmem:[#allocation11 + $0xba0] sm:$0xff]
    %v4908 = vld [vmem:[#allocation11 + $0xba8] sm:$0xff]
    %v4909 = vld [vmem:[#allocation11 + $0xbb0] sm:$0xff]
    %v4910 = vld [vmem:[#allocation11 + $0xbb8] sm:$0xff]
    %v4911 = vld [vmem:[#allocation11 + $0xbc0] sm:$0xff]
    %v4912 = vld [vmem:[#allocation11 + $0xbc8] sm:$0xff]
    %v4913 = vld [vmem:[#allocation11 + $0xbd0] sm:$0xff]
    %v4914 = vld [vmem:[#allocation11 + $0xbd8] sm:$0xff]
    %v4915 = vld [vmem:[#allocation11 + $0xbe0] sm:$0xff]
    %v4916 = vld [vmem:[#allocation11 + $0xbe8] sm:$0xff]
    %v4917 = vld [vmem:[#allocation11 + $0xbf0] sm:$0xff]
    %v4918 = vld [vmem:[#allocation11 + $0xbf8] sm:$0xff]
    %v4919 = vld [vmem:[#allocation11 + $0xc00] sm:$0xff]
    %v4920 = vld [vmem:[#allocation11 + $0xc08] sm:$0xff]
    %v4921 = vld [vmem:[#allocation11 + $0xc10] sm:$0xff]
    %v4922 = vld [vmem:[#allocation11 + $0xc18] sm:$0xff]
    %v4923 = vld [vmem:[#allocation11 + $0xc20] sm:$0xff]
    %v4924 = vld [vmem:[#allocation11 + $0xc28] sm:$0xff]
    %v4925 = vld [vmem:[#allocation11 + $0xc30] sm:$0xff]
    %v4926 = vld [vmem:[#allocation11 + $0xc38] sm:$0xff]
    %v4927 = vld [vmem:[#allocation11 + $0xc40] sm:$0xff]
    %v4928 = vld [vmem:[#allocation11 + $0xc48] sm:$0xff]
    %v4929 = vld [vmem:[#allocation11 + $0xc50] sm:$0xff]
    %v4930 = vld [vmem:[#allocation11 + $0xc58] sm:$0xff]
    %v4931 = vld [vmem:[#allocation11 + $0xc60] sm:$0xff]
    %v4932 = vld [vmem:[#allocation11 + $0xc68] sm:$0xff]
    %v4933 = vld [vmem:[#allocation11 + $0xc70] sm:$0xff]
    %v4934 = vld [vmem:[#allocation11 + $0xc78] sm:$0xff]
    %v4935 = vld [vmem:[#allocation11 + $0xc80] sm:$0xff]
    %v4936 = vld [vmem:[#allocation11 + $0xc88] sm:$0xff]
    %v4937 = vld [vmem:[#allocation11 + $0xc90] sm:$0xff]
    %v4938 = vld [vmem:[#allocation11 + $0xc98] sm:$0xff]
    %v4939 = vld [vmem:[#allocation11 + $0xca0] sm:$0xff]
    %v4940 = vld [vmem:[#allocation11 + $0xca8] sm:$0xff]
    %v4941 = vld [vmem:[#allocation11 + $0xcb0] sm:$0xff]
    %v4942 = vld [vmem:[#allocation11 + $0xcb8] sm:$0xff]
    %v4943 = vld [vmem:[#allocation11 + $0xcc0] sm:$0xff]
    %v4944 = vld [vmem:[#allocation11 + $0xcc8] sm:$0xff]
    %v4945 = vld [vmem:[#allocation11 + $0xcd0] sm:$0xff]
    %v4946 = vld [vmem:[#allocation11 + $0xcd8] sm:$0xff]
    %v4947 = vld [vmem:[#allocation11 + $0xce0] sm:$0xff]
    %v4948 = vld [vmem:[#allocation11 + $0xce8] sm:$0xff]
    %v4949 = vld [vmem:[#allocation11 + $0xcf0] sm:$0xff]
    %v4950 = vld [vmem:[#allocation11 + $0xcf8] sm:$0xff]
    %v4951 = vld [vmem:[#allocation11 + $0xd00] sm:$0xff]
    %v4952 = vld [vmem:[#allocation11 + $0xd08] sm:$0xff]
    %v4953 = vld [vmem:[#allocation11 + $0xd10] sm:$0xff]
    %v4954 = vld [vmem:[#allocation11 + $0xd18] sm:$0xff]
    %v4955 = vld [vmem:[#allocation11 + $0xd20] sm:$0xff]
    %v4956 = vld [vmem:[#allocation11 + $0xd28] sm:$0xff]
    %v4957 = vld [vmem:[#allocation11 + $0xd30] sm:$0xff]
    %v4958 = vld [vmem:[#allocation11 + $0xd38] sm:$0xff]
    %v4959 = vld [vmem:[#allocation11 + $0xd40] sm:$0xff]
    %v4960 = vld [vmem:[#allocation11 + $0xd48] sm:$0xff]
    %v4961 = vld [vmem:[#allocation11 + $0xd50] sm:$0xff]
    %v4962 = vld [vmem:[#allocation11 + $0xd58] sm:$0xff]
    %v4963 = vld [vmem:[#allocation11 + $0xd60] sm:$0xff]
    %v4964 = vld [vmem:[#allocation11 + $0xd68] sm:$0xff]
    %v4965 = vld [vmem:[#allocation11 + $0xd70] sm:$0xff]
    %v4966 = vld [vmem:[#allocation11 + $0xd78] sm:$0xff]
    %v4967 = vld [vmem:[#allocation11 + $0xd80] sm:$0xff]
    %v4968 = vld [vmem:[#allocation11 + $0xd88] sm:$0xff]
    %v4969 = vld [vmem:[#allocation11 + $0xd90] sm:$0xff]
    %v4970 = vld [vmem:[#allocation11 + $0xd98] sm:$0xff]
    %v4971 = vld [vmem:[#allocation11 + $0xda0] sm:$0xff]
    %v4972 = vld [vmem:[#allocation11 + $0xda8] sm:$0xff]
    %v4973 = vld [vmem:[#allocation11 + $0xdb0] sm:$0xff]
    %v4974 = vld [vmem:[#allocation11 + $0xdb8] sm:$0xff]
    %v4975 = vld [vmem:[#allocation11 + $0xdc0] sm:$0xff]
    %v4976 = vld [vmem:[#allocation11 + $0xdc8] sm:$0xff]
    %v4977 = vld [vmem:[#allocation11 + $0xdd0] sm:$0xff]
    %v4978 = vld [vmem:[#allocation11 + $0xdd8] sm:$0xff]
    %v4979 = vld [vmem:[#allocation11 + $0xde0] sm:$0xff]
    %v4980 = vld [vmem:[#allocation11 + $0xde8] sm:$0xff]
    %v4981 = vld [vmem:[#allocation11 + $0xdf0] sm:$0xff]
    %v4982 = vld [vmem:[#allocation11 + $0xdf8] sm:$0xff]
    %v4983 = vld [vmem:[#allocation11 + $0xe00] sm:$0xff]
    %v4984 = vld [vmem:[#allocation11 + $0xe08] sm:$0xff]
    %v4985 = vld [vmem:[#allocation11 + $0xe10] sm:$0xff]
    %v4986 = vld [vmem:[#allocation11 + $0xe18] sm:$0xff]
    %v4987 = vld [vmem:[#allocation11 + $0xe20] sm:$0xff]
    %v4988 = vld [vmem:[#allocation11 + $0xe28] sm:$0xff]
    %v4989 = vld [vmem:[#allocation11 + $0xe30] sm:$0xff]
    %v4990 = vld [vmem:[#allocation11 + $0xe38] sm:$0xff]
    %v4991 = vld [vmem:[#allocation11 + $0xe40] sm:$0xff]
    %v4992 = vld [vmem:[#allocation11 + $0xe48] sm:$0xff]
    %v4993 = vld [vmem:[#allocation11 + $0xe50] sm:$0xff]
    %v4994 = vld [vmem:[#allocation11 + $0xe58] sm:$0xff]
    %v4995 = vld [vmem:[#allocation11 + $0xe60] sm:$0xff]
    %v4996 = vld [vmem:[#allocation11 + $0xe68] sm:$0xff]
    %v4997 = vld [vmem:[#allocation11 + $0xe70] sm:$0xff]
    %v4998 = vld [vmem:[#allocation11 + $0xe78] sm:$0xff]
    %v4999 = vld [vmem:[#allocation11 + $0xe80] sm:$0xff]
    %v5000 = vld [vmem:[#allocation11 + $0xe88] sm:$0xff]
    %v5001 = vld [vmem:[#allocation11 + $0xe90] sm:$0xff]
    %v5002 = vld [vmem:[#allocation11 + $0xe98] sm:$0xff]
    %v5003 = vld [vmem:[#allocation11 + $0xea0] sm:$0xff]
    %v5004 = vld [vmem:[#allocation11 + $0xea8] sm:$0xff]
    %v5005 = vld [vmem:[#allocation11 + $0xeb0] sm:$0xff]
    %v5006 = vld [vmem:[#allocation11 + $0xeb8] sm:$0xff]
    %v5007 = vld [vmem:[#allocation11 + $0xec0] sm:$0xff]
    %v5008 = vld [vmem:[#allocation11 + $0xec8] sm:$0xff]
    %v5009 = vld [vmem:[#allocation11 + $0xed0] sm:$0xff]
    %v5010 = vld [vmem:[#allocation11 + $0xed8] sm:$0xff]
    %v5011 = vld [vmem:[#allocation11 + $0xee0] sm:$0xff]
    %v5012 = vld [vmem:[#allocation11 + $0xee8] sm:$0xff]
    %v5013 = vld [vmem:[#allocation11 + $0xef0] sm:$0xff]
    %v5014 = vld [vmem:[#allocation11 + $0xef8] sm:$0xff]
    %v5015 = vld [vmem:[#allocation11 + $0xf00] sm:$0xff]
    %v5016 = vld [vmem:[#allocation11 + $0xf08] sm:$0xff]
    %v5017 = vld [vmem:[#allocation11 + $0xf10] sm:$0xff]
    %v5018 = vld [vmem:[#allocation11 + $0xf18] sm:$0xff]
    %v5019 = vld [vmem:[#allocation11 + $0xf20] sm:$0xff]
    %v5020 = vld [vmem:[#allocation11 + $0xf28] sm:$0xff]
    %v5021 = vld [vmem:[#allocation11 + $0xf30] sm:$0xff]
    %v5022 = vld [vmem:[#allocation11 + $0xf38] sm:$0xff]
    %v5023 = vld [vmem:[#allocation11 + $0xf40] sm:$0xff]
    %v5024 = vld [vmem:[#allocation11 + $0xf48] sm:$0xff]
    %v5025 = vld [vmem:[#allocation11 + $0xf50] sm:$0xff]
    %v5026 = vld [vmem:[#allocation11 + $0xf58] sm:$0xff]
    %v5027 = vld [vmem:[#allocation11 + $0xf60] sm:$0xff]
    %v5028 = vld [vmem:[#allocation11 + $0xf68] sm:$0xff]
    %v5029 = vld [vmem:[#allocation11 + $0xf70] sm:$0xff]
    %v5030 = vld [vmem:[#allocation11 + $0xf78] sm:$0xff]
    %v5031 = vld [vmem:[#allocation11 + $0xf80] sm:$0xff]
    %v5032 = vld [vmem:[#allocation11 + $0xf88] sm:$0xff]
    %v5033 = vld [vmem:[#allocation11 + $0xf90] sm:$0xff]
    %v5034 = vld [vmem:[#allocation11 + $0xf98] sm:$0xff]
    %v5035 = vld [vmem:[#allocation11 + $0xfa0] sm:$0xff]
    %v5036 = vld [vmem:[#allocation11 + $0xfa8] sm:$0xff]
    %v5037 = vld [vmem:[#allocation11 + $0xfb0] sm:$0xff]
    %v5038 = vld [vmem:[#allocation11 + $0xfb8] sm:$0xff]
    %v5039 = vld [vmem:[#allocation11 + $0xfc0] sm:$0xff]
    %v5040 = vld [vmem:[#allocation11 + $0xfc8] sm:$0xff]
    %v5041 = vld [vmem:[#allocation11 + $0xfd0] sm:$0xff]
    %v5042 = vld [vmem:[#allocation11 + $0xfd8] sm:$0xff]
    %v5043 = vld [vmem:[#allocation11 + $0xfe0] sm:$0xff]
    %v5044 = vld [vmem:[#allocation11 + $0xfe8] sm:$0xff]
    %v5045 = vld [vmem:[#allocation11 + $0xff0] sm:$0xff]
    %v5046 = vld [vmem:[#allocation11 + $0xff8] sm:$0xff]
    %v5047 = vld [vmem:[#allocation11 + $0x1000] sm:$0xff]
    %v5048 = vld [vmem:[#allocation11 + $0x1008] sm:$0xff]
    %v5049 = vld [vmem:[#allocation11 + $0x1010] sm:$0xff]
    %v5050 = vld [vmem:[#allocation11 + $0x1018] sm:$0xff]
    %v5051 = vld [vmem:[#allocation11 + $0x1020] sm:$0xff]
    %v5052 = vld [vmem:[#allocation11 + $0x1028] sm:$0xff]
    %v5053 = vld [vmem:[#allocation11 + $0x1030] sm:$0xff]
    %v5054 = vld [vmem:[#allocation11 + $0x1038] sm:$0xff]
    %v5055 = vld [vmem:[#allocation11 + $0x1040] sm:$0xff]
    %v5056 = vld [vmem:[#allocation11 + $0x1048] sm:$0xff]
    %v5057 = vld [vmem:[#allocation11 + $0x1050] sm:$0xff]
    %v5058 = vld [vmem:[#allocation11 + $0x1058] sm:$0xff]
    %v5059 = vld [vmem:[#allocation11 + $0x1060] sm:$0xff]
    %v5060 = vld [vmem:[#allocation11 + $0x1068] sm:$0xff]
    %v5061 = vld [vmem:[#allocation11 + $0x1070] sm:$0xff]
    %v5062 = vld [vmem:[#allocation11 + $0x1078] sm:$0xff]
    %v5063 = vld [vmem:[#allocation11 + $0x1080] sm:$0xff]
    %v5064 = vld [vmem:[#allocation11 + $0x1088] sm:$0xff]
    %v5065 = vld [vmem:[#allocation11 + $0x1090] sm:$0xff]
    %v5066 = vld [vmem:[#allocation11 + $0x1098] sm:$0xff]
    %v5067 = vld [vmem:[#allocation11 + $0x10a0] sm:$0xff]
    %v5068 = vld [vmem:[#allocation11 + $0x10a8] sm:$0xff]
    %v5069 = vld [vmem:[#allocation11 + $0x10b0] sm:$0xff]
    %v5070 = vld [vmem:[#allocation11 + $0x10b8] sm:$0xff]
    %v5071 = vld [vmem:[#allocation11 + $0x10c0] sm:$0xff]
    %v5072 = vld [vmem:[#allocation11 + $0x10c8] sm:$0xff]
    %v5073 = vld [vmem:[#allocation11 + $0x10d0] sm:$0xff]
    %v5074 = vld [vmem:[#allocation11 + $0x10d8] sm:$0xff]
    %v5075 = vld [vmem:[#allocation11 + $0x10e0] sm:$0xff]
    %v5076 = vld [vmem:[#allocation11 + $0x10e8] sm:$0xff]
    %v5077 = vld [vmem:[#allocation11 + $0x10f0] sm:$0xff]
    %v5078 = vld [vmem:[#allocation11 + $0x10f8] sm:$0xff]
    %v5079 = vld [vmem:[#allocation11 + $0x1100] sm:$0xff]
    %v5080 = vld [vmem:[#allocation11 + $0x1108] sm:$0xff]
    %v5081 = vld [vmem:[#allocation11 + $0x1110] sm:$0xff]
    %v5082 = vld [vmem:[#allocation11 + $0x1118] sm:$0xff]
    %v5083 = vld [vmem:[#allocation11 + $0x1120] sm:$0xff]
    %v5084 = vld [vmem:[#allocation11 + $0x1128] sm:$0xff]
    %v5085 = vld [vmem:[#allocation11 + $0x1130] sm:$0xff]
    %v5086 = vld [vmem:[#allocation11 + $0x1138] sm:$0xff]
    %v5087 = vld [vmem:[#allocation11 + $0x1140] sm:$0xff]
    %v5088 = vld [vmem:[#allocation11 + $0x1148] sm:$0xf]
    %v5089 = vld [vmem:[#allocation11 + $0x1150] sm:$0xf]
    %v5090 = vld [vmem:[#allocation11 + $0x1158] sm:$0xf]
    %v5091 = vld [vmem:[#allocation11 + $0x1160] sm:$0xf]
    %v5092 = vld [vmem:[#allocation11 + $0x1168] sm:$0xf]
    %v5093 = vld [vmem:[#allocation11 + $0x1170] sm:$0xf]
    %v5094 = vld [vmem:[#allocation11 + $0x1178] sm:$0xf]
    %v5095 = vld [vmem:[#allocation11 + $0x1180] sm:$0xf]
    %v5096 = vld [vmem:[#allocation11 + $0x1188] sm:$0xf]
    %v5097 = vld [vmem:[#allocation11 + $0x1190] sm:$0xf]
    %v5098 = vld [vmem:[#allocation11 + $0x1198] sm:$0xf]
    %v5099 = vld [vmem:[#allocation11 + $0x11a0] sm:$0xf]
    %v5100 = vld [vmem:[#allocation11 + $0x11a8] sm:$0xf]
    %v5101 = vld [vmem:[#allocation11 + $0x11b0] sm:$0xf]
    %v5102 = vld [vmem:[#allocation11 + $0x11b8] sm:$0xf]
    %v5103 = vld [vmem:[#allocation11 + $0x11c0] sm:$0xf]
    %v5104 = vld [vmem:[#allocation11 + $0x11c8] sm:$0xf]
    %v5105 = vld [vmem:[#allocation11 + $0x11d0] sm:$0xf]
    %v5106 = vld [vmem:[#allocation11 + $0x11d8] sm:$0xf]
    %v5107 = vld [vmem:[#allocation11 + $0x11e0] sm:$0xf]
    %v5108 = vld [vmem:[#allocation11 + $0x11e8] sm:$0xf]
    %v5109 = vld [vmem:[#allocation11 + $0x11f0] sm:$0xf]
    %v5110 = vld [vmem:[#allocation11 + $0x11f8] sm:$0xf]
    %v5111 = vld [vmem:[#allocation11 + $0x1200] sm:$0xf]
    %v5112 = vld [vmem:[#allocation11 + $0x1208] sm:$0xf]
    %v5113 = vld [vmem:[#allocation11 + $0x1210] sm:$0xf]
    %v5114 = vld [vmem:[#allocation11 + $0x1218] sm:$0xf]
    %v5115 = vld [vmem:[#allocation11 + $0x1220] sm:$0xf]
    %v5116 = vld [vmem:[#allocation11 + $0x1228] sm:$0xf]
    %v5117 = vld [vmem:[#allocation11 + $0x1230] sm:$0xf]
    %v5118 = vld [vmem:[#allocation11 + $0x1238] sm:$0xf]
    %v5119 = vld [vmem:[#allocation11 + $0x1240] sm:$0xf]
    %v5120 = vld [vmem:[#allocation11 + $0x1248] sm:$0xf]
    %v5121 = vld [vmem:[#allocation11 + $0x1250] sm:$0xf]
    %v5122 = vld [vmem:[#allocation11 + $0x1258] sm:$0xf]
    %v5123 = vld [vmem:[#allocation11 + $0x1260] sm:$0xf]
    %v5124 = vld [vmem:[#allocation11 + $0x1268] sm:$0xf]
    %v5125 = vld [vmem:[#allocation11 + $0x1270] sm:$0xf]
    %v5126 = vld [vmem:[#allocation11 + $0x1278] sm:$0xf]
    %v5127 = vld [vmem:[#allocation11 + $0x1280] sm:$0xf]
    %v5128 = vld [vmem:[#allocation11 + $0x1288] sm:$0xf]
    %v5129 = vld [vmem:[#allocation11 + $0x1290] sm:$0xf]
    %v5130 = vld [vmem:[#allocation11 + $0x1298] sm:$0xf]
    %v5131 = vld [vmem:[#allocation11 + $0x12a0] sm:$0xf]
    %v5132 = vld [vmem:[#allocation11 + $0x12a8] sm:$0xf]
    %v5133 = vld [vmem:[#allocation11 + $0x12b0] sm:$0xf]
    %v5134 = vld [vmem:[#allocation11 + $0x12b8] sm:$0xf]
    %v5135 = vld [vmem:[#allocation11 + $0x12c0] sm:$0xf]
    %v5136 = vld [vmem:[#allocation11 + $0x12c8] sm:$0xf]
    %v5137 = vld [vmem:[#allocation11 + $0x12d0] sm:$0xf]
    %v5138 = vld [vmem:[#allocation11 + $0x12d8] sm:$0xf]
    %v5139 = vld [vmem:[#allocation11 + $0x12e0] sm:$0xf]
    %v5140 = vld [vmem:[#allocation11 + $0x12e8] sm:$0xf]
    %v5141 = vld [vmem:[#allocation11 + $0x12f0] sm:$0xf]
    %v5142 = vld [vmem:[#allocation11 + $0x12f8] sm:$0xf]
    %v5143 = vld [vmem:[#allocation11 + $0x1300] sm:$0xf]
    %v5144 = vld [vmem:[#allocation11 + $0x1308] sm:$0xf]
    %v5145 = vld [vmem:[#allocation11 + $0x1310] sm:$0xf]
    %v5146 = vld [vmem:[#allocation11 + $0x1318] sm:$0xf]
    %v5147 = vld [vmem:[#allocation11 + $0x1320] sm:$0xf]
    %v5148 = vld [vmem:[#allocation11 + $0x1328] sm:$0xf]
    %v5149 = vld [vmem:[#allocation11 + $0x1330] sm:$0xf]
    %v5150 = vld [vmem:[#allocation11 + $0x1338] sm:$0xf]
    %v5151 = vld [vmem:[#allocation11 + $0x1340] sm:$0xf]
    %v5152 = vld [vmem:[#allocation11 + $0x1348] sm:$0xf]
    %v5153 = vld [vmem:[#allocation11 + $0x1350] sm:$0xf]
    %v5154 = vld [vmem:[#allocation11 + $0x1358] sm:$0xf]
    %v5155 = vld [vmem:[#allocation11 + $0x1360] sm:$0xf]
    %v5156 = vld [vmem:[#allocation11 + $0x1368] sm:$0xf]
    %v5157 = vld [vmem:[#allocation11 + $0x1370] sm:$0xf]
    %v5158 = vld [vmem:[#allocation11 + $0x1378] sm:$0xf]
    %v5159 = vld [vmem:[#allocation11 + $0x1380] sm:$0xf]
    %v5160 = vld [vmem:[#allocation11 + $0x1388] sm:$0xf]
    %v5161 = vld [vmem:[#allocation11 + $0x1390] sm:$0xf]
    %v5162 = vld [vmem:[#allocation11 + $0x1398] sm:$0xf]
    %v5163 = vld [vmem:[#allocation11 + $0x13a0] sm:$0xf]
    %v5164 = vld [vmem:[#allocation11 + $0x13a8] sm:$0xf]
    %v5165 = vld [vmem:[#allocation11 + $0x13b0] sm:$0xf]
    %v5166 = vld [vmem:[#allocation11 + $0x13b8] sm:$0xf]
    %vm5167 = vcmask 130048
    %v5169 = vsel %vm5167, %v4534, 0
    %v5172 = vsel %vm5167, %v4613, 0
    %v5175 = vsel %vm5167, %v4692, 0
    %v5178 = vsel %vm5167, %v4771, 0
    %v5181 = vsel %vm5167, %v4850, 0
    %v5184 = vsel %vm5167, %v4929, 0
    %v5187 = vsel %vm5167, %v5008, 0
    %v5190 = vsel %vm5167, %v5087, 0
    %v5193 = vsel %vm5167, %v5166, 0
    %5195 = vmatprep.subr.mxu0 %v4536
    %5196 = vmatpush1.xpose.msra.mxu0 %v4535
    %5197 = vmatprep.subr.mxu0 %v4615
    %5198 = vmatpush1.xpose.msra.mxu0 %v4614
    %5199 = vmatprep.subr.mxu0 %v4694
    %5200 = vmatpush1.xpose.msra.mxu0 %v4693
    %5201 = vmatprep.subr.mxu0 %v4773
    %5202 = vmatpush1.xpose.msra.mxu0 %v4772
    %5203 = vmatprep.subr.mxu0 %v4852
    %5204 = vmatpush1.xpose.msra.mxu0 %v4851
    %5205 = vmatprep.subr.mxu0 %v4931
    %5206 = vmatpush1.xpose.msra.mxu0 %v4930
    %5207 = vmatprep.subr.mxu0 %v5010
    %5208 = vmatpush1.xpose.msra.mxu0 %v5009
    %5209 = vmatprep.subr.mxu0 %v5089
    %5210 = vmatpush1.xpose.msra.mxu0 %v5088
    %5211 = vmatprep.subr.mxu0 0.0
    %5212 = vmatpush1.xpose.msra.mxu0 0.0
    %5213 = vmatprep.subr.mxu0 0.0
    %5214 = vmatpush1.xpose.msra.mxu0 0.0
    %5215 = vmatprep.subr.mxu0 0.0
    %5216 = vmatpush1.xpose.msra.mxu0 0.0
    %5217 = vmatprep.subr.mxu0 0.0
    %5218 = vmatpush1.xpose.msra.mxu0 0.0
    %5219 = vmatprep.subr.mxu0 0.0
    %5220 = vmatpush1.xpose.msra.mxu0 0.0
    %5221 = vmatprep.subr.mxu0 0.0
    %5222 = vmatpush1.xpose.msra.mxu0 0.0
    %5223 = vmatprep.subr.mxu0 0.0
    %5224 = vmatpush1.xpose.msra.mxu0 0.0
    %5225 = vmatprep.subr.mxu0 0.0
    %5226 = vmatpush1.xpose.msra.mxu0 0.0
    %5227 = vmatprep.subr.mxu0 0.0
    %5228 = vmatpush1.xpose.msra.mxu0 0.0
    %5229 = vmatprep.subr.mxu0 0.0
    %5230 = vmatpush1.xpose.msra.mxu0 0.0
    %5231 = vmatprep.subr.mxu0 0.0
    %5232 = vmatpush1.xpose.msra.mxu0 0.0
    %5233 = vmatprep.subr.mxu0 0.0
    %5234 = vmatpush1.xpose.msra.mxu0 0.0
    %5235 = vmatprep.subr.mxu0 0.0
    %5236 = vmatpush1.xpose.msra.mxu0 0.0
    %5237 = vmatprep.subr.mxu0 0.0
    %5238 = vmatpush1.xpose.msra.mxu0 0.0
    %5239 = vmatprep.subr.mxu0 0.0
    %5240 = vmatpush1.xpose.msra.mxu0 0.0
    %5241 = vmatprep.subr.mxu0 0.0
    %5242 = vmatpush1.xpose.msra.mxu0 0.0
    %5243 = vmatprep.subr.mxu0 0.0
    %5244 = vmatpush1.xpose.msra.mxu0 0.0
    %5245 = vmatprep.subr.mxu0 0.0
    %5246 = vmatpush1.xpose.msra.mxu0 0.0
    %5247 = vmatprep.subr.mxu0 0.0
    %5248 = vmatpush1.xpose.msra.mxu0 0.0
    %5249 = vmatprep.subr.mxu0 0.0
    %5250 = vmatpush1.xpose.msra.mxu0 0.0
    %5251 = vmatprep.subr.mxu0 0.0
    %5252 = vmatpush1.xpose.msra.mxu0 0.0
    %5253 = vmatprep.subr.mxu0 0.0
    %5254 = vmatpush1.xpose.msra.mxu0 0.0
    %5255 = vmatprep.subr.mxu0 0.0
    %5256 = vmatpush1.xpose.msra.mxu0 0.0
    %5257 = vmatprep.subr.mxu0 0.0
    %5258 = vmatpush1.xpose.msra.mxu0 0.0
    %5259 = vmatprep.mubr.f32.mxu0 %v4457
    %5260 = vmatmul.mubr.f32.gmra.mrb[0].mxu0 %v4456
    %v5261 = vpop.f32.mrb[0].mxu0
    %v5262 = vadd.f32 %v138, %v5261
    %v5263 = vpop.f32.mrb[0].mxu0
    %5264 = vdwg.mxu0
    %5265 = vmatprep.subr.mxu0 %v4538
    %5266 = vmatpush1.xpose.msra.mxu0 %v4537
    %5267 = vmatprep.subr.mxu0 %v4617
    %5268 = vmatpush1.xpose.msra.mxu0 %v4616
    %5269 = vmatprep.subr.mxu0 %v4696
    %5270 = vmatpush1.xpose.msra.mxu0 %v4695
    %5271 = vmatprep.subr.mxu0 %v4775
    %5272 = vmatpush1.xpose.msra.mxu0 %v4774
    %5273 = vmatprep.subr.mxu0 %v4854
    %5274 = vmatpush1.xpose.msra.mxu0 %v4853
    %5275 = vmatprep.subr.mxu0 %v4933
    %5276 = vmatpush1.xpose.msra.mxu0 %v4932
    %5277 = vmatprep.subr.mxu0 %v5012
    %5278 = vmatpush1.xpose.msra.mxu0 %v5011
    %5279 = vmatprep.subr.mxu0 %v5091
    %5280 = vmatpush1.xpose.msra.mxu0 %v5090
    %5281 = vmatprep.subr.mxu0 0.0
    %5282 = vmatpush1.xpose.msra.mxu0 0.0
    %5283 = vmatprep.subr.mxu0 0.0
    %5284 = vmatpush1.xpose.msra.mxu0 0.0
    %5285 = vmatprep.subr.mxu0 0.0
    %5286 = vmatpush1.xpose.msra.mxu0 0.0
    %5287 = vmatprep.subr.mxu0 0.0
    %5288 = vmatpush1.xpose.msra.mxu0 0.0
    %5289 = vmatprep.subr.mxu0 0.0
    %5290 = vmatpush1.xpose.msra.mxu0 0.0
    %5291 = vmatprep.subr.mxu0 0.0
    %5292 = vmatpush1.xpose.msra.mxu0 0.0
    %5293 = vmatprep.subr.mxu0 0.0
    %5294 = vmatpush1.xpose.msra.mxu0 0.0
    %5295 = vmatprep.subr.mxu0 0.0
    %5296 = vmatpush1.xpose.msra.mxu0 0.0
    %5297 = vmatprep.subr.mxu0 0.0
    %5298 = vmatpush1.xpose.msra.mxu0 0.0
    %5299 = vmatprep.subr.mxu0 0.0
    %5300 = vmatpush1.xpose.msra.mxu0 0.0
    %5301 = vmatprep.subr.mxu0 0.0
    %5302 = vmatpush1.xpose.msra.mxu0 0.0
    %5303 = vmatprep.subr.mxu0 0.0
    %5304 = vmatpush1.xpose.msra.mxu0 0.0
    %5305 = vmatprep.subr.mxu0 0.0
    %5306 = vmatpush1.xpose.msra.mxu0 0.0
    %5307 = vmatprep.subr.mxu0 0.0
    %5308 = vmatpush1.xpose.msra.mxu0 0.0
    %5309 = vmatprep.subr.mxu0 0.0
    %5310 = vmatpush1.xpose.msra.mxu0 0.0
    %5311 = vmatprep.subr.mxu0 0.0
    %5312 = vmatpush1.xpose.msra.mxu0 0.0
    %5313 = vmatprep.subr.mxu0 0.0
    %5314 = vmatpush1.xpose.msra.mxu0 0.0
    %5315 = vmatprep.subr.mxu0 0.0
    %5316 = vmatpush1.xpose.msra.mxu0 0.0
    %5317 = vmatprep.subr.mxu0 0.0
    %5318 = vmatpush1.xpose.msra.mxu0 0.0
    %5319 = vmatprep.subr.mxu0 0.0
    %5320 = vmatpush1.xpose.msra.mxu0 0.0
    %5321 = vmatprep.subr.mxu0 0.0
    %5322 = vmatpush1.xpose.msra.mxu0 0.0
    %5323 = vmatprep.subr.mxu0 0.0
    %5324 = vmatpush1.xpose.msra.mxu0 0.0
    %5325 = vmatprep.subr.mxu0 0.0
    %5326 = vmatpush1.xpose.msra.mxu0 0.0
    %5327 = vmatprep.subr.mxu0 0.0
    %5328 = vmatpush1.xpose.msra.mxu0 0.0
    %5329 = vmatprep.mubr.f32.mxu0 %v4459
    %5330 = vmatmul.mubr.f32.gmra.mrb[0].mxu0 %v4458
    %v5331 = vpop.f32.mrb[0].mxu0
    %v5332 = vadd.f32 %v5262, %v5331
    %v5333 = vpop.f32.mrb[0].mxu0
    %5334 = vdwg.mxu0
    %5335 = vmatprep.subr.mxu0 %v4540
    %5336 = vmatpush1.xpose.msra.mxu0 %v4539
    %5337 = vmatprep.subr.mxu0 %v4619
    %5338 = vmatpush1.xpose.msra.mxu0 %v4618
    %5339 = vmatprep.subr.mxu0 %v4698
    %5340 = vmatpush1.xpose.msra.mxu0 %v4697
    %5341 = vmatprep.subr.mxu0 %v4777
    %5342 = vmatpush1.xpose.msra.mxu0 %v4776
    %5343 = vmatprep.subr.mxu0 %v4856
    %5344 = vmatpush1.xpose.msra.mxu0 %v4855
    %5345 = vmatprep.subr.mxu0 %v4935
    %5346 = vmatpush1.xpose.msra.mxu0 %v4934
    %5347 = vmatprep.subr.mxu0 %v5014
    %5348 = vmatpush1.xpose.msra.mxu0 %v5013
    %5349 = vmatprep.subr.mxu0 %v5093
    %5350 = vmatpush1.xpose.msra.mxu0 %v5092
    %5351 = vmatprep.subr.mxu0 0.0
    %5352 = vmatpush1.xpose.msra.mxu0 0.0
    %5353 = vmatprep.subr.mxu0 0.0
    %5354 = vmatpush1.xpose.msra.mxu0 0.0
    %5355 = vmatprep.subr.mxu0 0.0
    %5356 = vmatpush1.xpose.msra.mxu0 0.0
    %5357 = vmatprep.subr.mxu0 0.0
    %5358 = vmatpush1.xpose.msra.mxu0 0.0
    %5359 = vmatprep.subr.mxu0 0.0
    %5360 = vmatpush1.xpose.msra.mxu0 0.0
    %5361 = vmatprep.subr.mxu0 0.0
    %5362 = vmatpush1.xpose.msra.mxu0 0.0
    %5363 = vmatprep.subr.mxu0 0.0
    %5364 = vmatpush1.xpose.msra.mxu0 0.0
    %5365 = vmatprep.subr.mxu0 0.0
    %5366 = vmatpush1.xpose.msra.mxu0 0.0
    %5367 = vmatprep.subr.mxu0 0.0
    %5368 = vmatpush1.xpose.msra.mxu0 0.0
    %5369 = vmatprep.subr.mxu0 0.0
    %5370 = vmatpush1.xpose.msra.mxu0 0.0
    %5371 = vmatprep.subr.mxu0 0.0
    %5372 = vmatpush1.xpose.msra.mxu0 0.0
    %5373 = vmatprep.subr.mxu0 0.0
    %5374 = vmatpush1.xpose.msra.mxu0 0.0
    %5375 = vmatprep.subr.mxu0 0.0
    %5376 = vmatpush1.xpose.msra.mxu0 0.0
    %5377 = vmatprep.subr.mxu0 0.0
    %5378 = vmatpush1.xpose.msra.mxu0 0.0
    %5379 = vmatprep.subr.mxu0 0.0
    %5380 = vmatpush1.xpose.msra.mxu0 0.0
    %5381 = vmatprep.subr.mxu0 0.0
    %5382 = vmatpush1.xpose.msra.mxu0 0.0
    %5383 = vmatprep.subr.mxu0 0.0
    %5384 = vmatpush1.xpose.msra.mxu0 0.0
    %5385 = vmatprep.subr.mxu0 0.0
    %5386 = vmatpush1.xpose.msra.mxu0 0.0
    %5387 = vmatprep.subr.mxu0 0.0
    %5388 = vmatpush1.xpose.msra.mxu0 0.0
    %5389 = vmatprep.subr.mxu0 0.0
    %5390 = vmatpush1.xpose.msra.mxu0 0.0
    %5391 = vmatprep.subr.mxu0 0.0
    %5392 = vmatpush1.xpose.msra.mxu0 0.0
    %5393 = vmatprep.subr.mxu0 0.0
    %5394 = vmatpush1.xpose.msra.mxu0 0.0
    %5395 = vmatprep.subr.mxu0 0.0
    %5396 = vmatpush1.xpose.msra.mxu0 0.0
    %5397 = vmatprep.subr.mxu0 0.0
    %5398 = vmatpush1.xpose.msra.mxu0 0.0
    %5399 = vmatprep.mubr.f32.mxu0 %v4461
    %5400 = vmatmul.mubr.f32.gmra.mrb[0].mxu0 %v4460
    %v5401 = vpop.f32.mrb[0].mxu0
    %v5402 = vadd.f32 %v5332, %v5401
    %v5403 = vpop.f32.mrb[0].mxu0
    %5404 = vdwg.mxu0
    %5405 = vmatprep.subr.mxu0 %v4542
    %5406 = vmatpush1.xpose.msra.mxu0 %v4541
    %5407 = vmatprep.subr.mxu0 %v4621
    %5408 = vmatpush1.xpose.msra.mxu0 %v4620
    %5409 = vmatprep.subr.mxu0 %v4700
    %5410 = vmatpush1.xpose.msra.mxu0 %v4699
    %5411 = vmatprep.subr.mxu0 %v4779
    %5412 = vmatpush1.xpose.msra.mxu0 %v4778
    %5413 = vmatprep.subr.mxu0 %v4858
    %5414 = vmatpush1.xpose.msra.mxu0 %v4857
    %5415 = vmatprep.subr.mxu0 %v4937
    %5416 = vmatpush1.xpose.msra.mxu0 %v4936
    %5417 = vmatprep.subr.mxu0 %v5016
    %5418 = vmatpush1.xpose.msra.mxu0 %v5015
    %5419 = vmatprep.subr.mxu0 %v5095
    %5420 = vmatpush1.xpose.msra.mxu0 %v5094
    %5421 = vmatprep.subr.mxu0 0.0
    %5422 = vmatpush1.xpose.msra.mxu0 0.0
    %5423 = vmatprep.subr.mxu0 0.0
    %5424 = vmatpush1.xpose.msra.mxu0 0.0
    %5425 = vmatprep.subr.mxu0 0.0
    %5426 = vmatpush1.xpose.msra.mxu0 0.0
    %5427 = vmatprep.subr.mxu0 0.0
    %5428 = vmatpush1.xpose.msra.mxu0 0.0
    %5429 = vmatprep.subr.mxu0 0.0
    %5430 = vmatpush1.xpose.msra.mxu0 0.0
    %5431 = vmatprep.subr.mxu0 0.0
    %5432 = vmatpush1.xpose.msra.mxu0 0.0
    %5433 = vmatprep.subr.mxu0 0.0
    %5434 = vmatpush1.xpose.msra.mxu0 0.0
    %5435 = vmatprep.subr.mxu0 0.0
    %5436 = vmatpush1.xpose.msra.mxu0 0.0
    %5437 = vmatprep.subr.mxu0 0.0
    %5438 = vmatpush1.xpose.msra.mxu0 0.0
    %5439 = vmatprep.subr.mxu0 0.0
    %5440 = vmatpush1.xpose.msra.mxu0 0.0
    %5441 = vmatprep.subr.mxu0 0.0
    %5442 = vmatpush1.xpose.msra.mxu0 0.0
    %5443 = vmatprep.subr.mxu0 0.0
    %5444 = vmatpush1.xpose.msra.mxu0 0.0
    %5445 = vmatprep.subr.mxu0 0.0
    %5446 = vmatpush1.xpose.msra.mxu0 0.0
    %5447 = vmatprep.subr.mxu0 0.0
    %5448 = vmatpush1.xpose.msra.mxu0 0.0
    %5449 = vmatprep.subr.mxu0 0.0
    %5450 = vmatpush1.xpose.msra.mxu0 0.0
    %5451 = vmatprep.subr.mxu0 0.0
    %5452 = vmatpush1.xpose.msra.mxu0 0.0
    %5453 = vmatprep.subr.mxu0 0.0
    %5454 = vmatpush1.xpose.msra.mxu0 0.0
    %5455 = vmatprep.subr.mxu0 0.0
    %5456 = vmatpush1.xpose.msra.mxu0 0.0
    %5457 = vmatprep.subr.mxu0 0.0
    %5458 = vmatpush1.xpose.msra.mxu0 0.0
    %5459 = vmatprep.subr.mxu0 0.0
    %5460 = vmatpush1.xpose.msra.mxu0 0.0
    %5461 = vmatprep.subr.mxu0 0.0
    %5462 = vmatpush1.xpose.msra.mxu0 0.0
    %5463 = vmatprep.subr.mxu0 0.0
    %5464 = vmatpush1.xpose.msra.mxu0 0.0
    %5465 = vmatprep.subr.mxu0 0.0
    %5466 = vmatpush1.xpose.msra.mxu0 0.0
    %5467 = vmatprep.subr.mxu0 0.0
    %5468 = vmatpush1.xpose.msra.mxu0 0.0
    %5469 = vmatprep.mubr.f32.mxu0 %v4463
    %5470 = vmatmul.mubr.f32.gmra.mrb[0].mxu0 %v4462
    %v5471 = vpop.f32.mrb[0].mxu0
    %v5472 = vadd.f32 %v5402, %v5471
    %v5473 = vpop.f32.mrb[0].mxu0
    %5474 = vdwg.mxu0
    %5475 = vmatprep.subr.mxu0 %v4544
    %5476 = vmatpush1.xpose.msra.mxu0 %v4543
    %5477 = vmatprep.subr.mxu0 %v4623
    %5478 = vmatpush1.xpose.msra.mxu0 %v4622
    %5479 = vmatprep.subr.mxu0 %v4702
    %5480 = vmatpush1.xpose.msra.mxu0 %v4701
    %5481 = vmatprep.subr.mxu0 %v4781
    %5482 = vmatpush1.xpose.msra.mxu0 %v4780
    %5483 = vmatprep.subr.mxu0 %v4860
    %5484 = vmatpush1.xpose.msra.mxu0 %v4859
    %5485 = vmatprep.subr.mxu0 %v4939
    %5486 = vmatpush1.xpose.msra.mxu0 %v4938
    %5487 = vmatprep.subr.mxu0 %v5018
    %5488 = vmatpush1.xpose.msra.mxu0 %v5017
    %5489 = vmatprep.subr.mxu0 %v5097
    %5490 = vmatpush1.xpose.msra.mxu0 %v5096
    %5491 = vmatprep.subr.mxu0 0.0
    %5492 = vmatpush1.xpose.msra.mxu0 0.0
    %5493 = vmatprep.subr.mxu0 0.0
    %5494 = vmatpush1.xpose.msra.mxu0 0.0
    %5495 = vmatprep.subr.mxu0 0.0
    %5496 = vmatpush1.xpose.msra.mxu0 0.0
    %5497 = vmatprep.subr.mxu0 0.0
    %5498 = vmatpush1.xpose.msra.mxu0 0.0
    %5499 = vmatprep.subr.mxu0 0.0
    %5500 = vmatpush1.xpose.msra.mxu0 0.0
    %5501 = vmatprep.subr.mxu0 0.0
    %5502 = vmatpush1.xpose.msra.mxu0 0.0
    %5503 = vmatprep.subr.mxu0 0.0
    %5504 = vmatpush1.xpose.msra.mxu0 0.0
    %5505 = vmatprep.subr.mxu0 0.0
    %5506 = vmatpush1.xpose.msra.mxu0 0.0
    %5507 = vmatprep.subr.mxu0 0.0
    %5508 = vmatpush1.xpose.msra.mxu0 0.0
    %5509 = vmatprep.subr.mxu0 0.0
    %5510 = vmatpush1.xpose.msra.mxu0 0.0
    %5511 = vmatprep.subr.mxu0 0.0
    %5512 = vmatpush1.xpose.msra.mxu0 0.0
    %5513 = vmatprep.subr.mxu0 0.0
    %5514 = vmatpush1.xpose.msra.mxu0 0.0
    %5515 = vmatprep.subr.mxu0 0.0
    %5516 = vmatpush1.xpose.msra.mxu0 0.0
    %5517 = vmatprep.subr.mxu0 0.0
    %5518 = vmatpush1.xpose.msra.mxu0 0.0
    %5519 = vmatprep.subr.mxu0 0.0
    %5520 = vmatpush1.xpose.msra.mxu0 0.0
    %5521 = vmatprep.subr.mxu0 0.0
    %5522 = vmatpush1.xpose.msra.mxu0 0.0
    %5523 = vmatprep.subr.mxu0 0.0
    %5524 = vmatpush1.xpose.msra.mxu0 0.0
    %5525 = vmatprep.subr.mxu0 0.0
    %5526 = vmatpush1.xpose.msra.mxu0 0.0
    %5527 = vmatprep.subr.mxu0 0.0
    %5528 = vmatpush1.xpose.msra.mxu0 0.0
    %5529 = vmatprep.subr.mxu0 0.0
    %5530 = vmatpush1.xpose.msra.mxu0 0.0
    %5531 = vmatprep.subr.mxu0 0.0
    %5532 = vmatpush1.xpose.msra.mxu0 0.0
    %5533 = vmatprep.subr.mxu0 0.0
    %5534 = vmatpush1.xpose.msra.mxu0 0.0
    %5535 = vmatprep.subr.mxu0 0.0
    %5536 = vmatpush1.xpose.msra.mxu0 0.0
    %5537 = vmatprep.subr.mxu0 0.0
    %5538 = vmatpush1.xpose.msra.mxu0 0.0
    %5539 = vmatprep.mubr.f32.mxu0 %v4465
    %5540 = vmatmul.mubr.f32.gmra.mrb[0].mxu0 %v4464
    %v5541 = vpop.f32.mrb[0].mxu0
    %v5542 = vadd.f32 %v5472, %v5541
    %v5543 = vpop.f32.mrb[0].mxu0
    %5544 = vdwg.mxu0
    %5545 = vmatprep.subr.mxu0 %v4546
    %5546 = vmatpush1.xpose.msra.mxu0 %v4545
    %5547 = vmatprep.subr.mxu0 %v4625
    %5548 = vmatpush1.xpose.msra.mxu0 %v4624
    %5549 = vmatprep.subr.mxu0 %v4704
    %5550 = vmatpush1.xpose.msra.mxu0 %v4703
    %5551 = vmatprep.subr.mxu0 %v4783
    %5552 = vmatpush1.xpose.msra.mxu0 %v4782
    %5553 = vmatprep.subr.mxu0 %v4862
    %5554 = vmatpush1.xpose.msra.mxu0 %v4861
    %5555 = vmatprep.subr.mxu0 %v4941
    %5556 = vmatpush1.xpose.msra.mxu0 %v4940
    %5557 = vmatprep.subr.mxu0 %v5020
    %5558 = vmatpush1.xpose.msra.mxu0 %v5019
    %5559 = vmatprep.subr.mxu0 %v5099
    %5560 = vmatpush1.xpose.msra.mxu0 %v5098
    %5561 = vmatprep.subr.mxu0 0.0
    %5562 = vmatpush1.xpose.msra.mxu0 0.0
    %5563 = vmatprep.subr.mxu0 0.0
    %5564 = vmatpush1.xpose.msra.mxu0 0.0
    %5565 = vmatprep.subr.mxu0 0.0
    %5566 = vmatpush1.xpose.msra.mxu0 0.0
    %5567 = vmatprep.subr.mxu0 0.0
    %5568 = vmatpush1.xpose.msra.mxu0 0.0
    %5569 = vmatprep.subr.mxu0 0.0
    %5570 = vmatpush1.xpose.msra.mxu0 0.0
    %5571 = vmatprep.subr.mxu0 0.0
    %5572 = vmatpush1.xpose.msra.mxu0 0.0
    %5573 = vmatprep.subr.mxu0 0.0
    %5574 = vmatpush1.xpose.msra.mxu0 0.0
    %5575 = vmatprep.subr.mxu0 0.0
    %5576 = vmatpush1.xpose.msra.mxu0 0.0
    %5577 = vmatprep.subr.mxu0 0.0
    %5578 = vmatpush1.xpose.msra.mxu0 0.0
    %5579 = vmatprep.subr.mxu0 0.0
    %5580 = vmatpush1.xpose.msra.mxu0 0.0
    %5581 = vmatprep.subr.mxu0 0.0
    %5582 = vmatpush1.xpose.msra.mxu0 0.0
    %5583 = vmatprep.subr.mxu0 0.0
    %5584 = vmatpush1.xpose.msra.mxu0 0.0
    %5585 = vmatprep.subr.mxu0 0.0
    %5586 = vmatpush1.xpose.msra.mxu0 0.0
    %5587 = vmatprep.subr.mxu0 0.0
    %5588 = vmatpush1.xpose.msra.mxu0 0.0
    %5589 = vmatprep.subr.mxu0 0.0
    %5590 = vmatpush1.xpose.msra.mxu0 0.0
    %5591 = vmatprep.subr.mxu0 0.0
    %5592 = vmatpush1.xpose.msra.mxu0 0.0
    %5593 = vmatprep.subr.mxu0 0.0
    %5594 = vmatpush1.xpose.msra.mxu0 0.0
    %5595 = vmatprep.subr.mxu0 0.0
    %5596 = vmatpush1.xpose.msra.mxu0 0.0
    %5597 = vmatprep.subr.mxu0 0.0
    %5598 = vmatpush1.xpose.msra.mxu0 0.0
    %5599 = vmatprep.subr.mxu0 0.0
    %5600 = vmatpush1.xpose.msra.mxu0 0.0
    %5601 = vmatprep.subr.mxu0 0.0
    %5602 = vmatpush1.xpose.msra.mxu0 0.0
    %5603 = vmatprep.subr.mxu0 0.0
    %5604 = vmatpush1.xpose.msra.mxu0 0.0
    %5605 = vmatprep.subr.mxu0 0.0
    %5606 = vmatpush1.xpose.msra.mxu0 0.0
    %5607 = vmatprep.subr.mxu0 0.0
    %5608 = vmatpush1.xpose.msra.mxu0 0.0
    %5609 = vmatprep.mubr.f32.mxu0 %v4467
    %5610 = vmatmul.mubr.f32.gmra.mrb[0].mxu0 %v4466
    %v5611 = vpop.f32.mrb[0].mxu0
    %v5612 = vadd.f32 %v5542, %v5611
    %v5613 = vpop.f32.mrb[0].mxu0
    %5614 = vdwg.mxu0
    %5615 = vmatprep.subr.mxu0 %v4548
    %5616 = vmatpush1.xpose.msra.mxu0 %v4547
    %5617 = vmatprep.subr.mxu0 %v4627
    %5618 = vmatpush1.xpose.msra.mxu0 %v4626
    %5619 = vmatprep.subr.mxu0 %v4706
    %5620 = vmatpush1.xpose.msra.mxu0 %v4705
    %5621 = vmatprep.subr.mxu0 %v4785
    %5622 = vmatpush1.xpose.msra.mxu0 %v4784
    %5623 = vmatprep.subr.mxu0 %v4864
    %5624 = vmatpush1.xpose.msra.mxu0 %v4863
    %5625 = vmatprep.subr.mxu0 %v4943
    %5626 = vmatpush1.xpose.msra.mxu0 %v4942
    %5627 = vmatprep.subr.mxu0 %v5022
    %5628 = vmatpush1.xpose.msra.mxu0 %v5021
    %5629 = vmatprep.subr.mxu0 %v5101
    %5630 = vmatpush1.xpose.msra.mxu0 %v5100
    %5631 = vmatprep.subr.mxu0 0.0
    %5632 = vmatpush1.xpose.msra.mxu0 0.0
    %5633 = vmatprep.subr.mxu0 0.0
    %5634 = vmatpush1.xpose.msra.mxu0 0.0
    %5635 = vmatprep.subr.mxu0 0.0
    %5636 = vmatpush1.xpose.msra.mxu0 0.0
    %5637 = vmatprep.subr.mxu0 0.0
    %5638 = vmatpush1.xpose.msra.mxu0 0.0
    %5639 = vmatprep.subr.mxu0 0.0
    %5640 = vmatpush1.xpose.msra.mxu0 0.0
    %5641 = vmatprep.subr.mxu0 0.0
    %5642 = vmatpush1.xpose.msra.mxu0 0.0
    %5643 = vmatprep.subr.mxu0 0.0
    %5644 = vmatpush1.xpose.msra.mxu0 0.0
    %5645 = vmatprep.subr.mxu0 0.0
    %5646 = vmatpush1.xpose.msra.mxu0 0.0
    %5647 = vmatprep.subr.mxu0 0.0
    %5648 = vmatpush1.xpose.msra.mxu0 0.0
    %5649 = vmatprep.subr.mxu0 0.0
    %5650 = vmatpush1.xpose.msra.mxu0 0.0
    %5651 = vmatprep.subr.mxu0 0.0
    %5652 = vmatpush1.xpose.msra.mxu0 0.0
    %5653 = vmatprep.subr.mxu0 0.0
    %5654 = vmatpush1.xpose.msra.mxu0 0.0
    %5655 = vmatprep.subr.mxu0 0.0
    %5656 = vmatpush1.xpose.msra.mxu0 0.0
    %5657 = vmatprep.subr.mxu0 0.0
    %5658 = vmatpush1.xpose.msra.mxu0 0.0
    %5659 = vmatprep.subr.mxu0 0.0
    %5660 = vmatpush1.xpose.msra.mxu0 0.0
    %5661 = vmatprep.subr.mxu0 0.0
    %5662 = vmatpush1.xpose.msra.mxu0 0.0
    %5663 = vmatprep.subr.mxu0 0.0
    %5664 = vmatpush1.xpose.msra.mxu0 0.0
    %5665 = vmatprep.subr.mxu0 0.0
    %5666 = vmatpush1.xpose.msra.mxu0 0.0
    %5667 = vmatprep.subr.mxu0 0.0
    %5668 = vmatpush1.xpose.msra.mxu0 0.0
    %5669 = vmatprep.subr.mxu0 0.0
    %5670 = vmatpush1.xpose.msra.mxu0 0.0
    %5671 = vmatprep.subr.mxu0 0.0
    %5672 = vmatpush1.xpose.msra.mxu0 0.0
    %5673 = vmatprep.subr.mxu0 0.0
    %5674 = vmatpush1.xpose.msra.mxu0 0.0
    %5675 = vmatprep.subr.mxu0 0.0
    %5676 = vmatpush1.xpose.msra.mxu0 0.0
    %5677 = vmatprep.subr.mxu0 0.0
    %5678 = vmatpush1.xpose.msra.mxu0 0.0
    %5679 = vmatprep.mubr.f32.mxu0 %v4469
    %5680 = vmatmul.mubr.f32.gmra.mrb[0].mxu0 %v4468
    %v5681 = vpop.f32.mrb[0].mxu0
    %v5682 = vadd.f32 %v5612, %v5681
    %v5683 = vpop.f32.mrb[0].mxu0
    %5684 = vdwg.mxu0
    %5685 = vmatprep.subr.mxu0 %v4550
    %5686 = vmatpush1.xpose.msra.mxu0 %v4549
    %5687 = vmatprep.subr.mxu0 %v4629
    %5688 = vmatpush1.xpose.msra.mxu0 %v4628
    %5689 = vmatprep.subr.mxu0 %v4708
    %5690 = vmatpush1.xpose.msra.mxu0 %v4707
    %5691 = vmatprep.subr.mxu0 %v4787
    %5692 = vmatpush1.xpose.msra.mxu0 %v4786
    %5693 = vmatprep.subr.mxu0 %v4866
    %5694 = vmatpush1.xpose.msra.mxu0 %v4865
    %5695 = vmatprep.subr.mxu0 %v4945
    %5696 = vmatpush1.xpose.msra.mxu0 %v4944
    %5697 = vmatprep.subr.mxu0 %v5024
    %5698 = vmatpush1.xpose.msra.mxu0 %v5023
    %5699 = vmatprep.subr.mxu0 %v5103
    %5700 = vmatpush1.xpose.msra.mxu0 %v5102
    %5701 = vmatprep.subr.mxu0 0.0
    %5702 = vmatpush1.xpose.msra.mxu0 0.0
    %5703 = vmatprep.subr.mxu0 0.0
    %5704 = vmatpush1.xpose.msra.mxu0 0.0
    %5705 = vmatprep.subr.mxu0 0.0
    %5706 = vmatpush1.xpose.msra.mxu0 0.0
    %5707 = vmatprep.subr.mxu0 0.0
    %5708 = vmatpush1.xpose.msra.mxu0 0.0
    %5709 = vmatprep.subr.mxu0 0.0
    %5710 = vmatpush1.xpose.msra.mxu0 0.0
    %5711 = vmatprep.subr.mxu0 0.0
    %5712 = vmatpush1.xpose.msra.mxu0 0.0
    %5713 = vmatprep.subr.mxu0 0.0
    %5714 = vmatpush1.xpose.msra.mxu0 0.0
    %5715 = vmatprep.subr.mxu0 0.0
    %5716 = vmatpush1.xpose.msra.mxu0 0.0
    %5717 = vmatprep.subr.mxu0 0.0
    %5718 = vmatpush1.xpose.msra.mxu0 0.0
    %5719 = vmatprep.subr.mxu0 0.0
    %5720 = vmatpush1.xpose.msra.mxu0 0.0
    %5721 = vmatprep.subr.mxu0 0.0
    %5722 = vmatpush1.xpose.msra.mxu0 0.0
    %5723 = vmatprep.subr.mxu0 0.0
    %5724 = vmatpush1.xpose.msra.mxu0 0.0
    %5725 = vmatprep.subr.mxu0 0.0
    %5726 = vmatpush1.xpose.msra.mxu0 0.0
    %5727 = vmatprep.subr.mxu0 0.0
    %5728 = vmatpush1.xpose.msra.mxu0 0.0
    %5729 = vmatprep.subr.mxu0 0.0
    %5730 = vmatpush1.xpose.msra.mxu0 0.0
    %5731 = vmatprep.subr.mxu0 0.0
    %5732 = vmatpush1.xpose.msra.mxu0 0.0
    %5733 = vmatprep.subr.mxu0 0.0
    %5734 = vmatpush1.xpose.msra.mxu0 0.0
    %5735 = vmatprep.subr.mxu0 0.0
    %5736 = vmatpush1.xpose.msra.mxu0 0.0
    %5737 = vmatprep.subr.mxu0 0.0
    %5738 = vmatpush1.xpose.msra.mxu0 0.0
    %5739 = vmatprep.subr.mxu0 0.0
    %5740 = vmatpush1.xpose.msra.mxu0 0.0
    %5741 = vmatprep.subr.mxu0 0.0
    %5742 = vmatpush1.xpose.msra.mxu0 0.0
    %5743 = vmatprep.subr.mxu0 0.0
    %5744 = vmatpush1.xpose.msra.mxu0 0.0
    %5745 = vmatprep.subr.mxu0 0.0
    %5746 = vmatpush1.xpose.msra.mxu0 0.0
    %5747 = vmatprep.subr.mxu0 0.0
    %5748 = vmatpush1.xpose.msra.mxu0 0.0
    %5749 = vmatprep.mubr.f32.mxu0 %v4471
    %5750 = vmatmul.mubr.f32.gmra.mrb[0].mxu0 %v4470
    %v5751 = vpop.f32.mrb[0].mxu0
    %v5752 = vadd.f32 %v5682, %v5751
    %v5753 = vpop.f32.mrb[0].mxu0
    %5754 = vdwg.mxu0
    %5755 = vmatprep.subr.mxu0 %v4552
    %5756 = vmatpush1.xpose.msra.mxu0 %v4551
    %5757 = vmatprep.subr.mxu0 %v4631
    %5758 = vmatpush1.xpose.msra.mxu0 %v4630
    %5759 = vmatprep.subr.mxu0 %v4710
    %5760 = vmatpush1.xpose.msra.mxu0 %v4709
    %5761 = vmatprep.subr.mxu0 %v4789
    %5762 = vmatpush1.xpose.msra.mxu0 %v4788
    %5763 = vmatprep.subr.mxu0 %v4868
    %5764 = vmatpush1.xpose.msra.mxu0 %v4867
    %5765 = vmatprep.subr.mxu0 %v4947
    %5766 = vmatpush1.xpose.msra.mxu0 %v4946
    %5767 = vmatprep.subr.mxu0 %v5026
    %5768 = vmatpush1.xpose.msra.mxu0 %v5025
    %5769 = vmatprep.subr.mxu0 %v5105
    %5770 = vmatpush1.xpose.msra.mxu0 %v5104
    %5771 = vmatprep.subr.mxu0 0.0
    %5772 = vmatpush1.xpose.msra.mxu0 0.0
    %5773 = vmatprep.subr.mxu0 0.0
    %5774 = vmatpush1.xpose.msra.mxu0 0.0
    %5775 = vmatprep.subr.mxu0 0.0
    %5776 = vmatpush1.xpose.msra.mxu0 0.0
    %5777 = vmatprep.subr.mxu0 0.0
    %5778 = vmatpush1.xpose.msra.mxu0 0.0
    %5779 = vmatprep.subr.mxu0 0.0
    %5780 = vmatpush1.xpose.msra.mxu0 0.0
    %5781 = vmatprep.subr.mxu0 0.0
    %5782 = vmatpush1.xpose.msra.mxu0 0.0
    %5783 = vmatprep.subr.mxu0 0.0
    %5784 = vmatpush1.xpose.msra.mxu0 0.0
    %5785 = vmatprep.subr.mxu0 0.0
    %5786 = vmatpush1.xpose.msra.mxu0 0.0
    %5787 = vmatprep.subr.mxu0 0.0
    %5788 = vmatpush1.xpose.msra.mxu0 0.0
    %5789 = vmatprep.subr.mxu0 0.0
    %5790 = vmatpush1.xpose.msra.mxu0 0.0
    %5791 = vmatprep.subr.mxu0 0.0
    %5792 = vmatpush1.xpose.msra.mxu0 0.0
    %5793 = vmatprep.subr.mxu0 0.0
    %5794 = vmatpush1.xpose.msra.mxu0 0.0
    %5795 = vmatprep.subr.mxu0 0.0
    %5796 = vmatpush1.xpose.msra.mxu0 0.0
    %5797 = vmatprep.subr.mxu0 0.0
    %5798 = vmatpush1.xpose.msra.mxu0 0.0
    %5799 = vmatprep.subr.mxu0 0.0
    %5800 = vmatpush1.xpose.msra.mxu0 0.0
    %5801 = vmatprep.subr.mxu0 0.0
    %5802 = vmatpush1.xpose.msra.mxu0 0.0
    %5803 = vmatprep.subr.mxu0 0.0
    %5804 = vmatpush1.xpose.msra.mxu0 0.0
    %5805 = vmatprep.subr.mxu0 0.0
    %5806 = vmatpush1.xpose.msra.mxu0 0.0
    %5807 = vmatprep.subr.mxu0 0.0
    %5808 = vmatpush1.xpose.msra.mxu0 0.0
    %5809 = vmatprep.subr.mxu0 0.0
    %5810 = vmatpush1.xpose.msra.mxu0 0.0
    %5811 = vmatprep.subr.mxu0 0.0
    %5812 = vmatpush1.xpose.msra.mxu0 0.0
    %5813 = vmatprep.subr.mxu0 0.0
    %5814 = vmatpush1.xpose.msra.mxu0 0.0
    %5815 = vmatprep.subr.mxu0 0.0
    %5816 = vmatpush1.xpose.msra.mxu0 0.0
    %5817 = vmatprep.subr.mxu0 0.0
    %5818 = vmatpush1.xpose.msra.mxu0 0.0
    %5819 = vmatprep.mubr.f32.mxu0 %v4473
    %5820 = vmatmul.mubr.f32.gmra.mrb[0].mxu0 %v4472
    %v5821 = vpop.f32.mrb[0].mxu0
    %v5822 = vadd.f32 %v5752, %v5821
    %v5823 = vpop.f32.mrb[0].mxu0
    %5824 = vdwg.mxu0
    %5825 = vmatprep.subr.mxu0 %v4554
    %5826 = vmatpush1.xpose.msra.mxu0 %v4553
    %5827 = vmatprep.subr.mxu0 %v4633
    %5828 = vmatpush1.xpose.msra.mxu0 %v4632
    %5829 = vmatprep.subr.mxu0 %v4712
    %5830 = vmatpush1.xpose.msra.mxu0 %v4711
    %5831 = vmatprep.subr.mxu0 %v4791
    %5832 = vmatpush1.xpose.msra.mxu0 %v4790
    %5833 = vmatprep.subr.mxu0 %v4870
    %5834 = vmatpush1.xpose.msra.mxu0 %v4869
    %5835 = vmatprep.subr.mxu0 %v4949
    %5836 = vmatpush1.xpose.msra.mxu0 %v4948
    %5837 = vmatprep.subr.mxu0 %v5028
    %5838 = vmatpush1.xpose.msra.mxu0 %v5027
    %5839 = vmatprep.subr.mxu0 %v5107
    %5840 = vmatpush1.xpose.msra.mxu0 %v5106
    %5841 = vmatprep.subr.mxu0 0.0
    %5842 = vmatpush1.xpose.msra.mxu0 0.0
    %5843 = vmatprep.subr.mxu0 0.0
    %5844 = vmatpush1.xpose.msra.mxu0 0.0
    %5845 = vmatprep.subr.mxu0 0.0
    %5846 = vmatpush1.xpose.msra.mxu0 0.0
    %5847 = vmatprep.subr.mxu0 0.0
    %5848 = vmatpush1.xpose.msra.mxu0 0.0
    %5849 = vmatprep.subr.mxu0 0.0
    %5850 = vmatpush1.xpose.msra.mxu0 0.0
    %5851 = vmatprep.subr.mxu0 0.0
    %5852 = vmatpush1.xpose.msra.mxu0 0.0
    %5853 = vmatprep.subr.mxu0 0.0
    %5854 = vmatpush1.xpose.msra.mxu0 0.0
    %5855 = vmatprep.subr.mxu0 0.0
    %5856 = vmatpush1.xpose.msra.mxu0 0.0
    %5857 = vmatprep.subr.mxu0 0.0
    %5858 = vmatpush1.xpose.msra.mxu0 0.0
    %5859 = vmatprep.subr.mxu0 0.0
    %5860 = vmatpush1.xpose.msra.mxu0 0.0
    %5861 = vmatprep.subr.mxu0 0.0
    %5862 = vmatpush1.xpose.msra.mxu0 0.0
    %5863 = vmatprep.subr.mxu0 0.0
    %5864 = vmatpush1.xpose.msra.mxu0 0.0
    %5865 = vmatprep.subr.mxu0 0.0
    %5866 = vmatpush1.xpose.msra.mxu0 0.0
    %5867 = vmatprep.subr.mxu0 0.0
    %5868 = vmatpush1.xpose.msra.mxu0 0.0
    %5869 = vmatprep.subr.mxu0 0.0
    %5870 = vmatpush1.xpose.msra.mxu0 0.0
    %5871 = vmatprep.subr.mxu0 0.0
    %5872 = vmatpush1.xpose.msra.mxu0 0.0
    %5873 = vmatprep.subr.mxu0 0.0
    %5874 = vmatpush1.xpose.msra.mxu0 0.0
    %5875 = vmatprep.subr.mxu0 0.0
    %5876 = vmatpush1.xpose.msra.mxu0 0.0
    %5877 = vmatprep.subr.mxu0 0.0
    %5878 = vmatpush1.xpose.msra.mxu0 0.0
    %5879 = vmatprep.subr.mxu0 0.0
    %5880 = vmatpush1.xpose.msra.mxu0 0.0
    %5881 = vmatprep.subr.mxu0 0.0
    %5882 = vmatpush1.xpose.msra.mxu0 0.0
    %5883 = vmatprep.subr.mxu0 0.0
    %5884 = vmatpush1.xpose.msra.mxu0 0.0
    %5885 = vmatprep.subr.mxu0 0.0
    %5886 = vmatpush1.xpose.msra.mxu0 0.0
    %5887 = vmatprep.subr.mxu0 0.0
    %5888 = vmatpush1.xpose.msra.mxu0 0.0
    %5889 = vmatprep.mubr.f32.mxu0 %v4475
    %5890 = vmatmul.mubr.f32.gmra.mrb[0].mxu0 %v4474
    %v5891 = vpop.f32.mrb[0].mxu0
    %v5892 = vadd.f32 %v5822, %v5891
    %v5893 = vpop.f32.mrb[0].mxu0
    %5894 = vdwg.mxu0
    %5895 = vmatprep.subr.mxu0 %v4556
    %5896 = vmatpush1.xpose.msra.mxu0 %v4555
    %5897 = vmatprep.subr.mxu0 %v4635
    %5898 = vmatpush1.xpose.msra.mxu0 %v4634
    %5899 = vmatprep.subr.mxu0 %v4714
    %5900 = vmatpush1.xpose.msra.mxu0 %v4713
    %5901 = vmatprep.subr.mxu0 %v4793
    %5902 = vmatpush1.xpose.msra.mxu0 %v4792
    %5903 = vmatprep.subr.mxu0 %v4872
    %5904 = vmatpush1.xpose.msra.mxu0 %v4871
    %5905 = vmatprep.subr.mxu0 %v4951
    %5906 = vmatpush1.xpose.msra.mxu0 %v4950
    %5907 = vmatprep.subr.mxu0 %v5030
    %5908 = vmatpush1.xpose.msra.mxu0 %v5029
    %5909 = vmatprep.subr.mxu0 %v5109
    %5910 = vmatpush1.xpose.msra.mxu0 %v5108
    %5911 = vmatprep.subr.mxu0 0.0
    %5912 = vmatpush1.xpose.msra.mxu0 0.0
    %5913 = vmatprep.subr.mxu0 0.0
    %5914 = vmatpush1.xpose.msra.mxu0 0.0
    %5915 = vmatprep.subr.mxu0 0.0
    %5916 = vmatpush1.xpose.msra.mxu0 0.0
    %5917 = vmatprep.subr.mxu0 0.0
    %5918 = vmatpush1.xpose.msra.mxu0 0.0
    %5919 = vmatprep.subr.mxu0 0.0
    %5920 = vmatpush1.xpose.msra.mxu0 0.0
    %5921 = vmatprep.subr.mxu0 0.0
    %5922 = vmatpush1.xpose.msra.mxu0 0.0
    %5923 = vmatprep.subr.mxu0 0.0
    %5924 = vmatpush1.xpose.msra.mxu0 0.0
    %5925 = vmatprep.subr.mxu0 0.0
    %5926 = vmatpush1.xpose.msra.mxu0 0.0
    %5927 = vmatprep.subr.mxu0 0.0
    %5928 = vmatpush1.xpose.msra.mxu0 0.0
    %5929 = vmatprep.subr.mxu0 0.0
    %5930 = vmatpush1.xpose.msra.mxu0 0.0
    %5931 = vmatprep.subr.mxu0 0.0
    %5932 = vmatpush1.xpose.msra.mxu0 0.0
    %5933 = vmatprep.subr.mxu0 0.0
    %5934 = vmatpush1.xpose.msra.mxu0 0.0
    %5935 = vmatprep.subr.mxu0 0.0
    %5936 = vmatpush1.xpose.msra.mxu0 0.0
    %5937 = vmatprep.subr.mxu0 0.0
    %5938 = vmatpush1.xpose.msra.mxu0 0.0
    %5939 = vmatprep.subr.mxu0 0.0
    %5940 = vmatpush1.xpose.msra.mxu0 0.0
    %5941 = vmatprep.subr.mxu0 0.0
    %5942 = vmatpush1.xpose.msra.mxu0 0.0
    %5943 = vmatprep.subr.mxu0 0.0
    %5944 = vmatpush1.xpose.msra.mxu0 0.0
    %5945 = vmatprep.subr.mxu0 0.0
    %5946 = vmatpush1.xpose.msra.mxu0 0.0
    %5947 = vmatprep.subr.mxu0 0.0
    %5948 = vmatpush1.xpose.msra.mxu0 0.0
    %5949 = vmatprep.subr.mxu0 0.0
    %5950 = vmatpush1.xpose.msra.mxu0 0.0
    %5951 = vmatprep.subr.mxu0 0.0
    %5952 = vmatpush1.xpose.msra.mxu0 0.0
    %5953 = vmatprep.subr.mxu0 0.0
    %5954 = vmatpush1.xpose.msra.mxu0 0.0
    %5955 = vmatprep.subr.mxu0 0.0
    %5956 = vmatpush1.xpose.msra.mxu0 0.0
    %5957 = vmatprep.subr.mxu0 0.0
    %5958 = vmatpush1.xpose.msra.mxu0 0.0
    %5959 = vmatprep.mubr.f32.mxu0 %v4477
    %5960 = vmatmul.mubr.f32.gmra.mrb[0].mxu0 %v4476
    %v5961 = vpop.f32.mrb[0].mxu0
    %v5962 = vadd.f32 %v5892, %v5961
    %v5963 = vpop.f32.mrb[0].mxu0
    %5964 = vdwg.mxu0
    %5965 = vmatprep.subr.mxu0 %v4558
    %5966 = vmatpush1.xpose.msra.mxu0 %v4557
    %5967 = vmatprep.subr.mxu0 %v4637
    %5968 = vmatpush1.xpose.msra.mxu0 %v4636
    %5969 = vmatprep.subr.mxu0 %v4716
    %5970 = vmatpush1.xpose.msra.mxu0 %v4715
    %5971 = vmatprep.subr.mxu0 %v4795
    %5972 = vmatpush1.xpose.msra.mxu0 %v4794
    %5973 = vmatprep.subr.mxu0 %v4874
    %5974 = vmatpush1.xpose.msra.mxu0 %v4873
    %5975 = vmatprep.subr.mxu0 %v4953
    %5976 = vmatpush1.xpose.msra.mxu0 %v4952
    %5977 = vmatprep.subr.mxu0 %v5032
    %5978 = vmatpush1.xpose.msra.mxu0 %v5031
    %5979 = vmatprep.subr.mxu0 %v5111
    %5980 = vmatpush1.xpose.msra.mxu0 %v5110
    %5981 = vmatprep.subr.mxu0 0.0
    %5982 = vmatpush1.xpose.msra.mxu0 0.0
    %5983 = vmatprep.subr.mxu0 0.0
    %5984 = vmatpush1.xpose.msra.mxu0 0.0
    %5985 = vmatprep.subr.mxu0 0.0
    %5986 = vmatpush1.xpose.msra.mxu0 0.0
    %5987 = vmatprep.subr.mxu0 0.0
    %5988 = vmatpush1.xpose.msra.mxu0 0.0
    %5989 = vmatprep.subr.mxu0 0.0
    %5990 = vmatpush1.xpose.msra.mxu0 0.0
    %5991 = vmatprep.subr.mxu0 0.0
    %5992 = vmatpush1.xpose.msra.mxu0 0.0
    %5993 = vmatprep.subr.mxu0 0.0
    %5994 = vmatpush1.xpose.msra.mxu0 0.0
    %5995 = vmatprep.subr.mxu0 0.0
    %5996 = vmatpush1.xpose.msra.mxu0 0.0
    %5997 = vmatprep.subr.mxu0 0.0
    %5998 = vmatpush1.xpose.msra.mxu0 0.0
    %5999 = vmatprep.subr.mxu0 0.0
    %6000 = vmatpush1.xpose.msra.mxu0 0.0
    %6001 = vmatprep.subr.mxu0 0.0
    %6002 = vmatpush1.xpose.msra.mxu0 0.0
    %6003 = vmatprep.subr.mxu0 0.0
    %6004 = vmatpush1.xpose.msra.mxu0 0.0
    %6005 = vmatprep.subr.mxu0 0.0
    %6006 = vmatpush1.xpose.msra.mxu0 0.0
    %6007 = vmatprep.subr.mxu0 0.0
    %6008 = vmatpush1.xpose.msra.mxu0 0.0
    %6009 = vmatprep.subr.mxu0 0.0
    %6010 = vmatpush1.xpose.msra.mxu0 0.0
    %6011 = vmatprep.subr.mxu0 0.0
    %6012 = vmatpush1.xpose.msra.mxu0 0.0
    %6013 = vmatprep.subr.mxu0 0.0
    %6014 = vmatpush1.xpose.msra.mxu0 0.0
    %6015 = vmatprep.subr.mxu0 0.0
    %6016 = vmatpush1.xpose.msra.mxu0 0.0
    %6017 = vmatprep.subr.mxu0 0.0
    %6018 = vmatpush1.xpose.msra.mxu0 0.0
    %6019 = vmatprep.subr.mxu0 0.0
    %6020 = vmatpush1.xpose.msra.mxu0 0.0
    %6021 = vmatprep.subr.mxu0 0.0
    %6022 = vmatpush1.xpose.msra.mxu0 0.0
    %6023 = vmatprep.subr.mxu0 0.0
    %6024 = vmatpush1.xpose.msra.mxu0 0.0
    %6025 = vmatprep.subr.mxu0 0.0
    %6026 = vmatpush1.xpose.msra.mxu0 0.0
    %6027 = vmatprep.subr.mxu0 0.0
    %6028 = vmatpush1.xpose.msra.mxu0 0.0
    %6029 = vmatprep.mubr.f32.mxu0 %v4479
    %6030 = vmatmul.mubr.f32.gmra.mrb[0].mxu0 %v4478
    %v6031 = vpop.f32.mrb[0].mxu0
    %v6032 = vadd.f32 %v5962, %v6031
    %v6033 = vpop.f32.mrb[0].mxu0
    %6034 = vdwg.mxu0
    %6035 = vmatprep.subr.mxu0 %v4560
    %6036 = vmatpush1.xpose.msra.mxu0 %v4559
    %6037 = vmatprep.subr.mxu0 %v4639
    %6038 = vmatpush1.xpose.msra.mxu0 %v4638
    %6039 = vmatprep.subr.mxu0 %v4718
    %6040 = vmatpush1.xpose.msra.mxu0 %v4717
    %6041 = vmatprep.subr.mxu0 %v4797
    %6042 = vmatpush1.xpose.msra.mxu0 %v4796
    %6043 = vmatprep.subr.mxu0 %v4876
    %6044 = vmatpush1.xpose.msra.mxu0 %v4875
    %6045 = vmatprep.subr.mxu0 %v4955
    %6046 = vmatpush1.xpose.msra.mxu0 %v4954
    %6047 = vmatprep.subr.mxu0 %v5034
    %6048 = vmatpush1.xpose.msra.mxu0 %v5033
    %6049 = vmatprep.subr.mxu0 %v5113
    %6050 = vmatpush1.xpose.msra.mxu0 %v5112
    %6051 = vmatprep.subr.mxu0 0.0
    %6052 = vmatpush1.xpose.msra.mxu0 0.0
    %6053 = vmatprep.subr.mxu0 0.0
    %6054 = vmatpush1.xpose.msra.mxu0 0.0
    %6055 = vmatprep.subr.mxu0 0.0
    %6056 = vmatpush1.xpose.msra.mxu0 0.0
    %6057 = vmatprep.subr.mxu0 0.0
    %6058 = vmatpush1.xpose.msra.mxu0 0.0
    %6059 = vmatprep.subr.mxu0 0.0
    %6060 = vmatpush1.xpose.msra.mxu0 0.0
    %6061 = vmatprep.subr.mxu0 0.0
    %6062 = vmatpush1.xpose.msra.mxu0 0.0
    %6063 = vmatprep.subr.mxu0 0.0
    %6064 = vmatpush1.xpose.msra.mxu0 0.0
    %6065 = vmatprep.subr.mxu0 0.0
    %6066 = vmatpush1.xpose.msra.mxu0 0.0
    %6067 = vmatprep.subr.mxu0 0.0
    %6068 = vmatpush1.xpose.msra.mxu0 0.0
    %6069 = vmatprep.subr.mxu0 0.0
    %6070 = vmatpush1.xpose.msra.mxu0 0.0
    %6071 = vmatprep.subr.mxu0 0.0
    %6072 = vmatpush1.xpose.msra.mxu0 0.0
    %6073 = vmatprep.subr.mxu0 0.0
    %6074 = vmatpush1.xpose.msra.mxu0 0.0
    %6075 = vmatprep.subr.mxu0 0.0
    %6076 = vmatpush1.xpose.msra.mxu0 0.0
    %6077 = vmatprep.subr.mxu0 0.0
    %6078 = vmatpush1.xpose.msra.mxu0 0.0
    %6079 = vmatprep.subr.mxu0 0.0
    %6080 = vmatpush1.xpose.msra.mxu0 0.0
    %6081 = vmatprep.subr.mxu0 0.0
    %6082 = vmatpush1.xpose.msra.mxu0 0.0
    %6083 = vmatprep.subr.mxu0 0.0
    %6084 = vmatpush1.xpose.msra.mxu0 0.0
    %6085 = vmatprep.subr.mxu0 0.0
    %6086 = vmatpush1.xpose.msra.mxu0 0.0
    %6087 = vmatprep.subr.mxu0 0.0
    %6088 = vmatpush1.xpose.msra.mxu0 0.0
    %6089 = vmatprep.subr.mxu0 0.0
    %6090 = vmatpush1.xpose.msra.mxu0 0.0
    %6091 = vmatprep.subr.mxu0 0.0
    %6092 = vmatpush1.xpose.msra.mxu0 0.0
    %6093 = vmatprep.subr.mxu0 0.0
    %6094 = vmatpush1.xpose.msra.mxu0 0.0
    %6095 = vmatprep.subr.mxu0 0.0
    %6096 = vmatpush1.xpose.msra.mxu0 0.0
    %6097 = vmatprep.subr.mxu0 0.0
    %6098 = vmatpush1.xpose.msra.mxu0 0.0
    %6099 = vmatprep.mubr.f32.mxu0 %v4481
    %6100 = vmatmul.mubr.f32.gmra.mrb[0].mxu0 %v4480
    %v6101 = vpop.f32.mrb[0].mxu0
    %v6102 = vadd.f32 %v6032, %v6101
    %v6103 = vpop.f32.mrb[0].mxu0
    %6104 = vdwg.mxu0
    %6105 = vmatprep.subr.mxu0 %v4562
    %6106 = vmatpush1.xpose.msra.mxu0 %v4561
    %6107 = vmatprep.subr.mxu0 %v4641
    %6108 = vmatpush1.xpose.msra.mxu0 %v4640
    %6109 = vmatprep.subr.mxu0 %v4720
    %6110 = vmatpush1.xpose.msra.mxu0 %v4719
    %6111 = vmatprep.subr.mxu0 %v4799
    %6112 = vmatpush1.xpose.msra.mxu0 %v4798
    %6113 = vmatprep.subr.mxu0 %v4878
    %6114 = vmatpush1.xpose.msra.mxu0 %v4877
    %6115 = vmatprep.subr.mxu0 %v4957
    %6116 = vmatpush1.xpose.msra.mxu0 %v4956
    %6117 = vmatprep.subr.mxu0 %v5036
    %6118 = vmatpush1.xpose.msra.mxu0 %v5035
    %6119 = vmatprep.subr.mxu0 %v5115
    %6120 = vmatpush1.xpose.msra.mxu0 %v5114
    %6121 = vmatprep.subr.mxu0 0.0
    %6122 = vmatpush1.xpose.msra.mxu0 0.0
    %6123 = vmatprep.subr.mxu0 0.0
    %6124 = vmatpush1.xpose.msra.mxu0 0.0
    %6125 = vmatprep.subr.mxu0 0.0
    %6126 = vmatpush1.xpose.msra.mxu0 0.0
    %6127 = vmatprep.subr.mxu0 0.0
    %6128 = vmatpush1.xpose.msra.mxu0 0.0
    %6129 = vmatprep.subr.mxu0 0.0
    %6130 = vmatpush1.xpose.msra.mxu0 0.0
    %6131 = vmatprep.subr.mxu0 0.0
    %6132 = vmatpush1.xpose.msra.mxu0 0.0
    %6133 = vmatprep.subr.mxu0 0.0
    %6134 = vmatpush1.xpose.msra.mxu0 0.0
    %6135 = vmatprep.subr.mxu0 0.0
    %6136 = vmatpush1.xpose.msra.mxu0 0.0
    %6137 = vmatprep.subr.mxu0 0.0
    %6138 = vmatpush1.xpose.msra.mxu0 0.0
    %6139 = vmatprep.subr.mxu0 0.0
    %6140 = vmatpush1.xpose.msra.mxu0 0.0
    %6141 = vmatprep.subr.mxu0 0.0
    %6142 = vmatpush1.xpose.msra.mxu0 0.0
    %6143 = vmatprep.subr.mxu0 0.0
    %6144 = vmatpush1.xpose.msra.mxu0 0.0
    %6145 = vmatprep.subr.mxu0 0.0
    %6146 = vmatpush1.xpose.msra.mxu0 0.0
    %6147 = vmatprep.subr.mxu0 0.0
    %6148 = vmatpush1.xpose.msra.mxu0 0.0
    %6149 = vmatprep.subr.mxu0 0.0
    %6150 = vmatpush1.xpose.msra.mxu0 0.0
    %6151 = vmatprep.subr.mxu0 0.0
    %6152 = vmatpush1.xpose.msra.mxu0 0.0
    %6153 = vmatprep.subr.mxu0 0.0
    %6154 = vmatpush1.xpose.msra.mxu0 0.0
    %6155 = vmatprep.subr.mxu0 0.0
    %6156 = vmatpush1.xpose.msra.mxu0 0.0
    %6157 = vmatprep.subr.mxu0 0.0
    %6158 = vmatpush1.xpose.msra.mxu0 0.0
    %6159 = vmatprep.subr.mxu0 0.0
    %6160 = vmatpush1.xpose.msra.mxu0 0.0
    %6161 = vmatprep.subr.mxu0 0.0
    %6162 = vmatpush1.xpose.msra.mxu0 0.0
    %6163 = vmatprep.subr.mxu0 0.0
    %6164 = vmatpush1.xpose.msra.mxu0 0.0
    %6165 = vmatprep.subr.mxu0 0.0
    %6166 = vmatpush1.xpose.msra.mxu0 0.0
    %6167 = vmatprep.subr.mxu0 0.0
    %6168 = vmatpush1.xpose.msra.mxu0 0.0
    %6169 = vmatprep.mubr.f32.mxu0 %v4483
    %6170 = vmatmul.mubr.f32.gmra.mrb[0].mxu0 %v4482
    %v6171 = vpop.f32.mrb[0].mxu0
    %v6172 = vadd.f32 %v6102, %v6171
    %v6173 = vpop.f32.mrb[0].mxu0
    %6174 = vdwg.mxu0
    %6175 = vmatprep.subr.mxu0 %v4564
    %6176 = vmatpush1.xpose.msra.mxu0 %v4563
    %6177 = vmatprep.subr.mxu0 %v4643
    %6178 = vmatpush1.xpose.msra.mxu0 %v4642
    %6179 = vmatprep.subr.mxu0 %v4722
    %6180 = vmatpush1.xpose.msra.mxu0 %v4721
    %6181 = vmatprep.subr.mxu0 %v4801
    %6182 = vmatpush1.xpose.msra.mxu0 %v4800
    %6183 = vmatprep.subr.mxu0 %v4880
    %6184 = vmatpush1.xpose.msra.mxu0 %v4879
    %6185 = vmatprep.subr.mxu0 %v4959
    %6186 = vmatpush1.xpose.msra.mxu0 %v4958
    %6187 = vmatprep.subr.mxu0 %v5038
    %6188 = vmatpush1.xpose.msra.mxu0 %v5037
    %6189 = vmatprep.subr.mxu0 %v5117
    %6190 = vmatpush1.xpose.msra.mxu0 %v5116
    %6191 = vmatprep.subr.mxu0 0.0
    %6192 = vmatpush1.xpose.msra.mxu0 0.0
    %6193 = vmatprep.subr.mxu0 0.0
    %6194 = vmatpush1.xpose.msra.mxu0 0.0
    %6195 = vmatprep.subr.mxu0 0.0
    %6196 = vmatpush1.xpose.msra.mxu0 0.0
    %6197 = vmatprep.subr.mxu0 0.0
    %6198 = vmatpush1.xpose.msra.mxu0 0.0
    %6199 = vmatprep.subr.mxu0 0.0
    %6200 = vmatpush1.xpose.msra.mxu0 0.0
    %6201 = vmatprep.subr.mxu0 0.0
    %6202 = vmatpush1.xpose.msra.mxu0 0.0
    %6203 = vmatprep.subr.mxu0 0.0
    %6204 = vmatpush1.xpose.msra.mxu0 0.0
    %6205 = vmatprep.subr.mxu0 0.0
    %6206 = vmatpush1.xpose.msra.mxu0 0.0
    %6207 = vmatprep.subr.mxu0 0.0
    %6208 = vmatpush1.xpose.msra.mxu0 0.0
    %6209 = vmatprep.subr.mxu0 0.0
    %6210 = vmatpush1.xpose.msra.mxu0 0.0
    %6211 = vmatprep.subr.mxu0 0.0
    %6212 = vmatpush1.xpose.msra.mxu0 0.0
    %6213 = vmatprep.subr.mxu0 0.0
    %6214 = vmatpush1.xpose.msra.mxu0 0.0
    %6215 = vmatprep.subr.mxu0 0.0
    %6216 = vmatpush1.xpose.msra.mxu0 0.0
    %6217 = vmatprep.subr.mxu0 0.0
    %6218 = vmatpush1.xpose.msra.mxu0 0.0
    %6219 = vmatprep.subr.mxu0 0.0
    %6220 = vmatpush1.xpose.msra.mxu0 0.0
    %6221 = vmatprep.subr.mxu0 0.0
    %6222 = vmatpush1.xpose.msra.mxu0 0.0
    %6223 = vmatprep.subr.mxu0 0.0
    %6224 = vmatpush1.xpose.msra.mxu0 0.0
    %6225 = vmatprep.subr.mxu0 0.0
    %6226 = vmatpush1.xpose.msra.mxu0 0.0
    %6227 = vmatprep.subr.mxu0 0.0
    %6228 = vmatpush1.xpose.msra.mxu0 0.0
    %6229 = vmatprep.subr.mxu0 0.0
    %6230 = vmatpush1.xpose.msra.mxu0 0.0
    %6231 = vmatprep.subr.mxu0 0.0
    %6232 = vmatpush1.xpose.msra.mxu0 0.0
    %6233 = vmatprep.subr.mxu0 0.0
    %6234 = vmatpush1.xpose.msra.mxu0 0.0
    %6235 = vmatprep.subr.mxu0 0.0
    %6236 = vmatpush1.xpose.msra.mxu0 0.0
    %6237 = vmatprep.subr.mxu0 0.0
    %6238 = vmatpush1.xpose.msra.mxu0 0.0
    %6239 = vmatprep.mubr.f32.mxu0 %v4485
    %6240 = vmatmul.mubr.f32.gmra.mrb[0].mxu0 %v4484
    %v6241 = vpop.f32.mrb[0].mxu0
    %v6242 = vadd.f32 %v6172, %v6241
    %v6243 = vpop.f32.mrb[0].mxu0
    %6244 = vdwg.mxu0
    %6245 = vmatprep.subr.mxu0 %v4566
    %6246 = vmatpush1.xpose.msra.mxu0 %v4565
    %6247 = vmatprep.subr.mxu0 %v4645
    %6248 = vmatpush1.xpose.msra.mxu0 %v4644
    %6249 = vmatprep.subr.mxu0 %v4724
    %6250 = vmatpush1.xpose.msra.mxu0 %v4723
    %6251 = vmatprep.subr.mxu0 %v4803
    %6252 = vmatpush1.xpose.msra.mxu0 %v4802
    %6253 = vmatprep.subr.mxu0 %v4882
    %6254 = vmatpush1.xpose.msra.mxu0 %v4881
    %6255 = vmatprep.subr.mxu0 %v4961
    %6256 = vmatpush1.xpose.msra.mxu0 %v4960
    %6257 = vmatprep.subr.mxu0 %v5040
    %6258 = vmatpush1.xpose.msra.mxu0 %v5039
    %6259 = vmatprep.subr.mxu0 %v5119
    %6260 = vmatpush1.xpose.msra.mxu0 %v5118
    %6261 = vmatprep.subr.mxu0 0.0
    %6262 = vmatpush1.xpose.msra.mxu0 0.0
    %6263 = vmatprep.subr.mxu0 0.0
    %6264 = vmatpush1.xpose.msra.mxu0 0.0
    %6265 = vmatprep.subr.mxu0 0.0
    %6266 = vmatpush1.xpose.msra.mxu0 0.0
    %6267 = vmatprep.subr.mxu0 0.0
    %6268 = vmatpush1.xpose.msra.mxu0 0.0
    %6269 = vmatprep.subr.mxu0 0.0
    %6270 = vmatpush1.xpose.msra.mxu0 0.0
    %6271 = vmatprep.subr.mxu0 0.0
    %6272 = vmatpush1.xpose.msra.mxu0 0.0
    %6273 = vmatprep.subr.mxu0 0.0
    %6274 = vmatpush1.xpose.msra.mxu0 0.0
    %6275 = vmatprep.subr.mxu0 0.0
    %6276 = vmatpush1.xpose.msra.mxu0 0.0
    %6277 = vmatprep.subr.mxu0 0.0
    %6278 = vmatpush1.xpose.msra.mxu0 0.0
    %6279 = vmatprep.subr.mxu0 0.0
    %6280 = vmatpush1.xpose.msra.mxu0 0.0
    %6281 = vmatprep.subr.mxu0 0.0
    %6282 = vmatpush1.xpose.msra.mxu0 0.0
    %6283 = vmatprep.subr.mxu0 0.0
    %6284 = vmatpush1.xpose.msra.mxu0 0.0
    %6285 = vmatprep.subr.mxu0 0.0
    %6286 = vmatpush1.xpose.msra.mxu0 0.0
    %6287 = vmatprep.subr.mxu0 0.0
    %6288 = vmatpush1.xpose.msra.mxu0 0.0
    %6289 = vmatprep.subr.mxu0 0.0
    %6290 = vmatpush1.xpose.msra.mxu0 0.0
    %6291 = vmatprep.subr.mxu0 0.0
    %6292 = vmatpush1.xpose.msra.mxu0 0.0
    %6293 = vmatprep.subr.mxu0 0.0
    %6294 = vmatpush1.xpose.msra.mxu0 0.0
    %6295 = vmatprep.subr.mxu0 0.0
    %6296 = vmatpush1.xpose.msra.mxu0 0.0
    %6297 = vmatprep.subr.mxu0 0.0
    %6298 = vmatpush1.xpose.msra.mxu0 0.0
    %6299 = vmatprep.subr.mxu0 0.0
    %6300 = vmatpush1.xpose.msra.mxu0 0.0
    %6301 = vmatprep.subr.mxu0 0.0
    %6302 = vmatpush1.xpose.msra.mxu0 0.0
    %6303 = vmatprep.subr.mxu0 0.0
    %6304 = vmatpush1.xpose.msra.mxu0 0.0
    %6305 = vmatprep.subr.mxu0 0.0
    %6306 = vmatpush1.xpose.msra.mxu0 0.0
    %6307 = vmatprep.subr.mxu0 0.0
    %6308 = vmatpush1.xpose.msra.mxu0 0.0
    %6309 = vmatprep.mubr.f32.mxu0 %v4487
    %6310 = vmatmul.mubr.f32.gmra.mrb[0].mxu0 %v4486
    %v6311 = vpop.f32.mrb[0].mxu0
    %v6312 = vadd.f32 %v6242, %v6311
    %v6313 = vpop.f32.mrb[0].mxu0
    %6314 = vdwg.mxu0
    %6315 = vmatprep.subr.mxu0 %v4568
    %6316 = vmatpush1.xpose.msra.mxu0 %v4567
    %6317 = vmatprep.subr.mxu0 %v4647
    %6318 = vmatpush1.xpose.msra.mxu0 %v4646
    %6319 = vmatprep.subr.mxu0 %v4726
    %6320 = vmatpush1.xpose.msra.mxu0 %v4725
    %6321 = vmatprep.subr.mxu0 %v4805
    %6322 = vmatpush1.xpose.msra.mxu0 %v4804
    %6323 = vmatprep.subr.mxu0 %v4884
    %6324 = vmatpush1.xpose.msra.mxu0 %v4883
    %6325 = vmatprep.subr.mxu0 %v4963
    %6326 = vmatpush1.xpose.msra.mxu0 %v4962
    %6327 = vmatprep.subr.mxu0 %v5042
    %6328 = vmatpush1.xpose.msra.mxu0 %v5041
    %6329 = vmatprep.subr.mxu0 %v5121
    %6330 = vmatpush1.xpose.msra.mxu0 %v5120
    %6331 = vmatprep.subr.mxu0 0.0
    %6332 = vmatpush1.xpose.msra.mxu0 0.0
    %6333 = vmatprep.subr.mxu0 0.0
    %6334 = vmatpush1.xpose.msra.mxu0 0.0
    %6335 = vmatprep.subr.mxu0 0.0
    %6336 = vmatpush1.xpose.msra.mxu0 0.0
    %6337 = vmatprep.subr.mxu0 0.0
    %6338 = vmatpush1.xpose.msra.mxu0 0.0
    %6339 = vmatprep.subr.mxu0 0.0
    %6340 = vmatpush1.xpose.msra.mxu0 0.0
    %6341 = vmatprep.subr.mxu0 0.0
    %6342 = vmatpush1.xpose.msra.mxu0 0.0
    %6343 = vmatprep.subr.mxu0 0.0
    %6344 = vmatpush1.xpose.msra.mxu0 0.0
    %6345 = vmatprep.subr.mxu0 0.0
    %6346 = vmatpush1.xpose.msra.mxu0 0.0
    %6347 = vmatprep.subr.mxu0 0.0
    %6348 = vmatpush1.xpose.msra.mxu0 0.0
    %6349 = vmatprep.subr.mxu0 0.0
    %6350 = vmatpush1.xpose.msra.mxu0 0.0
    %6351 = vmatprep.subr.mxu0 0.0
    %6352 = vmatpush1.xpose.msra.mxu0 0.0
    %6353 = vmatprep.subr.mxu0 0.0
    %6354 = vmatpush1.xpose.msra.mxu0 0.0
    %6355 = vmatprep.subr.mxu0 0.0
    %6356 = vmatpush1.xpose.msra.mxu0 0.0
    %6357 = vmatprep.subr.mxu0 0.0
    %6358 = vmatpush1.xpose.msra.mxu0 0.0
    %6359 = vmatprep.subr.mxu0 0.0
    %6360 = vmatpush1.xpose.msra.mxu0 0.0
    %6361 = vmatprep.subr.mxu0 0.0
    %6362 = vmatpush1.xpose.msra.mxu0 0.0
    %6363 = vmatprep.subr.mxu0 0.0
    %6364 = vmatpush1.xpose.msra.mxu0 0.0
    %6365 = vmatprep.subr.mxu0 0.0
    %6366 = vmatpush1.xpose.msra.mxu0 0.0
    %6367 = vmatprep.subr.mxu0 0.0
    %6368 = vmatpush1.xpose.msra.mxu0 0.0
    %6369 = vmatprep.subr.mxu0 0.0
    %6370 = vmatpush1.xpose.msra.mxu0 0.0
    %6371 = vmatprep.subr.mxu0 0.0
    %6372 = vmatpush1.xpose.msra.mxu0 0.0
    %6373 = vmatprep.subr.mxu0 0.0
    %6374 = vmatpush1.xpose.msra.mxu0 0.0
    %6375 = vmatprep.subr.mxu0 0.0
    %6376 = vmatpush1.xpose.msra.mxu0 0.0
    %6377 = vmatprep.subr.mxu0 0.0
    %6378 = vmatpush1.xpose.msra.mxu0 0.0
    %6379 = vmatprep.mubr.f32.mxu0 %v4489
    %6380 = vmatmul.mubr.f32.gmra.mrb[0].mxu0 %v4488
    %v6381 = vpop.f32.mrb[0].mxu0
    %v6382 = vadd.f32 %v6312, %v6381
    %v6383 = vpop.f32.mrb[0].mxu0
    %6384 = vdwg.mxu0
    %6385 = vmatprep.subr.mxu0 %v4570
    %6386 = vmatpush1.xpose.msra.mxu0 %v4569
    %6387 = vmatprep.subr.mxu0 %v4649
    %6388 = vmatpush1.xpose.msra.mxu0 %v4648
    %6389 = vmatprep.subr.mxu0 %v4728
    %6390 = vmatpush1.xpose.msra.mxu0 %v4727
    %6391 = vmatprep.subr.mxu0 %v4807
    %6392 = vmatpush1.xpose.msra.mxu0 %v4806
    %6393 = vmatprep.subr.mxu0 %v4886
    %6394 = vmatpush1.xpose.msra.mxu0 %v4885
    %6395 = vmatprep.subr.mxu0 %v4965
    %6396 = vmatpush1.xpose.msra.mxu0 %v4964
    %6397 = vmatprep.subr.mxu0 %v5044
    %6398 = vmatpush1.xpose.msra.mxu0 %v5043
    %6399 = vmatprep.subr.mxu0 %v5123
    %6400 = vmatpush1.xpose.msra.mxu0 %v5122
    %6401 = vmatprep.subr.mxu0 0.0
    %6402 = vmatpush1.xpose.msra.mxu0 0.0
    %6403 = vmatprep.subr.mxu0 0.0
    %6404 = vmatpush1.xpose.msra.mxu0 0.0
    %6405 = vmatprep.subr.mxu0 0.0
    %6406 = vmatpush1.xpose.msra.mxu0 0.0
    %6407 = vmatprep.subr.mxu0 0.0
    %6408 = vmatpush1.xpose.msra.mxu0 0.0
    %6409 = vmatprep.subr.mxu0 0.0
    %6410 = vmatpush1.xpose.msra.mxu0 0.0
    %6411 = vmatprep.subr.mxu0 0.0
    %6412 = vmatpush1.xpose.msra.mxu0 0.0
    %6413 = vmatprep.subr.mxu0 0.0
    %6414 = vmatpush1.xpose.msra.mxu0 0.0
    %6415 = vmatprep.subr.mxu0 0.0
    %6416 = vmatpush1.xpose.msra.mxu0 0.0
    %6417 = vmatprep.subr.mxu0 0.0
    %6418 = vmatpush1.xpose.msra.mxu0 0.0
    %6419 = vmatprep.subr.mxu0 0.0
    %6420 = vmatpush1.xpose.msra.mxu0 0.0
    %6421 = vmatprep.subr.mxu0 0.0
    %6422 = vmatpush1.xpose.msra.mxu0 0.0
    %6423 = vmatprep.subr.mxu0 0.0
    %6424 = vmatpush1.xpose.msra.mxu0 0.0
    %6425 = vmatprep.subr.mxu0 0.0
    %6426 = vmatpush1.xpose.msra.mxu0 0.0
    %6427 = vmatprep.subr.mxu0 0.0
    %6428 = vmatpush1.xpose.msra.mxu0 0.0
    %6429 = vmatprep.subr.mxu0 0.0
    %6430 = vmatpush1.xpose.msra.mxu0 0.0
    %6431 = vmatprep.subr.mxu0 0.0
    %6432 = vmatpush1.xpose.msra.mxu0 0.0
    %6433 = vmatprep.subr.mxu0 0.0
    %6434 = vmatpush1.xpose.msra.mxu0 0.0
    %6435 = vmatprep.subr.mxu0 0.0
    %6436 = vmatpush1.xpose.msra.mxu0 0.0
    %6437 = vmatprep.subr.mxu0 0.0
    %6438 = vmatpush1.xpose.msra.mxu0 0.0
    %6439 = vmatprep.subr.mxu0 0.0
    %6440 = vmatpush1.xpose.msra.mxu0 0.0
    %6441 = vmatprep.subr.mxu0 0.0
    %6442 = vmatpush1.xpose.msra.mxu0 0.0
    %6443 = vmatprep.subr.mxu0 0.0
    %6444 = vmatpush1.xpose.msra.mxu0 0.0
    %6445 = vmatprep.subr.mxu0 0.0
    %6446 = vmatpush1.xpose.msra.mxu0 0.0
    %6447 = vmatprep.subr.mxu0 0.0
    %6448 = vmatpush1.xpose.msra.mxu0 0.0
    %6449 = vmatprep.mubr.f32.mxu0 %v4491
    %6450 = vmatmul.mubr.f32.gmra.mrb[0].mxu0 %v4490
    %v6451 = vpop.f32.mrb[0].mxu0
    %v6452 = vadd.f32 %v6382, %v6451
    %v6453 = vpop.f32.mrb[0].mxu0
    %6454 = vdwg.mxu0
    %6455 = vmatprep.subr.mxu0 %v4572
    %6456 = vmatpush1.xpose.msra.mxu0 %v4571
    %6457 = vmatprep.subr.mxu0 %v4651
    %6458 = vmatpush1.xpose.msra.mxu0 %v4650
    %6459 = vmatprep.subr.mxu0 %v4730
    %6460 = vmatpush1.xpose.msra.mxu0 %v4729
    %6461 = vmatprep.subr.mxu0 %v4809
    %6462 = vmatpush1.xpose.msra.mxu0 %v4808
    %6463 = vmatprep.subr.mxu0 %v4888
    %6464 = vmatpush1.xpose.msra.mxu0 %v4887
    %6465 = vmatprep.subr.mxu0 %v4967
    %6466 = vmatpush1.xpose.msra.mxu0 %v4966
    %6467 = vmatprep.subr.mxu0 %v5046
    %6468 = vmatpush1.xpose.msra.mxu0 %v5045
    %6469 = vmatprep.subr.mxu0 %v5125
    %6470 = vmatpush1.xpose.msra.mxu0 %v5124
    %6471 = vmatprep.subr.mxu0 0.0
    %6472 = vmatpush1.xpose.msra.mxu0 0.0
    %6473 = vmatprep.subr.mxu0 0.0
    %6474 = vmatpush1.xpose.msra.mxu0 0.0
    %6475 = vmatprep.subr.mxu0 0.0
    %6476 = vmatpush1.xpose.msra.mxu0 0.0
    %6477 = vmatprep.subr.mxu0 0.0
    %6478 = vmatpush1.xpose.msra.mxu0 0.0
    %6479 = vmatprep.subr.mxu0 0.0
    %6480 = vmatpush1.xpose.msra.mxu0 0.0
    %6481 = vmatprep.subr.mxu0 0.0
    %6482 = vmatpush1.xpose.msra.mxu0 0.0
    %6483 = vmatprep.subr.mxu0 0.0
    %6484 = vmatpush1.xpose.msra.mxu0 0.0
    %6485 = vmatprep.subr.mxu0 0.0
    %6486 = vmatpush1.xpose.msra.mxu0 0.0
    %6487 = vmatprep.subr.mxu0 0.0
    %6488 = vmatpush1.xpose.msra.mxu0 0.0
    %6489 = vmatprep.subr.mxu0 0.0
    %6490 = vmatpush1.xpose.msra.mxu0 0.0
    %6491 = vmatprep.subr.mxu0 0.0
    %6492 = vmatpush1.xpose.msra.mxu0 0.0
    %6493 = vmatprep.subr.mxu0 0.0
    %6494 = vmatpush1.xpose.msra.mxu0 0.0
    %6495 = vmatprep.subr.mxu0 0.0
    %6496 = vmatpush1.xpose.msra.mxu0 0.0
    %6497 = vmatprep.subr.mxu0 0.0
    %6498 = vmatpush1.xpose.msra.mxu0 0.0
    %6499 = vmatprep.subr.mxu0 0.0
    %6500 = vmatpush1.xpose.msra.mxu0 0.0
    %6501 = vmatprep.subr.mxu0 0.0
    %6502 = vmatpush1.xpose.msra.mxu0 0.0
    %6503 = vmatprep.subr.mxu0 0.0
    %6504 = vmatpush1.xpose.msra.mxu0 0.0
    %6505 = vmatprep.subr.mxu0 0.0
    %6506 = vmatpush1.xpose.msra.mxu0 0.0
    %6507 = vmatprep.subr.mxu0 0.0
    %6508 = vmatpush1.xpose.msra.mxu0 0.0
    %6509 = vmatprep.subr.mxu0 0.0
    %6510 = vmatpush1.xpose.msra.mxu0 0.0
    %6511 = vmatprep.subr.mxu0 0.0
    %6512 = vmatpush1.xpose.msra.mxu0 0.0
    %6513 = vmatprep.subr.mxu0 0.0
    %6514 = vmatpush1.xpose.msra.mxu0 0.0
    %6515 = vmatprep.subr.mxu0 0.0
    %6516 = vmatpush1.xpose.msra.mxu0 0.0
    %6517 = vmatprep.subr.mxu0 0.0
    %6518 = vmatpush1.xpose.msra.mxu0 0.0
    %6519 = vmatprep.mubr.f32.mxu0 %v4493
    %6520 = vmatmul.mubr.f32.gmra.mrb[0].mxu0 %v4492
    %v6521 = vpop.f32.mrb[0].mxu0
    %v6522 = vadd.f32 %v6452, %v6521
    %v6523 = vpop.f32.mrb[0].mxu0
    %6524 = vdwg.mxu0
    %6525 = vmatprep.subr.mxu0 %v4574
    %6526 = vmatpush1.xpose.msra.mxu0 %v4573
    %6527 = vmatprep.subr.mxu0 %v4653
    %6528 = vmatpush1.xpose.msra.mxu0 %v4652
    %6529 = vmatprep.subr.mxu0 %v4732
    %6530 = vmatpush1.xpose.msra.mxu0 %v4731
    %6531 = vmatprep.subr.mxu0 %v4811
    %6532 = vmatpush1.xpose.msra.mxu0 %v4810
    %6533 = vmatprep.subr.mxu0 %v4890
    %6534 = vmatpush1.xpose.msra.mxu0 %v4889
    %6535 = vmatprep.subr.mxu0 %v4969
    %6536 = vmatpush1.xpose.msra.mxu0 %v4968
    %6537 = vmatprep.subr.mxu0 %v5048
    %6538 = vmatpush1.xpose.msra.mxu0 %v5047
    %6539 = vmatprep.subr.mxu0 %v5127
    %6540 = vmatpush1.xpose.msra.mxu0 %v5126
    %6541 = vmatprep.subr.mxu0 0.0
    %6542 = vmatpush1.xpose.msra.mxu0 0.0
    %6543 = vmatprep.subr.mxu0 0.0
    %6544 = vmatpush1.xpose.msra.mxu0 0.0
    %6545 = vmatprep.subr.mxu0 0.0
    %6546 = vmatpush1.xpose.msra.mxu0 0.0
    %6547 = vmatprep.subr.mxu0 0.0
    %6548 = vmatpush1.xpose.msra.mxu0 0.0
    %6549 = vmatprep.subr.mxu0 0.0
    %6550 = vmatpush1.xpose.msra.mxu0 0.0
    %6551 = vmatprep.subr.mxu0 0.0
    %6552 = vmatpush1.xpose.msra.mxu0 0.0
    %6553 = vmatprep.subr.mxu0 0.0
    %6554 = vmatpush1.xpose.msra.mxu0 0.0
    %6555 = vmatprep.subr.mxu0 0.0
    %6556 = vmatpush1.xpose.msra.mxu0 0.0
    %6557 = vmatprep.subr.mxu0 0.0
    %6558 = vmatpush1.xpose.msra.mxu0 0.0
    %6559 = vmatprep.subr.mxu0 0.0
    %6560 = vmatpush1.xpose.msra.mxu0 0.0
    %6561 = vmatprep.subr.mxu0 0.0
    %6562 = vmatpush1.xpose.msra.mxu0 0.0
    %6563 = vmatprep.subr.mxu0 0.0
    %6564 = vmatpush1.xpose.msra.mxu0 0.0
    %6565 = vmatprep.subr.mxu0 0.0
    %6566 = vmatpush1.xpose.msra.mxu0 0.0
    %6567 = vmatprep.subr.mxu0 0.0
    %6568 = vmatpush1.xpose.msra.mxu0 0.0
    %6569 = vmatprep.subr.mxu0 0.0
    %6570 = vmatpush1.xpose.msra.mxu0 0.0
    %6571 = vmatprep.subr.mxu0 0.0
    %6572 = vmatpush1.xpose.msra.mxu0 0.0
    %6573 = vmatprep.subr.mxu0 0.0
    %6574 = vmatpush1.xpose.msra.mxu0 0.0
    %6575 = vmatprep.subr.mxu0 0.0
    %6576 = vmatpush1.xpose.msra.mxu0 0.0
    %6577 = vmatprep.subr.mxu0 0.0
    %6578 = vmatpush1.xpose.msra.mxu0 0.0
    %6579 = vmatprep.subr.mxu0 0.0
    %6580 = vmatpush1.xpose.msra.mxu0 0.0
    %6581 = vmatprep.subr.mxu0 0.0
    %6582 = vmatpush1.xpose.msra.mxu0 0.0
    %6583 = vmatprep.subr.mxu0 0.0
    %6584 = vmatpush1.xpose.msra.mxu0 0.0
    %6585 = vmatprep.subr.mxu0 0.0
    %6586 = vmatpush1.xpose.msra.mxu0 0.0
    %6587 = vmatprep.subr.mxu0 0.0
    %6588 = vmatpush1.xpose.msra.mxu0 0.0
    %6589 = vmatprep.mubr.f32.mxu0 %v4495
    %6590 = vmatmul.mubr.f32.gmra.mrb[0].mxu0 %v4494
    %v6591 = vpop.f32.mrb[0].mxu0
    %v6592 = vadd.f32 %v6522, %v6591
    %v6593 = vpop.f32.mrb[0].mxu0
    %6594 = vdwg.mxu0
    %6595 = vmatprep.subr.mxu0 %v4576
    %6596 = vmatpush1.xpose.msra.mxu0 %v4575
    %6597 = vmatprep.subr.mxu0 %v4655
    %6598 = vmatpush1.xpose.msra.mxu0 %v4654
    %6599 = vmatprep.subr.mxu0 %v4734
    %6600 = vmatpush1.xpose.msra.mxu0 %v4733
    %6601 = vmatprep.subr.mxu0 %v4813
    %6602 = vmatpush1.xpose.msra.mxu0 %v4812
    %6603 = vmatprep.subr.mxu0 %v4892
    %6604 = vmatpush1.xpose.msra.mxu0 %v4891
    %6605 = vmatprep.subr.mxu0 %v4971
    %6606 = vmatpush1.xpose.msra.mxu0 %v4970
    %6607 = vmatprep.subr.mxu0 %v5050
    %6608 = vmatpush1.xpose.msra.mxu0 %v5049
    %6609 = vmatprep.subr.mxu0 %v5129
    %6610 = vmatpush1.xpose.msra.mxu0 %v5128
    %6611 = vmatprep.subr.mxu0 0.0
    %6612 = vmatpush1.xpose.msra.mxu0 0.0
    %6613 = vmatprep.subr.mxu0 0.0
    %6614 = vmatpush1.xpose.msra.mxu0 0.0
    %6615 = vmatprep.subr.mxu0 0.0
    %6616 = vmatpush1.xpose.msra.mxu0 0.0
    %6617 = vmatprep.subr.mxu0 0.0
    %6618 = vmatpush1.xpose.msra.mxu0 0.0
    %6619 = vmatprep.subr.mxu0 0.0
    %6620 = vmatpush1.xpose.msra.mxu0 0.0
    %6621 = vmatprep.subr.mxu0 0.0
    %6622 = vmatpush1.xpose.msra.mxu0 0.0
    %6623 = vmatprep.subr.mxu0 0.0
    %6624 = vmatpush1.xpose.msra.mxu0 0.0
    %6625 = vmatprep.subr.mxu0 0.0
    %6626 = vmatpush1.xpose.msra.mxu0 0.0
    %6627 = vmatprep.subr.mxu0 0.0
    %6628 = vmatpush1.xpose.msra.mxu0 0.0
    %6629 = vmatprep.subr.mxu0 0.0
    %6630 = vmatpush1.xpose.msra.mxu0 0.0
    %6631 = vmatprep.subr.mxu0 0.0
    %6632 = vmatpush1.xpose.msra.mxu0 0.0
    %6633 = vmatprep.subr.mxu0 0.0
    %6634 = vmatpush1.xpose.msra.mxu0 0.0
    %6635 = vmatprep.subr.mxu0 0.0
    %6636 = vmatpush1.xpose.msra.mxu0 0.0
    %6637 = vmatprep.subr.mxu0 0.0
    %6638 = vmatpush1.xpose.msra.mxu0 0.0
    %6639 = vmatprep.subr.mxu0 0.0
    %6640 = vmatpush1.xpose.msra.mxu0 0.0
    %6641 = vmatprep.subr.mxu0 0.0
    %6642 = vmatpush1.xpose.msra.mxu0 0.0
    %6643 = vmatprep.subr.mxu0 0.0
    %6644 = vmatpush1.xpose.msra.mxu0 0.0
    %6645 = vmatprep.subr.mxu0 0.0
    %6646 = vmatpush1.xpose.msra.mxu0 0.0
    %6647 = vmatprep.subr.mxu0 0.0
    %6648 = vmatpush1.xpose.msra.mxu0 0.0
    %6649 = vmatprep.subr.mxu0 0.0
    %6650 = vmatpush1.xpose.msra.mxu0 0.0
    %6651 = vmatprep.subr.mxu0 0.0
    %6652 = vmatpush1.xpose.msra.mxu0 0.0
    %6653 = vmatprep.subr.mxu0 0.0
    %6654 = vmatpush1.xpose.msra.mxu0 0.0
    %6655 = vmatprep.subr.mxu0 0.0
    %6656 = vmatpush1.xpose.msra.mxu0 0.0
    %6657 = vmatprep.subr.mxu0 0.0
    %6658 = vmatpush1.xpose.msra.mxu0 0.0
    %6659 = vmatprep.mubr.f32.mxu0 %v4497
    %6660 = vmatmul.mubr.f32.gmra.mrb[0].mxu0 %v4496
    %v6661 = vpop.f32.mrb[0].mxu0
    %v6662 = vadd.f32 %v6592, %v6661
    %v6663 = vpop.f32.mrb[0].mxu0
    %6664 = vdwg.mxu0
    %6665 = vmatprep.subr.mxu0 %v4578
    %6666 = vmatpush1.xpose.msra.mxu0 %v4577
    %6667 = vmatprep.subr.mxu0 %v4657
    %6668 = vmatpush1.xpose.msra.mxu0 %v4656
    %6669 = vmatprep.subr.mxu0 %v4736
    %6670 = vmatpush1.xpose.msra.mxu0 %v4735
    %6671 = vmatprep.subr.mxu0 %v4815
    %6672 = vmatpush1.xpose.msra.mxu0 %v4814
    %6673 = vmatprep.subr.mxu0 %v4894
    %6674 = vmatpush1.xpose.msra.mxu0 %v4893
    %6675 = vmatprep.subr.mxu0 %v4973
    %6676 = vmatpush1.xpose.msra.mxu0 %v4972
    %6677 = vmatprep.subr.mxu0 %v5052
    %6678 = vmatpush1.xpose.msra.mxu0 %v5051
    %6679 = vmatprep.subr.mxu0 %v5131
    %6680 = vmatpush1.xpose.msra.mxu0 %v5130
    %6681 = vmatprep.subr.mxu0 0.0
    %6682 = vmatpush1.xpose.msra.mxu0 0.0
    %6683 = vmatprep.subr.mxu0 0.0
    %6684 = vmatpush1.xpose.msra.mxu0 0.0
    %6685 = vmatprep.subr.mxu0 0.0
    %6686 = vmatpush1.xpose.msra.mxu0 0.0
    %6687 = vmatprep.subr.mxu0 0.0
    %6688 = vmatpush1.xpose.msra.mxu0 0.0
    %6689 = vmatprep.subr.mxu0 0.0
    %6690 = vmatpush1.xpose.msra.mxu0 0.0
    %6691 = vmatprep.subr.mxu0 0.0
    %6692 = vmatpush1.xpose.msra.mxu0 0.0
    %6693 = vmatprep.subr.mxu0 0.0
    %6694 = vmatpush1.xpose.msra.mxu0 0.0
    %6695 = vmatprep.subr.mxu0 0.0
    %6696 = vmatpush1.xpose.msra.mxu0 0.0
    %6697 = vmatprep.subr.mxu0 0.0
    %6698 = vmatpush1.xpose.msra.mxu0 0.0
    %6699 = vmatprep.subr.mxu0 0.0
    %6700 = vmatpush1.xpose.msra.mxu0 0.0
    %6701 = vmatprep.subr.mxu0 0.0
    %6702 = vmatpush1.xpose.msra.mxu0 0.0
    %6703 = vmatprep.subr.mxu0 0.0
    %6704 = vmatpush1.xpose.msra.mxu0 0.0
    %6705 = vmatprep.subr.mxu0 0.0
    %6706 = vmatpush1.xpose.msra.mxu0 0.0
    %6707 = vmatprep.subr.mxu0 0.0
    %6708 = vmatpush1.xpose.msra.mxu0 0.0
    %6709 = vmatprep.subr.mxu0 0.0
    %6710 = vmatpush1.xpose.msra.mxu0 0.0
    %6711 = vmatprep.subr.mxu0 0.0
    %6712 = vmatpush1.xpose.msra.mxu0 0.0
    %6713 = vmatprep.subr.mxu0 0.0
    %6714 = vmatpush1.xpose.msra.mxu0 0.0
    %6715 = vmatprep.subr.mxu0 0.0
    %6716 = vmatpush1.xpose.msra.mxu0 0.0
    %6717 = vmatprep.subr.mxu0 0.0
    %6718 = vmatpush1.xpose.msra.mxu0 0.0
    %6719 = vmatprep.subr.mxu0 0.0
    %6720 = vmatpush1.xpose.msra.mxu0 0.0
    %6721 = vmatprep.subr.mxu0 0.0
    %6722 = vmatpush1.xpose.msra.mxu0 0.0
    %6723 = vmatprep.subr.mxu0 0.0
    %6724 = vmatpush1.xpose.msra.mxu0 0.0
    %6725 = vmatprep.subr.mxu0 0.0
    %6726 = vmatpush1.xpose.msra.mxu0 0.0
    %6727 = vmatprep.subr.mxu0 0.0
    %6728 = vmatpush1.xpose.msra.mxu0 0.0
    %6729 = vmatprep.mubr.f32.mxu0 %v4499
    %6730 = vmatmul.mubr.f32.gmra.mrb[0].mxu0 %v4498
    %v6731 = vpop.f32.mrb[0].mxu0
    %v6732 = vadd.f32 %v6662, %v6731
    %v6733 = vpop.f32.mrb[0].mxu0
    %6734 = vdwg.mxu0
    %6735 = vmatprep.subr.mxu0 %v4580
    %6736 = vmatpush1.xpose.msra.mxu0 %v4579
    %6737 = vmatprep.subr.mxu0 %v4659
    %6738 = vmatpush1.xpose.msra.mxu0 %v4658
    %6739 = vmatprep.subr.mxu0 %v4738
    %6740 = vmatpush1.xpose.msra.mxu0 %v4737
    %6741 = vmatprep.subr.mxu0 %v4817
    %6742 = vmatpush1.xpose.msra.mxu0 %v4816
    %6743 = vmatprep.subr.mxu0 %v4896
    %6744 = vmatpush1.xpose.msra.mxu0 %v4895
    %6745 = vmatprep.subr.mxu0 %v4975
    %6746 = vmatpush1.xpose.msra.mxu0 %v4974
    %6747 = vmatprep.subr.mxu0 %v5054
    %6748 = vmatpush1.xpose.msra.mxu0 %v5053
    %6749 = vmatprep.subr.mxu0 %v5133
    %6750 = vmatpush1.xpose.msra.mxu0 %v5132
    %6751 = vmatprep.subr.mxu0 0.0
    %6752 = vmatpush1.xpose.msra.mxu0 0.0
    %6753 = vmatprep.subr.mxu0 0.0
    %6754 = vmatpush1.xpose.msra.mxu0 0.0
    %6755 = vmatprep.subr.mxu0 0.0
    %6756 = vmatpush1.xpose.msra.mxu0 0.0
    %6757 = vmatprep.subr.mxu0 0.0
    %6758 = vmatpush1.xpose.msra.mxu0 0.0
    %6759 = vmatprep.subr.mxu0 0.0
    %6760 = vmatpush1.xpose.msra.mxu0 0.0
    %6761 = vmatprep.subr.mxu0 0.0
    %6762 = vmatpush1.xpose.msra.mxu0 0.0
    %6763 = vmatprep.subr.mxu0 0.0
    %6764 = vmatpush1.xpose.msra.mxu0 0.0
    %6765 = vmatprep.subr.mxu0 0.0
    %6766 = vmatpush1.xpose.msra.mxu0 0.0
    %6767 = vmatprep.subr.mxu0 0.0
    %6768 = vmatpush1.xpose.msra.mxu0 0.0
    %6769 = vmatprep.subr.mxu0 0.0
    %6770 = vmatpush1.xpose.msra.mxu0 0.0
    %6771 = vmatprep.subr.mxu0 0.0
    %6772 = vmatpush1.xpose.msra.mxu0 0.0
    %6773 = vmatprep.subr.mxu0 0.0
    %6774 = vmatpush1.xpose.msra.mxu0 0.0
    %6775 = vmatprep.subr.mxu0 0.0
    %6776 = vmatpush1.xpose.msra.mxu0 0.0
    %6777 = vmatprep.subr.mxu0 0.0
    %6778 = vmatpush1.xpose.msra.mxu0 0.0
    %6779 = vmatprep.subr.mxu0 0.0
    %6780 = vmatpush1.xpose.msra.mxu0 0.0
    %6781 = vmatprep.subr.mxu0 0.0
    %6782 = vmatpush1.xpose.msra.mxu0 0.0
    %6783 = vmatprep.subr.mxu0 0.0
    %6784 = vmatpush1.xpose.msra.mxu0 0.0
    %6785 = vmatprep.subr.mxu0 0.0
    %6786 = vmatpush1.xpose.msra.mxu0 0.0
    %6787 = vmatprep.subr.mxu0 0.0
    %6788 = vmatpush1.xpose.msra.mxu0 0.0
    %6789 = vmatprep.subr.mxu0 0.0
    %6790 = vmatpush1.xpose.msra.mxu0 0.0
    %6791 = vmatprep.subr.mxu0 0.0
    %6792 = vmatpush1.xpose.msra.mxu0 0.0
    %6793 = vmatprep.subr.mxu0 0.0
    %6794 = vmatpush1.xpose.msra.mxu0 0.0
    %6795 = vmatprep.subr.mxu0 0.0
    %6796 = vmatpush1.xpose.msra.mxu0 0.0
    %6797 = vmatprep.subr.mxu0 0.0
    %6798 = vmatpush1.xpose.msra.mxu0 0.0
    %6799 = vmatprep.mubr.f32.mxu0 %v4501
    %6800 = vmatmul.mubr.f32.gmra.mrb[0].mxu0 %v4500
    %v6801 = vpop.f32.mrb[0].mxu0
    %v6802 = vadd.f32 %v6732, %v6801
    %v6803 = vpop.f32.mrb[0].mxu0
    %6804 = vdwg.mxu0
    %6805 = vmatprep.subr.mxu0 %v4582
    %6806 = vmatpush1.xpose.msra.mxu0 %v4581
    %6807 = vmatprep.subr.mxu0 %v4661
    %6808 = vmatpush1.xpose.msra.mxu0 %v4660
    %6809 = vmatprep.subr.mxu0 %v4740
    %6810 = vmatpush1.xpose.msra.mxu0 %v4739
    %6811 = vmatprep.subr.mxu0 %v4819
    %6812 = vmatpush1.xpose.msra.mxu0 %v4818
    %6813 = vmatprep.subr.mxu0 %v4898
    %6814 = vmatpush1.xpose.msra.mxu0 %v4897
    %6815 = vmatprep.subr.mxu0 %v4977
    %6816 = vmatpush1.xpose.msra.mxu0 %v4976
    %6817 = vmatprep.subr.mxu0 %v5056
    %6818 = vmatpush1.xpose.msra.mxu0 %v5055
    %6819 = vmatprep.subr.mxu0 %v5135
    %6820 = vmatpush1.xpose.msra.mxu0 %v5134
    %6821 = vmatprep.subr.mxu0 0.0
    %6822 = vmatpush1.xpose.msra.mxu0 0.0
    %6823 = vmatprep.subr.mxu0 0.0
    %6824 = vmatpush1.xpose.msra.mxu0 0.0
    %6825 = vmatprep.subr.mxu0 0.0
    %6826 = vmatpush1.xpose.msra.mxu0 0.0
    %6827 = vmatprep.subr.mxu0 0.0
    %6828 = vmatpush1.xpose.msra.mxu0 0.0
    %6829 = vmatprep.subr.mxu0 0.0
    %6830 = vmatpush1.xpose.msra.mxu0 0.0
    %6831 = vmatprep.subr.mxu0 0.0
    %6832 = vmatpush1.xpose.msra.mxu0 0.0
    %6833 = vmatprep.subr.mxu0 0.0
    %6834 = vmatpush1.xpose.msra.mxu0 0.0
    %6835 = vmatprep.subr.mxu0 0.0
    %6836 = vmatpush1.xpose.msra.mxu0 0.0
    %6837 = vmatprep.subr.mxu0 0.0
    %6838 = vmatpush1.xpose.msra.mxu0 0.0
    %6839 = vmatprep.subr.mxu0 0.0
    %6840 = vmatpush1.xpose.msra.mxu0 0.0
    %6841 = vmatprep.subr.mxu0 0.0
    %6842 = vmatpush1.xpose.msra.mxu0 0.0
    %6843 = vmatprep.subr.mxu0 0.0
    %6844 = vmatpush1.xpose.msra.mxu0 0.0
    %6845 = vmatprep.subr.mxu0 0.0
    %6846 = vmatpush1.xpose.msra.mxu0 0.0
    %6847 = vmatprep.subr.mxu0 0.0
    %6848 = vmatpush1.xpose.msra.mxu0 0.0
    %6849 = vmatprep.subr.mxu0 0.0
    %6850 = vmatpush1.xpose.msra.mxu0 0.0
    %6851 = vmatprep.subr.mxu0 0.0
    %6852 = vmatpush1.xpose.msra.mxu0 0.0
    %6853 = vmatprep.subr.mxu0 0.0
    %6854 = vmatpush1.xpose.msra.mxu0 0.0
    %6855 = vmatprep.subr.mxu0 0.0
    %6856 = vmatpush1.xpose.msra.mxu0 0.0
    %6857 = vmatprep.subr.mxu0 0.0
    %6858 = vmatpush1.xpose.msra.mxu0 0.0
    %6859 = vmatprep.subr.mxu0 0.0
    %6860 = vmatpush1.xpose.msra.mxu0 0.0
    %6861 = vmatprep.subr.mxu0 0.0
    %6862 = vmatpush1.xpose.msra.mxu0 0.0
    %6863 = vmatprep.subr.mxu0 0.0
    %6864 = vmatpush1.xpose.msra.mxu0 0.0
    %6865 = vmatprep.subr.mxu0 0.0
    %6866 = vmatpush1.xpose.msra.mxu0 0.0
    %6867 = vmatprep.subr.mxu0 0.0
    %6868 = vmatpush1.xpose.msra.mxu0 0.0
    %6869 = vmatprep.mubr.f32.mxu0 %v4503
    %6870 = vmatmul.mubr.f32.gmra.mrb[0].mxu0 %v4502
    %v6871 = vpop.f32.mrb[0].mxu0
    %v6872 = vadd.f32 %v6802, %v6871
    %v6873 = vpop.f32.mrb[0].mxu0
    %6874 = vdwg.mxu0
    %6875 = vmatprep.subr.mxu0 %v4584
    %6876 = vmatpush1.xpose.msra.mxu0 %v4583
    %6877 = vmatprep.subr.mxu0 %v4663
    %6878 = vmatpush1.xpose.msra.mxu0 %v4662
    %6879 = vmatprep.subr.mxu0 %v4742
    %6880 = vmatpush1.xpose.msra.mxu0 %v4741
    %6881 = vmatprep.subr.mxu0 %v4821
    %6882 = vmatpush1.xpose.msra.mxu0 %v4820
    %6883 = vmatprep.subr.mxu0 %v4900
    %6884 = vmatpush1.xpose.msra.mxu0 %v4899
    %6885 = vmatprep.subr.mxu0 %v4979
    %6886 = vmatpush1.xpose.msra.mxu0 %v4978
    %6887 = vmatprep.subr.mxu0 %v5058
    %6888 = vmatpush1.xpose.msra.mxu0 %v5057
    %6889 = vmatprep.subr.mxu0 %v5137
    %6890 = vmatpush1.xpose.msra.mxu0 %v5136
    %6891 = vmatprep.subr.mxu0 0.0
    %6892 = vmatpush1.xpose.msra.mxu0 0.0
    %6893 = vmatprep.subr.mxu0 0.0
    %6894 = vmatpush1.xpose.msra.mxu0 0.0
    %6895 = vmatprep.subr.mxu0 0.0
    %6896 = vmatpush1.xpose.msra.mxu0 0.0
    %6897 = vmatprep.subr.mxu0 0.0
    %6898 = vmatpush1.xpose.msra.mxu0 0.0
    %6899 = vmatprep.subr.mxu0 0.0
    %6900 = vmatpush1.xpose.msra.mxu0 0.0
    %6901 = vmatprep.subr.mxu0 0.0
    %6902 = vmatpush1.xpose.msra.mxu0 0.0
    %6903 = vmatprep.subr.mxu0 0.0
    %6904 = vmatpush1.xpose.msra.mxu0 0.0
    %6905 = vmatprep.subr.mxu0 0.0
    %6906 = vmatpush1.xpose.msra.mxu0 0.0
    %6907 = vmatprep.subr.mxu0 0.0
    %6908 = vmatpush1.xpose.msra.mxu0 0.0
    %6909 = vmatprep.subr.mxu0 0.0
    %6910 = vmatpush1.xpose.msra.mxu0 0.0
    %6911 = vmatprep.subr.mxu0 0.0
    %6912 = vmatpush1.xpose.msra.mxu0 0.0
    %6913 = vmatprep.subr.mxu0 0.0
    %6914 = vmatpush1.xpose.msra.mxu0 0.0
    %6915 = vmatprep.subr.mxu0 0.0
    %6916 = vmatpush1.xpose.msra.mxu0 0.0
    %6917 = vmatprep.subr.mxu0 0.0
    %6918 = vmatpush1.xpose.msra.mxu0 0.0
    %6919 = vmatprep.subr.mxu0 0.0
    %6920 = vmatpush1.xpose.msra.mxu0 0.0
    %6921 = vmatprep.subr.mxu0 0.0
    %6922 = vmatpush1.xpose.msra.mxu0 0.0
    %6923 = vmatprep.subr.mxu0 0.0
    %6924 = vmatpush1.xpose.msra.mxu0 0.0
    %6925 = vmatprep.subr.mxu0 0.0
    %6926 = vmatpush1.xpose.msra.mxu0 0.0
    %6927 = vmatprep.subr.mxu0 0.0
    %6928 = vmatpush1.xpose.msra.mxu0 0.0
    %6929 = vmatprep.subr.mxu0 0.0
    %6930 = vmatpush1.xpose.msra.mxu0 0.0
    %6931 = vmatprep.subr.mxu0 0.0
    %6932 = vmatpush1.xpose.msra.mxu0 0.0
    %6933 = vmatprep.subr.mxu0 0.0
    %6934 = vmatpush1.xpose.msra.mxu0 0.0
    %6935 = vmatprep.subr.mxu0 0.0
    %6936 = vmatpush1.xpose.msra.mxu0 0.0
    %6937 = vmatprep.subr.mxu0 0.0
    %6938 = vmatpush1.xpose.msra.mxu0 0.0
    %6939 = vmatprep.mubr.f32.mxu0 %v4505
    %6940 = vmatmul.mubr.f32.gmra.mrb[0].mxu0 %v4504
    %v6941 = vpop.f32.mrb[0].mxu0
    %v6942 = vadd.f32 %v6872, %v6941
    %v6943 = vpop.f32.mrb[0].mxu0
    %6944 = vdwg.mxu0
    %6945 = vmatprep.subr.mxu0 %v4586
    %6946 = vmatpush1.xpose.msra.mxu0 %v4585
    %6947 = vmatprep.subr.mxu0 %v4665
    %6948 = vmatpush1.xpose.msra.mxu0 %v4664
    %6949 = vmatprep.subr.mxu0 %v4744
    %6950 = vmatpush1.xpose.msra.mxu0 %v4743
    %6951 = vmatprep.subr.mxu0 %v4823
    %6952 = vmatpush1.xpose.msra.mxu0 %v4822
    %6953 = vmatprep.subr.mxu0 %v4902
    %6954 = vmatpush1.xpose.msra.mxu0 %v4901
    %6955 = vmatprep.subr.mxu0 %v4981
    %6956 = vmatpush1.xpose.msra.mxu0 %v4980
    %6957 = vmatprep.subr.mxu0 %v5060
    %6958 = vmatpush1.xpose.msra.mxu0 %v5059
    %6959 = vmatprep.subr.mxu0 %v5139
    %6960 = vmatpush1.xpose.msra.mxu0 %v5138
    %6961 = vmatprep.subr.mxu0 0.0
    %6962 = vmatpush1.xpose.msra.mxu0 0.0
    %6963 = vmatprep.subr.mxu0 0.0
    %6964 = vmatpush1.xpose.msra.mxu0 0.0
    %6965 = vmatprep.subr.mxu0 0.0
    %6966 = vmatpush1.xpose.msra.mxu0 0.0
    %6967 = vmatprep.subr.mxu0 0.0
    %6968 = vmatpush1.xpose.msra.mxu0 0.0
    %6969 = vmatprep.subr.mxu0 0.0
    %6970 = vmatpush1.xpose.msra.mxu0 0.0
    %6971 = vmatprep.subr.mxu0 0.0
    %6972 = vmatpush1.xpose.msra.mxu0 0.0
    %6973 = vmatprep.subr.mxu0 0.0
    %6974 = vmatpush1.xpose.msra.mxu0 0.0
    %6975 = vmatprep.subr.mxu0 0.0
    %6976 = vmatpush1.xpose.msra.mxu0 0.0
    %6977 = vmatprep.subr.mxu0 0.0
    %6978 = vmatpush1.xpose.msra.mxu0 0.0
    %6979 = vmatprep.subr.mxu0 0.0
    %6980 = vmatpush1.xpose.msra.mxu0 0.0
    %6981 = vmatprep.subr.mxu0 0.0
    %6982 = vmatpush1.xpose.msra.mxu0 0.0
    %6983 = vmatprep.subr.mxu0 0.0
    %6984 = vmatpush1.xpose.msra.mxu0 0.0
    %6985 = vmatprep.subr.mxu0 0.0
    %6986 = vmatpush1.xpose.msra.mxu0 0.0
    %6987 = vmatprep.subr.mxu0 0.0
    %6988 = vmatpush1.xpose.msra.mxu0 0.0
    %6989 = vmatprep.subr.mxu0 0.0
    %6990 = vmatpush1.xpose.msra.mxu0 0.0
    %6991 = vmatprep.subr.mxu0 0.0
    %6992 = vmatpush1.xpose.msra.mxu0 0.0
    %6993 = vmatprep.subr.mxu0 0.0
    %6994 = vmatpush1.xpose.msra.mxu0 0.0
    %6995 = vmatprep.subr.mxu0 0.0
    %6996 = vmatpush1.xpose.msra.mxu0 0.0
    %6997 = vmatprep.subr.mxu0 0.0
    %6998 = vmatpush1.xpose.msra.mxu0 0.0
    %6999 = vmatprep.subr.mxu0 0.0
    %7000 = vmatpush1.xpose.msra.mxu0 0.0
    %7001 = vmatprep.subr.mxu0 0.0
    %7002 = vmatpush1.xpose.msra.mxu0 0.0
    %7003 = vmatprep.subr.mxu0 0.0
    %7004 = vmatpush1.xpose.msra.mxu0 0.0
    %7005 = vmatprep.subr.mxu0 0.0
    %7006 = vmatpush1.xpose.msra.mxu0 0.0
    %7007 = vmatprep.subr.mxu0 0.0
    %7008 = vmatpush1.xpose.msra.mxu0 0.0
    %7009 = vmatprep.mubr.f32.mxu0 %v4507
    %7010 = vmatmul.mubr.f32.gmra.mrb[0].mxu0 %v4506
    %v7011 = vpop.f32.mrb[0].mxu0
    %v7012 = vadd.f32 %v6942, %v7011
    %v7013 = vpop.f32.mrb[0].mxu0
    %7014 = vdwg.mxu0
    %7015 = vmatprep.subr.mxu0 %v4588
    %7016 = vmatpush1.xpose.msra.mxu0 %v4587
    %7017 = vmatprep.subr.mxu0 %v4667
    %7018 = vmatpush1.xpose.msra.mxu0 %v4666
    %7019 = vmatprep.subr.mxu0 %v4746
    %7020 = vmatpush1.xpose.msra.mxu0 %v4745
    %7021 = vmatprep.subr.mxu0 %v4825
    %7022 = vmatpush1.xpose.msra.mxu0 %v4824
    %7023 = vmatprep.subr.mxu0 %v4904
    %7024 = vmatpush1.xpose.msra.mxu0 %v4903
    %7025 = vmatprep.subr.mxu0 %v4983
    %7026 = vmatpush1.xpose.msra.mxu0 %v4982
    %7027 = vmatprep.subr.mxu0 %v5062
    %7028 = vmatpush1.xpose.msra.mxu0 %v5061
    %7029 = vmatprep.subr.mxu0 %v5141
    %7030 = vmatpush1.xpose.msra.mxu0 %v5140
    %7031 = vmatprep.subr.mxu0 0.0
    %7032 = vmatpush1.xpose.msra.mxu0 0.0
    %7033 = vmatprep.subr.mxu0 0.0
    %7034 = vmatpush1.xpose.msra.mxu0 0.0
    %7035 = vmatprep.subr.mxu0 0.0
    %7036 = vmatpush1.xpose.msra.mxu0 0.0
    %7037 = vmatprep.subr.mxu0 0.0
    %7038 = vmatpush1.xpose.msra.mxu0 0.0
    %7039 = vmatprep.subr.mxu0 0.0
    %7040 = vmatpush1.xpose.msra.mxu0 0.0
    %7041 = vmatprep.subr.mxu0 0.0
    %7042 = vmatpush1.xpose.msra.mxu0 0.0
    %7043 = vmatprep.subr.mxu0 0.0
    %7044 = vmatpush1.xpose.msra.mxu0 0.0
    %7045 = vmatprep.subr.mxu0 0.0
    %7046 = vmatpush1.xpose.msra.mxu0 0.0
    %7047 = vmatprep.subr.mxu0 0.0
    %7048 = vmatpush1.xpose.msra.mxu0 0.0
    %7049 = vmatprep.subr.mxu0 0.0
    %7050 = vmatpush1.xpose.msra.mxu0 0.0
    %7051 = vmatprep.subr.mxu0 0.0
    %7052 = vmatpush1.xpose.msra.mxu0 0.0
    %7053 = vmatprep.subr.mxu0 0.0
    %7054 = vmatpush1.xpose.msra.mxu0 0.0
    %7055 = vmatprep.subr.mxu0 0.0
    %7056 = vmatpush1.xpose.msra.mxu0 0.0
    %7057 = vmatprep.subr.mxu0 0.0
    %7058 = vmatpush1.xpose.msra.mxu0 0.0
    %7059 = vmatprep.subr.mxu0 0.0
    %7060 = vmatpush1.xpose.msra.mxu0 0.0
    %7061 = vmatprep.subr.mxu0 0.0
    %7062 = vmatpush1.xpose.msra.mxu0 0.0
    %7063 = vmatprep.subr.mxu0 0.0
    %7064 = vmatpush1.xpose.msra.mxu0 0.0
    %7065 = vmatprep.subr.mxu0 0.0
    %7066 = vmatpush1.xpose.msra.mxu0 0.0
    %7067 = vmatprep.subr.mxu0 0.0
    %7068 = vmatpush1.xpose.msra.mxu0 0.0
    %7069 = vmatprep.subr.mxu0 0.0
    %7070 = vmatpush1.xpose.msra.mxu0 0.0
    %7071 = vmatprep.subr.mxu0 0.0
    %7072 = vmatpush1.xpose.msra.mxu0 0.0
    %7073 = vmatprep.subr.mxu0 0.0
    %7074 = vmatpush1.xpose.msra.mxu0 0.0
    %7075 = vmatprep.subr.mxu0 0.0
    %7076 = vmatpush1.xpose.msra.mxu0 0.0
    %7077 = vmatprep.subr.mxu0 0.0
    %7078 = vmatpush1.xpose.msra.mxu0 0.0
    %7079 = vmatprep.mubr.f32.mxu0 %v4509
    %7080 = vmatmul.mubr.f32.gmra.mrb[0].mxu0 %v4508
    %v7081 = vpop.f32.mrb[0].mxu0
    %v7082 = vadd.f32 %v7012, %v7081
    %v7083 = vpop.f32.mrb[0].mxu0
    %7084 = vdwg.mxu0
    %7085 = vmatprep.subr.mxu0 %v4590
    %7086 = vmatpush1.xpose.msra.mxu0 %v4589
    %7087 = vmatprep.subr.mxu0 %v4669
    %7088 = vmatpush1.xpose.msra.mxu0 %v4668
    %7089 = vmatprep.subr.mxu0 %v4748
    %7090 = vmatpush1.xpose.msra.mxu0 %v4747
    %7091 = vmatprep.subr.mxu0 %v4827
    %7092 = vmatpush1.xpose.msra.mxu0 %v4826
    %7093 = vmatprep.subr.mxu0 %v4906
    %7094 = vmatpush1.xpose.msra.mxu0 %v4905
    %7095 = vmatprep.subr.mxu0 %v4985
    %7096 = vmatpush1.xpose.msra.mxu0 %v4984
    %7097 = vmatprep.subr.mxu0 %v5064
    %7098 = vmatpush1.xpose.msra.mxu0 %v5063
    %7099 = vmatprep.subr.mxu0 %v5143
    %7100 = vmatpush1.xpose.msra.mxu0 %v5142
    %7101 = vmatprep.subr.mxu0 0.0
    %7102 = vmatpush1.xpose.msra.mxu0 0.0
    %7103 = vmatprep.subr.mxu0 0.0
    %7104 = vmatpush1.xpose.msra.mxu0 0.0
    %7105 = vmatprep.subr.mxu0 0.0
    %7106 = vmatpush1.xpose.msra.mxu0 0.0
    %7107 = vmatprep.subr.mxu0 0.0
    %7108 = vmatpush1.xpose.msra.mxu0 0.0
    %7109 = vmatprep.subr.mxu0 0.0
    %7110 = vmatpush1.xpose.msra.mxu0 0.0
    %7111 = vmatprep.subr.mxu0 0.0
    %7112 = vmatpush1.xpose.msra.mxu0 0.0
    %7113 = vmatprep.subr.mxu0 0.0
    %7114 = vmatpush1.xpose.msra.mxu0 0.0
    %7115 = vmatprep.subr.mxu0 0.0
    %7116 = vmatpush1.xpose.msra.mxu0 0.0
    %7117 = vmatprep.subr.mxu0 0.0
    %7118 = vmatpush1.xpose.msra.mxu0 0.0
    %7119 = vmatprep.subr.mxu0 0.0
    %7120 = vmatpush1.xpose.msra.mxu0 0.0
    %7121 = vmatprep.subr.mxu0 0.0
    %7122 = vmatpush1.xpose.msra.mxu0 0.0
    %7123 = vmatprep.subr.mxu0 0.0
    %7124 = vmatpush1.xpose.msra.mxu0 0.0
    %7125 = vmatprep.subr.mxu0 0.0
    %7126 = vmatpush1.xpose.msra.mxu0 0.0
    %7127 = vmatprep.subr.mxu0 0.0
    %7128 = vmatpush1.xpose.msra.mxu0 0.0
    %7129 = vmatprep.subr.mxu0 0.0
    %7130 = vmatpush1.xpose.msra.mxu0 0.0
    %7131 = vmatprep.subr.mxu0 0.0
    %7132 = vmatpush1.xpose.msra.mxu0 0.0
    %7133 = vmatprep.subr.mxu0 0.0
    %7134 = vmatpush1.xpose.msra.mxu0 0.0
    %7135 = vmatprep.subr.mxu0 0.0
    %7136 = vmatpush1.xpose.msra.mxu0 0.0
    %7137 = vmatprep.subr.mxu0 0.0
    %7138 = vmatpush1.xpose.msra.mxu0 0.0
    %7139 = vmatprep.subr.mxu0 0.0
    %7140 = vmatpush1.xpose.msra.mxu0 0.0
    %7141 = vmatprep.subr.mxu0 0.0
    %7142 = vmatpush1.xpose.msra.mxu0 0.0
    %7143 = vmatprep.subr.mxu0 0.0
    %7144 = vmatpush1.xpose.msra.mxu0 0.0
    %7145 = vmatprep.subr.mxu0 0.0
    %7146 = vmatpush1.xpose.msra.mxu0 0.0
    %7147 = vmatprep.subr.mxu0 0.0
    %7148 = vmatpush1.xpose.msra.mxu0 0.0
    %7149 = vmatprep.mubr.f32.mxu0 %v4511
    %7150 = vmatmul.mubr.f32.gmra.mrb[0].mxu0 %v4510
    %v7151 = vpop.f32.mrb[0].mxu0
    %v7152 = vadd.f32 %v7082, %v7151
    %v7153 = vpop.f32.mrb[0].mxu0
    %7154 = vdwg.mxu0
    %7155 = vmatprep.subr.mxu0 %v4592
    %7156 = vmatpush1.xpose.msra.mxu0 %v4591
    %7157 = vmatprep.subr.mxu0 %v4671
    %7158 = vmatpush1.xpose.msra.mxu0 %v4670
    %7159 = vmatprep.subr.mxu0 %v4750
    %7160 = vmatpush1.xpose.msra.mxu0 %v4749
    %7161 = vmatprep.subr.mxu0 %v4829
    %7162 = vmatpush1.xpose.msra.mxu0 %v4828
    %7163 = vmatprep.subr.mxu0 %v4908
    %7164 = vmatpush1.xpose.msra.mxu0 %v4907
    %7165 = vmatprep.subr.mxu0 %v4987
    %7166 = vmatpush1.xpose.msra.mxu0 %v4986
    %7167 = vmatprep.subr.mxu0 %v5066
    %7168 = vmatpush1.xpose.msra.mxu0 %v5065
    %7169 = vmatprep.subr.mxu0 %v5145
    %7170 = vmatpush1.xpose.msra.mxu0 %v5144
    %7171 = vmatprep.subr.mxu0 0.0
    %7172 = vmatpush1.xpose.msra.mxu0 0.0
    %7173 = vmatprep.subr.mxu0 0.0
    %7174 = vmatpush1.xpose.msra.mxu0 0.0
    %7175 = vmatprep.subr.mxu0 0.0
    %7176 = vmatpush1.xpose.msra.mxu0 0.0
    %7177 = vmatprep.subr.mxu0 0.0
    %7178 = vmatpush1.xpose.msra.mxu0 0.0
    %7179 = vmatprep.subr.mxu0 0.0
    %7180 = vmatpush1.xpose.msra.mxu0 0.0
    %7181 = vmatprep.subr.mxu0 0.0
    %7182 = vmatpush1.xpose.msra.mxu0 0.0
    %7183 = vmatprep.subr.mxu0 0.0
    %7184 = vmatpush1.xpose.msra.mxu0 0.0
    %7185 = vmatprep.subr.mxu0 0.0
    %7186 = vmatpush1.xpose.msra.mxu0 0.0
    %7187 = vmatprep.subr.mxu0 0.0
    %7188 = vmatpush1.xpose.msra.mxu0 0.0
    %7189 = vmatprep.subr.mxu0 0.0
    %7190 = vmatpush1.xpose.msra.mxu0 0.0
    %7191 = vmatprep.subr.mxu0 0.0
    %7192 = vmatpush1.xpose.msra.mxu0 0.0
    %7193 = vmatprep.subr.mxu0 0.0
    %7194 = vmatpush1.xpose.msra.mxu0 0.0
    %7195 = vmatprep.subr.mxu0 0.0
    %7196 = vmatpush1.xpose.msra.mxu0 0.0
    %7197 = vmatprep.subr.mxu0 0.0
    %7198 = vmatpush1.xpose.msra.mxu0 0.0
    %7199 = vmatprep.subr.mxu0 0.0
    %7200 = vmatpush1.xpose.msra.mxu0 0.0
    %7201 = vmatprep.subr.mxu0 0.0
    %7202 = vmatpush1.xpose.msra.mxu0 0.0
    %7203 = vmatprep.subr.mxu0 0.0
    %7204 = vmatpush1.xpose.msra.mxu0 0.0
    %7205 = vmatprep.subr.mxu0 0.0
    %7206 = vmatpush1.xpose.msra.mxu0 0.0
    %7207 = vmatprep.subr.mxu0 0.0
    %7208 = vmatpush1.xpose.msra.mxu0 0.0
    %7209 = vmatprep.subr.mxu0 0.0
    %7210 = vmatpush1.xpose.msra.mxu0 0.0
    %7211 = vmatprep.subr.mxu0 0.0
    %7212 = vmatpush1.xpose.msra.mxu0 0.0
    %7213 = vmatprep.subr.mxu0 0.0
    %7214 = vmatpush1.xpose.msra.mxu0 0.0
    %7215 = vmatprep.subr.mxu0 0.0
    %7216 = vmatpush1.xpose.msra.mxu0 0.0
    %7217 = vmatprep.subr.mxu0 0.0
    %7218 = vmatpush1.xpose.msra.mxu0 0.0
    %7219 = vmatprep.mubr.f32.mxu0 %v4513
    %7220 = vmatmul.mubr.f32.gmra.mrb[0].mxu0 %v4512
    %v7221 = vpop.f32.mrb[0].mxu0
    %v7222 = vadd.f32 %v7152, %v7221
    %v7223 = vpop.f32.mrb[0].mxu0
    %7224 = vdwg.mxu0
    %7225 = vmatprep.subr.mxu0 %v4594
    %7226 = vmatpush1.xpose.msra.mxu0 %v4593
    %7227 = vmatprep.subr.mxu0 %v4673
    %7228 = vmatpush1.xpose.msra.mxu0 %v4672
    %7229 = vmatprep.subr.mxu0 %v4752
    %7230 = vmatpush1.xpose.msra.mxu0 %v4751
    %7231 = vmatprep.subr.mxu0 %v4831
    %7232 = vmatpush1.xpose.msra.mxu0 %v4830
    %7233 = vmatprep.subr.mxu0 %v4910
    %7234 = vmatpush1.xpose.msra.mxu0 %v4909
    %7235 = vmatprep.subr.mxu0 %v4989
    %7236 = vmatpush1.xpose.msra.mxu0 %v4988
    %7237 = vmatprep.subr.mxu0 %v5068
    %7238 = vmatpush1.xpose.msra.mxu0 %v5067
    %7239 = vmatprep.subr.mxu0 %v5147
    %7240 = vmatpush1.xpose.msra.mxu0 %v5146
    %7241 = vmatprep.subr.mxu0 0.0
    %7242 = vmatpush1.xpose.msra.mxu0 0.0
    %7243 = vmatprep.subr.mxu0 0.0
    %7244 = vmatpush1.xpose.msra.mxu0 0.0
    %7245 = vmatprep.subr.mxu0 0.0
    %7246 = vmatpush1.xpose.msra.mxu0 0.0
    %7247 = vmatprep.subr.mxu0 0.0
    %7248 = vmatpush1.xpose.msra.mxu0 0.0
    %7249 = vmatprep.subr.mxu0 0.0
    %7250 = vmatpush1.xpose.msra.mxu0 0.0
    %7251 = vmatprep.subr.mxu0 0.0
    %7252 = vmatpush1.xpose.msra.mxu0 0.0
    %7253 = vmatprep.subr.mxu0 0.0
    %7254 = vmatpush1.xpose.msra.mxu0 0.0
    %7255 = vmatprep.subr.mxu0 0.0
    %7256 = vmatpush1.xpose.msra.mxu0 0.0
    %7257 = vmatprep.subr.mxu0 0.0
    %7258 = vmatpush1.xpose.msra.mxu0 0.0
    %7259 = vmatprep.subr.mxu0 0.0
    %7260 = vmatpush1.xpose.msra.mxu0 0.0
    %7261 = vmatprep.subr.mxu0 0.0
    %7262 = vmatpush1.xpose.msra.mxu0 0.0
    %7263 = vmatprep.subr.mxu0 0.0
    %7264 = vmatpush1.xpose.msra.mxu0 0.0
    %7265 = vmatprep.subr.mxu0 0.0
    %7266 = vmatpush1.xpose.msra.mxu0 0.0
    %7267 = vmatprep.subr.mxu0 0.0
    %7268 = vmatpush1.xpose.msra.mxu0 0.0
    %7269 = vmatprep.subr.mxu0 0.0
    %7270 = vmatpush1.xpose.msra.mxu0 0.0
    %7271 = vmatprep.subr.mxu0 0.0
    %7272 = vmatpush1.xpose.msra.mxu0 0.0
    %7273 = vmatprep.subr.mxu0 0.0
    %7274 = vmatpush1.xpose.msra.mxu0 0.0
    %7275 = vmatprep.subr.mxu0 0.0
    %7276 = vmatpush1.xpose.msra.mxu0 0.0
    %7277 = vmatprep.subr.mxu0 0.0
    %7278 = vmatpush1.xpose.msra.mxu0 0.0
    %7279 = vmatprep.subr.mxu0 0.0
    %7280 = vmatpush1.xpose.msra.mxu0 0.0
    %7281 = vmatprep.subr.mxu0 0.0
    %7282 = vmatpush1.xpose.msra.mxu0 0.0
    %7283 = vmatprep.subr.mxu0 0.0
    %7284 = vmatpush1.xpose.msra.mxu0 0.0
    %7285 = vmatprep.subr.mxu0 0.0
    %7286 = vmatpush1.xpose.msra.mxu0 0.0
    %7287 = vmatprep.subr.mxu0 0.0
    %7288 = vmatpush1.xpose.msra.mxu0 0.0
    %7289 = vmatprep.mubr.f32.mxu0 %v4515
    %7290 = vmatmul.mubr.f32.gmra.mrb[0].mxu0 %v4514
    %v7291 = vpop.f32.mrb[0].mxu0
    %v7292 = vadd.f32 %v7222, %v7291
    %v7293 = vpop.f32.mrb[0].mxu0
    %7294 = vdwg.mxu0
    %7295 = vmatprep.subr.mxu0 %v4596
    %7296 = vmatpush1.xpose.msra.mxu0 %v4595
    %7297 = vmatprep.subr.mxu0 %v4675
    %7298 = vmatpush1.xpose.msra.mxu0 %v4674
    %7299 = vmatprep.subr.mxu0 %v4754
    %7300 = vmatpush1.xpose.msra.mxu0 %v4753
    %7301 = vmatprep.subr.mxu0 %v4833
    %7302 = vmatpush1.xpose.msra.mxu0 %v4832
    %7303 = vmatprep.subr.mxu0 %v4912
    %7304 = vmatpush1.xpose.msra.mxu0 %v4911
    %7305 = vmatprep.subr.mxu0 %v4991
    %7306 = vmatpush1.xpose.msra.mxu0 %v4990
    %7307 = vmatprep.subr.mxu0 %v5070
    %7308 = vmatpush1.xpose.msra.mxu0 %v5069
    %7309 = vmatprep.subr.mxu0 %v5149
    %7310 = vmatpush1.xpose.msra.mxu0 %v5148
    %7311 = vmatprep.subr.mxu0 0.0
    %7312 = vmatpush1.xpose.msra.mxu0 0.0
    %7313 = vmatprep.subr.mxu0 0.0
    %7314 = vmatpush1.xpose.msra.mxu0 0.0
    %7315 = vmatprep.subr.mxu0 0.0
    %7316 = vmatpush1.xpose.msra.mxu0 0.0
    %7317 = vmatprep.subr.mxu0 0.0
    %7318 = vmatpush1.xpose.msra.mxu0 0.0
    %7319 = vmatprep.subr.mxu0 0.0
    %7320 = vmatpush1.xpose.msra.mxu0 0.0
    %7321 = vmatprep.subr.mxu0 0.0
    %7322 = vmatpush1.xpose.msra.mxu0 0.0
    %7323 = vmatprep.subr.mxu0 0.0
    %7324 = vmatpush1.xpose.msra.mxu0 0.0
    %7325 = vmatprep.subr.mxu0 0.0
    %7326 = vmatpush1.xpose.msra.mxu0 0.0
    %7327 = vmatprep.subr.mxu0 0.0
    %7328 = vmatpush1.xpose.msra.mxu0 0.0
    %7329 = vmatprep.subr.mxu0 0.0
    %7330 = vmatpush1.xpose.msra.mxu0 0.0
    %7331 = vmatprep.subr.mxu0 0.0
    %7332 = vmatpush1.xpose.msra.mxu0 0.0
    %7333 = vmatprep.subr.mxu0 0.0
    %7334 = vmatpush1.xpose.msra.mxu0 0.0
    %7335 = vmatprep.subr.mxu0 0.0
    %7336 = vmatpush1.xpose.msra.mxu0 0.0
    %7337 = vmatprep.subr.mxu0 0.0
    %7338 = vmatpush1.xpose.msra.mxu0 0.0
    %7339 = vmatprep.subr.mxu0 0.0
    %7340 = vmatpush1.xpose.msra.mxu0 0.0
    %7341 = vmatprep.subr.mxu0 0.0
    %7342 = vmatpush1.xpose.msra.mxu0 0.0
    %7343 = vmatprep.subr.mxu0 0.0
    %7344 = vmatpush1.xpose.msra.mxu0 0.0
    %7345 = vmatprep.subr.mxu0 0.0
    %7346 = vmatpush1.xpose.msra.mxu0 0.0
    %7347 = vmatprep.subr.mxu0 0.0
    %7348 = vmatpush1.xpose.msra.mxu0 0.0
    %7349 = vmatprep.subr.mxu0 0.0
    %7350 = vmatpush1.xpose.msra.mxu0 0.0
    %7351 = vmatprep.subr.mxu0 0.0
    %7352 = vmatpush1.xpose.msra.mxu0 0.0
    %7353 = vmatprep.subr.mxu0 0.0
    %7354 = vmatpush1.xpose.msra.mxu0 0.0
    %7355 = vmatprep.subr.mxu0 0.0
    %7356 = vmatpush1.xpose.msra.mxu0 0.0
    %7357 = vmatprep.subr.mxu0 0.0
    %7358 = vmatpush1.xpose.msra.mxu0 0.0
    %7359 = vmatprep.mubr.f32.mxu0 %v4517
    %7360 = vmatmul.mubr.f32.gmra.mrb[0].mxu0 %v4516
    %v7361 = vpop.f32.mrb[0].mxu0
    %v7362 = vadd.f32 %v7292, %v7361
    %v7363 = vpop.f32.mrb[0].mxu0
    %7364 = vdwg.mxu0
    %7365 = vmatprep.subr.mxu0 %v4598
    %7366 = vmatpush1.xpose.msra.mxu0 %v4597
    %7367 = vmatprep.subr.mxu0 %v4677
    %7368 = vmatpush1.xpose.msra.mxu0 %v4676
    %7369 = vmatprep.subr.mxu0 %v4756
    %7370 = vmatpush1.xpose.msra.mxu0 %v4755
    %7371 = vmatprep.subr.mxu0 %v4835
    %7372 = vmatpush1.xpose.msra.mxu0 %v4834
    %7373 = vmatprep.subr.mxu0 %v4914
    %7374 = vmatpush1.xpose.msra.mxu0 %v4913
    %7375 = vmatprep.subr.mxu0 %v4993
    %7376 = vmatpush1.xpose.msra.mxu0 %v4992
    %7377 = vmatprep.subr.mxu0 %v5072
    %7378 = vmatpush1.xpose.msra.mxu0 %v5071
    %7379 = vmatprep.subr.mxu0 %v5151
    %7380 = vmatpush1.xpose.msra.mxu0 %v5150
    %7381 = vmatprep.subr.mxu0 0.0
    %7382 = vmatpush1.xpose.msra.mxu0 0.0
    %7383 = vmatprep.subr.mxu0 0.0
    %7384 = vmatpush1.xpose.msra.mxu0 0.0
    %7385 = vmatprep.subr.mxu0 0.0
    %7386 = vmatpush1.xpose.msra.mxu0 0.0
    %7387 = vmatprep.subr.mxu0 0.0
    %7388 = vmatpush1.xpose.msra.mxu0 0.0
    %7389 = vmatprep.subr.mxu0 0.0
    %7390 = vmatpush1.xpose.msra.mxu0 0.0
    %7391 = vmatprep.subr.mxu0 0.0
    %7392 = vmatpush1.xpose.msra.mxu0 0.0
    %7393 = vmatprep.subr.mxu0 0.0
    %7394 = vmatpush1.xpose.msra.mxu0 0.0
    %7395 = vmatprep.subr.mxu0 0.0
    %7396 = vmatpush1.xpose.msra.mxu0 0.0
    %7397 = vmatprep.subr.mxu0 0.0
    %7398 = vmatpush1.xpose.msra.mxu0 0.0
    %7399 = vmatprep.subr.mxu0 0.0
    %7400 = vmatpush1.xpose.msra.mxu0 0.0
    %7401 = vmatprep.subr.mxu0 0.0
    %7402 = vmatpush1.xpose.msra.mxu0 0.0
    %7403 = vmatprep.subr.mxu0 0.0
    %7404 = vmatpush1.xpose.msra.mxu0 0.0
    %7405 = vmatprep.subr.mxu0 0.0
    %7406 = vmatpush1.xpose.msra.mxu0 0.0
    %7407 = vmatprep.subr.mxu0 0.0
    %7408 = vmatpush1.xpose.msra.mxu0 0.0
    %7409 = vmatprep.subr.mxu0 0.0
    %7410 = vmatpush1.xpose.msra.mxu0 0.0
    %7411 = vmatprep.subr.mxu0 0.0
    %7412 = vmatpush1.xpose.msra.mxu0 0.0
    %7413 = vmatprep.subr.mxu0 0.0
    %7414 = vmatpush1.xpose.msra.mxu0 0.0
    %7415 = vmatprep.subr.mxu0 0.0
    %7416 = vmatpush1.xpose.msra.mxu0 0.0
    %7417 = vmatprep.subr.mxu0 0.0
    %7418 = vmatpush1.xpose.msra.mxu0 0.0
    %7419 = vmatprep.subr.mxu0 0.0
    %7420 = vmatpush1.xpose.msra.mxu0 0.0
    %7421 = vmatprep.subr.mxu0 0.0
    %7422 = vmatpush1.xpose.msra.mxu0 0.0
    %7423 = vmatprep.subr.mxu0 0.0
    %7424 = vmatpush1.xpose.msra.mxu0 0.0
    %7425 = vmatprep.subr.mxu0 0.0
    %7426 = vmatpush1.xpose.msra.mxu0 0.0
    %7427 = vmatprep.subr.mxu0 0.0
    %7428 = vmatpush1.xpose.msra.mxu0 0.0
    %7429 = vmatprep.mubr.f32.mxu0 %v4519
    %7430 = vmatmul.mubr.f32.gmra.mrb[0].mxu0 %v4518
    %v7431 = vpop.f32.mrb[0].mxu0
    %v7432 = vadd.f32 %v7362, %v7431
    %v7433 = vpop.f32.mrb[0].mxu0
    %7434 = vdwg.mxu0
    %7435 = vmatprep.subr.mxu0 %v4600
    %7436 = vmatpush1.xpose.msra.mxu0 %v4599
    %7437 = vmatprep.subr.mxu0 %v4679
    %7438 = vmatpush1.xpose.msra.mxu0 %v4678
    %7439 = vmatprep.subr.mxu0 %v4758
    %7440 = vmatpush1.xpose.msra.mxu0 %v4757
    %7441 = vmatprep.subr.mxu0 %v4837
    %7442 = vmatpush1.xpose.msra.mxu0 %v4836
    %7443 = vmatprep.subr.mxu0 %v4916
    %7444 = vmatpush1.xpose.msra.mxu0 %v4915
    %7445 = vmatprep.subr.mxu0 %v4995
    %7446 = vmatpush1.xpose.msra.mxu0 %v4994
    %7447 = vmatprep.subr.mxu0 %v5074
    %7448 = vmatpush1.xpose.msra.mxu0 %v5073
    %7449 = vmatprep.subr.mxu0 %v5153
    %7450 = vmatpush1.xpose.msra.mxu0 %v5152
    %7451 = vmatprep.subr.mxu0 0.0
    %7452 = vmatpush1.xpose.msra.mxu0 0.0
    %7453 = vmatprep.subr.mxu0 0.0
    %7454 = vmatpush1.xpose.msra.mxu0 0.0
    %7455 = vmatprep.subr.mxu0 0.0
    %7456 = vmatpush1.xpose.msra.mxu0 0.0
    %7457 = vmatprep.subr.mxu0 0.0
    %7458 = vmatpush1.xpose.msra.mxu0 0.0
    %7459 = vmatprep.subr.mxu0 0.0
    %7460 = vmatpush1.xpose.msra.mxu0 0.0
    %7461 = vmatprep.subr.mxu0 0.0
    %7462 = vmatpush1.xpose.msra.mxu0 0.0
    %7463 = vmatprep.subr.mxu0 0.0
    %7464 = vmatpush1.xpose.msra.mxu0 0.0
    %7465 = vmatprep.subr.mxu0 0.0
    %7466 = vmatpush1.xpose.msra.mxu0 0.0
    %7467 = vmatprep.subr.mxu0 0.0
    %7468 = vmatpush1.xpose.msra.mxu0 0.0
    %7469 = vmatprep.subr.mxu0 0.0
    %7470 = vmatpush1.xpose.msra.mxu0 0.0
    %7471 = vmatprep.subr.mxu0 0.0
    %7472 = vmatpush1.xpose.msra.mxu0 0.0
    %7473 = vmatprep.subr.mxu0 0.0
    %7474 = vmatpush1.xpose.msra.mxu0 0.0
    %7475 = vmatprep.subr.mxu0 0.0
    %7476 = vmatpush1.xpose.msra.mxu0 0.0
    %7477 = vmatprep.subr.mxu0 0.0
    %7478 = vmatpush1.xpose.msra.mxu0 0.0
    %7479 = vmatprep.subr.mxu0 0.0
    %7480 = vmatpush1.xpose.msra.mxu0 0.0
    %7481 = vmatprep.subr.mxu0 0.0
    %7482 = vmatpush1.xpose.msra.mxu0 0.0
    %7483 = vmatprep.subr.mxu0 0.0
    %7484 = vmatpush1.xpose.msra.mxu0 0.0
    %7485 = vmatprep.subr.mxu0 0.0
    %7486 = vmatpush1.xpose.msra.mxu0 0.0
    %7487 = vmatprep.subr.mxu0 0.0
    %7488 = vmatpush1.xpose.msra.mxu0 0.0
    %7489 = vmatprep.subr.mxu0 0.0
    %7490 = vmatpush1.xpose.msra.mxu0 0.0
    %7491 = vmatprep.subr.mxu0 0.0
    %7492 = vmatpush1.xpose.msra.mxu0 0.0
    %7493 = vmatprep.subr.mxu0 0.0
    %7494 = vmatpush1.xpose.msra.mxu0 0.0
    %7495 = vmatprep.subr.mxu0 0.0
    %7496 = vmatpush1.xpose.msra.mxu0 0.0
    %7497 = vmatprep.subr.mxu0 0.0
    %7498 = vmatpush1.xpose.msra.mxu0 0.0
    %7499 = vmatprep.mubr.f32.mxu0 %v4521
    %7500 = vmatmul.mubr.f32.gmra.mrb[0].mxu0 %v4520
    %v7501 = vpop.f32.mrb[0].mxu0
    %v7502 = vadd.f32 %v7432, %v7501
    %v7503 = vpop.f32.mrb[0].mxu0
    %7504 = vdwg.mxu0
    %7505 = vmatprep.subr.mxu0 %v4602
    %7506 = vmatpush1.xpose.msra.mxu0 %v4601
    %7507 = vmatprep.subr.mxu0 %v4681
    %7508 = vmatpush1.xpose.msra.mxu0 %v4680
    %7509 = vmatprep.subr.mxu0 %v4760
    %7510 = vmatpush1.xpose.msra.mxu0 %v4759
    %7511 = vmatprep.subr.mxu0 %v4839
    %7512 = vmatpush1.xpose.msra.mxu0 %v4838
    %7513 = vmatprep.subr.mxu0 %v4918
    %7514 = vmatpush1.xpose.msra.mxu0 %v4917
    %7515 = vmatprep.subr.mxu0 %v4997
    %7516 = vmatpush1.xpose.msra.mxu0 %v4996
    %7517 = vmatprep.subr.mxu0 %v5076
    %7518 = vmatpush1.xpose.msra.mxu0 %v5075
    %7519 = vmatprep.subr.mxu0 %v5155
    %7520 = vmatpush1.xpose.msra.mxu0 %v5154
    %7521 = vmatprep.subr.mxu0 0.0
    %7522 = vmatpush1.xpose.msra.mxu0 0.0
    %7523 = vmatprep.subr.mxu0 0.0
    %7524 = vmatpush1.xpose.msra.mxu0 0.0
    %7525 = vmatprep.subr.mxu0 0.0
    %7526 = vmatpush1.xpose.msra.mxu0 0.0
    %7527 = vmatprep.subr.mxu0 0.0
    %7528 = vmatpush1.xpose.msra.mxu0 0.0
    %7529 = vmatprep.subr.mxu0 0.0
    %7530 = vmatpush1.xpose.msra.mxu0 0.0
    %7531 = vmatprep.subr.mxu0 0.0
    %7532 = vmatpush1.xpose.msra.mxu0 0.0
    %7533 = vmatprep.subr.mxu0 0.0
    %7534 = vmatpush1.xpose.msra.mxu0 0.0
    %7535 = vmatprep.subr.mxu0 0.0
    %7536 = vmatpush1.xpose.msra.mxu0 0.0
    %7537 = vmatprep.subr.mxu0 0.0
    %7538 = vmatpush1.xpose.msra.mxu0 0.0
    %7539 = vmatprep.subr.mxu0 0.0
    %7540 = vmatpush1.xpose.msra.mxu0 0.0
    %7541 = vmatprep.subr.mxu0 0.0
    %7542 = vmatpush1.xpose.msra.mxu0 0.0
    %7543 = vmatprep.subr.mxu0 0.0
    %7544 = vmatpush1.xpose.msra.mxu0 0.0
    %7545 = vmatprep.subr.mxu0 0.0
    %7546 = vmatpush1.xpose.msra.mxu0 0.0
    %7547 = vmatprep.subr.mxu0 0.0
    %7548 = vmatpush1.xpose.msra.mxu0 0.0
    %7549 = vmatprep.subr.mxu0 0.0
    %7550 = vmatpush1.xpose.msra.mxu0 0.0
    %7551 = vmatprep.subr.mxu0 0.0
    %7552 = vmatpush1.xpose.msra.mxu0 0.0
    %7553 = vmatprep.subr.mxu0 0.0
    %7554 = vmatpush1.xpose.msra.mxu0 0.0
    %7555 = vmatprep.subr.mxu0 0.0
    %7556 = vmatpush1.xpose.msra.mxu0 0.0
    %7557 = vmatprep.subr.mxu0 0.0
    %7558 = vmatpush1.xpose.msra.mxu0 0.0
    %7559 = vmatprep.subr.mxu0 0.0
    %7560 = vmatpush1.xpose.msra.mxu0 0.0
    %7561 = vmatprep.subr.mxu0 0.0
    %7562 = vmatpush1.xpose.msra.mxu0 0.0
    %7563 = vmatprep.subr.mxu0 0.0
    %7564 = vmatpush1.xpose.msra.mxu0 0.0
    %7565 = vmatprep.subr.mxu0 0.0
    %7566 = vmatpush1.xpose.msra.mxu0 0.0
    %7567 = vmatprep.subr.mxu0 0.0
    %7568 = vmatpush1.xpose.msra.mxu0 0.0
    %7569 = vmatprep.mubr.f32.mxu0 %v4523
    %7570 = vmatmul.mubr.f32.gmra.mrb[0].mxu0 %v4522
    %v7571 = vpop.f32.mrb[0].mxu0
    %v7572 = vadd.f32 %v7502, %v7571
    %v7573 = vpop.f32.mrb[0].mxu0
    %7574 = vdwg.mxu0
    %7575 = vmatprep.subr.mxu0 %v4604
    %7576 = vmatpush1.xpose.msra.mxu0 %v4603
    %7577 = vmatprep.subr.mxu0 %v4683
    %7578 = vmatpush1.xpose.msra.mxu0 %v4682
    %7579 = vmatprep.subr.mxu0 %v4762
    %7580 = vmatpush1.xpose.msra.mxu0 %v4761
    %7581 = vmatprep.subr.mxu0 %v4841
    %7582 = vmatpush1.xpose.msra.mxu0 %v4840
    %7583 = vmatprep.subr.mxu0 %v4920
    %7584 = vmatpush1.xpose.msra.mxu0 %v4919
    %7585 = vmatprep.subr.mxu0 %v4999
    %7586 = vmatpush1.xpose.msra.mxu0 %v4998
    %7587 = vmatprep.subr.mxu0 %v5078
    %7588 = vmatpush1.xpose.msra.mxu0 %v5077
    %7589 = vmatprep.subr.mxu0 %v5157
    %7590 = vmatpush1.xpose.msra.mxu0 %v5156
    %7591 = vmatprep.subr.mxu0 0.0
    %7592 = vmatpush1.xpose.msra.mxu0 0.0
    %7593 = vmatprep.subr.mxu0 0.0
    %7594 = vmatpush1.xpose.msra.mxu0 0.0
    %7595 = vmatprep.subr.mxu0 0.0
    %7596 = vmatpush1.xpose.msra.mxu0 0.0
    %7597 = vmatprep.subr.mxu0 0.0
    %7598 = vmatpush1.xpose.msra.mxu0 0.0
    %7599 = vmatprep.subr.mxu0 0.0
    %7600 = vmatpush1.xpose.msra.mxu0 0.0
    %7601 = vmatprep.subr.mxu0 0.0
    %7602 = vmatpush1.xpose.msra.mxu0 0.0
    %7603 = vmatprep.subr.mxu0 0.0
    %7604 = vmatpush1.xpose.msra.mxu0 0.0
    %7605 = vmatprep.subr.mxu0 0.0
    %7606 = vmatpush1.xpose.msra.mxu0 0.0
    %7607 = vmatprep.subr.mxu0 0.0
    %7608 = vmatpush1.xpose.msra.mxu0 0.0
    %7609 = vmatprep.subr.mxu0 0.0
    %7610 = vmatpush1.xpose.msra.mxu0 0.0
    %7611 = vmatprep.subr.mxu0 0.0
    %7612 = vmatpush1.xpose.msra.mxu0 0.0
    %7613 = vmatprep.subr.mxu0 0.0
    %7614 = vmatpush1.xpose.msra.mxu0 0.0
    %7615 = vmatprep.subr.mxu0 0.0
    %7616 = vmatpush1.xpose.msra.mxu0 0.0
    %7617 = vmatprep.subr.mxu0 0.0
    %7618 = vmatpush1.xpose.msra.mxu0 0.0
    %7619 = vmatprep.subr.mxu0 0.0
    %7620 = vmatpush1.xpose.msra.mxu0 0.0
    %7621 = vmatprep.subr.mxu0 0.0
    %7622 = vmatpush1.xpose.msra.mxu0 0.0
    %7623 = vmatprep.subr.mxu0 0.0
    %7624 = vmatpush1.xpose.msra.mxu0 0.0
    %7625 = vmatprep.subr.mxu0 0.0
    %7626 = vmatpush1.xpose.msra.mxu0 0.0
    %7627 = vmatprep.subr.mxu0 0.0
    %7628 = vmatpush1.xpose.msra.mxu0 0.0
    %7629 = vmatprep.subr.mxu0 0.0
    %7630 = vmatpush1.xpose.msra.mxu0 0.0
    %7631 = vmatprep.subr.mxu0 0.0
    %7632 = vmatpush1.xpose.msra.mxu0 0.0
    %7633 = vmatprep.subr.mxu0 0.0
    %7634 = vmatpush1.xpose.msra.mxu0 0.0
    %7635 = vmatprep.subr.mxu0 0.0
    %7636 = vmatpush1.xpose.msra.mxu0 0.0
    %7637 = vmatprep.subr.mxu0 0.0
    %7638 = vmatpush1.xpose.msra.mxu0 0.0
    %7639 = vmatprep.mubr.f32.mxu0 %v4525
    %7640 = vmatmul.mubr.f32.gmra.mrb[0].mxu0 %v4524
    %v7641 = vpop.f32.mrb[0].mxu0
    %v7642 = vadd.f32 %v7572, %v7641
    %v7643 = vpop.f32.mrb[0].mxu0
    %7644 = vdwg.mxu0
    %7645 = vmatprep.subr.mxu0 %v4606
    %7646 = vmatpush1.xpose.msra.mxu0 %v4605
    %7647 = vmatprep.subr.mxu0 %v4685
    %7648 = vmatpush1.xpose.msra.mxu0 %v4684
    %7649 = vmatprep.subr.mxu0 %v4764
    %7650 = vmatpush1.xpose.msra.mxu0 %v4763
    %7651 = vmatprep.subr.mxu0 %v4843
    %7652 = vmatpush1.xpose.msra.mxu0 %v4842
    %7653 = vmatprep.subr.mxu0 %v4922
    %7654 = vmatpush1.xpose.msra.mxu0 %v4921
    %7655 = vmatprep.subr.mxu0 %v5001
    %7656 = vmatpush1.xpose.msra.mxu0 %v5000
    %7657 = vmatprep.subr.mxu0 %v5080
    %7658 = vmatpush1.xpose.msra.mxu0 %v5079
    %7659 = vmatprep.subr.mxu0 %v5159
    %7660 = vmatpush1.xpose.msra.mxu0 %v5158
    %7661 = vmatprep.subr.mxu0 0.0
    %7662 = vmatpush1.xpose.msra.mxu0 0.0
    %7663 = vmatprep.subr.mxu0 0.0
    %7664 = vmatpush1.xpose.msra.mxu0 0.0
    %7665 = vmatprep.subr.mxu0 0.0
    %7666 = vmatpush1.xpose.msra.mxu0 0.0
    %7667 = vmatprep.subr.mxu0 0.0
    %7668 = vmatpush1.xpose.msra.mxu0 0.0
    %7669 = vmatprep.subr.mxu0 0.0
    %7670 = vmatpush1.xpose.msra.mxu0 0.0
    %7671 = vmatprep.subr.mxu0 0.0
    %7672 = vmatpush1.xpose.msra.mxu0 0.0
    %7673 = vmatprep.subr.mxu0 0.0
    %7674 = vmatpush1.xpose.msra.mxu0 0.0
    %7675 = vmatprep.subr.mxu0 0.0
    %7676 = vmatpush1.xpose.msra.mxu0 0.0
    %7677 = vmatprep.subr.mxu0 0.0
    %7678 = vmatpush1.xpose.msra.mxu0 0.0
    %7679 = vmatprep.subr.mxu0 0.0
    %7680 = vmatpush1.xpose.msra.mxu0 0.0
    %7681 = vmatprep.subr.mxu0 0.0
    %7682 = vmatpush1.xpose.msra.mxu0 0.0
    %7683 = vmatprep.subr.mxu0 0.0
    %7684 = vmatpush1.xpose.msra.mxu0 0.0
    %7685 = vmatprep.subr.mxu0 0.0
    %7686 = vmatpush1.xpose.msra.mxu0 0.0
    %7687 = vmatprep.subr.mxu0 0.0
    %7688 = vmatpush1.xpose.msra.mxu0 0.0
    %7689 = vmatprep.subr.mxu0 0.0
    %7690 = vmatpush1.xpose.msra.mxu0 0.0
    %7691 = vmatprep.subr.mxu0 0.0
    %7692 = vmatpush1.xpose.msra.mxu0 0.0
    %7693 = vmatprep.subr.mxu0 0.0
    %7694 = vmatpush1.xpose.msra.mxu0 0.0
    %7695 = vmatprep.subr.mxu0 0.0
    %7696 = vmatpush1.xpose.msra.mxu0 0.0
    %7697 = vmatprep.subr.mxu0 0.0
    %7698 = vmatpush1.xpose.msra.mxu0 0.0
    %7699 = vmatprep.subr.mxu0 0.0
    %7700 = vmatpush1.xpose.msra.mxu0 0.0
    %7701 = vmatprep.subr.mxu0 0.0
    %7702 = vmatpush1.xpose.msra.mxu0 0.0
    %7703 = vmatprep.subr.mxu0 0.0
    %7704 = vmatpush1.xpose.msra.mxu0 0.0
    %7705 = vmatprep.subr.mxu0 0.0
    %7706 = vmatpush1.xpose.msra.mxu0 0.0
    %7707 = vmatprep.subr.mxu0 0.0
    %7708 = vmatpush1.xpose.msra.mxu0 0.0
    %7709 = vmatprep.mubr.f32.mxu0 %v4527
    %7710 = vmatmul.mubr.f32.gmra.mrb[0].mxu0 %v4526
    %v7711 = vpop.f32.mrb[0].mxu0
    %v7712 = vadd.f32 %v7642, %v7711
    %v7713 = vpop.f32.mrb[0].mxu0
    %7714 = vdwg.mxu0
    %7715 = vmatprep.subr.mxu0 %v4608
    %7716 = vmatpush1.xpose.msra.mxu0 %v4607
    %7717 = vmatprep.subr.mxu0 %v4687
    %7718 = vmatpush1.xpose.msra.mxu0 %v4686
    %7719 = vmatprep.subr.mxu0 %v4766
    %7720 = vmatpush1.xpose.msra.mxu0 %v4765
    %7721 = vmatprep.subr.mxu0 %v4845
    %7722 = vmatpush1.xpose.msra.mxu0 %v4844
    %7723 = vmatprep.subr.mxu0 %v4924
    %7724 = vmatpush1.xpose.msra.mxu0 %v4923
    %7725 = vmatprep.subr.mxu0 %v5003
    %7726 = vmatpush1.xpose.msra.mxu0 %v5002
    %7727 = vmatprep.subr.mxu0 %v5082
    %7728 = vmatpush1.xpose.msra.mxu0 %v5081
    %7729 = vmatprep.subr.mxu0 %v5161
    %7730 = vmatpush1.xpose.msra.mxu0 %v5160
    %7731 = vmatprep.subr.mxu0 0.0
    %7732 = vmatpush1.xpose.msra.mxu0 0.0
    %7733 = vmatprep.subr.mxu0 0.0
    %7734 = vmatpush1.xpose.msra.mxu0 0.0
    %7735 = vmatprep.subr.mxu0 0.0
    %7736 = vmatpush1.xpose.msra.mxu0 0.0
    %7737 = vmatprep.subr.mxu0 0.0
    %7738 = vmatpush1.xpose.msra.mxu0 0.0
    %7739 = vmatprep.subr.mxu0 0.0
    %7740 = vmatpush1.xpose.msra.mxu0 0.0
    %7741 = vmatprep.subr.mxu0 0.0
    %7742 = vmatpush1.xpose.msra.mxu0 0.0
    %7743 = vmatprep.subr.mxu0 0.0
    %7744 = vmatpush1.xpose.msra.mxu0 0.0
    %7745 = vmatprep.subr.mxu0 0.0
    %7746 = vmatpush1.xpose.msra.mxu0 0.0
    %7747 = vmatprep.subr.mxu0 0.0
    %7748 = vmatpush1.xpose.msra.mxu0 0.0
    %7749 = vmatprep.subr.mxu0 0.0
    %7750 = vmatpush1.xpose.msra.mxu0 0.0
    %7751 = vmatprep.subr.mxu0 0.0
    %7752 = vmatpush1.xpose.msra.mxu0 0.0
    %7753 = vmatprep.subr.mxu0 0.0
    %7754 = vmatpush1.xpose.msra.mxu0 0.0
    %7755 = vmatprep.subr.mxu0 0.0
    %7756 = vmatpush1.xpose.msra.mxu0 0.0
    %7757 = vmatprep.subr.mxu0 0.0
    %7758 = vmatpush1.xpose.msra.mxu0 0.0
    %7759 = vmatprep.subr.mxu0 0.0
    %7760 = vmatpush1.xpose.msra.mxu0 0.0
    %7761 = vmatprep.subr.mxu0 0.0
    %7762 = vmatpush1.xpose.msra.mxu0 0.0
    %7763 = vmatprep.subr.mxu0 0.0
    %7764 = vmatpush1.xpose.msra.mxu0 0.0
    %7765 = vmatprep.subr.mxu0 0.0
    %7766 = vmatpush1.xpose.msra.mxu0 0.0
    %7767 = vmatprep.subr.mxu0 0.0
    %7768 = vmatpush1.xpose.msra.mxu0 0.0
    %7769 = vmatprep.subr.mxu0 0.0
    %7770 = vmatpush1.xpose.msra.mxu0 0.0
    %7771 = vmatprep.subr.mxu0 0.0
    %7772 = vmatpush1.xpose.msra.mxu0 0.0
    %7773 = vmatprep.subr.mxu0 0.0
    %7774 = vmatpush1.xpose.msra.mxu0 0.0
    %7775 = vmatprep.subr.mxu0 0.0
    %7776 = vmatpush1.xpose.msra.mxu0 0.0
    %7777 = vmatprep.subr.mxu0 0.0
    %7778 = vmatpush1.xpose.msra.mxu0 0.0
    %7779 = vmatprep.mubr.f32.mxu0 %v4529
    %7780 = vmatmul.mubr.f32.gmra.mrb[0].mxu0 %v4528
    %v7781 = vpop.f32.mrb[0].mxu0
    %v7782 = vadd.f32 %v7712, %v7781
    %v7783 = vpop.f32.mrb[0].mxu0
    %7784 = vdwg.mxu0
    %7785 = vmatprep.subr.mxu0 %v4610
    %7786 = vmatpush1.xpose.msra.mxu0 %v4609
    %7787 = vmatprep.subr.mxu0 %v4689
    %7788 = vmatpush1.xpose.msra.mxu0 %v4688
    %7789 = vmatprep.subr.mxu0 %v4768
    %7790 = vmatpush1.xpose.msra.mxu0 %v4767
    %7791 = vmatprep.subr.mxu0 %v4847
    %7792 = vmatpush1.xpose.msra.mxu0 %v4846
    %7793 = vmatprep.subr.mxu0 %v4926
    %7794 = vmatpush1.xpose.msra.mxu0 %v4925
    %7795 = vmatprep.subr.mxu0 %v5005
    %7796 = vmatpush1.xpose.msra.mxu0 %v5004
    %7797 = vmatprep.subr.mxu0 %v5084
    %7798 = vmatpush1.xpose.msra.mxu0 %v5083
    %7799 = vmatprep.subr.mxu0 %v5163
    %7800 = vmatpush1.xpose.msra.mxu0 %v5162
    %7801 = vmatprep.subr.mxu0 0.0
    %7802 = vmatpush1.xpose.msra.mxu0 0.0
    %7803 = vmatprep.subr.mxu0 0.0
    %7804 = vmatpush1.xpose.msra.mxu0 0.0
    %7805 = vmatprep.subr.mxu0 0.0
    %7806 = vmatpush1.xpose.msra.mxu0 0.0
    %7807 = vmatprep.subr.mxu0 0.0
    %7808 = vmatpush1.xpose.msra.mxu0 0.0
    %7809 = vmatprep.subr.mxu0 0.0
    %7810 = vmatpush1.xpose.msra.mxu0 0.0
    %7811 = vmatprep.subr.mxu0 0.0
    %7812 = vmatpush1.xpose.msra.mxu0 0.0
    %7813 = vmatprep.subr.mxu0 0.0
    %7814 = vmatpush1.xpose.msra.mxu0 0.0
    %7815 = vmatprep.subr.mxu0 0.0
    %7816 = vmatpush1.xpose.msra.mxu0 0.0
    %7817 = vmatprep.subr.mxu0 0.0
    %7818 = vmatpush1.xpose.msra.mxu0 0.0
    %7819 = vmatprep.subr.mxu0 0.0
    %7820 = vmatpush1.xpose.msra.mxu0 0.0
    %7821 = vmatprep.subr.mxu0 0.0
    %7822 = vmatpush1.xpose.msra.mxu0 0.0
    %7823 = vmatprep.subr.mxu0 0.0
    %7824 = vmatpush1.xpose.msra.mxu0 0.0
    %7825 = vmatprep.subr.mxu0 0.0
    %7826 = vmatpush1.xpose.msra.mxu0 0.0
    %7827 = vmatprep.subr.mxu0 0.0
    %7828 = vmatpush1.xpose.msra.mxu0 0.0
    %7829 = vmatprep.subr.mxu0 0.0
    %7830 = vmatpush1.xpose.msra.mxu0 0.0
    %7831 = vmatprep.subr.mxu0 0.0
    %7832 = vmatpush1.xpose.msra.mxu0 0.0
    %7833 = vmatprep.subr.mxu0 0.0
    %7834 = vmatpush1.xpose.msra.mxu0 0.0
    %7835 = vmatprep.subr.mxu0 0.0
    %7836 = vmatpush1.xpose.msra.mxu0 0.0
    %7837 = vmatprep.subr.mxu0 0.0
    %7838 = vmatpush1.xpose.msra.mxu0 0.0
    %7839 = vmatprep.subr.mxu0 0.0
    %7840 = vmatpush1.xpose.msra.mxu0 0.0
    %7841 = vmatprep.subr.mxu0 0.0
    %7842 = vmatpush1.xpose.msra.mxu0 0.0
    %7843 = vmatprep.subr.mxu0 0.0
    %7844 = vmatpush1.xpose.msra.mxu0 0.0
    %7845 = vmatprep.subr.mxu0 0.0
    %7846 = vmatpush1.xpose.msra.mxu0 0.0
    %7847 = vmatprep.subr.mxu0 0.0
    %7848 = vmatpush1.xpose.msra.mxu0 0.0
    %7849 = vmatprep.mubr.f32.mxu0 %v4531
    %7850 = vmatmul.mubr.f32.gmra.mrb[0].mxu0 %v4530
    %v7851 = vpop.f32.mrb[0].mxu0
    %v7852 = vadd.f32 %v7782, %v7851
    %v7853 = vpop.f32.mrb[0].mxu0
    %7854 = vdwg.mxu0
    %7855 = vmatprep.subr.mxu0 %v4612
    %7856 = vmatpush1.xpose.msra.mxu0 %v4611
    %7857 = vmatprep.subr.mxu0 %v4691
    %7858 = vmatpush1.xpose.msra.mxu0 %v4690
    %7859 = vmatprep.subr.mxu0 %v4770
    %7860 = vmatpush1.xpose.msra.mxu0 %v4769
    %7861 = vmatprep.subr.mxu0 %v4849
    %7862 = vmatpush1.xpose.msra.mxu0 %v4848
    %7863 = vmatprep.subr.mxu0 %v4928
    %7864 = vmatpush1.xpose.msra.mxu0 %v4927
    %7865 = vmatprep.subr.mxu0 %v5007
    %7866 = vmatpush1.xpose.msra.mxu0 %v5006
    %7867 = vmatprep.subr.mxu0 %v5086
    %7868 = vmatpush1.xpose.msra.mxu0 %v5085
    %7869 = vmatprep.subr.mxu0 %v5165
    %7870 = vmatpush1.xpose.msra.mxu0 %v5164
    %7871 = vmatprep.subr.mxu0 0.0
    %7872 = vmatpush1.xpose.msra.mxu0 0.0
    %7873 = vmatprep.subr.mxu0 0.0
    %7874 = vmatpush1.xpose.msra.mxu0 0.0
    %7875 = vmatprep.subr.mxu0 0.0
    %7876 = vmatpush1.xpose.msra.mxu0 0.0
    %7877 = vmatprep.subr.mxu0 0.0
    %7878 = vmatpush1.xpose.msra.mxu0 0.0
    %7879 = vmatprep.subr.mxu0 0.0
    %7880 = vmatpush1.xpose.msra.mxu0 0.0
    %7881 = vmatprep.subr.mxu0 0.0
    %7882 = vmatpush1.xpose.msra.mxu0 0.0
    %7883 = vmatprep.subr.mxu0 0.0
    %7884 = vmatpush1.xpose.msra.mxu0 0.0
    %7885 = vmatprep.subr.mxu0 0.0
    %7886 = vmatpush1.xpose.msra.mxu0 0.0
    %7887 = vmatprep.subr.mxu0 0.0
    %7888 = vmatpush1.xpose.msra.mxu0 0.0
    %7889 = vmatprep.subr.mxu0 0.0
    %7890 = vmatpush1.xpose.msra.mxu0 0.0
    %7891 = vmatprep.subr.mxu0 0.0
    %7892 = vmatpush1.xpose.msra.mxu0 0.0
    %7893 = vmatprep.subr.mxu0 0.0
    %7894 = vmatpush1.xpose.msra.mxu0 0.0
    %7895 = vmatprep.subr.mxu0 0.0
    %7896 = vmatpush1.xpose.msra.mxu0 0.0
    %7897 = vmatprep.subr.mxu0 0.0
    %7898 = vmatpush1.xpose.msra.mxu0 0.0
    %7899 = vmatprep.subr.mxu0 0.0
    %7900 = vmatpush1.xpose.msra.mxu0 0.0
    %7901 = vmatprep.subr.mxu0 0.0
    %7902 = vmatpush1.xpose.msra.mxu0 0.0
    %7903 = vmatprep.subr.mxu0 0.0
    %7904 = vmatpush1.xpose.msra.mxu0 0.0
    %7905 = vmatprep.subr.mxu0 0.0
    %7906 = vmatpush1.xpose.msra.mxu0 0.0
    %7907 = vmatprep.subr.mxu0 0.0
    %7908 = vmatpush1.xpose.msra.mxu0 0.0
    %7909 = vmatprep.subr.mxu0 0.0
    %7910 = vmatpush1.xpose.msra.mxu0 0.0
    %7911 = vmatprep.subr.mxu0 0.0
    %7912 = vmatpush1.xpose.msra.mxu0 0.0
    %7913 = vmatprep.subr.mxu0 0.0
    %7914 = vmatpush1.xpose.msra.mxu0 0.0
    %7915 = vmatprep.subr.mxu0 0.0
    %7916 = vmatpush1.xpose.msra.mxu0 0.0
    %7917 = vmatprep.subr.mxu0 0.0
    %7918 = vmatpush1.xpose.msra.mxu0 0.0
    %7919 = vmatprep.mubr.f32.mxu0 %v4533
    %7920 = vmatmul.mubr.f32.gmra.mrb[0].mxu0 %v4532
    %v7921 = vpop.f32.mrb[0].mxu0
    %v7922 = vadd.f32 %v7852, %v7921
    %v7923 = vpop.f32.mrb[0].mxu0
    %7924 = vdwg.mxu0
    %7925 = vmatprep.subr.mxu0 0.0
    %7926 = vmatpush1.xpose.msra.mxu0 %v5172
    %7927 = vmatprep.subr.mxu0 0.0
    %7928 = vmatpush1.xpose.msra.mxu0 %v5175
    %7929 = vmatprep.subr.mxu0 0.0
    %7930 = vmatpush1.xpose.msra.mxu0 %v5178
    %7931 = vmatprep.subr.mxu0 0.0
    %7932 = vmatpush1.xpose.msra.mxu0 %v5181
    %7933 = vmatprep.subr.mxu0 0.0
    %7934 = vmatpush1.xpose.msra.mxu0 %v5184
    %7935 = vmatprep.subr.mxu0 0.0
    %7936 = vmatpush1.xpose.msra.mxu0 %v5187
    %7937 = vmatprep.subr.mxu0 0.0
    %7938 = vmatpush1.xpose.msra.mxu0 %v5190
    %7939 = vmatprep.subr.mxu0 0.0
    %7940 = vmatpush1.xpose.msra.mxu0 %v5193
    %7941 = vmatprep.subr.mxu0 0.0
    %7942 = vmatpush1.xpose.msra.mxu0 0.0
    %7943 = vmatprep.subr.mxu0 0.0
    %7944 = vmatpush1.xpose.msra.mxu0 0.0
    %7945 = vmatprep.subr.mxu0 0.0
    %7946 = vmatpush1.xpose.msra.mxu0 0.0
    %7947 = vmatprep.subr.mxu0 0.0
    %7948 = vmatpush1.xpose.msra.mxu0 0.0
    %7949 = vmatprep.subr.mxu0 0.0
    %7950 = vmatpush1.xpose.msra.mxu0 0.0
    %7951 = vmatprep.subr.mxu0 0.0
    %7952 = vmatpush1.xpose.msra.mxu0 0.0
    %7953 = vmatprep.subr.mxu0 0.0
    %7954 = vmatpush1.xpose.msra.mxu0 0.0
    %7955 = vmatprep.subr.mxu0 0.0
    %7956 = vmatpush1.xpose.msra.mxu0 0.0
    %7957 = vmatprep.subr.mxu0 0.0
    %7958 = vmatpush1.xpose.msra.mxu0 0.0
    %7959 = vmatprep.subr.mxu0 0.0
    %7960 = vmatpush1.xpose.msra.mxu0 0.0
    %7961 = vmatprep.subr.mxu0 0.0
    %7962 = vmatpush1.xpose.msra.mxu0 0.0
    %7963 = vmatprep.subr.mxu0 0.0
    %7964 = vmatpush1.xpose.msra.mxu0 0.0
    %7965 = vmatprep.subr.mxu0 0.0
    %7966 = vmatpush1.xpose.msra.mxu0 0.0
    %7967 = vmatprep.subr.mxu0 0.0
    %7968 = vmatpush1.xpose.msra.mxu0 0.0
    %7969 = vmatprep.subr.mxu0 0.0
    %7970 = vmatpush1.xpose.msra.mxu0 0.0
    %7971 = vmatprep.subr.mxu0 0.0
    %7972 = vmatpush1.xpose.msra.mxu0 0.0
    %7973 = vmatprep.subr.mxu0 0.0
    %7974 = vmatpush1.xpose.msra.mxu0 0.0
    %7975 = vmatprep.subr.mxu0 0.0
    %7976 = vmatpush1.xpose.msra.mxu0 0.0
    %7977 = vmatprep.subr.mxu0 0.0
    %7978 = vmatpush1.xpose.msra.mxu0 0.0
    %7979 = vmatprep.subr.mxu0 0.0
    %7980 = vmatpush1.xpose.msra.mxu0 0.0
    %7981 = vmatprep.subr.mxu0 0.0
    %7982 = vmatpush1.xpose.msra.mxu0 0.0
    %7983 = vmatprep.subr.mxu0 0.0
    %7984 = vmatpush1.xpose.msra.mxu0 0.0
    %7985 = vmatprep.subr.mxu0 0.0
    %7986 = vmatpush1.xpose.msra.mxu0 0.0
    %7987 = vmatprep.subr.mxu0 0.0
    %7988 = vmatpush1.xpose.msra.mxu0 0.0
    %7989 = vmatprep.mubr.f32.mxu0 0.0
    %7990 = vmatmul.mubr.f32.gmra.mrb[0].mxu0 %v5169
    %v7991 = vpop.f32.mrb[0].mxu0
    %v7992 = vadd.f32 %v7922, %v7991
    %v7993 = vpop.f32.mrb[0].mxu0
    %7994 = vdwg.mxu0
    %v7995 = vadd.f32 %v329, %v7992
    %v7996 = vsel %vm313, %v7995, 0.0
    %7997 = vadd.xlane.f32.xlu0 %v7996
    %v7998 = vpop.xlane.xlu0 %7997
    %v7999 = vmul.f32 %v7998, %v317
    %v8000 = vsub.f32 %v7995, %v7999
    %v8001 = vmul.f32 %v8000, %v8000
    %v8002 = vsel %vm313, %v8001, 0.0
    %8003 = vadd.xlane.f32.xlu0 %v8002
    %v8004 = vpop.xlane.xlu0 %8003
    %v8005 = vmul.f32 %v8004, %v317
    %v8006 = vadd.f32 %v8005, 1e-05
    %v8007 = vrsqrt.pop %v8006
    %v8008 = vmul.f32 %v8000, %v8007
    %v8009 = vmul.f32 %v8008, %v139
    %v8010 = vadd.f32 %v8009, %v140
    %v8011 = vld [vmem:[#allocation13] sm:$0xff]
    %v8012 = vld [vmem:[#allocation13 + $0x8] sm:$0x3]
    %v8014 = vsel %vm150, %v8010, 0
    %v8017 = vsel %vm150, %v8011, 0
    %v8020 = vsel %vm150, %v8012, 0
    %8022 = vmatprep.subr.mxu0 0.0
    %8023 = vmatpush1.xpose.msra.mxu0 %v8017
    %8024 = vmatprep.subr.mxu0 0.0
    %8025 = vmatpush1.xpose.msra.mxu0 %v8020
    %8026 = vmatprep.subr.mxu0 0.0
    %8027 = vmatpush1.xpose.msra.mxu0 0.0
    %8028 = vmatprep.subr.mxu0 0.0
    %8029 = vmatpush1.xpose.msra.mxu0 0.0
    %8030 = vmatprep.subr.mxu0 0.0
    %8031 = vmatpush1.xpose.msra.mxu0 0.0
    %8032 = vmatprep.subr.mxu0 0.0
    %8033 = vmatpush1.xpose.msra.mxu0 0.0
    %8034 = vmatprep.subr.mxu0 0.0
    %8035 = vmatpush1.xpose.msra.mxu0 0.0
    %8036 = vmatprep.subr.mxu0 0.0
    %8037 = vmatpush1.xpose.msra.mxu0 0.0
    %8038 = vmatprep.subr.mxu0 0.0
    %8039 = vmatpush1.xpose.msra.mxu0 0.0
    %8040 = vmatprep.subr.mxu0 0.0
    %8041 = vmatpush1.xpose.msra.mxu0 0.0
    %8042 = vmatprep.subr.mxu0 0.0
    %8043 = vmatpush1.xpose.msra.mxu0 0.0
    %8044 = vmatprep.subr.mxu0 0.0
    %8045 = vmatpush1.xpose.msra.mxu0 0.0
    %8046 = vmatprep.subr.mxu0 0.0
    %8047 = vmatpush1.xpose.msra.mxu0 0.0
    %8048 = vmatprep.subr.mxu0 0.0
    %8049 = vmatpush1.xpose.msra.mxu0 0.0
    %8050 = vmatprep.subr.mxu0 0.0
    %8051 = vmatpush1.xpose.msra.mxu0 0.0
    %8052 = vmatprep.subr.mxu0 0.0
    %8053 = vmatpush1.xpose.msra.mxu0 0.0
    %8054 = vmatprep.subr.mxu0 0.0
    %8055 = vmatpush1.xpose.msra.mxu0 0.0
    %8056 = vmatprep.subr.mxu0 0.0
    %8057 = vmatpush1.xpose.msra.mxu0 0.0
    %8058 = vmatprep.subr.mxu0 0.0
    %8059 = vmatpush1.xpose.msra.mxu0 0.0
    %8060 = vmatprep.subr.mxu0 0.0
    %8061 = vmatpush1.xpose.msra.mxu0 0.0
    %8062 = vmatprep.subr.mxu0 0.0
    %8063 = vmatpush1.xpose.msra.mxu0 0.0
    %8064 = vmatprep.subr.mxu0 0.0
    %8065 = vmatpush1.xpose.msra.mxu0 0.0
    %8066 = vmatprep.subr.mxu0 0.0
    %8067 = vmatpush1.xpose.msra.mxu0 0.0
    %8068 = vmatprep.subr.mxu0 0.0
    %8069 = vmatpush1.xpose.msra.mxu0 0.0
    %8070 = vmatprep.subr.mxu0 0.0
    %8071 = vmatpush1.xpose.msra.mxu0 0.0
    %8072 = vmatprep.subr.mxu0 0.0
    %8073 = vmatpush1.xpose.msra.mxu0 0.0
    %8074 = vmatprep.subr.mxu0 0.0
    %8075 = vmatpush1.xpose.msra.mxu0 0.0
    %8076 = vmatprep.subr.mxu0 0.0
    %8077 = vmatpush1.xpose.msra.mxu0 0.0
    %8078 = vmatprep.subr.mxu0 0.0
    %8079 = vmatpush1.xpose.msra.mxu0 0.0
    %8080 = vmatprep.subr.mxu0 0.0
    %8081 = vmatpush1.xpose.msra.mxu0 0.0
    %8082 = vmatprep.subr.mxu0 0.0
    %8083 = vmatpush1.xpose.msra.mxu0 0.0
    %8084 = vmatprep.subr.mxu0 0.0
    %8085 = vmatpush1.xpose.msra.mxu0 0.0
    %8086 = vmatprep.mubr.f32.mxu0 0.0
    %8087 = vmatmul.mubr.f32.gmra.mrb[0].mxu0 %v8014
    %v8088 = vpop.f32.mrb[0].mxu0
    %v8089 = vadd.f32 %v141, %v8088
    %v8090 = vpop.f32.mrb[0].mxu0
    %8091 = vdwg.mxu0
    %vm8092 = vcmask 73728
    %8093 = vst.msk [vmem:[#allocation16] sm:$0x1] %vm8092, %v8089
    // Predicated region
    $region66: #{tpu_custom_call.1} parent=1 // pred_check
      _
    $region67: #{tpu_custom_call.1} parent=1 // pred_check_branch
      %8095 = sbr.rel (0) target = $region69
    $region68: #{tpu_custom_call.1} parent=1 // pred_region
      %s8097 = ssub.s32 16, 16
      %8098 = vsyncadd [#allocation4], %s8097
      %s8100 = sshll.u32 [#allocation16], 4
      %s8101 = int_to_ptr.vmem [resolvable:$true] %s8100
      %8103 = dma.vmem_to_hbm [thread:$0]  %s8101, 16, %s8, [#allocation4]
    $region69: #{tpu_custom_call.1} parent=1 // pred_fallthru
      _
    // Predicated region
    $region70: #{tpu_custom_call.1} parent=1 // pred_check
      _
    $region71: #{tpu_custom_call.1} parent=1 // pred_check_branch
      %8105 = sbr.rel (0) target = $region73
    $region72: #{tpu_custom_call.1} parent=1 // pred_region
      %8106 = dma.done [#allocation4], 16
    $region73: #{tpu_custom_call.1} parent=1 // pred_fallthru
      _
    %8107 = vsyncpa [#allocation3], 1
    %8108 = vsyncpa [#allocation6], 1
    %8109 = vsyncpa [#allocation9], 1
    %8110 = vsyncpa [#allocation12], 1
    %8111 = vsyncpa [#allocation15], 1
    %8112 = vsyncpa [#allocation4], 1

</llo_original>
